<compile_context>
chip_gen: v7x
topology: tpu7x:2x2x1
jax: 0.10.0
libtpu: 0.0.40
codegen_flags: <defaults>
</compile_context>

<pallas_src>
import jax
import jax.numpy as jnp
from jax import lax
from jax.experimental import pallas as pl
from jax.experimental.pallas import tpu as pltpu


def _fused_conv_block_kernel(x_ref, w1_ref, b1_ref, w2_ref, b2_ref, o_ref,
                             xpad_ref, mid_ref):
    """(conv3x3 + folded-BN bias + ReLU) x 2 for one batch element.

    x_ref   : (1, H, W, Cin)         bf16 unpadded input tile
    w1_ref  : (3, 3, Cin, Cmid)      bf16, BN1 scale folded in
    b1_ref  : (1, Cmid)              f32 folded bias (conv1 bias + BN1 shift)
    w2_ref  : (3, 3, Cmid, Cout)     bf16, BN2 scale folded in
    b2_ref  : (1, Cout)              f32 folded bias
    o_ref   : (1, H, W, Cout)        f32 output tile
    xpad_ref: VMEM (H+2, W+2, Cin)   bf16 scratch: zero-padded input
    mid_ref : VMEM (H+2, W+2, Cmid)  bf16 scratch: zero-padded intermediate
    """
    H = o_ref.shape[1]
    W = o_ref.shape[2]
    cmid = w1_ref.shape[3]
    cout = o_ref.shape[3]

    def conv3x3(src_ref, w_ref, n_out):
        # Nine taps as 2-D MXU contractions with a single f32 accumulator.
        # The three dx-shifted slabs are loaded once each and reused across dy
        # (the dx shift is the sublane-relayout; do it 3x, not 9x).
        acc = jnp.zeros((H * W, n_out), jnp.float32)
        for dx in range(3):
            col = src_ref[:, dx:dx + W, :]                # (H+2, W, C_in)
            for dy in range(3):
                tap = col[dy:dy + H].reshape(H * W, -1)   # (H*W, C_in)
                acc = acc + jnp.dot(tap, w_ref[dy, dx],
                                    preferred_element_type=jnp.float32)
        return acc

    # ---- in-kernel zero padding of the input (no jnp.pad HBM pass) ----
    xpad_ref[...] = jnp.zeros_like(xpad_ref)
    xpad_ref[1:H + 1, 1:W + 1, :] = x_ref[0]

    # ---- conv1 + bias + ReLU -> bf16 intermediate kept in VMEM ----
    mid_ref[...] = jnp.zeros_like(mid_ref)
    y1 = jnp.maximum(conv3x3(xpad_ref, w1_ref, cmid) + b1_ref[0], 0.0)
    mid_ref[1:H + 1, 1:W + 1, :] = y1.reshape(H, W, cmid).astype(mid_ref.dtype)

    # ---- conv2 + bias + ReLU -> output ----
    y2 = jnp.maximum(conv3x3(mid_ref, w2_ref, cout) + b2_ref[0], 0.0)
    o_ref[0] = y2.reshape(H, W, cout).astype(o_ref.dtype)


def fused_conv_block(x_nhwc, w1, b1, w2, b2):
    """x_nhwc: (N, H, W, Cin) bf16 -> (N, H, W, Cout) f32. padding=1 (SAME)."""
    N, H, W, Cin = x_nhwc.shape
    Cmid = w1.shape[-1]
    Cout = w2.shape[-1]

    # TODO(synk): for production H/W/C, tile the grid over (N, H-row tiles[,
    # Cout tiles]) with halo'd input blocks and an explicit vmem_limit_bytes so
    # the working set fits v7x's 64 MiB VMEM and the pipeline has enough steps.
    # TODO(synk): for tiny channel counts (Cin=4/Cout=8) the MXU/lanes are
    # underutilized; wide real layers (C >= 128) are naturally lane-dense.
    grid_spec = pltpu.PrefetchScalarGridSpec(
        num_scalar_prefetch=0,
        grid=(N,),
        in_specs=[
            pl.BlockSpec((1, H, W, Cin), lambda n: (n, 0, 0, 0)),
            pl.BlockSpec((3, 3, Cin, Cmid), lambda n: (0, 0, 0, 0)),
            pl.BlockSpec((1, Cmid), lambda n: (0, 0)),
            pl.BlockSpec((3, 3, Cmid, Cout), lambda n: (0, 0, 0, 0)),
            pl.BlockSpec((1, Cout), lambda n: (0, 0)),
        ],
        out_specs=pl.BlockSpec((1, H, W, Cout), lambda n: (n, 0, 0, 0)),
        scratch_shapes=[
            pltpu.VMEM((H + 2, W + 2, Cin), jnp.bfloat16),
            pltpu.VMEM((H + 2, W + 2, Cmid), jnp.bfloat16),
        ],
    )

    return pl.pallas_call(
        _fused_conv_block_kernel,
        out_shape=jax.ShapeDtypeStruct((N, H, W, Cout), jnp.float32),
        grid_spec=grid_spec,
        compiler_params=pltpu.CompilerParams(
            dimension_semantics=("parallel",)),
    )(x_nhwc, w1, b1, w2, b2)


def fold_bn_into_conv(w_hwio, conv_bias, gamma, beta, running_mean,
                      running_var, eps=1e-5):
    """Fold eval-mode BatchNorm into the conv weights and bias.

    y = scale*(conv(x, w) + b - mean) + beta
      = conv(x, w*scale) + (scale*(b - mean) + beta)
    """
    scale = gamma / jnp.sqrt(running_var + eps)        # (Cout,)
    w_folded = w_hwio * scale                          # broadcast over Cout
    b_folded = scale * (conv_bias - running_mean) + beta
    return w_folded, b_folded


def init_conv_bn(key, cin, cout):
    """Deterministic synthetic parameters for Conv2d(3x3) + BatchNorm2d."""
    k1, k2, k3, k4, k5, k6 = jax.random.split(key, 6)
    fan_in = cin * 9
    bound = 1.0 / jnp.sqrt(fan_in)
    w = jax.random.uniform(k1, (3, 3, cin, cout), jnp.float32, -bound, bound)  # HWIO
    b = jax.random.uniform(k2, (cout,), jnp.float32, -bound, bound)
    gamma = 1.0 + 0.1 * jax.random.normal(k3, (cout,), jnp.float32)
    beta = 0.1 * jax.random.normal(k4, (cout,), jnp.float32)
    rmean = 0.1 * jax.random.normal(k5, (cout,), jnp.float32)
    rvar = 1.0 + 0.1 * jnp.abs(jax.random.normal(k6, (cout,), jnp.float32))
    return w, b, gamma, beta, rmean, rvar


@jax.jit
def conv_block_forward(x_nchw, params1, params2):
    """Equivalent of ConvBlock.forward (eval-mode BN). Input/output NCHW."""
    w1, b1, g1, be1, m1, v1 = params1
    w2, b2, g2, be2, m2, v2 = params2
    w1f, bb1 = fold_bn_into_conv(w1, b1, g1, be1, m1, v1)
    w2f, bb2 = fold_bn_into_conv(w2, b2, g2, be2, m2, v2)
    Cmid = w1f.shape[-1]
    Cout = w2f.shape[-1]

    # NCHW -> NHWC transpose fused with the bf16 cast (one XLA pass).
    # TODO(synk): in a real pipeline keep activations NHWC end-to-end so these
    # interface transposes (extra HBM passes) disappear.
    x = jnp.transpose(x_nchw, (0, 2, 3, 1)).astype(jnp.bfloat16)

    y = fused_conv_block(
        x,
        w1f.astype(jnp.bfloat16), bb1.reshape(1, Cmid).astype(jnp.float32),
        w2f.astype(jnp.bfloat16), bb2.reshape(1, Cout).astype(jnp.float32))

    return jnp.transpose(y, (0, 3, 1, 2))  # NHWC -> NCHW


def _reference(x_nchw, params1, params2):
    """Pure-JAX f32 reference (true module semantics, eval-mode BN)."""
    def layer(x, params):
        w, b, g, be, m, v = params
        scale = g / jnp.sqrt(v + 1e-5)
        bias = scale * (b - m) + be
        y = lax.conv_general_dilated(
            x, w, window_strides=(1, 1), padding="SAME",
            dimension_numbers=("NHWC", "HWIO", "NHWC"))
        return jnp.maximum(y * scale + bias, 0.0)

    x = jnp.transpose(x_nchw, (0, 2, 3, 1))
    x = layer(x, params1)
    x = layer(x, params2)
    return jnp.transpose(x, (0, 3, 1, 2))


if __name__ == "__main__":
    key = jax.random.PRNGKey(0)
    kx, kp1, kp2 = jax.random.split(key, 3)

    N, Cin, Cout, H, W = 2, 4, 8, 16, 16
    x = jax.random.normal(kx, (N, Cin, H, W), jnp.float32)  # NCHW, like PyTorch

    params1 = init_conv_bn(kp1, Cin, Cout)
    params2 = init_conv_bn(kp2, Cout, Cout)

    out = jax.block_until_ready(conv_block_forward(x, params1, params2))
    ref = jax.block_until_ready(_reference(x, params1, params2))

    assert out.shape == (N, Cout, H, W)
    # bf16 operands with f32 accumulation -> loosened tolerance vs f32 reference.
    assert jnp.allclose(out, ref, atol=5e-2, rtol=5e-2), (
        "mismatch vs reference: max abs err = "
        f"{jnp.max(jnp.abs(out - ref)):.4f}")

    print("KERNEL_OK")
</pallas_src>

<mosaic_0001>
module attributes {stable_mosaic.version = 11 : i64} {
  func.func @_fused_conv_block_kernel(%arg0: i32, %arg1: memref<1x16x16x4xbf16, #tpu.memory_space<vmem>>, %arg2: memref<3x3x4x8xbf16, #tpu.memory_space<vmem>>, %arg3: memref<1x8xf32, #tpu.memory_space<vmem>>, %arg4: memref<3x3x8x8xbf16, #tpu.memory_space<vmem>>, %arg5: memref<1x8xf32, #tpu.memory_space<vmem>>, %arg6: memref<1x16x16x8xf32, #tpu.memory_space<vmem>>, %arg7: memref<18x18x4xbf16, #tpu.memory_space<vmem>>, %arg8: memref<18x18x8xbf16, #tpu.memory_space<vmem>>) attributes {dimension_semantics = [#tpu.dimension_semantics<parallel>], iteration_bounds = array<i64: 2>, scalar_prefetch = 0 : i64, scratch_operands = 2 : i64, tpu.core_type = #tpu.core_type<tc>, window_params = [{transform_indices = @transform_0, window_bounds = array<i64: 1, 16, 16, 4>}, {pipeline_mode = #tpu.pipeline_mode<synchronous>, transform_indices = @transform_1, window_bounds = array<i64: 3, 3, 4, 8>}, {pipeline_mode = #tpu.pipeline_mode<synchronous>, transform_indices = @transform_2, window_bounds = array<i64: 1, 8>}, {pipeline_mode = #tpu.pipeline_mode<synchronous>, transform_indices = @transform_3, window_bounds = array<i64: 3, 3, 8, 8>}, {pipeline_mode = #tpu.pipeline_mode<synchronous>, transform_indices = @transform_4, window_bounds = array<i64: 1, 8>}, {transform_indices = @transform_5, window_bounds = array<i64: 1, 16, 16, 8>}]} {
    %cst = arith.constant 0.000000e+00 : bf16
    %0 = vector.broadcast %cst : bf16 to vector<18x18x4xbf16>
    %c0 = arith.constant 0 : index
    %c0_0 = arith.constant 0 : index
    %c0_1 = arith.constant 0 : index
    %1 = vector.load %arg7[%c0, %c0_0, %c0_1] : memref<18x18x4xbf16, #tpu.memory_space<vmem>>, vector<18x18x4xbf16>
    tpu.vector_store %arg7[%c0, %c0_0, %c0_1], %0 {strides = array<i32>} : memref<18x18x4xbf16, #tpu.memory_space<vmem>>, vector<18x18x4xbf16>,
    %c0_2 = arith.constant 0 : index
    %c0_3 = arith.constant 0 : index
    %c0_4 = arith.constant 0 : index
    %c0_5 = arith.constant 0 : index
    %2 = vector.load %arg1[%c0_2, %c0_3, %c0_4, %c0_5] : memref<1x16x16x4xbf16, #tpu.memory_space<vmem>>, vector<1x16x16x4xbf16>
    %3 = vector.shape_cast %2 : vector<1x16x16x4xbf16> to vector<16x16x4xbf16>
    %c1 = arith.constant 1 : index
    %c1_6 = arith.constant 1 : index
    %c0_7 = arith.constant 0 : index
    %4 = vector.load %arg7[%c1, %c1_6, %c0_7] : memref<18x18x4xbf16, #tpu.memory_space<vmem>>, vector<16x16x4xbf16>
    tpu.vector_store %arg7[%c1, %c1_6, %c0_7], %3 {strides = array<i32>} : memref<18x18x4xbf16, #tpu.memory_space<vmem>>, vector<16x16x4xbf16>,
    %cst_8 = arith.constant 0.000000e+00 : bf16
    %5 = vector.broadcast %cst_8 : bf16 to vector<18x18x8xbf16>
    %c0_9 = arith.constant 0 : index
    %c0_10 = arith.constant 0 : index
    %c0_11 = arith.constant 0 : index
    %6 = vector.load %arg8[%c0_9, %c0_10, %c0_11] : memref<18x18x8xbf16, #tpu.memory_space<vmem>>, vector<18x18x8xbf16>
    tpu.vector_store %arg8[%c0_9, %c0_10, %c0_11], %5 {strides = array<i32>} : memref<18x18x8xbf16, #tpu.memory_space<vmem>>, vector<18x18x8xbf16>,
    %cst_12 = arith.constant 0.000000e+00 : f32
    %7 = vector.broadcast %cst_12 : f32 to vector<256x8xf32>
    %c0_13 = arith.constant 0 : index
    %c0_14 = arith.constant 0 : index
    %c0_15 = arith.constant 0 : index
    %8 = vector.load %arg7[%c0_13, %c0_14, %c0_15] : memref<18x18x4xbf16, #tpu.memory_space<vmem>>, vector<18x16x4xbf16>
    %9 = vector.extract_strided_slice %8 {offsets = [0, 0, 0], sizes = [16, 16, 4], strides = [1, 1, 1]} : vector<18x16x4xbf16> to vector<16x16x4xbf16>
    %10 = vector.shape_cast %9 : vector<16x16x4xbf16> to vector<256x4xbf16>
    %c0_16 = arith.constant 0 : index
    %c0_17 = arith.constant 0 : index
    %c0_18 = arith.constant 0 : index
    %c0_19 = arith.constant 0 : index
    %11 = vector.load %arg2[%c0_16, %c0_17, %c0_18, %c0_19] : memref<3x3x4x8xbf16, #tpu.memory_space<vmem>>, vector<1x1x4x8xbf16>
    %12 = vector.shape_cast %11 : vector<1x1x4x8xbf16> to vector<4x8xbf16>
    %cst_20 = arith.constant dense<0.000000e+00> : vector<256x8xf32>
    %13 = tpu.matmul %10, %12, %cst_20 {dimension_numbers = #tpu.dot_dimension_numbers<[1], [0], [0], [1], [0, 0, 1, 1], [], []>} : vector<256x4xbf16>, vector<4x8xbf16>, vector<256x8xf32> -> vector<256x8xf32>
    %14 = arith.addf %7, %13 : vector<256x8xf32>
    %15 = vector.extract_strided_slice %8 {offsets = [1, 0, 0], sizes = [16, 16, 4], strides = [1, 1, 1]} : vector<18x16x4xbf16> to vector<16x16x4xbf16>
    %16 = vector.shape_cast %15 : vector<16x16x4xbf16> to vector<256x4xbf16>
    %c1_21 = arith.constant 1 : index
    %c0_22 = arith.constant 0 : index
    %c0_23 = arith.constant 0 : index
    %c0_24 = arith.constant 0 : index
    %17 = vector.load %arg2[%c1_21, %c0_22, %c0_23, %c0_24] : memref<3x3x4x8xbf16, #tpu.memory_space<vmem>>, vector<1x1x4x8xbf16>
    %18 = vector.shape_cast %17 : vector<1x1x4x8xbf16> to vector<4x8xbf16>
    %cst_25 = arith.constant dense<0.000000e+00> : vector<256x8xf32>
    %19 = tpu.matmul %16, %18, %cst_25 {dimension_numbers = #tpu.dot_dimension_numbers<[1], [0], [0], [1], [0, 0, 1, 1], [], []>} : vector<256x4xbf16>, vector<4x8xbf16>, vector<256x8xf32> -> vector<256x8xf32>
    %20 = arith.addf %14, %19 : vector<256x8xf32>
    %21 = vector.extract_strided_slice %8 {offsets = [2, 0, 0], sizes = [16, 16, 4], strides = [1, 1, 1]} : vector<18x16x4xbf16> to vector<16x16x4xbf16>
    %22 = vector.shape_cast %21 : vector<16x16x4xbf16> to vector<256x4xbf16>
    %c2 = arith.constant 2 : index
    %c0_26 = arith.constant 0 : index
    %c0_27 = arith.constant 0 : index
    %c0_28 = arith.constant 0 : index
    %23 = vector.load %arg2[%c2, %c0_26, %c0_27, %c0_28] : memref<3x3x4x8xbf16, #tpu.memory_space<vmem>>, vector<1x1x4x8xbf16>
    %24 = vector.shape_cast %23 : vector<1x1x4x8xbf16> to vector<4x8xbf16>
    %cst_29 = arith.constant dense<0.000000e+00> : vector<256x8xf32>
    %25 = tpu.matmul %22, %24, %cst_29 {dimension_numbers = #tpu.dot_dimension_numbers<[1], [0], [0], [1], [0, 0, 1, 1], [], []>} : vector<256x4xbf16>, vector<4x8xbf16>, vector<256x8xf32> -> vector<256x8xf32>
    %26 = arith.addf %20, %25 : vector<256x8xf32>
    %c0_30 = arith.constant 0 : index
    %c1_31 = arith.constant 1 : index
    %c0_32 = arith.constant 0 : index
    %27 = vector.load %arg7[%c0_30, %c1_31, %c0_32] : memref<18x18x4xbf16, #tpu.memory_space<vmem>>, vector<18x16x4xbf16>
    %28 = vector.extract_strided_slice %27 {offsets = [0, 0, 0], sizes = [16, 16, 4], strides = [1, 1, 1]} : vector<18x16x4xbf16> to vector<16x16x4xbf16>
    %29 = vector.shape_cast %28 : vector<16x16x4xbf16> to vector<256x4xbf16>
    %c0_33 = arith.constant 0 : index
    %c1_34 = arith.constant 1 : index
    %c0_35 = arith.constant 0 : index
    %c0_36 = arith.constant 0 : index
    %30 = vector.load %arg2[%c0_33, %c1_34, %c0_35, %c0_36] : memref<3x3x4x8xbf16, #tpu.memory_space<vmem>>, vector<1x1x4x8xbf16>
    %31 = vector.shape_cast %30 : vector<1x1x4x8xbf16> to vector<4x8xbf16>
    %cst_37 = arith.constant dense<0.000000e+00> : vector<256x8xf32>
    %32 = tpu.matmul %29, %31, %cst_37 {dimension_numbers = #tpu.dot_dimension_numbers<[1], [0], [0], [1], [0, 0, 1, 1], [], []>} : vector<256x4xbf16>, vector<4x8xbf16>, vector<256x8xf32> -> vector<256x8xf32>
    %33 = arith.addf %26, %32 : vector<256x8xf32>
    %34 = vector.extract_strided_slice %27 {offsets = [1, 0, 0], sizes = [16, 16, 4], strides = [1, 1, 1]} : vector<18x16x4xbf16> to vector<16x16x4xbf16>
    %35 = vector.shape_cast %34 : vector<16x16x4xbf16> to vector<256x4xbf16>
    %c1_38 = arith.constant 1 : index
    %c1_39 = arith.constant 1 : index
    %c0_40 = arith.constant 0 : index
    %c0_41 = arith.constant 0 : index
    %36 = vector.load %arg2[%c1_38, %c1_39, %c0_40, %c0_41] : memref<3x3x4x8xbf16, #tpu.memory_space<vmem>>, vector<1x1x4x8xbf16>
    %37 = vector.shape_cast %36 : vector<1x1x4x8xbf16> to vector<4x8xbf16>
    %cst_42 = arith.constant dense<0.000000e+00> : vector<256x8xf32>
    %38 = tpu.matmul %35, %37, %cst_42 {dimension_numbers = #tpu.dot_dimension_numbers<[1], [0], [0], [1], [0, 0, 1, 1], [], []>} : vector<256x4xbf16>, vector<4x8xbf16>, vector<256x8xf32> -> vector<256x8xf32>
    %39 = arith.addf %33, %38 : vector<256x8xf32>
    %40 = vector.extract_strided_slice %27 {offsets = [2, 0, 0], sizes = [16, 16, 4], strides = [1, 1, 1]} : vector<18x16x4xbf16> to vector<16x16x4xbf16>
    %41 = vector.shape_cast %40 : vector<16x16x4xbf16> to vector<256x4xbf16>
    %c2_43 = arith.constant 2 : index
    %c1_44 = arith.constant 1 : index
    %c0_45 = arith.constant 0 : index
    %c0_46 = arith.constant 0 : index
    %42 = vector.load %arg2[%c2_43, %c1_44, %c0_45, %c0_46] : memref<3x3x4x8xbf16, #tpu.memory_space<vmem>>, vector<1x1x4x8xbf16>
    %43 = vector.shape_cast %42 : vector<1x1x4x8xbf16> to vector<4x8xbf16>
    %cst_47 = arith.constant dense<0.000000e+00> : vector<256x8xf32>
    %44 = tpu.matmul %41, %43, %cst_47 {dimension_numbers = #tpu.dot_dimension_numbers<[1], [0], [0], [1], [0, 0, 1, 1], [], []>} : vector<256x4xbf16>, vector<4x8xbf16>, vector<256x8xf32> -> vector<256x8xf32>
    %45 = arith.addf %39, %44 : vector<256x8xf32>
    %c0_48 = arith.constant 0 : index
    %c2_49 = arith.constant 2 : index
    %c0_50 = arith.constant 0 : index
    %46 = vector.load %arg7[%c0_48, %c2_49, %c0_50] : memref<18x18x4xbf16, #tpu.memory_space<vmem>>, vector<18x16x4xbf16>
    %47 = vector.extract_strided_slice %46 {offsets = [0, 0, 0], sizes = [16, 16, 4], strides = [1, 1, 1]} : vector<18x16x4xbf16> to vector<16x16x4xbf16>
    %48 = vector.shape_cast %47 : vector<16x16x4xbf16> to vector<256x4xbf16>
    %c0_51 = arith.constant 0 : index
    %c2_52 = arith.constant 2 : index
    %c0_53 = arith.constant 0 : index
    %c0_54 = arith.constant 0 : index
    %49 = vector.load %arg2[%c0_51, %c2_52, %c0_53, %c0_54] : memref<3x3x4x8xbf16, #tpu.memory_space<vmem>>, vector<1x1x4x8xbf16>
    %50 = vector.shape_cast %49 : vector<1x1x4x8xbf16> to vector<4x8xbf16>
    %cst_55 = arith.constant dense<0.000000e+00> : vector<256x8xf32>
    %51 = tpu.matmul %48, %50, %cst_55 {dimension_numbers = #tpu.dot_dimension_numbers<[1], [0], [0], [1], [0, 0, 1, 1], [], []>} : vector<256x4xbf16>, vector<4x8xbf16>, vector<256x8xf32> -> vector<256x8xf32>
    %52 = arith.addf %45, %51 : vector<256x8xf32>
    %53 = vector.extract_strided_slice %46 {offsets = [1, 0, 0], sizes = [16, 16, 4], strides = [1, 1, 1]} : vector<18x16x4xbf16> to vector<16x16x4xbf16>
    %54 = vector.shape_cast %53 : vector<16x16x4xbf16> to vector<256x4xbf16>
    %c1_56 = arith.constant 1 : index
    %c2_57 = arith.constant 2 : index
    %c0_58 = arith.constant 0 : index
    %c0_59 = arith.constant 0 : index
    %55 = vector.load %arg2[%c1_56, %c2_57, %c0_58, %c0_59] : memref<3x3x4x8xbf16, #tpu.memory_space<vmem>>, vector<1x1x4x8xbf16>
    %56 = vector.shape_cast %55 : vector<1x1x4x8xbf16> to vector<4x8xbf16>
    %cst_60 = arith.constant dense<0.000000e+00> : vector<256x8xf32>
    %57 = tpu.matmul %54, %56, %cst_60 {dimension_numbers = #tpu.dot_dimension_numbers<[1], [0], [0], [1], [0, 0, 1, 1], [], []>} : vector<256x4xbf16>, vector<4x8xbf16>, vector<256x8xf32> -> vector<256x8xf32>
    %58 = arith.addf %52, %57 : vector<256x8xf32>
    %59 = vector.extract_strided_slice %46 {offsets = [2, 0, 0], sizes = [16, 16, 4], strides = [1, 1, 1]} : vector<18x16x4xbf16> to vector<16x16x4xbf16>
    %60 = vector.shape_cast %59 : vector<16x16x4xbf16> to vector<256x4xbf16>
    %c2_61 = arith.constant 2 : index
    %c2_62 = arith.constant 2 : index
    %c0_63 = arith.constant 0 : index
    %c0_64 = arith.constant 0 : index
    %61 = vector.load %arg2[%c2_61, %c2_62, %c0_63, %c0_64] : memref<3x3x4x8xbf16, #tpu.memory_space<vmem>>, vector<1x1x4x8xbf16>
    %62 = vector.shape_cast %61 : vector<1x1x4x8xbf16> to vector<4x8xbf16>
    %cst_65 = arith.constant dense<0.000000e+00> : vector<256x8xf32>
    %63 = tpu.matmul %60, %62, %cst_65 {dimension_numbers = #tpu.dot_dimension_numbers<[1], [0], [0], [1], [0, 0, 1, 1], [], []>} : vector<256x4xbf16>, vector<4x8xbf16>, vector<256x8xf32> -> vector<256x8xf32>
    %64 = arith.addf %58, %63 : vector<256x8xf32>
    %c0_66 = arith.constant 0 : index
    %c0_67 = arith.constant 0 : index
    %65 = vector.load %arg3[%c0_66, %c0_67] : memref<1x8xf32, #tpu.memory_space<vmem>>, vector<1x8xf32>
    %66 = vector.shape_cast %65 : vector<1x8xf32> to vector<8xf32>
    %67 = vector.shape_cast %66 : vector<8xf32> to vector<1x8xf32>
    %68 = vector.broadcast %67 : vector<1x8xf32> to vector<256x8xf32>
    %69 = arith.addf %64, %68 : vector<256x8xf32>
    %cst_68 = arith.constant 0.000000e+00 : f32
    %70 = vector.broadcast %cst_68 : f32 to vector<256x8xf32>
    %71 = arith.maximumf %69, %70 : vector<256x8xf32>
    %72 = vector.shape_cast %71 : vector<256x8xf32> to vector<16x16x8xf32>
    %73 = arith.truncf %72 : vector<16x16x8xf32> to vector<16x16x8xbf16>
    %c1_69 = arith.constant 1 : index
    %c1_70 = arith.constant 1 : index
    %c0_71 = arith.constant 0 : index
    %74 = vector.load %arg8[%c1_69, %c1_70, %c0_71] : memref<18x18x8xbf16, #tpu.memory_space<vmem>>, vector<16x16x8xbf16>
    tpu.vector_store %arg8[%c1_69, %c1_70, %c0_71], %73 {strides = array<i32>} : memref<18x18x8xbf16, #tpu.memory_space<vmem>>, vector<16x16x8xbf16>,
    %cst_72 = arith.constant 0.000000e+00 : f32
    %75 = vector.broadcast %cst_72 : f32 to vector<256x8xf32>
    %c0_73 = arith.constant 0 : index
    %c0_74 = arith.constant 0 : index
    %c0_75 = arith.constant 0 : index
    %76 = vector.load %arg8[%c0_73, %c0_74, %c0_75] : memref<18x18x8xbf16, #tpu.memory_space<vmem>>, vector<18x16x8xbf16>
    %77 = vector.extract_strided_slice %76 {offsets = [0, 0, 0], sizes = [16, 16, 8], strides = [1, 1, 1]} : vector<18x16x8xbf16> to vector<16x16x8xbf16>
    %78 = vector.shape_cast %77 : vector<16x16x8xbf16> to vector<256x8xbf16>
    %c0_76 = arith.constant 0 : index
    %c0_77 = arith.constant 0 : index
    %c0_78 = arith.constant 0 : index
    %c0_79 = arith.constant 0 : index
    %79 = vector.load %arg4[%c0_76, %c0_77, %c0_78, %c0_79] : memref<3x3x8x8xbf16, #tpu.memory_space<vmem>>, vector<1x1x8x8xbf16>
    %80 = vector.shape_cast %79 : vector<1x1x8x8xbf16> to vector<8x8xbf16>
    %cst_80 = arith.constant dense<0.000000e+00> : vector<256x8xf32>
    %81 = tpu.matmul %78, %80, %cst_80 {dimension_numbers = #tpu.dot_dimension_numbers<[1], [0], [0], [1], [0, 0, 1, 1], [], []>} : vector<256x8xbf16>, vector<8x8xbf16>, vector<256x8xf32> -> vector<256x8xf32>
    %82 = arith.addf %75, %81 : vector<256x8xf32>
    %83 = vector.extract_strided_slice %76 {offsets = [1, 0, 0], sizes = [16, 16, 8], strides = [1, 1, 1]} : vector<18x16x8xbf16> to vector<16x16x8xbf16>
    %84 = vector.shape_cast %83 : vector<16x16x8xbf16> to vector<256x8xbf16>
    %c1_81 = arith.constant 1 : index
    %c0_82 = arith.constant 0 : index
    %c0_83 = arith.constant 0 : index
    %c0_84 = arith.constant 0 : index
    %85 = vector.load %arg4[%c1_81, %c0_82, %c0_83, %c0_84] : memref<3x3x8x8xbf16, #tpu.memory_space<vmem>>, vector<1x1x8x8xbf16>
    %86 = vector.shape_cast %85 : vector<1x1x8x8xbf16> to vector<8x8xbf16>
    %cst_85 = arith.constant dense<0.000000e+00> : vector<256x8xf32>
    %87 = tpu.matmul %84, %86, %cst_85 {dimension_numbers = #tpu.dot_dimension_numbers<[1], [0], [0], [1], [0, 0, 1, 1], [], []>} : vector<256x8xbf16>, vector<8x8xbf16>, vector<256x8xf32> -> vector<256x8xf32>
    %88 = arith.addf %82, %87 : vector<256x8xf32>
    %89 = vector.extract_strided_slice %76 {offsets = [2, 0, 0], sizes = [16, 16, 8], strides = [1, 1, 1]} : vector<18x16x8xbf16> to vector<16x16x8xbf16>
    %90 = vector.shape_cast %89 : vector<16x16x8xbf16> to vector<256x8xbf16>
    %c2_86 = arith.constant 2 : index
    %c0_87 = arith.constant 0 : index
    %c0_88 = arith.constant 0 : index
    %c0_89 = arith.constant 0 : index
    %91 = vector.load %arg4[%c2_86, %c0_87, %c0_88, %c0_89] : memref<3x3x8x8xbf16, #tpu.memory_space<vmem>>, vector<1x1x8x8xbf16>
    %92 = vector.shape_cast %91 : vector<1x1x8x8xbf16> to vector<8x8xbf16>
    %cst_90 = arith.constant dense<0.000000e+00> : vector<256x8xf32>
    %93 = tpu.matmul %90, %92, %cst_90 {dimension_numbers = #tpu.dot_dimension_numbers<[1], [0], [0], [1], [0, 0, 1, 1], [], []>} : vector<256x8xbf16>, vector<8x8xbf16>, vector<256x8xf32> -> vector<256x8xf32>
    %94 = arith.addf %88, %93 : vector<256x8xf32>
    %c0_91 = arith.constant 0 : index
    %c1_92 = arith.constant 1 : index
    %c0_93 = arith.constant 0 : index
    %95 = vector.load %arg8[%c0_91, %c1_92, %c0_93] : memref<18x18x8xbf16, #tpu.memory_space<vmem>>, vector<18x16x8xbf16>
    %96 = vector.extract_strided_slice %95 {offsets = [0, 0, 0], sizes = [16, 16, 8], strides = [1, 1, 1]} : vector<18x16x8xbf16> to vector<16x16x8xbf16>
    %97 = vector.shape_cast %96 : vector<16x16x8xbf16> to vector<256x8xbf16>
    %c0_94 = arith.constant 0 : index
    %c1_95 = arith.constant 1 : index
    %c0_96 = arith.constant 0 : index
    %c0_97 = arith.constant 0 : index
    %98 = vector.load %arg4[%c0_94, %c1_95, %c0_96, %c0_97] : memref<3x3x8x8xbf16, #tpu.memory_space<vmem>>, vector<1x1x8x8xbf16>
    %99 = vector.shape_cast %98 : vector<1x1x8x8xbf16> to vector<8x8xbf16>
    %cst_98 = arith.constant dense<0.000000e+00> : vector<256x8xf32>
    %100 = tpu.matmul %97, %99, %cst_98 {dimension_numbers = #tpu.dot_dimension_numbers<[1], [0], [0], [1], [0, 0, 1, 1], [], []>} : vector<256x8xbf16>, vector<8x8xbf16>, vector<256x8xf32> -> vector<256x8xf32>
    %101 = arith.addf %94, %100 : vector<256x8xf32>
    %102 = vector.extract_strided_slice %95 {offsets = [1, 0, 0], sizes = [16, 16, 8], strides = [1, 1, 1]} : vector<18x16x8xbf16> to vector<16x16x8xbf16>
    %103 = vector.shape_cast %102 : vector<16x16x8xbf16> to vector<256x8xbf16>
    %c1_99 = arith.constant 1 : index
    %c1_100 = arith.constant 1 : index
    %c0_101 = arith.constant 0 : index
    %c0_102 = arith.constant 0 : index
    %104 = vector.load %arg4[%c1_99, %c1_100, %c0_101, %c0_102] : memref<3x3x8x8xbf16, #tpu.memory_space<vmem>>, vector<1x1x8x8xbf16>
    %105 = vector.shape_cast %104 : vector<1x1x8x8xbf16> to vector<8x8xbf16>
    %cst_103 = arith.constant dense<0.000000e+00> : vector<256x8xf32>
    %106 = tpu.matmul %103, %105, %cst_103 {dimension_numbers = #tpu.dot_dimension_numbers<[1], [0], [0], [1], [0, 0, 1, 1], [], []>} : vector<256x8xbf16>, vector<8x8xbf16>, vector<256x8xf32> -> vector<256x8xf32>
    %107 = arith.addf %101, %106 : vector<256x8xf32>
    %108 = vector.extract_strided_slice %95 {offsets = [2, 0, 0], sizes = [16, 16, 8], strides = [1, 1, 1]} : vector<18x16x8xbf16> to vector<16x16x8xbf16>
    %109 = vector.shape_cast %108 : vector<16x16x8xbf16> to vector<256x8xbf16>
    %c2_104 = arith.constant 2 : index
    %c1_105 = arith.constant 1 : index
    %c0_106 = arith.constant 0 : index
    %c0_107 = arith.constant 0 : index
    %110 = vector.load %arg4[%c2_104, %c1_105, %c0_106, %c0_107] : memref<3x3x8x8xbf16, #tpu.memory_space<vmem>>, vector<1x1x8x8xbf16>
    %111 = vector.shape_cast %110 : vector<1x1x8x8xbf16> to vector<8x8xbf16>
    %cst_108 = arith.constant dense<0.000000e+00> : vector<256x8xf32>
    %112 = tpu.matmul %109, %111, %cst_108 {dimension_numbers = #tpu.dot_dimension_numbers<[1], [0], [0], [1], [0, 0, 1, 1], [], []>} : vector<256x8xbf16>, vector<8x8xbf16>, vector<256x8xf32> -> vector<256x8xf32>
    %113 = arith.addf %107, %112 : vector<256x8xf32>
    %c0_109 = arith.constant 0 : index
    %c2_110 = arith.constant 2 : index
    %c0_111 = arith.constant 0 : index
    %114 = vector.load %arg8[%c0_109, %c2_110, %c0_111] : memref<18x18x8xbf16, #tpu.memory_space<vmem>>, vector<18x16x8xbf16>
    %115 = vector.extract_strided_slice %114 {offsets = [0, 0, 0], sizes = [16, 16, 8], strides = [1, 1, 1]} : vector<18x16x8xbf16> to vector<16x16x8xbf16>
    %116 = vector.shape_cast %115 : vector<16x16x8xbf16> to vector<256x8xbf16>
    %c0_112 = arith.constant 0 : index
    %c2_113 = arith.constant 2 : index
    %c0_114 = arith.constant 0 : index
    %c0_115 = arith.constant 0 : index
    %117 = vector.load %arg4[%c0_112, %c2_113, %c0_114, %c0_115] : memref<3x3x8x8xbf16, #tpu.memory_space<vmem>>, vector<1x1x8x8xbf16>
    %118 = vector.shape_cast %117 : vector<1x1x8x8xbf16> to vector<8x8xbf16>
    %cst_116 = arith.constant dense<0.000000e+00> : vector<256x8xf32>
    %119 = tpu.matmul %116, %118, %cst_116 {dimension_numbers = #tpu.dot_dimension_numbers<[1], [0], [0], [1], [0, 0, 1, 1], [], []>} : vector<256x8xbf16>, vector<8x8xbf16>, vector<256x8xf32> -> vector<256x8xf32>
    %120 = arith.addf %113, %119 : vector<256x8xf32>
    %121 = vector.extract_strided_slice %114 {offsets = [1, 0, 0], sizes = [16, 16, 8], strides = [1, 1, 1]} : vector<18x16x8xbf16> to vector<16x16x8xbf16>
    %122 = vector.shape_cast %121 : vector<16x16x8xbf16> to vector<256x8xbf16>
    %c1_117 = arith.constant 1 : index
    %c2_118 = arith.constant 2 : index
    %c0_119 = arith.constant 0 : index
    %c0_120 = arith.constant 0 : index
    %123 = vector.load %arg4[%c1_117, %c2_118, %c0_119, %c0_120] : memref<3x3x8x8xbf16, #tpu.memory_space<vmem>>, vector<1x1x8x8xbf16>
    %124 = vector.shape_cast %123 : vector<1x1x8x8xbf16> to vector<8x8xbf16>
    %cst_121 = arith.constant dense<0.000000e+00> : vector<256x8xf32>
    %125 = tpu.matmul %122, %124, %cst_121 {dimension_numbers = #tpu.dot_dimension_numbers<[1], [0], [0], [1], [0, 0, 1, 1], [], []>} : vector<256x8xbf16>, vector<8x8xbf16>, vector<256x8xf32> -> vector<256x8xf32>
    %126 = arith.addf %120, %125 : vector<256x8xf32>
    %127 = vector.extract_strided_slice %114 {offsets = [2, 0, 0], sizes = [16, 16, 8], strides = [1, 1, 1]} : vector<18x16x8xbf16> to vector<16x16x8xbf16>
    %128 = vector.shape_cast %127 : vector<16x16x8xbf16> to vector<256x8xbf16>
    %c2_122 = arith.constant 2 : index
    %c2_123 = arith.constant 2 : index
    %c0_124 = arith.constant 0 : index
    %c0_125 = arith.constant 0 : index
    %129 = vector.load %arg4[%c2_122, %c2_123, %c0_124, %c0_125] : memref<3x3x8x8xbf16, #tpu.memory_space<vmem>>, vector<1x1x8x8xbf16>
    %130 = vector.shape_cast %129 : vector<1x1x8x8xbf16> to vector<8x8xbf16>
    %cst_126 = arith.constant dense<0.000000e+00> : vector<256x8xf32>
    %131 = tpu.matmul %128, %130, %cst_126 {dimension_numbers = #tpu.dot_dimension_numbers<[1], [0], [0], [1], [0, 0, 1, 1], [], []>} : vector<256x8xbf16>, vector<8x8xbf16>, vector<256x8xf32> -> vector<256x8xf32>
    %132 = arith.addf %126, %131 : vector<256x8xf32>
    %c0_127 = arith.constant 0 : index
    %c0_128 = arith.constant 0 : index
    %133 = vector.load %arg5[%c0_127, %c0_128] : memref<1x8xf32, #tpu.memory_space<vmem>>, vector<1x8xf32>
    %134 = vector.shape_cast %133 : vector<1x8xf32> to vector<8xf32>
    %135 = vector.shape_cast %134 : vector<8xf32> to vector<1x8xf32>
    %136 = vector.broadcast %135 : vector<1x8xf32> to vector<256x8xf32>
    %137 = arith.addf %132, %136 : vector<256x8xf32>
    %cst_129 = arith.constant 0.000000e+00 : f32
    %138 = vector.broadcast %cst_129 : f32 to vector<256x8xf32>
    %139 = arith.maximumf %137, %138 : vector<256x8xf32>
    %140 = vector.shape_cast %139 : vector<256x8xf32> to vector<16x16x8xf32>
    %c0_130 = arith.constant 0 : index
    %c0_131 = arith.constant 0 : index
    %c0_132 = arith.constant 0 : index
    %c0_133 = arith.constant 0 : index
    %141 = vector.load %arg6[%c0_130, %c0_131, %c0_132, %c0_133] : memref<1x16x16x8xf32, #tpu.memory_space<vmem>>, vector<1x16x16x8xf32>
    %142 = vector.shape_cast %141 : vector<1x16x16x8xf32> to vector<16x16x8xf32>
    %143 = vector.shape_cast %140 : vector<16x16x8xf32> to vector<1x16x16x8xf32>
    tpu.vector_store %arg6[%c0_130, %c0_131, %c0_132, %c0_133], %143 {strides = array<i32>} : memref<1x16x16x8xf32, #tpu.memory_space<vmem>>, vector<1x16x16x8xf32>,
    return
  }
  func.func @transform_0(%arg0: i32) -> (i32, i32, i32, i32) {
    %c0_i32 = arith.constant 0 : i32
    %c0_i32_0 = arith.constant 0 : i32
    %c0_i32_1 = arith.constant 0 : i32
    %c0_i32_2 = arith.constant 0 : i32
    return %arg0, %c0_i32, %c0_i32_0, %c0_i32_1 : i32, i32, i32, i32
  }
  func.func @transform_1(%arg0: i32) -> (i32, i32, i32, i32) {
    %c0_i32 = arith.constant 0 : i32
    %c0_i32_0 = arith.constant 0 : i32
    %c0_i32_1 = arith.constant 0 : i32
    %c0_i32_2 = arith.constant 0 : i32
    %c0_i32_3 = arith.constant 0 : i32
    return %c0_i32, %c0_i32_0, %c0_i32_1, %c0_i32_2 : i32, i32, i32, i32
  }
  func.func @transform_2(%arg0: i32) -> (i32, i32) {
    %c0_i32 = arith.constant 0 : i32
    %c0_i32_0 = arith.constant 0 : i32
    %c0_i32_1 = arith.constant 0 : i32
    return %c0_i32, %c0_i32_0 : i32, i32
  }
  func.func @transform_3(%arg0: i32) -> (i32, i32, i32, i32) {
    %c0_i32 = arith.constant 0 : i32
    %c0_i32_0 = arith.constant 0 : i32
    %c0_i32_1 = arith.constant 0 : i32
    %c0_i32_2 = arith.constant 0 : i32
    %c0_i32_3 = arith.constant 0 : i32
    return %c0_i32, %c0_i32_0, %c0_i32_1, %c0_i32_2 : i32, i32, i32, i32
  }
  func.func @transform_4(%arg0: i32) -> (i32, i32) {
    %c0_i32 = arith.constant 0 : i32
    %c0_i32_0 = arith.constant 0 : i32
    %c0_i32_1 = arith.constant 0 : i32
    return %c0_i32, %c0_i32_0 : i32, i32
  }
  func.func @transform_5(%arg0: i32) -> (i32, i32, i32, i32) {
    %c0_i32 = arith.constant 0 : i32
    %c0_i32_0 = arith.constant 0 : i32
    %c0_i32_1 = arith.constant 0 : i32
    %c0_i32_2 = arith.constant 0 : i32
    return %arg0, %c0_i32, %c0_i32_0, %c0_i32_1 : i32, i32, i32, i32
  }
}

</mosaic_0001>

<llo_original>
// kernel: conv_block_forward.1
$region0: #{conv_block_forward.1}
  #allocation0 [shape = 'u32[]', space=smem, size = 0x4, offset = 0x4, fixed_abs, tag = 'smem constant byte address 0x4 - core index']
  #allocation1 [shape = 'u32[144,128]{1,0:T(1,128)}', space=vmem, size = 0x12000, scoped, tag = 'internal scratch']
  #allocation2 [shape = 'bf16[18,18,4]{2,1,0:T(8,128)(2,1)}', space=vmem, size = 0x1b000, scoped, tag = 'scratch operand']
  #allocation3 [shape = 'bf16[18,18,8]{2,1,0:T(8,128)(2,1)}', space=vmem, size = 0x1b000, scoped, tag = 'scratch operand']
  %s0 = inlined_call_operand.vmem [shape: bf16[2,16,16,4], index: 0, kind: input, shape index: {}]
  %s1 = inlined_call_operand.vmem [shape: bf16[3,3,4,8], index: 1, kind: input, shape index: {}]
  %s2 = inlined_call_operand.vmem [shape: f32[1,8], index: 2, kind: input, shape index: {}]
  %s3 = inlined_call_operand.vmem [shape: bf16[3,3,8,8], index: 3, kind: input, shape index: {}]
  %s4 = inlined_call_operand.vmem [shape: f32[1,8], index: 4, kind: input, shape index: {}]
  %s5 = inlined_call_operand.vmem [shape: f32[2,16,16,8], index: 5, kind: output, shape index: {}]
  %s6 = sld [smem:[#allocation0]]
  $region53: #{conv_block_forward.1} parent=0
    _
  %s8 = ssub.s32 1, %s6
  %s9 = scalar_select 0, %s8, %s6
  loop: start=0, step=1, limit=4
  $region2: #{conv_block_forward.1} parent=0 // loop_pre_header
    _
  $region3: #{conv_block_forward.1} parent=0 // loop_header
    %s11 = sphi 0, %s15
    %p12 = scmp.ge.s32.totalorder %s11, 4
    %s21 = sphi 0, %s23
    %s24 = sphi 0, %s21
    %s25 = sphi 0, %s24
    %s41 = sphi 0, %s25
    %s45 = sphi 0, %s45
    %s47 = sphi 0, %s45
    %s48 = sphi 0, %s47
    %s62 = sphi 0, %s48
    %s66 = sphi 0, %s66
    %s68 = sphi 0, %s66
    %s69 = sphi 0, %s68
    %s83 = sphi 0, %s69
    %s87 = sphi 0, %s87
    %s89 = sphi 0, %s87
    %s90 = sphi 0, %s89
    %s104 = sphi 0, %s90
    %s108 = sphi 0, %s108
    %s110 = sphi 0, %s108
    %s111 = sphi 0, %s110
    %s125 = sphi 0, %s111
    %s131 = sphi 0, %s133
    %s134 = sphi 0, %s131
    %s135 = sphi 0, %s134
    %s151 = sphi 0, %s135
  $region4: #{conv_block_forward.1} parent=0 // loop_header_branch
    %14 = sbr.rel (%p12) target = $region8
  $region5: #{conv_block_forward.1} parent=0 // loop_body
    %s16 = ssub.s32 %s11, 1
    %s17 = ssub.s32 %s11, 2
    %s18 = sadd.s32 %s11, 1
    %s19 = ssub.s32 %s11, %s18
    %p20 = scmp.eq.s32.totalorder %s19, 0
    %s22 = sadd.s32 %s21, 1
    %s23 = scalar_select %p20, %s21, %s22
    %p26 = pneg %p20
    %p27 = scmp.eq.s32.totalorder %s11, 1
    %p28 = por %p26, %p27
    %p29 = scmp.ne.s32.totalorder %s21, %s24
    %p30 = scmp.eq.s32.totalorder %s11, 0
    %p31 = por %p29, %p30
    %p32 = scmp.ne.s32.totalorder %s21, %s24
    %p33 = scmp.eq.s32.totalorder %s16, 1
    %p34 = por %p32, %p33
    %p35 = scmp.ne.s32.totalorder %s24, %s25
    %p36 = scmp.eq.s32.totalorder %s16, 0
    %p37 = por %p35, %p36
    %p38 = scmp.ne.s32.totalorder %s24, %s25
    %p39 = scmp.eq.s32.totalorder %s17, 1
    %p40 = por %p38, %p39
    %p42 = scmp.ne.s32.totalorder %s25, %s41
    %p43 = scmp.eq.s32.totalorder %s17, 0
    %p44 = por %p42, %p43
    %s46 = sadd.s32 %s45, 1
    %p49 = scmp.eq.s32.totalorder %s11, 1
    %p50 = scmp.ne.s32.totalorder %s45, %s47
    %p51 = scmp.eq.s32.totalorder %s11, 0
    %p52 = por %p50, %p51
    %p53 = scmp.ne.s32.totalorder %s45, %s47
    %p54 = scmp.eq.s32.totalorder %s16, 1
    %p55 = por %p53, %p54
    %p56 = scmp.ne.s32.totalorder %s47, %s48
    %p57 = scmp.eq.s32.totalorder %s16, 0
    %p58 = por %p56, %p57
    %p59 = scmp.ne.s32.totalorder %s47, %s48
    %p60 = scmp.eq.s32.totalorder %s17, 1
    %p61 = por %p59, %p60
    %p63 = scmp.ne.s32.totalorder %s48, %s62
    %p64 = scmp.eq.s32.totalorder %s17, 0
    %p65 = por %p63, %p64
    %s67 = sadd.s32 %s66, 1
    %p70 = scmp.eq.s32.totalorder %s11, 1
    %p71 = scmp.ne.s32.totalorder %s66, %s68
    %p72 = scmp.eq.s32.totalorder %s11, 0
    %p73 = por %p71, %p72
    %p74 = scmp.ne.s32.totalorder %s66, %s68
    %p75 = scmp.eq.s32.totalorder %s16, 1
    %p76 = por %p74, %p75
    %p77 = scmp.ne.s32.totalorder %s68, %s69
    %p78 = scmp.eq.s32.totalorder %s16, 0
    %p79 = por %p77, %p78
    %p80 = scmp.ne.s32.totalorder %s68, %s69
    %p81 = scmp.eq.s32.totalorder %s17, 1
    %p82 = por %p80, %p81
    %p84 = scmp.ne.s32.totalorder %s69, %s83
    %p85 = scmp.eq.s32.totalorder %s17, 0
    %p86 = por %p84, %p85
    %s88 = sadd.s32 %s87, 1
    %p91 = scmp.eq.s32.totalorder %s11, 1
    %p92 = scmp.ne.s32.totalorder %s87, %s89
    %p93 = scmp.eq.s32.totalorder %s11, 0
    %p94 = por %p92, %p93
    %p95 = scmp.ne.s32.totalorder %s87, %s89
    %p96 = scmp.eq.s32.totalorder %s16, 1
    %p97 = por %p95, %p96
    %p98 = scmp.ne.s32.totalorder %s89, %s90
    %p99 = scmp.eq.s32.totalorder %s16, 0
    %p100 = por %p98, %p99
    %p101 = scmp.ne.s32.totalorder %s89, %s90
    %p102 = scmp.eq.s32.totalorder %s17, 1
    %p103 = por %p101, %p102
    %p105 = scmp.ne.s32.totalorder %s90, %s104
    %p106 = scmp.eq.s32.totalorder %s17, 0
    %p107 = por %p105, %p106
    %s109 = sadd.s32 %s108, 1
    %p112 = scmp.eq.s32.totalorder %s11, 1
    %p113 = scmp.ne.s32.totalorder %s108, %s110
    %p114 = scmp.eq.s32.totalorder %s11, 0
    %p115 = por %p113, %p114
    %p116 = scmp.ne.s32.totalorder %s108, %s110
    %p117 = scmp.eq.s32.totalorder %s16, 1
    %p118 = por %p116, %p117
    %p119 = scmp.ne.s32.totalorder %s110, %s111
    %p120 = scmp.eq.s32.totalorder %s16, 0
    %p121 = por %p119, %p120
    %p122 = scmp.ne.s32.totalorder %s110, %s111
    %p123 = scmp.eq.s32.totalorder %s17, 1
    %p124 = por %p122, %p123
    %p126 = scmp.ne.s32.totalorder %s111, %s125
    %p127 = scmp.eq.s32.totalorder %s17, 0
    %p128 = por %p126, %p127
    %s129 = ssub.s32 %s11, %s18
    %p130 = scmp.eq.s32.totalorder %s129, 0
    %s132 = sadd.s32 %s131, 1
    %s133 = scalar_select %p130, %s131, %s132
    %p136 = pneg %p130
    %p137 = scmp.eq.s32.totalorder %s11, 1
    %p138 = por %p136, %p137
    %p139 = scmp.ne.s32.totalorder %s131, %s134
    %p140 = scmp.eq.s32.totalorder %s11, 0
    %p141 = por %p139, %p140
    %p142 = scmp.ne.s32.totalorder %s131, %s134
    %p143 = scmp.eq.s32.totalorder %s16, 1
    %p144 = por %p142, %p143
    %p145 = scmp.ne.s32.totalorder %s134, %s135
    %p146 = scmp.eq.s32.totalorder %s16, 0
    %p147 = por %p145, %p146
    %p148 = scmp.ne.s32.totalorder %s134, %s135
    %p149 = scmp.eq.s32.totalorder %s17, 1
    %p150 = por %p148, %p149
    %p152 = scmp.ne.s32.totalorder %s135, %s151
    %p153 = scmp.eq.s32.totalorder %s17, 0
    %p154 = por %p152, %p153
    %p155 = scmp.le.s32.totalorder 1, %s11
    %p156 = scmp.lt.s32.totalorder %s11, 3
    %p157 = pnand %p155, %p156
    %p158 = pneg %p157
    // Predicated region
    $region9: #{conv_block_forward.1} parent=5 // pred_check
      _
    $region10: #{conv_block_forward.1} parent=5 // pred_check_branch
      %160 = sbr.rel (%p157) target = $region12
    $region11: #{conv_block_forward.1} parent=5 // pred_region
      %s161 = ssub.s32 %s11, 1
      // Predicated region
      $region13: #{conv_block_forward.1} parent=11 // pred_check
        %p162 = pneg %p58
      $region14: #{conv_block_forward.1} parent=11 // pred_check_branch
        %164 = sbr.rel (%p162) target = $region16
      $region15: #{conv_block_forward.1} parent=11 // pred_region
        _
      $region16: #{conv_block_forward.1} parent=11 // pred_fallthru
        _
      // Predicated region
      $region17: #{conv_block_forward.1} parent=11 // pred_check
        %p165 = pneg %p79
      $region18: #{conv_block_forward.1} parent=11 // pred_check_branch
        %167 = sbr.rel (%p165) target = $region20
      $region19: #{conv_block_forward.1} parent=11 // pred_region
        _
      $region20: #{conv_block_forward.1} parent=11 // pred_fallthru
        _
      // Predicated region
      $region21: #{conv_block_forward.1} parent=11 // pred_check
        %p168 = pneg %p100
      $region22: #{conv_block_forward.1} parent=11 // pred_check_branch
        %170 = sbr.rel (%p168) target = $region24
      $region23: #{conv_block_forward.1} parent=11 // pred_region
        _
      $region24: #{conv_block_forward.1} parent=11 // pred_fallthru
        _
      // Predicated region
      $region25: #{conv_block_forward.1} parent=11 // pred_check
        %p171 = pneg %p121
      $region26: #{conv_block_forward.1} parent=11 // pred_check_branch
        %173 = sbr.rel (%p171) target = $region28
      $region27: #{conv_block_forward.1} parent=11 // pred_region
        _
      $region28: #{conv_block_forward.1} parent=11 // pred_fallthru
        _
    $region12: #{conv_block_forward.1} parent=5 // pred_fallthru
      _
    %p174 = scmp.lt.s32.totalorder %s11, 2
    // Predicated region
    $region29: #{conv_block_forward.1} parent=5 // pred_check
      %p175 = pneg %p174
    $region30: #{conv_block_forward.1} parent=5 // pred_check_branch
      %177 = sbr.rel (%p175) target = $region32
    $region31: #{conv_block_forward.1} parent=5 // pred_region
      // Predicated region
      $region33: #{conv_block_forward.1} parent=31 // pred_check
        %p178 = pneg %p31
      $region34: #{conv_block_forward.1} parent=31 // pred_check_branch
        %180 = sbr.rel (%p178) target = $region36
      $region35: #{conv_block_forward.1} parent=31 // pred_region
        %p181 = scmp.lt.s32.totalorder %s11, 1
        %s182 = scalar_select %p181, %s11, 1
        %s183 = smul.addr %s182, 32
        %s184 = smul.addr %s183, 4
        %s185 = scalar_lea.vmem %s0, %s184
      $region36: #{conv_block_forward.1} parent=31 // pred_fallthru
        _
    $region32: #{conv_block_forward.1} parent=5 // pred_fallthru
      _
    %p186 = scmp.le.s32.totalorder 1, %s11
    %p187 = scmp.lt.s32.totalorder %s11, 3
    %p188 = pnand %p186, %p187
    %p189 = pneg %p188
    // Predicated region
    $region37: #{conv_block_forward.1} parent=5 // pred_check
      _
    $region38: #{conv_block_forward.1} parent=5 // pred_check_branch
      %191 = sbr.rel (%p188) target = $region40
    $region39: #{conv_block_forward.1} parent=5 // pred_region
      %s192 = ssub.s32 %s11, 1
      %p193 = scmp.lt.s32.totalorder %s16, 1
      %s194 = scalar_select %p193, %s16, 1
      %s195 = smul.addr %s194, 32
      %s196 = smul.addr %s195, 4
      %s197 = scalar_lea.vmem %s0, %s196
      %p198 = pneg %p37
      %p199 = pneg %p34
      %p200 = pneg %p58
      %p201 = pneg %p55
      %p202 = pneg %p79
      %p203 = pneg %p76
      %p204 = pneg %p100
      %p205 = pneg %p97
      %p206 = pneg %p121
      %p207 = pneg %p118
      %p208 = pneg %p147
      %p209 = pneg %p144
      %p210 = scmp.lt.s32.totalorder %s16, 1
      %s211 = scalar_select %p210, %s16, 1
      %s212 = smul.addr %s211, 32
      %s213 = smul.addr %s212, 8
      %s214 = scalar_lea.vmem %s5, %s213
      %p215 = scmp.lt.s32.totalorder %s16, 1
      %s216 = scalar_select %p215, %s16, 1
      %s217 = smul.addr %s216, 32
      %s218 = smul.addr %s217, 4
      %s219 = scalar_lea.vmem %s0, %s218
      %p220 = scmp.lt.s32.totalorder %s16, 1
      %s221 = scalar_select %p220, %s16, 1
      %s222 = smul.addr %s221, 32
      %s223 = smul.addr %s222, 8
      %s224 = scalar_lea.vmem %s5, %s223
      %vm226 = vcmask 27648
      %227 = vst.msk [vmem:[#allocation2] sm:$0xf] %vm226, 0
      %228 = vst.msk [vmem:[#allocation2 + $0x4] sm:$0xf] %vm226, 0
      %vm229 = vcmask 24576
      %230 = vst.msk [vmem:[#allocation2 + $0x8] sm:$0x1] %vm229, 0
      %231 = vst.msk [vmem:[#allocation2 + $0xc] sm:$0xf] %vm226, 0
      %232 = vst.msk [vmem:[#allocation2 + $0x10] sm:$0xf] %vm226, 0
      %233 = vst.msk [vmem:[#allocation2 + $0x14] sm:$0x1] %vm229, 0
      %234 = vst.msk [vmem:[#allocation2 + $0x18] sm:$0xf] %vm226, 0
      %235 = vst.msk [vmem:[#allocation2 + $0x1c] sm:$0xf] %vm226, 0
      %236 = vst.msk [vmem:[#allocation2 + $0x20] sm:$0x1] %vm229, 0
      %237 = vst.msk [vmem:[#allocation2 + $0x24] sm:$0xf] %vm226, 0
      %238 = vst.msk [vmem:[#allocation2 + $0x28] sm:$0xf] %vm226, 0
      %239 = vst.msk [vmem:[#allocation2 + $0x2c] sm:$0x1] %vm229, 0
      %240 = vst.msk [vmem:[#allocation2 + $0x30] sm:$0xf] %vm226, 0
      %241 = vst.msk [vmem:[#allocation2 + $0x34] sm:$0xf] %vm226, 0
      %242 = vst.msk [vmem:[#allocation2 + $0x38] sm:$0x1] %vm229, 0
      %243 = vst.msk [vmem:[#allocation2 + $0x3c] sm:$0xf] %vm226, 0
      %244 = vst.msk [vmem:[#allocation2 + $0x40] sm:$0xf] %vm226, 0
      %245 = vst.msk [vmem:[#allocation2 + $0x44] sm:$0x1] %vm229, 0
      %246 = vst.msk [vmem:[#allocation2 + $0x48] sm:$0xf] %vm226, 0
      %247 = vst.msk [vmem:[#allocation2 + $0x4c] sm:$0xf] %vm226, 0
      %248 = vst.msk [vmem:[#allocation2 + $0x50] sm:$0x1] %vm229, 0
      %249 = vst.msk [vmem:[#allocation2 + $0x54] sm:$0xf] %vm226, 0
      %250 = vst.msk [vmem:[#allocation2 + $0x58] sm:$0xf] %vm226, 0
      %251 = vst.msk [vmem:[#allocation2 + $0x5c] sm:$0x1] %vm229, 0
      %252 = vst.msk [vmem:[#allocation2 + $0x60] sm:$0xf] %vm226, 0
      %253 = vst.msk [vmem:[#allocation2 + $0x64] sm:$0xf] %vm226, 0
      %254 = vst.msk [vmem:[#allocation2 + $0x68] sm:$0x1] %vm229, 0
      %255 = vst.msk [vmem:[#allocation2 + $0x6c] sm:$0xf] %vm226, 0
      %256 = vst.msk [vmem:[#allocation2 + $0x70] sm:$0xf] %vm226, 0
      %257 = vst.msk [vmem:[#allocation2 + $0x74] sm:$0x1] %vm229, 0
      %258 = vst.msk [vmem:[#allocation2 + $0x78] sm:$0xf] %vm226, 0
      %259 = vst.msk [vmem:[#allocation2 + $0x7c] sm:$0xf] %vm226, 0
      %260 = vst.msk [vmem:[#allocation2 + $0x80] sm:$0x1] %vm229, 0
      %261 = vst.msk [vmem:[#allocation2 + $0x84] sm:$0xf] %vm226, 0
      %262 = vst.msk [vmem:[#allocation2 + $0x88] sm:$0xf] %vm226, 0
      %263 = vst.msk [vmem:[#allocation2 + $0x8c] sm:$0x1] %vm229, 0
      %264 = vst.msk [vmem:[#allocation2 + $0x90] sm:$0xf] %vm226, 0
      %265 = vst.msk [vmem:[#allocation2 + $0x94] sm:$0xf] %vm226, 0
      %266 = vst.msk [vmem:[#allocation2 + $0x98] sm:$0x1] %vm229, 0
      %267 = vst.msk [vmem:[#allocation2 + $0x9c] sm:$0xf] %vm226, 0
      %268 = vst.msk [vmem:[#allocation2 + $0xa0] sm:$0xf] %vm226, 0
      %269 = vst.msk [vmem:[#allocation2 + $0xa4] sm:$0x1] %vm229, 0
      %270 = vst.msk [vmem:[#allocation2 + $0xa8] sm:$0xf] %vm226, 0
      %271 = vst.msk [vmem:[#allocation2 + $0xac] sm:$0xf] %vm226, 0
      %272 = vst.msk [vmem:[#allocation2 + $0xb0] sm:$0x1] %vm229, 0
      %273 = vst.msk [vmem:[#allocation2 + $0xb4] sm:$0xf] %vm226, 0
      %274 = vst.msk [vmem:[#allocation2 + $0xb8] sm:$0xf] %vm226, 0
      %275 = vst.msk [vmem:[#allocation2 + $0xbc] sm:$0x1] %vm229, 0
      %276 = vst.msk [vmem:[#allocation2 + $0xc0] sm:$0xf] %vm226, 0
      %277 = vst.msk [vmem:[#allocation2 + $0xc4] sm:$0xf] %vm226, 0
      %278 = vst.msk [vmem:[#allocation2 + $0xc8] sm:$0x1] %vm229, 0
      %279 = vst.msk [vmem:[#allocation2 + $0xcc] sm:$0xf] %vm226, 0
      %280 = vst.msk [vmem:[#allocation2 + $0xd0] sm:$0xf] %vm226, 0
      %281 = vst.msk [vmem:[#allocation2 + $0xd4] sm:$0x1] %vm229, 0
      %v282 = vld [vmem:[%s219] sm:$0xf]
      %v283 = vld [vmem:[%s219 + $0x4] sm:$0xf]
      %v284 = vld [vmem:[%s219 + $0x8] sm:$0xf]
      %v285 = vld [vmem:[%s219 + $0xc] sm:$0xf]
      %v286 = vld [vmem:[%s219 + $0x10] sm:$0xf]
      %v287 = vld [vmem:[%s219 + $0x14] sm:$0xf]
      %v288 = vld [vmem:[%s219 + $0x18] sm:$0xf]
      %v289 = vld [vmem:[%s219 + $0x1c] sm:$0xf]
      %v290 = vld [vmem:[%s219 + $0x20] sm:$0xf]
      %v291 = vld [vmem:[%s219 + $0x24] sm:$0xf]
      %v292 = vld [vmem:[%s219 + $0x28] sm:$0xf]
      %v293 = vld [vmem:[%s219 + $0x2c] sm:$0xf]
      %v294 = vld [vmem:[%s219 + $0x30] sm:$0xf]
      %v295 = vld [vmem:[%s219 + $0x34] sm:$0xf]
      %v296 = vld [vmem:[%s219 + $0x38] sm:$0xf]
      %v297 = vld [vmem:[%s219 + $0x3c] sm:$0xf]
      %v298 = vld [vmem:[%s219 + $0x40] sm:$0xf]
      %v299 = vld [vmem:[%s219 + $0x44] sm:$0xf]
      %v300 = vld [vmem:[%s219 + $0x48] sm:$0xf]
      %v301 = vld [vmem:[%s219 + $0x4c] sm:$0xf]
      %v302 = vld [vmem:[%s219 + $0x50] sm:$0xf]
      %v303 = vld [vmem:[%s219 + $0x54] sm:$0xf]
      %v304 = vld [vmem:[%s219 + $0x58] sm:$0xf]
      %v305 = vld [vmem:[%s219 + $0x5c] sm:$0xf]
      %v306 = vld [vmem:[%s219 + $0x60] sm:$0xf]
      %v307 = vld [vmem:[%s219 + $0x64] sm:$0xf]
      %v308 = vld [vmem:[%s219 + $0x68] sm:$0xf]
      %v309 = vld [vmem:[%s219 + $0x6c] sm:$0xf]
      %v310 = vld [vmem:[%s219 + $0x70] sm:$0xf]
      %v311 = vld [vmem:[%s219 + $0x74] sm:$0xf]
      %v312 = vld [vmem:[%s219 + $0x78] sm:$0xf]
      %v313 = vld [vmem:[%s219 + $0x7c] sm:$0xf]
      %vm314 = vsmask.f32 256
      %vm315 = vsmask.f32 4368
      %vm316 = vmor %vm314, %vm315
      %v318 = vshrl.u32 %v282, 16
      %v320 = vrot.slane %v318, 7
      %v321 = vshll.u32 %v282, 16
      %v323 = vor.u32 %v320, %v321
      %v324 = vrot.slane %v320, 4
      %v326 = vshrl.u32 %v283, 16
      %v328 = vrot.slane %v326, 7
      %v329 = vshll.u32 %v283, 16
      %v331 = vor.u32 %v328, %v329
      %v332 = vsel %vm316, %v324, %v331
      %v333 = vrot.slane %v328, 4
      %v335 = vshrl.u32 %v284, 16
      %v337 = vrot.slane %v335, 7
      %v338 = vshll.u32 %v284, 16
      %v340 = vor.u32 %v337, %v338
      %v341 = vrot.slane %v337, 4
      %v343 = vshrl.u32 %v285, 16
      %v345 = vrot.slane %v343, 7
      %v346 = vshll.u32 %v285, 16
      %v348 = vor.u32 %v345, %v346
      %v349 = vsel %vm316, %v341, %v348
      %v350 = vrot.slane %v345, 4
      %v352 = vshrl.u32 %v286, 16
      %v354 = vrot.slane %v352, 7
      %v355 = vshll.u32 %v286, 16
      %v357 = vor.u32 %v354, %v355
      %v358 = vrot.slane %v354, 4
      %v360 = vshrl.u32 %v287, 16
      %v362 = vrot.slane %v360, 7
      %v363 = vshll.u32 %v287, 16
      %v365 = vor.u32 %v362, %v363
      %v366 = vsel %vm316, %v358, %v365
      %v367 = vrot.slane %v362, 4
      %v369 = vshrl.u32 %v288, 16
      %v371 = vrot.slane %v369, 7
      %v372 = vshll.u32 %v288, 16
      %v374 = vor.u32 %v371, %v372
      %v375 = vrot.slane %v371, 4
      %v377 = vshrl.u32 %v289, 16
      %v379 = vrot.slane %v377, 7
      %v380 = vshll.u32 %v289, 16
      %v382 = vor.u32 %v379, %v380
      %v383 = vsel %vm316, %v375, %v382
      %v384 = vrot.slane %v379, 4
      %v386 = vshrl.u32 %v290, 16
      %v388 = vrot.slane %v386, 7
      %v389 = vshll.u32 %v290, 16
      %v391 = vor.u32 %v388, %v389
      %v392 = vrot.slane %v388, 4
      %v394 = vshrl.u32 %v291, 16
      %v396 = vrot.slane %v394, 7
      %v397 = vshll.u32 %v291, 16
      %v399 = vor.u32 %v396, %v397
      %v400 = vsel %vm316, %v392, %v399
      %v401 = vrot.slane %v396, 4
      %v403 = vshrl.u32 %v292, 16
      %v405 = vrot.slane %v403, 7
      %v406 = vshll.u32 %v292, 16
      %v408 = vor.u32 %v405, %v406
      %v409 = vrot.slane %v405, 4
      %v411 = vshrl.u32 %v293, 16
      %v413 = vrot.slane %v411, 7
      %v414 = vshll.u32 %v293, 16
      %v416 = vor.u32 %v413, %v414
      %v417 = vsel %vm316, %v409, %v416
      %v418 = vrot.slane %v413, 4
      %v420 = vshrl.u32 %v294, 16
      %v422 = vrot.slane %v420, 7
      %v423 = vshll.u32 %v294, 16
      %v425 = vor.u32 %v422, %v423
      %v426 = vrot.slane %v422, 4
      %v428 = vshrl.u32 %v295, 16
      %v430 = vrot.slane %v428, 7
      %v431 = vshll.u32 %v295, 16
      %v433 = vor.u32 %v430, %v431
      %v434 = vsel %vm316, %v426, %v433
      %v435 = vrot.slane %v430, 4
      %v437 = vshrl.u32 %v296, 16
      %v439 = vrot.slane %v437, 7
      %v440 = vshll.u32 %v296, 16
      %v442 = vor.u32 %v439, %v440
      %v443 = vrot.slane %v439, 4
      %v445 = vshrl.u32 %v297, 16
      %v447 = vrot.slane %v445, 7
      %v448 = vshll.u32 %v297, 16
      %v450 = vor.u32 %v447, %v448
      %v451 = vsel %vm316, %v443, %v450
      %v452 = vrot.slane %v447, 4
      %v454 = vshrl.u32 %v298, 16
      %v456 = vrot.slane %v454, 7
      %v457 = vshll.u32 %v298, 16
      %v459 = vor.u32 %v456, %v457
      %v460 = vrot.slane %v456, 4
      %v462 = vshrl.u32 %v299, 16
      %v464 = vrot.slane %v462, 7
      %v465 = vshll.u32 %v299, 16
      %v467 = vor.u32 %v464, %v465
      %v468 = vsel %vm316, %v460, %v467
      %v469 = vrot.slane %v464, 4
      %v471 = vshrl.u32 %v300, 16
      %v473 = vrot.slane %v471, 7
      %v474 = vshll.u32 %v300, 16
      %v476 = vor.u32 %v473, %v474
      %v477 = vrot.slane %v473, 4
      %v479 = vshrl.u32 %v301, 16
      %v481 = vrot.slane %v479, 7
      %v482 = vshll.u32 %v301, 16
      %v484 = vor.u32 %v481, %v482
      %v485 = vsel %vm316, %v477, %v484
      %v486 = vrot.slane %v481, 4
      %v488 = vshrl.u32 %v302, 16
      %v490 = vrot.slane %v488, 7
      %v491 = vshll.u32 %v302, 16
      %v493 = vor.u32 %v490, %v491
      %v494 = vrot.slane %v490, 4
      %v496 = vshrl.u32 %v303, 16
      %v498 = vrot.slane %v496, 7
      %v499 = vshll.u32 %v303, 16
      %v501 = vor.u32 %v498, %v499
      %v502 = vsel %vm316, %v494, %v501
      %v503 = vrot.slane %v498, 4
      %v505 = vshrl.u32 %v304, 16
      %v507 = vrot.slane %v505, 7
      %v508 = vshll.u32 %v304, 16
      %v510 = vor.u32 %v507, %v508
      %v511 = vrot.slane %v507, 4
      %v513 = vshrl.u32 %v305, 16
      %v515 = vrot.slane %v513, 7
      %v516 = vshll.u32 %v305, 16
      %v518 = vor.u32 %v515, %v516
      %v519 = vsel %vm316, %v511, %v518
      %v520 = vrot.slane %v515, 4
      %v522 = vshrl.u32 %v306, 16
      %v524 = vrot.slane %v522, 7
      %v525 = vshll.u32 %v306, 16
      %v527 = vor.u32 %v524, %v525
      %v528 = vrot.slane %v524, 4
      %v530 = vshrl.u32 %v307, 16
      %v532 = vrot.slane %v530, 7
      %v533 = vshll.u32 %v307, 16
      %v535 = vor.u32 %v532, %v533
      %v536 = vsel %vm316, %v528, %v535
      %v537 = vrot.slane %v532, 4
      %v539 = vshrl.u32 %v308, 16
      %v541 = vrot.slane %v539, 7
      %v542 = vshll.u32 %v308, 16
      %v544 = vor.u32 %v541, %v542
      %v545 = vrot.slane %v541, 4
      %v547 = vshrl.u32 %v309, 16
      %v549 = vrot.slane %v547, 7
      %v550 = vshll.u32 %v309, 16
      %v552 = vor.u32 %v549, %v550
      %v553 = vsel %vm316, %v545, %v552
      %v554 = vrot.slane %v549, 4
      %v556 = vshrl.u32 %v310, 16
      %v558 = vrot.slane %v556, 7
      %v559 = vshll.u32 %v310, 16
      %v561 = vor.u32 %v558, %v559
      %v562 = vrot.slane %v558, 4
      %v564 = vshrl.u32 %v311, 16
      %v566 = vrot.slane %v564, 7
      %v567 = vshll.u32 %v311, 16
      %v569 = vor.u32 %v566, %v567
      %v570 = vsel %vm316, %v562, %v569
      %v571 = vrot.slane %v566, 4
      %v573 = vshrl.u32 %v312, 16
      %v575 = vrot.slane %v573, 7
      %v576 = vshll.u32 %v312, 16
      %v578 = vor.u32 %v575, %v576
      %v579 = vrot.slane %v575, 4
      %v581 = vshrl.u32 %v313, 16
      %v583 = vrot.slane %v581, 7
      %v584 = vshll.u32 %v313, 16
      %v586 = vor.u32 %v583, %v584
      %v587 = vsel %vm316, %v579, %v586
      %v588 = vrot.slane %v583, 4
      %s637 = scalar_lea.vmem [#allocation2], 12
      %vm638 = vcmask 27648
      %vm639 = vsmask.f32 7938
      %vm640 = vmand %vm638, %vm639
      %v641 = vld [vmem:[%s637] sm:$0xf]
      %v642 = vsel %vm640, %v323, %v641
      %643 = vst [vmem:[%s637] sm:$0xf] %v642
      %644 = vst.msk [vmem:[%s637 + $0x4] sm:$0xf] %vm226, %v332
      %vm645 = vcmask 24576
      %vm646 = vmand %vm645, %vm314
      %v647 = vld [vmem:[%s637 + $0x8] sm:$0x1]
      %v648 = vsel %vm646, %v333, %v647
      %649 = vst [vmem:[%s637 + $0x8] sm:$0x1] %v648
      %v650 = vld [vmem:[%s637 + $0xc] sm:$0xf]
      %v651 = vsel %vm640, %v340, %v650
      %652 = vst [vmem:[%s637 + $0xc] sm:$0xf] %v651
      %653 = vst.msk [vmem:[%s637 + $0x10] sm:$0xf] %vm226, %v349
      %v654 = vld [vmem:[%s637 + $0x14] sm:$0x1]
      %v655 = vsel %vm646, %v350, %v654
      %656 = vst [vmem:[%s637 + $0x14] sm:$0x1] %v655
      %v657 = vld [vmem:[%s637 + $0x18] sm:$0xf]
      %v658 = vsel %vm640, %v357, %v657
      %659 = vst [vmem:[%s637 + $0x18] sm:$0xf] %v658
      %660 = vst.msk [vmem:[%s637 + $0x1c] sm:$0xf] %vm226, %v366
      %v661 = vld [vmem:[%s637 + $0x20] sm:$0x1]
      %v662 = vsel %vm646, %v367, %v661
      %663 = vst [vmem:[%s637 + $0x20] sm:$0x1] %v662
      %v664 = vld [vmem:[%s637 + $0x24] sm:$0xf]
      %v665 = vsel %vm640, %v374, %v664
      %666 = vst [vmem:[%s637 + $0x24] sm:$0xf] %v665
      %667 = vst.msk [vmem:[%s637 + $0x28] sm:$0xf] %vm226, %v383
      %v668 = vld [vmem:[%s637 + $0x2c] sm:$0x1]
      %v669 = vsel %vm646, %v384, %v668
      %670 = vst [vmem:[%s637 + $0x2c] sm:$0x1] %v669
      %v671 = vld [vmem:[%s637 + $0x30] sm:$0xf]
      %v672 = vsel %vm640, %v391, %v671
      %673 = vst [vmem:[%s637 + $0x30] sm:$0xf] %v672
      %674 = vst.msk [vmem:[%s637 + $0x34] sm:$0xf] %vm226, %v400
      %v675 = vld [vmem:[%s637 + $0x38] sm:$0x1]
      %v676 = vsel %vm646, %v401, %v675
      %677 = vst [vmem:[%s637 + $0x38] sm:$0x1] %v676
      %v678 = vld [vmem:[%s637 + $0x3c] sm:$0xf]
      %v679 = vsel %vm640, %v408, %v678
      %680 = vst [vmem:[%s637 + $0x3c] sm:$0xf] %v679
      %681 = vst.msk [vmem:[%s637 + $0x40] sm:$0xf] %vm226, %v417
      %v682 = vld [vmem:[%s637 + $0x44] sm:$0x1]
      %v683 = vsel %vm646, %v418, %v682
      %684 = vst [vmem:[%s637 + $0x44] sm:$0x1] %v683
      %v685 = vld [vmem:[%s637 + $0x48] sm:$0xf]
      %v686 = vsel %vm640, %v425, %v685
      %687 = vst [vmem:[%s637 + $0x48] sm:$0xf] %v686
      %688 = vst.msk [vmem:[%s637 + $0x4c] sm:$0xf] %vm226, %v434
      %v689 = vld [vmem:[%s637 + $0x50] sm:$0x1]
      %v690 = vsel %vm646, %v435, %v689
      %691 = vst [vmem:[%s637 + $0x50] sm:$0x1] %v690
      %v692 = vld [vmem:[%s637 + $0x54] sm:$0xf]
      %v693 = vsel %vm640, %v442, %v692
      %694 = vst [vmem:[%s637 + $0x54] sm:$0xf] %v693
      %695 = vst.msk [vmem:[%s637 + $0x58] sm:$0xf] %vm226, %v451
      %v696 = vld [vmem:[%s637 + $0x5c] sm:$0x1]
      %v697 = vsel %vm646, %v452, %v696
      %698 = vst [vmem:[%s637 + $0x5c] sm:$0x1] %v697
      %v699 = vld [vmem:[%s637 + $0x60] sm:$0xf]
      %v700 = vsel %vm640, %v459, %v699
      %701 = vst [vmem:[%s637 + $0x60] sm:$0xf] %v700
      %702 = vst.msk [vmem:[%s637 + $0x64] sm:$0xf] %vm226, %v468
      %v703 = vld [vmem:[%s637 + $0x68] sm:$0x1]
      %v704 = vsel %vm646, %v469, %v703
      %705 = vst [vmem:[%s637 + $0x68] sm:$0x1] %v704
      %v706 = vld [vmem:[%s637 + $0x6c] sm:$0xf]
      %v707 = vsel %vm640, %v476, %v706
      %708 = vst [vmem:[%s637 + $0x6c] sm:$0xf] %v707
      %709 = vst.msk [vmem:[%s637 + $0x70] sm:$0xf] %vm226, %v485
      %v710 = vld [vmem:[%s637 + $0x74] sm:$0x1]
      %v711 = vsel %vm646, %v486, %v710
      %712 = vst [vmem:[%s637 + $0x74] sm:$0x1] %v711
      %v713 = vld [vmem:[%s637 + $0x78] sm:$0xf]
      %v714 = vsel %vm640, %v493, %v713
      %715 = vst [vmem:[%s637 + $0x78] sm:$0xf] %v714
      %716 = vst.msk [vmem:[%s637 + $0x7c] sm:$0xf] %vm226, %v502
      %v717 = vld [vmem:[%s637 + $0x80] sm:$0x1]
      %v718 = vsel %vm646, %v503, %v717
      %719 = vst [vmem:[%s637 + $0x80] sm:$0x1] %v718
      %v720 = vld [vmem:[%s637 + $0x84] sm:$0xf]
      %v721 = vsel %vm640, %v510, %v720
      %722 = vst [vmem:[%s637 + $0x84] sm:$0xf] %v721
      %723 = vst.msk [vmem:[%s637 + $0x88] sm:$0xf] %vm226, %v519
      %v724 = vld [vmem:[%s637 + $0x8c] sm:$0x1]
      %v725 = vsel %vm646, %v520, %v724
      %726 = vst [vmem:[%s637 + $0x8c] sm:$0x1] %v725
      %v727 = vld [vmem:[%s637 + $0x90] sm:$0xf]
      %v728 = vsel %vm640, %v527, %v727
      %729 = vst [vmem:[%s637 + $0x90] sm:$0xf] %v728
      %730 = vst.msk [vmem:[%s637 + $0x94] sm:$0xf] %vm226, %v536
      %v731 = vld [vmem:[%s637 + $0x98] sm:$0x1]
      %v732 = vsel %vm646, %v537, %v731
      %733 = vst [vmem:[%s637 + $0x98] sm:$0x1] %v732
      %v734 = vld [vmem:[%s637 + $0x9c] sm:$0xf]
      %v735 = vsel %vm640, %v544, %v734
      %736 = vst [vmem:[%s637 + $0x9c] sm:$0xf] %v735
      %737 = vst.msk [vmem:[%s637 + $0xa0] sm:$0xf] %vm226, %v553
      %v738 = vld [vmem:[%s637 + $0xa4] sm:$0x1]
      %v739 = vsel %vm646, %v554, %v738
      %740 = vst [vmem:[%s637 + $0xa4] sm:$0x1] %v739
      %v741 = vld [vmem:[%s637 + $0xa8] sm:$0xf]
      %v742 = vsel %vm640, %v561, %v741
      %743 = vst [vmem:[%s637 + $0xa8] sm:$0xf] %v742
      %744 = vst.msk [vmem:[%s637 + $0xac] sm:$0xf] %vm226, %v570
      %v745 = vld [vmem:[%s637 + $0xb0] sm:$0x1]
      %v746 = vsel %vm646, %v571, %v745
      %747 = vst [vmem:[%s637 + $0xb0] sm:$0x1] %v746
      %v748 = vld [vmem:[%s637 + $0xb4] sm:$0xf]
      %v749 = vsel %vm640, %v578, %v748
      %750 = vst [vmem:[%s637 + $0xb4] sm:$0xf] %v749
      %751 = vst.msk [vmem:[%s637 + $0xb8] sm:$0xf] %vm226, %v587
      %v752 = vld [vmem:[%s637 + $0xbc] sm:$0x1]
      %v753 = vsel %vm646, %v588, %v752
      %754 = vst [vmem:[%s637 + $0xbc] sm:$0x1] %v753
      %vm755 = vcmask 60416
      %756 = vst.msk [vmem:[#allocation3] sm:$0xf] %vm755, 0
      %757 = vst.msk [vmem:[#allocation3 + $0x4] sm:$0xf] %vm755, 0
      %vm758 = vcmask 57344
      %759 = vst.msk [vmem:[#allocation3 + $0x8] sm:$0x1] %vm758, 0
      %760 = vst.msk [vmem:[#allocation3 + $0xc] sm:$0xf] %vm755, 0
      %761 = vst.msk [vmem:[#allocation3 + $0x10] sm:$0xf] %vm755, 0
      %762 = vst.msk [vmem:[#allocation3 + $0x14] sm:$0x1] %vm758, 0
      %763 = vst.msk [vmem:[#allocation3 + $0x18] sm:$0xf] %vm755, 0
      %764 = vst.msk [vmem:[#allocation3 + $0x1c] sm:$0xf] %vm755, 0
      %765 = vst.msk [vmem:[#allocation3 + $0x20] sm:$0x1] %vm758, 0
      %766 = vst.msk [vmem:[#allocation3 + $0x24] sm:$0xf] %vm755, 0
      %767 = vst.msk [vmem:[#allocation3 + $0x28] sm:$0xf] %vm755, 0
      %768 = vst.msk [vmem:[#allocation3 + $0x2c] sm:$0x1] %vm758, 0
      %769 = vst.msk [vmem:[#allocation3 + $0x30] sm:$0xf] %vm755, 0
      %770 = vst.msk [vmem:[#allocation3 + $0x34] sm:$0xf] %vm755, 0
      %771 = vst.msk [vmem:[#allocation3 + $0x38] sm:$0x1] %vm758, 0
      %772 = vst.msk [vmem:[#allocation3 + $0x3c] sm:$0xf] %vm755, 0
      %773 = vst.msk [vmem:[#allocation3 + $0x40] sm:$0xf] %vm755, 0
      %774 = vst.msk [vmem:[#allocation3 + $0x44] sm:$0x1] %vm758, 0
      %775 = vst.msk [vmem:[#allocation3 + $0x48] sm:$0xf] %vm755, 0
      %776 = vst.msk [vmem:[#allocation3 + $0x4c] sm:$0xf] %vm755, 0
      %777 = vst.msk [vmem:[#allocation3 + $0x50] sm:$0x1] %vm758, 0
      %778 = vst.msk [vmem:[#allocation3 + $0x54] sm:$0xf] %vm755, 0
      %779 = vst.msk [vmem:[#allocation3 + $0x58] sm:$0xf] %vm755, 0
      %780 = vst.msk [vmem:[#allocation3 + $0x5c] sm:$0x1] %vm758, 0
      %781 = vst.msk [vmem:[#allocation3 + $0x60] sm:$0xf] %vm755, 0
      %782 = vst.msk [vmem:[#allocation3 + $0x64] sm:$0xf] %vm755, 0
      %783 = vst.msk [vmem:[#allocation3 + $0x68] sm:$0x1] %vm758, 0
      %784 = vst.msk [vmem:[#allocation3 + $0x6c] sm:$0xf] %vm755, 0
      %785 = vst.msk [vmem:[#allocation3 + $0x70] sm:$0xf] %vm755, 0
      %786 = vst.msk [vmem:[#allocation3 + $0x74] sm:$0x1] %vm758, 0
      %787 = vst.msk [vmem:[#allocation3 + $0x78] sm:$0xf] %vm755, 0
      %788 = vst.msk [vmem:[#allocation3 + $0x7c] sm:$0xf] %vm755, 0
      %789 = vst.msk [vmem:[#allocation3 + $0x80] sm:$0x1] %vm758, 0
      %790 = vst.msk [vmem:[#allocation3 + $0x84] sm:$0xf] %vm755, 0
      %791 = vst.msk [vmem:[#allocation3 + $0x88] sm:$0xf] %vm755, 0
      %792 = vst.msk [vmem:[#allocation3 + $0x8c] sm:$0x1] %vm758, 0
      %793 = vst.msk [vmem:[#allocation3 + $0x90] sm:$0xf] %vm755, 0
      %794 = vst.msk [vmem:[#allocation3 + $0x94] sm:$0xf] %vm755, 0
      %795 = vst.msk [vmem:[#allocation3 + $0x98] sm:$0x1] %vm758, 0
      %796 = vst.msk [vmem:[#allocation3 + $0x9c] sm:$0xf] %vm755, 0
      %797 = vst.msk [vmem:[#allocation3 + $0xa0] sm:$0xf] %vm755, 0
      %798 = vst.msk [vmem:[#allocation3 + $0xa4] sm:$0x1] %vm758, 0
      %799 = vst.msk [vmem:[#allocation3 + $0xa8] sm:$0xf] %vm755, 0
      %800 = vst.msk [vmem:[#allocation3 + $0xac] sm:$0xf] %vm755, 0
      %801 = vst.msk [vmem:[#allocation3 + $0xb0] sm:$0x1] %vm758, 0
      %802 = vst.msk [vmem:[#allocation3 + $0xb4] sm:$0xf] %vm755, 0
      %803 = vst.msk [vmem:[#allocation3 + $0xb8] sm:$0xf] %vm755, 0
      %804 = vst.msk [vmem:[#allocation3 + $0xbc] sm:$0x1] %vm758, 0
      %805 = vst.msk [vmem:[#allocation3 + $0xc0] sm:$0xf] %vm755, 0
      %806 = vst.msk [vmem:[#allocation3 + $0xc4] sm:$0xf] %vm755, 0
      %807 = vst.msk [vmem:[#allocation3 + $0xc8] sm:$0x1] %vm758, 0
      %808 = vst.msk [vmem:[#allocation3 + $0xcc] sm:$0xf] %vm755, 0
      %809 = vst.msk [vmem:[#allocation3 + $0xd0] sm:$0xf] %vm755, 0
      %810 = vst.msk [vmem:[#allocation3 + $0xd4] sm:$0x1] %vm758, 0
      %v811 = vld [vmem:[#allocation2] sm:$0xf]
      %v812 = vld [vmem:[#allocation2 + $0x4] sm:$0xf]
      %v813 = vld [vmem:[#allocation2 + $0xc] sm:$0xf]
      %v814 = vld [vmem:[#allocation2 + $0x10] sm:$0xf]
      %v815 = vld [vmem:[#allocation2 + $0x18] sm:$0xf]
      %v816 = vld [vmem:[#allocation2 + $0x1c] sm:$0xf]
      %v817 = vld [vmem:[#allocation2 + $0x24] sm:$0xf]
      %v818 = vld [vmem:[#allocation2 + $0x28] sm:$0xf]
      %v819 = vld [vmem:[#allocation2 + $0x30] sm:$0xf]
      %v820 = vld [vmem:[#allocation2 + $0x34] sm:$0xf]
      %v821 = vld [vmem:[#allocation2 + $0x3c] sm:$0xf]
      %v822 = vld [vmem:[#allocation2 + $0x40] sm:$0xf]
      %v823 = vld [vmem:[#allocation2 + $0x48] sm:$0xf]
      %v824 = vld [vmem:[#allocation2 + $0x4c] sm:$0xf]
      %v825 = vld [vmem:[#allocation2 + $0x54] sm:$0xf]
      %v826 = vld [vmem:[#allocation2 + $0x58] sm:$0xf]
      %v827 = vld [vmem:[#allocation2 + $0x60] sm:$0xf]
      %v828 = vld [vmem:[#allocation2 + $0x64] sm:$0xf]
      %v829 = vld [vmem:[#allocation2 + $0x6c] sm:$0xf]
      %v830 = vld [vmem:[#allocation2 + $0x70] sm:$0xf]
      %v831 = vld [vmem:[#allocation2 + $0x78] sm:$0xf]
      %v832 = vld [vmem:[#allocation2 + $0x7c] sm:$0xf]
      %v833 = vld [vmem:[#allocation2 + $0x84] sm:$0xf]
      %v834 = vld [vmem:[#allocation2 + $0x88] sm:$0xf]
      %v835 = vld [vmem:[#allocation2 + $0x90] sm:$0xf]
      %v836 = vld [vmem:[#allocation2 + $0x94] sm:$0xf]
      %v837 = vld [vmem:[#allocation2 + $0x9c] sm:$0xf]
      %v838 = vld [vmem:[#allocation2 + $0xa0] sm:$0xf]
      %v839 = vld [vmem:[#allocation2 + $0xa8] sm:$0xf]
      %v840 = vld [vmem:[#allocation2 + $0xac] sm:$0xf]
      %v841 = vld [vmem:[#allocation2 + $0xb4] sm:$0xf]
      %v842 = vld [vmem:[#allocation2 + $0xb8] sm:$0xf]
      %v843 = vld [vmem:[#allocation2 + $0xc0] sm:$0xf]
      %v844 = vld [vmem:[#allocation2 + $0xc4] sm:$0xf]
      %v845 = vld [vmem:[#allocation2 + $0xcc] sm:$0xf]
      %v846 = vld [vmem:[#allocation2 + $0xd0] sm:$0xf]
      %v847 = vld [vmem:[%s1] sm:$0x3]
      %s848 = scalar_lea.vmem %s1, 6
      %v849 = vld [vmem:[%s848] sm:$0x3]
      %v882 = vunpack.c.l.b16 %v813
      %v883 = vunpack.c.l.b16 %v814
      %v884 = vunpack.c.l.b16 %v815
      %v885 = vunpack.c.l.b16 %v816
      %v886 = vunpack.c.l.b16 %v817
      %v887 = vunpack.c.l.b16 %v818
      %v888 = vunpack.c.l.b16 %v819
      %v889 = vunpack.c.l.b16 %v820
      %v890 = vunpack.c.l.b16 %v821
      %v891 = vunpack.c.l.b16 %v822
      %v892 = vunpack.c.l.b16 %v823
      %v893 = vunpack.c.l.b16 %v824
      %v894 = vunpack.c.l.b16 %v825
      %v895 = vunpack.c.l.b16 %v826
      %v896 = vunpack.c.l.b16 %v827
      %v897 = vunpack.c.l.b16 %v828
      %v898 = vunpack.c.l.b16 %v829
      %v899 = vunpack.c.l.b16 %v830
      %v900 = vunpack.c.l.b16 %v831
      %v901 = vunpack.c.l.b16 %v832
      %v902 = vunpack.c.l.b16 %v833
      %v903 = vunpack.c.l.b16 %v834
      %v904 = vunpack.c.l.b16 %v835
      %v905 = vunpack.c.l.b16 %v836
      %v906 = vunpack.c.l.b16 %v837
      %v907 = vunpack.c.l.b16 %v838
      %v908 = vunpack.c.l.b16 %v839
      %v909 = vunpack.c.l.b16 %v840
      %v910 = vunpack.c.l.b16 %v841
      %v911 = vunpack.c.l.b16 %v842
      %v912 = vunpack.c.l.b16 %v843
      %v913 = vunpack.c.l.b16 %v844
      %v914 = vpack.c.b16 %v883, %v882
      %v915 = vpack.c.b16 %v885, %v884
      %v916 = vpack.c.b16 %v887, %v886
      %v917 = vpack.c.b16 %v889, %v888
      %v918 = vpack.c.b16 %v891, %v890
      %v919 = vpack.c.b16 %v893, %v892
      %v920 = vpack.c.b16 %v895, %v894
      %v921 = vpack.c.b16 %v897, %v896
      %v922 = vpack.c.b16 %v899, %v898
      %v923 = vpack.c.b16 %v901, %v900
      %v924 = vpack.c.b16 %v903, %v902
      %v925 = vpack.c.b16 %v905, %v904
      %v926 = vpack.c.b16 %v907, %v906
      %v927 = vpack.c.b16 %v909, %v908
      %v928 = vpack.c.b16 %v911, %v910
      %v929 = vpack.c.b16 %v913, %v912
      %vm930 = vcmask 31744
      %v932 = vsel %vm930, %v914, 0
      %v935 = vsel %vm930, %v915, 0
      %v938 = vsel %vm930, %v916, 0
      %v941 = vsel %vm930, %v917, 0
      %v944 = vsel %vm930, %v918, 0
      %v947 = vsel %vm930, %v919, 0
      %v950 = vsel %vm930, %v920, 0
      %v953 = vsel %vm930, %v921, 0
      %v956 = vsel %vm930, %v922, 0
      %v959 = vsel %vm930, %v923, 0
      %v962 = vsel %vm930, %v924, 0
      %v965 = vsel %vm930, %v925, 0
      %v968 = vsel %vm930, %v926, 0
      %v971 = vsel %vm930, %v927, 0
      %v974 = vsel %vm930, %v928, 0
      %v977 = vsel %vm930, %v929, 0
      %vm979 = vcmask 1041408
      %v981 = vsel %vm979, %v849, 0
      %983 = vmatprep.subr.bf16.mxu0 0
      %984 = vmatpush1.bf16.msra.mxu0 %v981
      %985 = vmatprep.subr.bf16.mxu0 0
      %986 = vmatpush1.bf16.msra.mxu0 0
      %987 = vmatprep.subr.bf16.mxu0 0
      %988 = vmatpush1.bf16.msra.mxu0 0
      %989 = vmatprep.subr.bf16.mxu0 0
      %990 = vmatpush1.bf16.msra.mxu0 0
      %991 = vmatprep.subr.bf16.mxu0 0
      %992 = vmatpush1.bf16.msra.mxu0 0
      %993 = vmatprep.subr.bf16.mxu0 0
      %994 = vmatpush1.bf16.msra.mxu0 0
      %995 = vmatprep.subr.bf16.mxu0 0
      %996 = vmatpush1.bf16.msra.mxu0 0
      %997 = vmatprep.subr.bf16.mxu0 0
      %998 = vmatpush1.bf16.msra.mxu0 0
      %999 = vmatprep.subr.bf16.mxu0 0
      %1000 = vmatpush1.bf16.msra.mxu0 0
      %1001 = vmatprep.subr.bf16.mxu0 0
      %1002 = vmatpush1.bf16.msra.mxu0 0
      %1003 = vmatprep.subr.bf16.mxu0 0
      %1004 = vmatpush1.bf16.msra.mxu0 0
      %1005 = vmatprep.subr.bf16.mxu0 0
      %1006 = vmatpush1.bf16.msra.mxu0 0
      %1007 = vmatprep.subr.bf16.mxu0 0
      %1008 = vmatpush1.bf16.msra.mxu0 0
      %1009 = vmatprep.subr.bf16.mxu0 0
      %1010 = vmatpush1.bf16.msra.mxu0 0
      %1011 = vmatprep.subr.bf16.mxu0 0
      %1012 = vmatpush1.bf16.msra.mxu0 0
      %1013 = vmatprep.subr.bf16.mxu0 0
      %1014 = vmatpush1.bf16.msra.mxu0 0
      %1015 = vmatprep.mubr.bf16.mxu0 0
      %1016 = vmatmul.mubr.bf16.gmra.mrb[0].mxu0 %v932
      %v1017 = vpop.f32.mrb[0].mxu0
      %v1018 = vadd.f32 0.0, %v1017
      %v1019 = vpop.f32.mrb[0].mxu0
      %v1020 = vpop.f32.mrb[0].mxu0
      %v1021 = vadd.f32 0.0, %v1020
      %v1022 = vpop.f32.mrb[0].mxu0
      %1023 = vmatprep.mubr.bf16.mxu0 0
      %1024 = vmatmul.mubr.bf16.gmra.mrb[0].mxu0 %v935
      %v1025 = vpop.f32.mrb[0].mxu0
      %v1026 = vadd.f32 0.0, %v1025
      %v1027 = vpop.f32.mrb[0].mxu0
      %v1028 = vpop.f32.mrb[0].mxu0
      %v1029 = vadd.f32 0.0, %v1028
      %v1030 = vpop.f32.mrb[0].mxu0
      %1031 = vmatprep.mubr.bf16.mxu0 0
      %1032 = vmatmul.mubr.bf16.gmra.mrb[0].mxu0 %v938
      %v1033 = vpop.f32.mrb[0].mxu0
      %v1034 = vadd.f32 0.0, %v1033
      %v1035 = vpop.f32.mrb[0].mxu0
      %v1036 = vpop.f32.mrb[0].mxu0
      %v1037 = vadd.f32 0.0, %v1036
      %v1038 = vpop.f32.mrb[0].mxu0
      %1039 = vmatprep.mubr.bf16.mxu0 0
      %1040 = vmatmul.mubr.bf16.gmra.mrb[0].mxu0 %v941
      %v1041 = vpop.f32.mrb[0].mxu0
      %v1042 = vadd.f32 0.0, %v1041
      %v1043 = vpop.f32.mrb[0].mxu0
      %v1044 = vpop.f32.mrb[0].mxu0
      %v1045 = vadd.f32 0.0, %v1044
      %v1046 = vpop.f32.mrb[0].mxu0
      %1047 = vmatprep.mubr.bf16.mxu0 0
      %1048 = vmatmul.mubr.bf16.gmra.mrb[0].mxu0 %v944
      %v1049 = vpop.f32.mrb[0].mxu0
      %v1050 = vadd.f32 0.0, %v1049
      %v1051 = vpop.f32.mrb[0].mxu0
      %v1052 = vpop.f32.mrb[0].mxu0
      %v1053 = vadd.f32 0.0, %v1052
      %v1054 = vpop.f32.mrb[0].mxu0
      %1055 = vmatprep.mubr.bf16.mxu0 0
      %1056 = vmatmul.mubr.bf16.gmra.mrb[0].mxu0 %v947
      %v1057 = vpop.f32.mrb[0].mxu0
      %v1058 = vadd.f32 0.0, %v1057
      %v1059 = vpop.f32.mrb[0].mxu0
      %v1060 = vpop.f32.mrb[0].mxu0
      %v1061 = vadd.f32 0.0, %v1060
      %v1062 = vpop.f32.mrb[0].mxu0
      %1063 = vmatprep.mubr.bf16.mxu0 0
      %1064 = vmatmul.mubr.bf16.gmra.mrb[0].mxu0 %v950
      %v1065 = vpop.f32.mrb[0].mxu0
      %v1066 = vadd.f32 0.0, %v1065
      %v1067 = vpop.f32.mrb[0].mxu0
      %v1068 = vpop.f32.mrb[0].mxu0
      %v1069 = vadd.f32 0.0, %v1068
      %v1070 = vpop.f32.mrb[0].mxu0
      %1071 = vmatprep.mubr.bf16.mxu0 0
      %1072 = vmatmul.mubr.bf16.gmra.mrb[0].mxu0 %v953
      %v1073 = vpop.f32.mrb[0].mxu0
      %v1074 = vadd.f32 0.0, %v1073
      %v1075 = vpop.f32.mrb[0].mxu0
      %v1076 = vpop.f32.mrb[0].mxu0
      %v1077 = vadd.f32 0.0, %v1076
      %v1078 = vpop.f32.mrb[0].mxu0
      %1079 = vmatprep.mubr.bf16.mxu0 0
      %1080 = vmatmul.mubr.bf16.gmra.mrb[0].mxu0 %v956
      %v1081 = vpop.f32.mrb[0].mxu0
      %v1082 = vadd.f32 0.0, %v1081
      %v1083 = vpop.f32.mrb[0].mxu0
      %v1084 = vpop.f32.mrb[0].mxu0
      %v1085 = vadd.f32 0.0, %v1084
      %v1086 = vpop.f32.mrb[0].mxu0
      %1087 = vmatprep.mubr.bf16.mxu0 0
      %1088 = vmatmul.mubr.bf16.gmra.mrb[0].mxu0 %v959
      %v1089 = vpop.f32.mrb[0].mxu0
      %v1090 = vadd.f32 0.0, %v1089
      %v1091 = vpop.f32.mrb[0].mxu0
      %v1092 = vpop.f32.mrb[0].mxu0
      %v1093 = vadd.f32 0.0, %v1092
      %v1094 = vpop.f32.mrb[0].mxu0
      %1095 = vmatprep.mubr.bf16.mxu0 0
      %1096 = vmatmul.mubr.bf16.gmra.mrb[0].mxu0 %v962
      %v1097 = vpop.f32.mrb[0].mxu0
      %v1098 = vadd.f32 0.0, %v1097
      %v1099 = vpop.f32.mrb[0].mxu0
      %v1100 = vpop.f32.mrb[0].mxu0
      %v1101 = vadd.f32 0.0, %v1100
      %v1102 = vpop.f32.mrb[0].mxu0
      %1103 = vmatprep.mubr.bf16.mxu0 0
      %1104 = vmatmul.mubr.bf16.gmra.mrb[0].mxu0 %v965
      %v1105 = vpop.f32.mrb[0].mxu0
      %v1106 = vadd.f32 0.0, %v1105
      %v1107 = vpop.f32.mrb[0].mxu0
      %v1108 = vpop.f32.mrb[0].mxu0
      %v1109 = vadd.f32 0.0, %v1108
      %v1110 = vpop.f32.mrb[0].mxu0
      %1111 = vmatprep.mubr.bf16.mxu0 0
      %1112 = vmatmul.mubr.bf16.gmra.mrb[0].mxu0 %v968
      %v1113 = vpop.f32.mrb[0].mxu0
      %v1114 = vadd.f32 0.0, %v1113
      %v1115 = vpop.f32.mrb[0].mxu0
      %v1116 = vpop.f32.mrb[0].mxu0
      %v1117 = vadd.f32 0.0, %v1116
      %v1118 = vpop.f32.mrb[0].mxu0
      %1119 = vmatprep.mubr.bf16.mxu0 0
      %1120 = vmatmul.mubr.bf16.gmra.mrb[0].mxu0 %v971
      %v1121 = vpop.f32.mrb[0].mxu0
      %v1122 = vadd.f32 0.0, %v1121
      %v1123 = vpop.f32.mrb[0].mxu0
      %v1124 = vpop.f32.mrb[0].mxu0
      %v1125 = vadd.f32 0.0, %v1124
      %v1126 = vpop.f32.mrb[0].mxu0
      %1127 = vmatprep.mubr.bf16.mxu0 0
      %1128 = vmatmul.mubr.bf16.gmra.mrb[0].mxu0 %v974
      %v1129 = vpop.f32.mrb[0].mxu0
      %v1130 = vadd.f32 0.0, %v1129
      %v1131 = vpop.f32.mrb[0].mxu0
      %v1132 = vpop.f32.mrb[0].mxu0
      %v1133 = vadd.f32 0.0, %v1132
      %v1134 = vpop.f32.mrb[0].mxu0
      %1135 = vmatprep.mubr.bf16.mxu0 0
      %1136 = vmatmul.mubr.bf16.gmra.mrb[0].mxu0 %v977
      %v1137 = vpop.f32.mrb[0].mxu0
      %v1138 = vadd.f32 0.0, %v1137
      %v1139 = vpop.f32.mrb[0].mxu0
      %v1140 = vpop.f32.mrb[0].mxu0
      %v1141 = vadd.f32 0.0, %v1140
      %v1142 = vpop.f32.mrb[0].mxu0
      %1143 = vdwg.mxu0
      %v1146 = vunpack.c.l.b16 %v811
      %v1147 = vunpack.c.l.b16 %v812
      %v1148 = vpack.c.b16 %v1147, %v1146
      %v1150 = vsel %vm930, %v1148, 0
      %v1153 = vsel %vm979, %v847, 0
      %1155 = vmatprep.subr.bf16.mxu0 0
      %1156 = vmatpush1.bf16.msra.mxu0 %v1153
      %1157 = vmatprep.subr.bf16.mxu0 0
      %1158 = vmatpush1.bf16.msra.mxu0 0
      %1159 = vmatprep.subr.bf16.mxu0 0
      %1160 = vmatpush1.bf16.msra.mxu0 0
      %1161 = vmatprep.subr.bf16.mxu0 0
      %1162 = vmatpush1.bf16.msra.mxu0 0
      %1163 = vmatprep.subr.bf16.mxu0 0
      %1164 = vmatpush1.bf16.msra.mxu0 0
      %1165 = vmatprep.subr.bf16.mxu0 0
      %1166 = vmatpush1.bf16.msra.mxu0 0
      %1167 = vmatprep.subr.bf16.mxu0 0
      %1168 = vmatpush1.bf16.msra.mxu0 0
      %1169 = vmatprep.subr.bf16.mxu0 0
      %1170 = vmatpush1.bf16.msra.mxu0 0
      %1171 = vmatprep.subr.bf16.mxu0 0
      %1172 = vmatpush1.bf16.msra.mxu0 0
      %1173 = vmatprep.subr.bf16.mxu0 0
      %1174 = vmatpush1.bf16.msra.mxu0 0
      %1175 = vmatprep.subr.bf16.mxu0 0
      %1176 = vmatpush1.bf16.msra.mxu0 0
      %1177 = vmatprep.subr.bf16.mxu0 0
      %1178 = vmatpush1.bf16.msra.mxu0 0
      %1179 = vmatprep.subr.bf16.mxu0 0
      %1180 = vmatpush1.bf16.msra.mxu0 0
      %1181 = vmatprep.subr.bf16.mxu0 0
      %1182 = vmatpush1.bf16.msra.mxu0 0
      %1183 = vmatprep.subr.bf16.mxu0 0
      %1184 = vmatpush1.bf16.msra.mxu0 0
      %1185 = vmatprep.subr.bf16.mxu0 0
      %1186 = vmatpush1.bf16.msra.mxu0 0
      %1187 = vmatprep.mubr.bf16.mxu0 0
      %1188 = vmatmul.mubr.bf16.gmra.mrb[0].mxu0 %v1150
      %v1189 = vpop.f32.mrb[0].mxu0
      %v1190 = vadd.f32 %v1018, %v1189
      %v1191 = vpop.f32.mrb[0].mxu0
      %v1192 = vpop.f32.mrb[0].mxu0
      %v1193 = vadd.f32 %v1021, %v1192
      %v1194 = vpop.f32.mrb[0].mxu0
      %1195 = vmatprep.mubr.bf16.mxu0 0
      %1196 = vmatmul.mubr.bf16.gmra.mrb[0].mxu0 %v932
      %v1197 = vpop.f32.mrb[0].mxu0
      %v1198 = vadd.f32 %v1026, %v1197
      %v1199 = vpop.f32.mrb[0].mxu0
      %v1200 = vpop.f32.mrb[0].mxu0
      %v1201 = vadd.f32 %v1029, %v1200
      %v1202 = vpop.f32.mrb[0].mxu0
      %1203 = vmatprep.mubr.bf16.mxu0 0
      %1204 = vmatmul.mubr.bf16.gmra.mrb[0].mxu0 %v935
      %v1205 = vpop.f32.mrb[0].mxu0
      %v1206 = vadd.f32 %v1034, %v1205
      %v1207 = vpop.f32.mrb[0].mxu0
      %v1208 = vpop.f32.mrb[0].mxu0
      %v1209 = vadd.f32 %v1037, %v1208
      %v1210 = vpop.f32.mrb[0].mxu0
      %1211 = vmatprep.mubr.bf16.mxu0 0
      %1212 = vmatmul.mubr.bf16.gmra.mrb[0].mxu0 %v938
      %v1213 = vpop.f32.mrb[0].mxu0
      %v1214 = vadd.f32 %v1042, %v1213
      %v1215 = vpop.f32.mrb[0].mxu0
      %v1216 = vpop.f32.mrb[0].mxu0
      %v1217 = vadd.f32 %v1045, %v1216
      %v1218 = vpop.f32.mrb[0].mxu0
      %1219 = vmatprep.mubr.bf16.mxu0 0
      %1220 = vmatmul.mubr.bf16.gmra.mrb[0].mxu0 %v941
      %v1221 = vpop.f32.mrb[0].mxu0
      %v1222 = vadd.f32 %v1050, %v1221
      %v1223 = vpop.f32.mrb[0].mxu0
      %v1224 = vpop.f32.mrb[0].mxu0
      %v1225 = vadd.f32 %v1053, %v1224
      %v1226 = vpop.f32.mrb[0].mxu0
      %1227 = vmatprep.mubr.bf16.mxu0 0
      %1228 = vmatmul.mubr.bf16.gmra.mrb[0].mxu0 %v944
      %v1229 = vpop.f32.mrb[0].mxu0
      %v1230 = vadd.f32 %v1058, %v1229
      %v1231 = vpop.f32.mrb[0].mxu0
      %v1232 = vpop.f32.mrb[0].mxu0
      %v1233 = vadd.f32 %v1061, %v1232
      %v1234 = vpop.f32.mrb[0].mxu0
      %1235 = vmatprep.mubr.bf16.mxu0 0
      %1236 = vmatmul.mubr.bf16.gmra.mrb[0].mxu0 %v947
      %v1237 = vpop.f32.mrb[0].mxu0
      %v1238 = vadd.f32 %v1066, %v1237
      %v1239 = vpop.f32.mrb[0].mxu0
      %v1240 = vpop.f32.mrb[0].mxu0
      %v1241 = vadd.f32 %v1069, %v1240
      %v1242 = vpop.f32.mrb[0].mxu0
      %1243 = vmatprep.mubr.bf16.mxu0 0
      %1244 = vmatmul.mubr.bf16.gmra.mrb[0].mxu0 %v950
      %v1245 = vpop.f32.mrb[0].mxu0
      %v1246 = vadd.f32 %v1074, %v1245
      %v1247 = vpop.f32.mrb[0].mxu0
      %v1248 = vpop.f32.mrb[0].mxu0
      %v1249 = vadd.f32 %v1077, %v1248
      %v1250 = vpop.f32.mrb[0].mxu0
      %1251 = vmatprep.mubr.bf16.mxu0 0
      %1252 = vmatmul.mubr.bf16.gmra.mrb[0].mxu0 %v953
      %v1253 = vpop.f32.mrb[0].mxu0
      %v1254 = vadd.f32 %v1082, %v1253
      %v1255 = vpop.f32.mrb[0].mxu0
      %v1256 = vpop.f32.mrb[0].mxu0
      %v1257 = vadd.f32 %v1085, %v1256
      %v1258 = vpop.f32.mrb[0].mxu0
      %1259 = vmatprep.mubr.bf16.mxu0 0
      %1260 = vmatmul.mubr.bf16.gmra.mrb[0].mxu0 %v956
      %v1261 = vpop.f32.mrb[0].mxu0
      %v1262 = vadd.f32 %v1090, %v1261
      %v1263 = vpop.f32.mrb[0].mxu0
      %v1264 = vpop.f32.mrb[0].mxu0
      %v1265 = vadd.f32 %v1093, %v1264
      %v1266 = vpop.f32.mrb[0].mxu0
      %1267 = vmatprep.mubr.bf16.mxu0 0
      %1268 = vmatmul.mubr.bf16.gmra.mrb[0].mxu0 %v959
      %v1269 = vpop.f32.mrb[0].mxu0
      %v1270 = vadd.f32 %v1098, %v1269
      %v1271 = vpop.f32.mrb[0].mxu0
      %v1272 = vpop.f32.mrb[0].mxu0
      %v1273 = vadd.f32 %v1101, %v1272
      %v1274 = vpop.f32.mrb[0].mxu0
      %1275 = vmatprep.mubr.bf16.mxu0 0
      %1276 = vmatmul.mubr.bf16.gmra.mrb[0].mxu0 %v962
      %v1277 = vpop.f32.mrb[0].mxu0
      %v1278 = vadd.f32 %v1106, %v1277
      %v1279 = vpop.f32.mrb[0].mxu0
      %v1280 = vpop.f32.mrb[0].mxu0
      %v1281 = vadd.f32 %v1109, %v1280
      %v1282 = vpop.f32.mrb[0].mxu0
      %1283 = vmatprep.mubr.bf16.mxu0 0
      %1284 = vmatmul.mubr.bf16.gmra.mrb[0].mxu0 %v965
      %v1285 = vpop.f32.mrb[0].mxu0
      %v1286 = vadd.f32 %v1114, %v1285
      %v1287 = vpop.f32.mrb[0].mxu0
      %v1288 = vpop.f32.mrb[0].mxu0
      %v1289 = vadd.f32 %v1117, %v1288
      %v1290 = vpop.f32.mrb[0].mxu0
      %1291 = vmatprep.mubr.bf16.mxu0 0
      %1292 = vmatmul.mubr.bf16.gmra.mrb[0].mxu0 %v968
      %v1293 = vpop.f32.mrb[0].mxu0
      %v1294 = vadd.f32 %v1122, %v1293
      %v1295 = vpop.f32.mrb[0].mxu0
      %v1296 = vpop.f32.mrb[0].mxu0
      %v1297 = vadd.f32 %v1125, %v1296
      %v1298 = vpop.f32.mrb[0].mxu0
      %1299 = vmatprep.mubr.bf16.mxu0 0
      %1300 = vmatmul.mubr.bf16.gmra.mrb[0].mxu0 %v971
      %v1301 = vpop.f32.mrb[0].mxu0
      %v1302 = vadd.f32 %v1130, %v1301
      %v1303 = vpop.f32.mrb[0].mxu0
      %v1304 = vpop.f32.mrb[0].mxu0
      %v1305 = vadd.f32 %v1133, %v1304
      %v1306 = vpop.f32.mrb[0].mxu0
      %1307 = vmatprep.mubr.bf16.mxu0 0
      %1308 = vmatmul.mubr.bf16.gmra.mrb[0].mxu0 %v974
      %v1309 = vpop.f32.mrb[0].mxu0
      %v1310 = vadd.f32 %v1138, %v1309
      %v1311 = vpop.f32.mrb[0].mxu0
      %v1312 = vpop.f32.mrb[0].mxu0
      %v1313 = vadd.f32 %v1141, %v1312
      %v1314 = vpop.f32.mrb[0].mxu0
      %1315 = vdwg.mxu0
      %s1316 = scalar_lea.vmem %s1, 12
      %v1317 = vld [vmem:[%s1316] sm:$0x3]
      %v1320 = vunpack.c.l.b16 %v845
      %v1321 = vunpack.c.l.b16 %v846
      %v1322 = vpack.c.b16 %v1321, %v1320
      %v1324 = vsel %vm930, %v1322, 0
      %v1327 = vsel %vm979, %v1317, 0
      %1329 = vmatprep.subr.bf16.mxu0 0
      %1330 = vmatpush1.bf16.msra.mxu0 %v1327
      %1331 = vmatprep.subr.bf16.mxu0 0
      %1332 = vmatpush1.bf16.msra.mxu0 0
      %1333 = vmatprep.subr.bf16.mxu0 0
      %1334 = vmatpush1.bf16.msra.mxu0 0
      %1335 = vmatprep.subr.bf16.mxu0 0
      %1336 = vmatpush1.bf16.msra.mxu0 0
      %1337 = vmatprep.subr.bf16.mxu0 0
      %1338 = vmatpush1.bf16.msra.mxu0 0
      %1339 = vmatprep.subr.bf16.mxu0 0
      %1340 = vmatpush1.bf16.msra.mxu0 0
      %1341 = vmatprep.subr.bf16.mxu0 0
      %1342 = vmatpush1.bf16.msra.mxu0 0
      %1343 = vmatprep.subr.bf16.mxu0 0
      %1344 = vmatpush1.bf16.msra.mxu0 0
      %1345 = vmatprep.subr.bf16.mxu0 0
      %1346 = vmatpush1.bf16.msra.mxu0 0
      %1347 = vmatprep.subr.bf16.mxu0 0
      %1348 = vmatpush1.bf16.msra.mxu0 0
      %1349 = vmatprep.subr.bf16.mxu0 0
      %1350 = vmatpush1.bf16.msra.mxu0 0
      %1351 = vmatprep.subr.bf16.mxu0 0
      %1352 = vmatpush1.bf16.msra.mxu0 0
      %1353 = vmatprep.subr.bf16.mxu0 0
      %1354 = vmatpush1.bf16.msra.mxu0 0
      %1355 = vmatprep.subr.bf16.mxu0 0
      %1356 = vmatpush1.bf16.msra.mxu0 0
      %1357 = vmatprep.subr.bf16.mxu0 0
      %1358 = vmatpush1.bf16.msra.mxu0 0
      %1359 = vmatprep.subr.bf16.mxu0 0
      %1360 = vmatpush1.bf16.msra.mxu0 0
      %1361 = vmatprep.mubr.bf16.mxu0 0
      %1362 = vmatmul.mubr.bf16.gmra.mrb[0].mxu0 %v935
      %v1363 = vpop.f32.mrb[0].mxu0
      %v1364 = vadd.f32 0.0, %v1363
      %v1365 = vpop.f32.mrb[0].mxu0
      %v1366 = vpop.f32.mrb[0].mxu0
      %v1367 = vadd.f32 0.0, %v1366
      %v1368 = vpop.f32.mrb[0].mxu0
      %1369 = vmatprep.mubr.bf16.mxu0 0
      %1370 = vmatmul.mubr.bf16.gmra.mrb[0].mxu0 %v938
      %v1371 = vpop.f32.mrb[0].mxu0
      %v1372 = vadd.f32 0.0, %v1371
      %v1373 = vpop.f32.mrb[0].mxu0
      %v1374 = vpop.f32.mrb[0].mxu0
      %v1375 = vadd.f32 0.0, %v1374
      %v1376 = vpop.f32.mrb[0].mxu0
      %1377 = vmatprep.mubr.bf16.mxu0 0
      %1378 = vmatmul.mubr.bf16.gmra.mrb[0].mxu0 %v941
      %v1379 = vpop.f32.mrb[0].mxu0
      %v1380 = vadd.f32 0.0, %v1379
      %v1381 = vpop.f32.mrb[0].mxu0
      %v1382 = vpop.f32.mrb[0].mxu0
      %v1383 = vadd.f32 0.0, %v1382
      %v1384 = vpop.f32.mrb[0].mxu0
      %1385 = vmatprep.mubr.bf16.mxu0 0
      %1386 = vmatmul.mubr.bf16.gmra.mrb[0].mxu0 %v944
      %v1387 = vpop.f32.mrb[0].mxu0
      %v1388 = vadd.f32 0.0, %v1387
      %v1389 = vpop.f32.mrb[0].mxu0
      %v1390 = vpop.f32.mrb[0].mxu0
      %v1391 = vadd.f32 0.0, %v1390
      %v1392 = vpop.f32.mrb[0].mxu0
      %1393 = vmatprep.mubr.bf16.mxu0 0
      %1394 = vmatmul.mubr.bf16.gmra.mrb[0].mxu0 %v947
      %v1395 = vpop.f32.mrb[0].mxu0
      %v1396 = vadd.f32 0.0, %v1395
      %v1397 = vpop.f32.mrb[0].mxu0
      %v1398 = vpop.f32.mrb[0].mxu0
      %v1399 = vadd.f32 0.0, %v1398
      %v1400 = vpop.f32.mrb[0].mxu0
      %1401 = vmatprep.mubr.bf16.mxu0 0
      %1402 = vmatmul.mubr.bf16.gmra.mrb[0].mxu0 %v950
      %v1403 = vpop.f32.mrb[0].mxu0
      %v1404 = vadd.f32 0.0, %v1403
      %v1405 = vpop.f32.mrb[0].mxu0
      %v1406 = vpop.f32.mrb[0].mxu0
      %v1407 = vadd.f32 0.0, %v1406
      %v1408 = vpop.f32.mrb[0].mxu0
      %1409 = vmatprep.mubr.bf16.mxu0 0
      %1410 = vmatmul.mubr.bf16.gmra.mrb[0].mxu0 %v953
      %v1411 = vpop.f32.mrb[0].mxu0
      %v1412 = vadd.f32 0.0, %v1411
      %v1413 = vpop.f32.mrb[0].mxu0
      %v1414 = vpop.f32.mrb[0].mxu0
      %v1415 = vadd.f32 0.0, %v1414
      %v1416 = vpop.f32.mrb[0].mxu0
      %1417 = vmatprep.mubr.bf16.mxu0 0
      %1418 = vmatmul.mubr.bf16.gmra.mrb[0].mxu0 %v956
      %v1419 = vpop.f32.mrb[0].mxu0
      %v1420 = vadd.f32 0.0, %v1419
      %v1421 = vpop.f32.mrb[0].mxu0
      %v1422 = vpop.f32.mrb[0].mxu0
      %v1423 = vadd.f32 0.0, %v1422
      %v1424 = vpop.f32.mrb[0].mxu0
      %1425 = vmatprep.mubr.bf16.mxu0 0
      %1426 = vmatmul.mubr.bf16.gmra.mrb[0].mxu0 %v959
      %v1427 = vpop.f32.mrb[0].mxu0
      %v1428 = vadd.f32 0.0, %v1427
      %v1429 = vpop.f32.mrb[0].mxu0
      %v1430 = vpop.f32.mrb[0].mxu0
      %v1431 = vadd.f32 0.0, %v1430
      %v1432 = vpop.f32.mrb[0].mxu0
      %1433 = vmatprep.mubr.bf16.mxu0 0
      %1434 = vmatmul.mubr.bf16.gmra.mrb[0].mxu0 %v962
      %v1435 = vpop.f32.mrb[0].mxu0
      %v1436 = vadd.f32 0.0, %v1435
      %v1437 = vpop.f32.mrb[0].mxu0
      %v1438 = vpop.f32.mrb[0].mxu0
      %v1439 = vadd.f32 0.0, %v1438
      %v1440 = vpop.f32.mrb[0].mxu0
      %1441 = vmatprep.mubr.bf16.mxu0 0
      %1442 = vmatmul.mubr.bf16.gmra.mrb[0].mxu0 %v965
      %v1443 = vpop.f32.mrb[0].mxu0
      %v1444 = vadd.f32 0.0, %v1443
      %v1445 = vpop.f32.mrb[0].mxu0
      %v1446 = vpop.f32.mrb[0].mxu0
      %v1447 = vadd.f32 0.0, %v1446
      %v1448 = vpop.f32.mrb[0].mxu0
      %1449 = vmatprep.mubr.bf16.mxu0 0
      %1450 = vmatmul.mubr.bf16.gmra.mrb[0].mxu0 %v968
      %v1451 = vpop.f32.mrb[0].mxu0
      %v1452 = vadd.f32 0.0, %v1451
      %v1453 = vpop.f32.mrb[0].mxu0
      %v1454 = vpop.f32.mrb[0].mxu0
      %v1455 = vadd.f32 0.0, %v1454
      %v1456 = vpop.f32.mrb[0].mxu0
      %1457 = vmatprep.mubr.bf16.mxu0 0
      %1458 = vmatmul.mubr.bf16.gmra.mrb[0].mxu0 %v971
      %v1459 = vpop.f32.mrb[0].mxu0
      %v1460 = vadd.f32 0.0, %v1459
      %v1461 = vpop.f32.mrb[0].mxu0
      %v1462 = vpop.f32.mrb[0].mxu0
      %v1463 = vadd.f32 0.0, %v1462
      %v1464 = vpop.f32.mrb[0].mxu0
      %1465 = vmatprep.mubr.bf16.mxu0 0
      %1466 = vmatmul.mubr.bf16.gmra.mrb[0].mxu0 %v974
      %v1467 = vpop.f32.mrb[0].mxu0
      %v1468 = vadd.f32 0.0, %v1467
      %v1469 = vpop.f32.mrb[0].mxu0
      %v1470 = vpop.f32.mrb[0].mxu0
      %v1471 = vadd.f32 0.0, %v1470
      %v1472 = vpop.f32.mrb[0].mxu0
      %1473 = vmatprep.mubr.bf16.mxu0 0
      %1474 = vmatmul.mubr.bf16.gmra.mrb[0].mxu0 %v977
      %v1475 = vpop.f32.mrb[0].mxu0
      %v1476 = vadd.f32 0.0, %v1475
      %v1477 = vpop.f32.mrb[0].mxu0
      %v1478 = vpop.f32.mrb[0].mxu0
      %v1479 = vadd.f32 0.0, %v1478
      %v1480 = vpop.f32.mrb[0].mxu0
      %1481 = vmatprep.mubr.bf16.mxu0 0
      %1482 = vmatmul.mubr.bf16.gmra.mrb[0].mxu0 %v1324
      %v1483 = vpop.f32.mrb[0].mxu0
      %v1484 = vadd.f32 0.0, %v1483
      %v1485 = vpop.f32.mrb[0].mxu0
      %v1486 = vpop.f32.mrb[0].mxu0
      %v1487 = vadd.f32 0.0, %v1486
      %v1488 = vpop.f32.mrb[0].mxu0
      %1489 = vdwg.mxu0
      %v1490 = vadd.f32 %v1190, %v1364
      %v1491 = vadd.f32 %v1193, %v1367
      %v1492 = vadd.f32 %v1198, %v1372
      %v1493 = vadd.f32 %v1201, %v1375
      %v1494 = vadd.f32 %v1206, %v1380
      %v1495 = vadd.f32 %v1209, %v1383
      %v1496 = vadd.f32 %v1214, %v1388
      %v1497 = vadd.f32 %v1217, %v1391
      %v1498 = vadd.f32 %v1222, %v1396
      %v1499 = vadd.f32 %v1225, %v1399
      %v1500 = vadd.f32 %v1230, %v1404
      %v1501 = vadd.f32 %v1233, %v1407
      %v1502 = vadd.f32 %v1238, %v1412
      %v1503 = vadd.f32 %v1241, %v1415
      %v1504 = vadd.f32 %v1246, %v1420
      %v1505 = vadd.f32 %v1249, %v1423
      %v1506 = vadd.f32 %v1254, %v1428
      %v1507 = vadd.f32 %v1257, %v1431
      %v1508 = vadd.f32 %v1262, %v1436
      %v1509 = vadd.f32 %v1265, %v1439
      %v1510 = vadd.f32 %v1270, %v1444
      %v1511 = vadd.f32 %v1273, %v1447
      %v1512 = vadd.f32 %v1278, %v1452
      %v1513 = vadd.f32 %v1281, %v1455
      %v1514 = vadd.f32 %v1286, %v1460
      %v1515 = vadd.f32 %v1289, %v1463
      %v1516 = vadd.f32 %v1294, %v1468
      %v1517 = vadd.f32 %v1297, %v1471
      %v1518 = vadd.f32 %v1302, %v1476
      %v1519 = vadd.f32 %v1305, %v1479
      %v1520 = vadd.f32 %v1310, %v1484
      %v1521 = vadd.f32 %v1313, %v1487
      %v1522 = vld [vmem:[#allocation2] sm:$0xf]
      %v1523 = vld [vmem:[#allocation2 + $0x4] sm:$0xf]
      %v1524 = vld [vmem:[#allocation2 + $0x8] sm:$0x1]
      %v1525 = vld [vmem:[#allocation2 + $0xc] sm:$0xf]
      %v1526 = vld [vmem:[#allocation2 + $0x10] sm:$0xf]
      %v1527 = vld [vmem:[#allocation2 + $0x14] sm:$0x1]
      %v1528 = vld [vmem:[#allocation2 + $0x18] sm:$0xf]
      %v1529 = vld [vmem:[#allocation2 + $0x1c] sm:$0xf]
      %v1530 = vld [vmem:[#allocation2 + $0x20] sm:$0x1]
      %v1531 = vld [vmem:[#allocation2 + $0x24] sm:$0xf]
      %v1532 = vld [vmem:[#allocation2 + $0x28] sm:$0xf]
      %v1533 = vld [vmem:[#allocation2 + $0x2c] sm:$0x1]
      %v1534 = vld [vmem:[#allocation2 + $0x30] sm:$0xf]
      %v1535 = vld [vmem:[#allocation2 + $0x34] sm:$0xf]
      %v1536 = vld [vmem:[#allocation2 + $0x38] sm:$0x1]
      %v1537 = vld [vmem:[#allocation2 + $0x3c] sm:$0xf]
      %v1538 = vld [vmem:[#allocation2 + $0x40] sm:$0xf]
      %v1539 = vld [vmem:[#allocation2 + $0x44] sm:$0x1]
      %v1540 = vld [vmem:[#allocation2 + $0x48] sm:$0xf]
      %v1541 = vld [vmem:[#allocation2 + $0x4c] sm:$0xf]
      %v1542 = vld [vmem:[#allocation2 + $0x50] sm:$0x1]
      %v1543 = vld [vmem:[#allocation2 + $0x54] sm:$0xf]
      %v1544 = vld [vmem:[#allocation2 + $0x58] sm:$0xf]
      %v1545 = vld [vmem:[#allocation2 + $0x5c] sm:$0x1]
      %v1546 = vld [vmem:[#allocation2 + $0x60] sm:$0xf]
      %v1547 = vld [vmem:[#allocation2 + $0x64] sm:$0xf]
      %v1548 = vld [vmem:[#allocation2 + $0x68] sm:$0x1]
      %v1549 = vld [vmem:[#allocation2 + $0x6c] sm:$0xf]
      %v1550 = vld [vmem:[#allocation2 + $0x70] sm:$0xf]
      %v1551 = vld [vmem:[#allocation2 + $0x74] sm:$0x1]
      %v1552 = vld [vmem:[#allocation2 + $0x78] sm:$0xf]
      %v1553 = vld [vmem:[#allocation2 + $0x7c] sm:$0xf]
      %v1554 = vld [vmem:[#allocation2 + $0x80] sm:$0x1]
      %v1555 = vld [vmem:[#allocation2 + $0x84] sm:$0xf]
      %v1556 = vld [vmem:[#allocation2 + $0x88] sm:$0xf]
      %v1557 = vld [vmem:[#allocation2 + $0x8c] sm:$0x1]
      %v1558 = vld [vmem:[#allocation2 + $0x90] sm:$0xf]
      %v1559 = vld [vmem:[#allocation2 + $0x94] sm:$0xf]
      %v1560 = vld [vmem:[#allocation2 + $0x98] sm:$0x1]
      %v1561 = vld [vmem:[#allocation2 + $0x9c] sm:$0xf]
      %v1562 = vld [vmem:[#allocation2 + $0xa0] sm:$0xf]
      %v1563 = vld [vmem:[#allocation2 + $0xa4] sm:$0x1]
      %v1564 = vld [vmem:[#allocation2 + $0xa8] sm:$0xf]
      %v1565 = vld [vmem:[#allocation2 + $0xac] sm:$0xf]
      %v1566 = vld [vmem:[#allocation2 + $0xb0] sm:$0x1]
      %v1567 = vld [vmem:[#allocation2 + $0xb4] sm:$0xf]
      %v1568 = vld [vmem:[#allocation2 + $0xb8] sm:$0xf]
      %v1569 = vld [vmem:[#allocation2 + $0xbc] sm:$0x1]
      %v1570 = vld [vmem:[#allocation2 + $0xc0] sm:$0xf]
      %v1571 = vld [vmem:[#allocation2 + $0xc4] sm:$0xf]
      %v1572 = vld [vmem:[#allocation2 + $0xc8] sm:$0x1]
      %v1573 = vld [vmem:[#allocation2 + $0xcc] sm:$0xf]
      %v1574 = vld [vmem:[#allocation2 + $0xd0] sm:$0xf]
      %v1575 = vld [vmem:[#allocation2 + $0xd4] sm:$0x1]
      %vm1576 = vsmask.f32 3328
      %vm1577 = vsmask.f32 7440
      %vm1578 = vmor %vm1576, %vm1577
      %v1580 = vshrl.u32 %v1522, 16
      %v1582 = vrot.slane %v1580, 4
      %v1583 = vshll.u32 %v1522, 16
      %v1585 = vrot.slane %v1583, 5
      %v1586 = vor.u32 %v1582, %v1585
      %v1587 = vrot.slane %v1586, 4
      %v1589 = vshll.u32 %v1523, 16
      %v1591 = vrot.slane %v1589, 5
      %v1592 = vsel %vm1578, %v1587, %v1591
      %v1593 = vshrl.u32 %v1523, 16
      %v1595 = vrot.slane %v1593, 4
      %v1596 = vor.u32 %v1595, %v1591
      %v1597 = vrot.slane %v1596, 4
      %v1599 = vshll.u32 %v1524, 16
      %v1601 = vrot.slane %v1599, 5
      %v1602 = vsel %vm1578, %v1597, %v1601
      %v1604 = vshrl.u32 %v1525, 16
      %v1606 = vrot.slane %v1604, 4
      %v1607 = vshll.u32 %v1525, 16
      %v1609 = vrot.slane %v1607, 5
      %v1610 = vor.u32 %v1606, %v1609
      %v1611 = vrot.slane %v1610, 4
      %v1613 = vshll.u32 %v1526, 16
      %v1615 = vrot.slane %v1613, 5
      %v1616 = vsel %vm1578, %v1611, %v1615
      %v1617 = vshrl.u32 %v1526, 16
      %v1619 = vrot.slane %v1617, 4
      %v1620 = vor.u32 %v1619, %v1615
      %v1621 = vrot.slane %v1620, 4
      %v1623 = vshll.u32 %v1527, 16
      %v1625 = vrot.slane %v1623, 5
      %v1626 = vsel %vm1578, %v1621, %v1625
      %v1628 = vshrl.u32 %v1528, 16
      %v1630 = vrot.slane %v1628, 4
      %v1631 = vshll.u32 %v1528, 16
      %v1633 = vrot.slane %v1631, 5
      %v1634 = vor.u32 %v1630, %v1633
      %v1635 = vrot.slane %v1634, 4
      %v1637 = vshll.u32 %v1529, 16
      %v1639 = vrot.slane %v1637, 5
      %v1640 = vsel %vm1578, %v1635, %v1639
      %v1641 = vshrl.u32 %v1529, 16
      %v1643 = vrot.slane %v1641, 4
      %v1644 = vor.u32 %v1643, %v1639
      %v1645 = vrot.slane %v1644, 4
      %v1647 = vshll.u32 %v1530, 16
      %v1649 = vrot.slane %v1647, 5
      %v1650 = vsel %vm1578, %v1645, %v1649
      %v1652 = vshrl.u32 %v1531, 16
      %v1654 = vrot.slane %v1652, 4
      %v1655 = vshll.u32 %v1531, 16
      %v1657 = vrot.slane %v1655, 5
      %v1658 = vor.u32 %v1654, %v1657
      %v1659 = vrot.slane %v1658, 4
      %v1661 = vshll.u32 %v1532, 16
      %v1663 = vrot.slane %v1661, 5
      %v1664 = vsel %vm1578, %v1659, %v1663
      %v1665 = vshrl.u32 %v1532, 16
      %v1667 = vrot.slane %v1665, 4
      %v1668 = vor.u32 %v1667, %v1663
      %v1669 = vrot.slane %v1668, 4
      %v1671 = vshll.u32 %v1533, 16
      %v1673 = vrot.slane %v1671, 5
      %v1674 = vsel %vm1578, %v1669, %v1673
      %v1676 = vshrl.u32 %v1534, 16
      %v1678 = vrot.slane %v1676, 4
      %v1679 = vshll.u32 %v1534, 16
      %v1681 = vrot.slane %v1679, 5
      %v1682 = vor.u32 %v1678, %v1681
      %v1683 = vrot.slane %v1682, 4
      %v1685 = vshll.u32 %v1535, 16
      %v1687 = vrot.slane %v1685, 5
      %v1688 = vsel %vm1578, %v1683, %v1687
      %v1689 = vshrl.u32 %v1535, 16
      %v1691 = vrot.slane %v1689, 4
      %v1692 = vor.u32 %v1691, %v1687
      %v1693 = vrot.slane %v1692, 4
      %v1695 = vshll.u32 %v1536, 16
      %v1697 = vrot.slane %v1695, 5
      %v1698 = vsel %vm1578, %v1693, %v1697
      %v1700 = vshrl.u32 %v1537, 16
      %v1702 = vrot.slane %v1700, 4
      %v1703 = vshll.u32 %v1537, 16
      %v1705 = vrot.slane %v1703, 5
      %v1706 = vor.u32 %v1702, %v1705
      %v1707 = vrot.slane %v1706, 4
      %v1709 = vshll.u32 %v1538, 16
      %v1711 = vrot.slane %v1709, 5
      %v1712 = vsel %vm1578, %v1707, %v1711
      %v1713 = vshrl.u32 %v1538, 16
      %v1715 = vrot.slane %v1713, 4
      %v1716 = vor.u32 %v1715, %v1711
      %v1717 = vrot.slane %v1716, 4
      %v1719 = vshll.u32 %v1539, 16
      %v1721 = vrot.slane %v1719, 5
      %v1722 = vsel %vm1578, %v1717, %v1721
      %v1724 = vshrl.u32 %v1540, 16
      %v1726 = vrot.slane %v1724, 4
      %v1727 = vshll.u32 %v1540, 16
      %v1729 = vrot.slane %v1727, 5
      %v1730 = vor.u32 %v1726, %v1729
      %v1731 = vrot.slane %v1730, 4
      %v1733 = vshll.u32 %v1541, 16
      %v1735 = vrot.slane %v1733, 5
      %v1736 = vsel %vm1578, %v1731, %v1735
      %v1737 = vshrl.u32 %v1541, 16
      %v1739 = vrot.slane %v1737, 4
      %v1740 = vor.u32 %v1739, %v1735
      %v1741 = vrot.slane %v1740, 4
      %v1743 = vshll.u32 %v1542, 16
      %v1745 = vrot.slane %v1743, 5
      %v1746 = vsel %vm1578, %v1741, %v1745
      %v1748 = vshrl.u32 %v1543, 16
      %v1750 = vrot.slane %v1748, 4
      %v1751 = vshll.u32 %v1543, 16
      %v1753 = vrot.slane %v1751, 5
      %v1754 = vor.u32 %v1750, %v1753
      %v1755 = vrot.slane %v1754, 4
      %v1757 = vshll.u32 %v1544, 16
      %v1759 = vrot.slane %v1757, 5
      %v1760 = vsel %vm1578, %v1755, %v1759
      %v1761 = vshrl.u32 %v1544, 16
      %v1763 = vrot.slane %v1761, 4
      %v1764 = vor.u32 %v1763, %v1759
      %v1765 = vrot.slane %v1764, 4
      %v1767 = vshll.u32 %v1545, 16
      %v1769 = vrot.slane %v1767, 5
      %v1770 = vsel %vm1578, %v1765, %v1769
      %v1772 = vshrl.u32 %v1546, 16
      %v1774 = vrot.slane %v1772, 4
      %v1775 = vshll.u32 %v1546, 16
      %v1777 = vrot.slane %v1775, 5
      %v1778 = vor.u32 %v1774, %v1777
      %v1779 = vrot.slane %v1778, 4
      %v1781 = vshll.u32 %v1547, 16
      %v1783 = vrot.slane %v1781, 5
      %v1784 = vsel %vm1578, %v1779, %v1783
      %v1785 = vshrl.u32 %v1547, 16
      %v1787 = vrot.slane %v1785, 4
      %v1788 = vor.u32 %v1787, %v1783
      %v1789 = vrot.slane %v1788, 4
      %v1791 = vshll.u32 %v1548, 16
      %v1793 = vrot.slane %v1791, 5
      %v1794 = vsel %vm1578, %v1789, %v1793
      %v1796 = vshrl.u32 %v1549, 16
      %v1798 = vrot.slane %v1796, 4
      %v1799 = vshll.u32 %v1549, 16
      %v1801 = vrot.slane %v1799, 5
      %v1802 = vor.u32 %v1798, %v1801
      %v1803 = vrot.slane %v1802, 4
      %v1805 = vshll.u32 %v1550, 16
      %v1807 = vrot.slane %v1805, 5
      %v1808 = vsel %vm1578, %v1803, %v1807
      %v1809 = vshrl.u32 %v1550, 16
      %v1811 = vrot.slane %v1809, 4
      %v1812 = vor.u32 %v1811, %v1807
      %v1813 = vrot.slane %v1812, 4
      %v1815 = vshll.u32 %v1551, 16
      %v1817 = vrot.slane %v1815, 5
      %v1818 = vsel %vm1578, %v1813, %v1817
      %v1820 = vshrl.u32 %v1552, 16
      %v1822 = vrot.slane %v1820, 4
      %v1823 = vshll.u32 %v1552, 16
      %v1825 = vrot.slane %v1823, 5
      %v1826 = vor.u32 %v1822, %v1825
      %v1827 = vrot.slane %v1826, 4
      %v1829 = vshll.u32 %v1553, 16
      %v1831 = vrot.slane %v1829, 5
      %v1832 = vsel %vm1578, %v1827, %v1831
      %v1833 = vshrl.u32 %v1553, 16
      %v1835 = vrot.slane %v1833, 4
      %v1836 = vor.u32 %v1835, %v1831
      %v1837 = vrot.slane %v1836, 4
      %v1839 = vshll.u32 %v1554, 16
      %v1841 = vrot.slane %v1839, 5
      %v1842 = vsel %vm1578, %v1837, %v1841
      %v1844 = vshrl.u32 %v1555, 16
      %v1846 = vrot.slane %v1844, 4
      %v1847 = vshll.u32 %v1555, 16
      %v1849 = vrot.slane %v1847, 5
      %v1850 = vor.u32 %v1846, %v1849
      %v1851 = vrot.slane %v1850, 4
      %v1853 = vshll.u32 %v1556, 16
      %v1855 = vrot.slane %v1853, 5
      %v1856 = vsel %vm1578, %v1851, %v1855
      %v1857 = vshrl.u32 %v1556, 16
      %v1859 = vrot.slane %v1857, 4
      %v1860 = vor.u32 %v1859, %v1855
      %v1861 = vrot.slane %v1860, 4
      %v1863 = vshll.u32 %v1557, 16
      %v1865 = vrot.slane %v1863, 5
      %v1866 = vsel %vm1578, %v1861, %v1865
      %v1868 = vshrl.u32 %v1558, 16
      %v1870 = vrot.slane %v1868, 4
      %v1871 = vshll.u32 %v1558, 16
      %v1873 = vrot.slane %v1871, 5
      %v1874 = vor.u32 %v1870, %v1873
      %v1875 = vrot.slane %v1874, 4
      %v1877 = vshll.u32 %v1559, 16
      %v1879 = vrot.slane %v1877, 5
      %v1880 = vsel %vm1578, %v1875, %v1879
      %v1881 = vshrl.u32 %v1559, 16
      %v1883 = vrot.slane %v1881, 4
      %v1884 = vor.u32 %v1883, %v1879
      %v1885 = vrot.slane %v1884, 4
      %v1887 = vshll.u32 %v1560, 16
      %v1889 = vrot.slane %v1887, 5
      %v1890 = vsel %vm1578, %v1885, %v1889
      %v1892 = vshrl.u32 %v1561, 16
      %v1894 = vrot.slane %v1892, 4
      %v1895 = vshll.u32 %v1561, 16
      %v1897 = vrot.slane %v1895, 5
      %v1898 = vor.u32 %v1894, %v1897
      %v1899 = vrot.slane %v1898, 4
      %v1901 = vshll.u32 %v1562, 16
      %v1903 = vrot.slane %v1901, 5
      %v1904 = vsel %vm1578, %v1899, %v1903
      %v1905 = vshrl.u32 %v1562, 16
      %v1907 = vrot.slane %v1905, 4
      %v1908 = vor.u32 %v1907, %v1903
      %v1909 = vrot.slane %v1908, 4
      %v1911 = vshll.u32 %v1563, 16
      %v1913 = vrot.slane %v1911, 5
      %v1914 = vsel %vm1578, %v1909, %v1913
      %v1916 = vshrl.u32 %v1564, 16
      %v1918 = vrot.slane %v1916, 4
      %v1919 = vshll.u32 %v1564, 16
      %v1921 = vrot.slane %v1919, 5
      %v1922 = vor.u32 %v1918, %v1921
      %v1923 = vrot.slane %v1922, 4
      %v1925 = vshll.u32 %v1565, 16
      %v1927 = vrot.slane %v1925, 5
      %v1928 = vsel %vm1578, %v1923, %v1927
      %v1929 = vshrl.u32 %v1565, 16
      %v1931 = vrot.slane %v1929, 4
      %v1932 = vor.u32 %v1931, %v1927
      %v1933 = vrot.slane %v1932, 4
      %v1935 = vshll.u32 %v1566, 16
      %v1937 = vrot.slane %v1935, 5
      %v1938 = vsel %vm1578, %v1933, %v1937
      %v1940 = vshrl.u32 %v1567, 16
      %v1942 = vrot.slane %v1940, 4
      %v1943 = vshll.u32 %v1567, 16
      %v1945 = vrot.slane %v1943, 5
      %v1946 = vor.u32 %v1942, %v1945
      %v1947 = vrot.slane %v1946, 4
      %v1949 = vshll.u32 %v1568, 16
      %v1951 = vrot.slane %v1949, 5
      %v1952 = vsel %vm1578, %v1947, %v1951
      %v1953 = vshrl.u32 %v1568, 16
      %v1955 = vrot.slane %v1953, 4
      %v1956 = vor.u32 %v1955, %v1951
      %v1957 = vrot.slane %v1956, 4
      %v1959 = vshll.u32 %v1569, 16
      %v1961 = vrot.slane %v1959, 5
      %v1962 = vsel %vm1578, %v1957, %v1961
      %s1963 = scalar_lea.vmem %s1, 2
      %v1964 = vld [vmem:[%s1963] sm:$0x3]
      %v1965 = vunpack.c.l.b16 %v1592
      %v1966 = vunpack.c.l.b16 %v1602
      %v1967 = vunpack.c.l.b16 %v1616
      %v1968 = vunpack.c.l.b16 %v1626
      %v1969 = vunpack.c.l.b16 %v1640
      %v1970 = vunpack.c.l.b16 %v1650
      %v1971 = vunpack.c.l.b16 %v1664
      %v1972 = vunpack.c.l.b16 %v1674
      %v1973 = vunpack.c.l.b16 %v1688
      %v1974 = vunpack.c.l.b16 %v1698
      %v1975 = vunpack.c.l.b16 %v1712
      %v1976 = vunpack.c.l.b16 %v1722
      %v1977 = vunpack.c.l.b16 %v1736
      %v1978 = vunpack.c.l.b16 %v1746
      %v1979 = vunpack.c.l.b16 %v1760
      %v1980 = vunpack.c.l.b16 %v1770
      %v1981 = vunpack.c.l.b16 %v1784
      %v1982 = vunpack.c.l.b16 %v1794
      %v1983 = vunpack.c.l.b16 %v1808
      %v1984 = vunpack.c.l.b16 %v1818
      %v1985 = vunpack.c.l.b16 %v1832
      %v1986 = vunpack.c.l.b16 %v1842
      %v1987 = vunpack.c.l.b16 %v1856
      %v1988 = vunpack.c.l.b16 %v1866
      %v1989 = vunpack.c.l.b16 %v1880
      %v1990 = vunpack.c.l.b16 %v1890
      %v1991 = vunpack.c.l.b16 %v1904
      %v1992 = vunpack.c.l.b16 %v1914
      %v1993 = vunpack.c.l.b16 %v1928
      %v1994 = vunpack.c.l.b16 %v1938
      %v1995 = vunpack.c.l.b16 %v1952
      %v1996 = vunpack.c.l.b16 %v1962
      %v1997 = vpack.c.b16 %v1966, %v1965
      %v1998 = vpack.c.b16 %v1968, %v1967
      %v1999 = vpack.c.b16 %v1970, %v1969
      %v2000 = vpack.c.b16 %v1972, %v1971
      %v2001 = vpack.c.b16 %v1974, %v1973
      %v2002 = vpack.c.b16 %v1976, %v1975
      %v2003 = vpack.c.b16 %v1978, %v1977
      %v2004 = vpack.c.b16 %v1980, %v1979
      %v2005 = vpack.c.b16 %v1982, %v1981
      %v2006 = vpack.c.b16 %v1984, %v1983
      %v2007 = vpack.c.b16 %v1986, %v1985
      %v2008 = vpack.c.b16 %v1988, %v1987
      %v2009 = vpack.c.b16 %v1990, %v1989
      %v2010 = vpack.c.b16 %v1992, %v1991
      %v2011 = vpack.c.b16 %v1994, %v1993
      %v2012 = vpack.c.b16 %v1996, %v1995
      %v2014 = vsel %vm930, %v1997, 0
      %v2017 = vsel %vm930, %v1998, 0
      %v2020 = vsel %vm930, %v1999, 0
      %v2023 = vsel %vm930, %v2000, 0
      %v2026 = vsel %vm930, %v2001, 0
      %v2029 = vsel %vm930, %v2002, 0
      %v2032 = vsel %vm930, %v2003, 0
      %v2035 = vsel %vm930, %v2004, 0
      %v2038 = vsel %vm930, %v2005, 0
      %v2041 = vsel %vm930, %v2006, 0
      %v2044 = vsel %vm930, %v2007, 0
      %v2047 = vsel %vm930, %v2008, 0
      %v2050 = vsel %vm930, %v2009, 0
      %v2053 = vsel %vm930, %v2010, 0
      %v2056 = vsel %vm930, %v2011, 0
      %v2059 = vsel %vm930, %v2012, 0
      %v2062 = vsel %vm979, %v1964, 0
      %2064 = vmatprep.subr.bf16.mxu0 0
      %2065 = vmatpush1.bf16.msra.mxu0 %v2062
      %2066 = vmatprep.subr.bf16.mxu0 0
      %2067 = vmatpush1.bf16.msra.mxu0 0
      %2068 = vmatprep.subr.bf16.mxu0 0
      %2069 = vmatpush1.bf16.msra.mxu0 0
      %2070 = vmatprep.subr.bf16.mxu0 0
      %2071 = vmatpush1.bf16.msra.mxu0 0
      %2072 = vmatprep.subr.bf16.mxu0 0
      %2073 = vmatpush1.bf16.msra.mxu0 0
      %2074 = vmatprep.subr.bf16.mxu0 0
      %2075 = vmatpush1.bf16.msra.mxu0 0
      %2076 = vmatprep.subr.bf16.mxu0 0
      %2077 = vmatpush1.bf16.msra.mxu0 0
      %2078 = vmatprep.subr.bf16.mxu0 0
      %2079 = vmatpush1.bf16.msra.mxu0 0
      %2080 = vmatprep.subr.bf16.mxu0 0
      %2081 = vmatpush1.bf16.msra.mxu0 0
      %2082 = vmatprep.subr.bf16.mxu0 0
      %2083 = vmatpush1.bf16.msra.mxu0 0
      %2084 = vmatprep.subr.bf16.mxu0 0
      %2085 = vmatpush1.bf16.msra.mxu0 0
      %2086 = vmatprep.subr.bf16.mxu0 0
      %2087 = vmatpush1.bf16.msra.mxu0 0
      %2088 = vmatprep.subr.bf16.mxu0 0
      %2089 = vmatpush1.bf16.msra.mxu0 0
      %2090 = vmatprep.subr.bf16.mxu0 0
      %2091 = vmatpush1.bf16.msra.mxu0 0
      %2092 = vmatprep.subr.bf16.mxu0 0
      %2093 = vmatpush1.bf16.msra.mxu0 0
      %2094 = vmatprep.subr.bf16.mxu0 0
      %2095 = vmatpush1.bf16.msra.mxu0 0
      %2096 = vmatprep.mubr.bf16.mxu0 0
      %2097 = vmatmul.mubr.bf16.gmra.mrb[0].mxu0 %v2014
      %v2098 = vpop.f32.mrb[0].mxu0
      %v2099 = vadd.f32 0.0, %v2098
      %v2100 = vpop.f32.mrb[0].mxu0
      %v2101 = vpop.f32.mrb[0].mxu0
      %v2102 = vadd.f32 0.0, %v2101
      %v2103 = vpop.f32.mrb[0].mxu0
      %2104 = vmatprep.mubr.bf16.mxu0 0
      %2105 = vmatmul.mubr.bf16.gmra.mrb[0].mxu0 %v2017
      %v2106 = vpop.f32.mrb[0].mxu0
      %v2107 = vadd.f32 0.0, %v2106
      %v2108 = vpop.f32.mrb[0].mxu0
      %v2109 = vpop.f32.mrb[0].mxu0
      %v2110 = vadd.f32 0.0, %v2109
      %v2111 = vpop.f32.mrb[0].mxu0
      %2112 = vmatprep.mubr.bf16.mxu0 0
      %2113 = vmatmul.mubr.bf16.gmra.mrb[0].mxu0 %v2020
      %v2114 = vpop.f32.mrb[0].mxu0
      %v2115 = vadd.f32 0.0, %v2114
      %v2116 = vpop.f32.mrb[0].mxu0
      %v2117 = vpop.f32.mrb[0].mxu0
      %v2118 = vadd.f32 0.0, %v2117
      %v2119 = vpop.f32.mrb[0].mxu0
      %2120 = vmatprep.mubr.bf16.mxu0 0
      %2121 = vmatmul.mubr.bf16.gmra.mrb[0].mxu0 %v2023
      %v2122 = vpop.f32.mrb[0].mxu0
      %v2123 = vadd.f32 0.0, %v2122
      %v2124 = vpop.f32.mrb[0].mxu0
      %v2125 = vpop.f32.mrb[0].mxu0
      %v2126 = vadd.f32 0.0, %v2125
      %v2127 = vpop.f32.mrb[0].mxu0
      %2128 = vmatprep.mubr.bf16.mxu0 0
      %2129 = vmatmul.mubr.bf16.gmra.mrb[0].mxu0 %v2026
      %v2130 = vpop.f32.mrb[0].mxu0
      %v2131 = vadd.f32 0.0, %v2130
      %v2132 = vpop.f32.mrb[0].mxu0
      %v2133 = vpop.f32.mrb[0].mxu0
      %v2134 = vadd.f32 0.0, %v2133
      %v2135 = vpop.f32.mrb[0].mxu0
      %2136 = vmatprep.mubr.bf16.mxu0 0
      %2137 = vmatmul.mubr.bf16.gmra.mrb[0].mxu0 %v2029
      %v2138 = vpop.f32.mrb[0].mxu0
      %v2139 = vadd.f32 0.0, %v2138
      %v2140 = vpop.f32.mrb[0].mxu0
      %v2141 = vpop.f32.mrb[0].mxu0
      %v2142 = vadd.f32 0.0, %v2141
      %v2143 = vpop.f32.mrb[0].mxu0
      %2144 = vmatprep.mubr.bf16.mxu0 0
      %2145 = vmatmul.mubr.bf16.gmra.mrb[0].mxu0 %v2032
      %v2146 = vpop.f32.mrb[0].mxu0
      %v2147 = vadd.f32 0.0, %v2146
      %v2148 = vpop.f32.mrb[0].mxu0
      %v2149 = vpop.f32.mrb[0].mxu0
      %v2150 = vadd.f32 0.0, %v2149
      %v2151 = vpop.f32.mrb[0].mxu0
      %2152 = vmatprep.mubr.bf16.mxu0 0
      %2153 = vmatmul.mubr.bf16.gmra.mrb[0].mxu0 %v2035
      %v2154 = vpop.f32.mrb[0].mxu0
      %v2155 = vadd.f32 0.0, %v2154
      %v2156 = vpop.f32.mrb[0].mxu0
      %v2157 = vpop.f32.mrb[0].mxu0
      %v2158 = vadd.f32 0.0, %v2157
      %v2159 = vpop.f32.mrb[0].mxu0
      %2160 = vmatprep.mubr.bf16.mxu0 0
      %2161 = vmatmul.mubr.bf16.gmra.mrb[0].mxu0 %v2038
      %v2162 = vpop.f32.mrb[0].mxu0
      %v2163 = vadd.f32 0.0, %v2162
      %v2164 = vpop.f32.mrb[0].mxu0
      %v2165 = vpop.f32.mrb[0].mxu0
      %v2166 = vadd.f32 0.0, %v2165
      %v2167 = vpop.f32.mrb[0].mxu0
      %2168 = vmatprep.mubr.bf16.mxu0 0
      %2169 = vmatmul.mubr.bf16.gmra.mrb[0].mxu0 %v2041
      %v2170 = vpop.f32.mrb[0].mxu0
      %v2171 = vadd.f32 0.0, %v2170
      %v2172 = vpop.f32.mrb[0].mxu0
      %v2173 = vpop.f32.mrb[0].mxu0
      %v2174 = vadd.f32 0.0, %v2173
      %v2175 = vpop.f32.mrb[0].mxu0
      %2176 = vmatprep.mubr.bf16.mxu0 0
      %2177 = vmatmul.mubr.bf16.gmra.mrb[0].mxu0 %v2044
      %v2178 = vpop.f32.mrb[0].mxu0
      %v2179 = vadd.f32 0.0, %v2178
      %v2180 = vpop.f32.mrb[0].mxu0
      %v2181 = vpop.f32.mrb[0].mxu0
      %v2182 = vadd.f32 0.0, %v2181
      %v2183 = vpop.f32.mrb[0].mxu0
      %2184 = vmatprep.mubr.bf16.mxu0 0
      %2185 = vmatmul.mubr.bf16.gmra.mrb[0].mxu0 %v2047
      %v2186 = vpop.f32.mrb[0].mxu0
      %v2187 = vadd.f32 0.0, %v2186
      %v2188 = vpop.f32.mrb[0].mxu0
      %v2189 = vpop.f32.mrb[0].mxu0
      %v2190 = vadd.f32 0.0, %v2189
      %v2191 = vpop.f32.mrb[0].mxu0
      %2192 = vmatprep.mubr.bf16.mxu0 0
      %2193 = vmatmul.mubr.bf16.gmra.mrb[0].mxu0 %v2050
      %v2194 = vpop.f32.mrb[0].mxu0
      %v2195 = vadd.f32 0.0, %v2194
      %v2196 = vpop.f32.mrb[0].mxu0
      %v2197 = vpop.f32.mrb[0].mxu0
      %v2198 = vadd.f32 0.0, %v2197
      %v2199 = vpop.f32.mrb[0].mxu0
      %2200 = vmatprep.mubr.bf16.mxu0 0
      %2201 = vmatmul.mubr.bf16.gmra.mrb[0].mxu0 %v2053
      %v2202 = vpop.f32.mrb[0].mxu0
      %v2203 = vadd.f32 0.0, %v2202
      %v2204 = vpop.f32.mrb[0].mxu0
      %v2205 = vpop.f32.mrb[0].mxu0
      %v2206 = vadd.f32 0.0, %v2205
      %v2207 = vpop.f32.mrb[0].mxu0
      %2208 = vmatprep.mubr.bf16.mxu0 0
      %2209 = vmatmul.mubr.bf16.gmra.mrb[0].mxu0 %v2056
      %v2210 = vpop.f32.mrb[0].mxu0
      %v2211 = vadd.f32 0.0, %v2210
      %v2212 = vpop.f32.mrb[0].mxu0
      %v2213 = vpop.f32.mrb[0].mxu0
      %v2214 = vadd.f32 0.0, %v2213
      %v2215 = vpop.f32.mrb[0].mxu0
      %2216 = vmatprep.mubr.bf16.mxu0 0
      %2217 = vmatmul.mubr.bf16.gmra.mrb[0].mxu0 %v2059
      %v2218 = vpop.f32.mrb[0].mxu0
      %v2219 = vadd.f32 0.0, %v2218
      %v2220 = vpop.f32.mrb[0].mxu0
      %v2221 = vpop.f32.mrb[0].mxu0
      %v2222 = vadd.f32 0.0, %v2221
      %v2223 = vpop.f32.mrb[0].mxu0
      %2224 = vdwg.mxu0
      %v2225 = vadd.f32 %v1490, %v2099
      %v2226 = vadd.f32 %v1491, %v2102
      %v2227 = vadd.f32 %v1492, %v2107
      %v2228 = vadd.f32 %v1493, %v2110
      %v2229 = vadd.f32 %v1494, %v2115
      %v2230 = vadd.f32 %v1495, %v2118
      %v2231 = vadd.f32 %v1496, %v2123
      %v2232 = vadd.f32 %v1497, %v2126
      %v2233 = vadd.f32 %v1498, %v2131
      %v2234 = vadd.f32 %v1499, %v2134
      %v2235 = vadd.f32 %v1500, %v2139
      %v2236 = vadd.f32 %v1501, %v2142
      %v2237 = vadd.f32 %v1502, %v2147
      %v2238 = vadd.f32 %v1503, %v2150
      %v2239 = vadd.f32 %v1504, %v2155
      %v2240 = vadd.f32 %v1505, %v2158
      %v2241 = vadd.f32 %v1506, %v2163
      %v2242 = vadd.f32 %v1507, %v2166
      %v2243 = vadd.f32 %v1508, %v2171
      %v2244 = vadd.f32 %v1509, %v2174
      %v2245 = vadd.f32 %v1510, %v2179
      %v2246 = vadd.f32 %v1511, %v2182
      %v2247 = vadd.f32 %v1512, %v2187
      %v2248 = vadd.f32 %v1513, %v2190
      %v2249 = vadd.f32 %v1514, %v2195
      %v2250 = vadd.f32 %v1515, %v2198
      %v2251 = vadd.f32 %v1516, %v2203
      %v2252 = vadd.f32 %v1517, %v2206
      %v2253 = vadd.f32 %v1518, %v2211
      %v2254 = vadd.f32 %v1519, %v2214
      %v2255 = vadd.f32 %v1520, %v2219
      %v2256 = vadd.f32 %v1521, %v2222
      %v2258 = vshrl.u32 %v1570, 16
      %v2260 = vrot.slane %v2258, 4
      %v2261 = vshll.u32 %v1570, 16
      %v2263 = vrot.slane %v2261, 5
      %v2264 = vor.u32 %v2260, %v2263
      %v2265 = vrot.slane %v2264, 4
      %v2267 = vshll.u32 %v1571, 16
      %v2269 = vrot.slane %v2267, 5
      %v2270 = vsel %vm1578, %v2265, %v2269
      %v2271 = vshrl.u32 %v1571, 16
      %v2273 = vrot.slane %v2271, 4
      %v2274 = vor.u32 %v2273, %v2269
      %v2275 = vrot.slane %v2274, 4
      %v2277 = vshll.u32 %v1572, 16
      %v2279 = vrot.slane %v2277, 5
      %v2280 = vsel %vm1578, %v2275, %v2279
      %s2281 = scalar_lea.vmem %s1, 8
      %v2282 = vld [vmem:[%s2281] sm:$0x3]
      %v2283 = vunpack.c.l.b16 %v2270
      %v2284 = vunpack.c.l.b16 %v2280
      %v2285 = vpack.c.b16 %v2284, %v2283
      %v2287 = vsel %vm930, %v2285, 0
      %v2290 = vsel %vm979, %v2282, 0
      %2292 = vmatprep.subr.bf16.mxu0 0
      %2293 = vmatpush1.bf16.msra.mxu0 %v2290
      %2294 = vmatprep.subr.bf16.mxu0 0
      %2295 = vmatpush1.bf16.msra.mxu0 0
      %2296 = vmatprep.subr.bf16.mxu0 0
      %2297 = vmatpush1.bf16.msra.mxu0 0
      %2298 = vmatprep.subr.bf16.mxu0 0
      %2299 = vmatpush1.bf16.msra.mxu0 0
      %2300 = vmatprep.subr.bf16.mxu0 0
      %2301 = vmatpush1.bf16.msra.mxu0 0
      %2302 = vmatprep.subr.bf16.mxu0 0
      %2303 = vmatpush1.bf16.msra.mxu0 0
      %2304 = vmatprep.subr.bf16.mxu0 0
      %2305 = vmatpush1.bf16.msra.mxu0 0
      %2306 = vmatprep.subr.bf16.mxu0 0
      %2307 = vmatpush1.bf16.msra.mxu0 0
      %2308 = vmatprep.subr.bf16.mxu0 0
      %2309 = vmatpush1.bf16.msra.mxu0 0
      %2310 = vmatprep.subr.bf16.mxu0 0
      %2311 = vmatpush1.bf16.msra.mxu0 0
      %2312 = vmatprep.subr.bf16.mxu0 0
      %2313 = vmatpush1.bf16.msra.mxu0 0
      %2314 = vmatprep.subr.bf16.mxu0 0
      %2315 = vmatpush1.bf16.msra.mxu0 0
      %2316 = vmatprep.subr.bf16.mxu0 0
      %2317 = vmatpush1.bf16.msra.mxu0 0
      %2318 = vmatprep.subr.bf16.mxu0 0
      %2319 = vmatpush1.bf16.msra.mxu0 0
      %2320 = vmatprep.subr.bf16.mxu0 0
      %2321 = vmatpush1.bf16.msra.mxu0 0
      %2322 = vmatprep.subr.bf16.mxu0 0
      %2323 = vmatpush1.bf16.msra.mxu0 0
      %2324 = vmatprep.mubr.bf16.mxu0 0
      %2325 = vmatmul.mubr.bf16.gmra.mrb[0].mxu0 %v2017
      %v2326 = vpop.f32.mrb[0].mxu0
      %v2327 = vadd.f32 0.0, %v2326
      %v2328 = vpop.f32.mrb[0].mxu0
      %v2329 = vpop.f32.mrb[0].mxu0
      %v2330 = vadd.f32 0.0, %v2329
      %v2331 = vpop.f32.mrb[0].mxu0
      %2332 = vmatprep.mubr.bf16.mxu0 0
      %2333 = vmatmul.mubr.bf16.gmra.mrb[0].mxu0 %v2020
      %v2334 = vpop.f32.mrb[0].mxu0
      %v2335 = vadd.f32 0.0, %v2334
      %v2336 = vpop.f32.mrb[0].mxu0
      %v2337 = vpop.f32.mrb[0].mxu0
      %v2338 = vadd.f32 0.0, %v2337
      %v2339 = vpop.f32.mrb[0].mxu0
      %2340 = vmatprep.mubr.bf16.mxu0 0
      %2341 = vmatmul.mubr.bf16.gmra.mrb[0].mxu0 %v2023
      %v2342 = vpop.f32.mrb[0].mxu0
      %v2343 = vadd.f32 0.0, %v2342
      %v2344 = vpop.f32.mrb[0].mxu0
      %v2345 = vpop.f32.mrb[0].mxu0
      %v2346 = vadd.f32 0.0, %v2345
      %v2347 = vpop.f32.mrb[0].mxu0
      %2348 = vmatprep.mubr.bf16.mxu0 0
      %2349 = vmatmul.mubr.bf16.gmra.mrb[0].mxu0 %v2026
      %v2350 = vpop.f32.mrb[0].mxu0
      %v2351 = vadd.f32 0.0, %v2350
      %v2352 = vpop.f32.mrb[0].mxu0
      %v2353 = vpop.f32.mrb[0].mxu0
      %v2354 = vadd.f32 0.0, %v2353
      %v2355 = vpop.f32.mrb[0].mxu0
      %2356 = vmatprep.mubr.bf16.mxu0 0
      %2357 = vmatmul.mubr.bf16.gmra.mrb[0].mxu0 %v2029
      %v2358 = vpop.f32.mrb[0].mxu0
      %v2359 = vadd.f32 0.0, %v2358
      %v2360 = vpop.f32.mrb[0].mxu0
      %v2361 = vpop.f32.mrb[0].mxu0
      %v2362 = vadd.f32 0.0, %v2361
      %v2363 = vpop.f32.mrb[0].mxu0
      %2364 = vmatprep.mubr.bf16.mxu0 0
      %2365 = vmatmul.mubr.bf16.gmra.mrb[0].mxu0 %v2032
      %v2366 = vpop.f32.mrb[0].mxu0
      %v2367 = vadd.f32 0.0, %v2366
      %v2368 = vpop.f32.mrb[0].mxu0
      %v2369 = vpop.f32.mrb[0].mxu0
      %v2370 = vadd.f32 0.0, %v2369
      %v2371 = vpop.f32.mrb[0].mxu0
      %2372 = vmatprep.mubr.bf16.mxu0 0
      %2373 = vmatmul.mubr.bf16.gmra.mrb[0].mxu0 %v2035
      %v2374 = vpop.f32.mrb[0].mxu0
      %v2375 = vadd.f32 0.0, %v2374
      %v2376 = vpop.f32.mrb[0].mxu0
      %v2377 = vpop.f32.mrb[0].mxu0
      %v2378 = vadd.f32 0.0, %v2377
      %v2379 = vpop.f32.mrb[0].mxu0
      %2380 = vmatprep.mubr.bf16.mxu0 0
      %2381 = vmatmul.mubr.bf16.gmra.mrb[0].mxu0 %v2038
      %v2382 = vpop.f32.mrb[0].mxu0
      %v2383 = vadd.f32 0.0, %v2382
      %v2384 = vpop.f32.mrb[0].mxu0
      %v2385 = vpop.f32.mrb[0].mxu0
      %v2386 = vadd.f32 0.0, %v2385
      %v2387 = vpop.f32.mrb[0].mxu0
      %2388 = vmatprep.mubr.bf16.mxu0 0
      %2389 = vmatmul.mubr.bf16.gmra.mrb[0].mxu0 %v2041
      %v2390 = vpop.f32.mrb[0].mxu0
      %v2391 = vadd.f32 0.0, %v2390
      %v2392 = vpop.f32.mrb[0].mxu0
      %v2393 = vpop.f32.mrb[0].mxu0
      %v2394 = vadd.f32 0.0, %v2393
      %v2395 = vpop.f32.mrb[0].mxu0
      %2396 = vmatprep.mubr.bf16.mxu0 0
      %2397 = vmatmul.mubr.bf16.gmra.mrb[0].mxu0 %v2044
      %v2398 = vpop.f32.mrb[0].mxu0
      %v2399 = vadd.f32 0.0, %v2398
      %v2400 = vpop.f32.mrb[0].mxu0
      %v2401 = vpop.f32.mrb[0].mxu0
      %v2402 = vadd.f32 0.0, %v2401
      %v2403 = vpop.f32.mrb[0].mxu0
      %2404 = vmatprep.mubr.bf16.mxu0 0
      %2405 = vmatmul.mubr.bf16.gmra.mrb[0].mxu0 %v2047
      %v2406 = vpop.f32.mrb[0].mxu0
      %v2407 = vadd.f32 0.0, %v2406
      %v2408 = vpop.f32.mrb[0].mxu0
      %v2409 = vpop.f32.mrb[0].mxu0
      %v2410 = vadd.f32 0.0, %v2409
      %v2411 = vpop.f32.mrb[0].mxu0
      %2412 = vmatprep.mubr.bf16.mxu0 0
      %2413 = vmatmul.mubr.bf16.gmra.mrb[0].mxu0 %v2050
      %v2414 = vpop.f32.mrb[0].mxu0
      %v2415 = vadd.f32 0.0, %v2414
      %v2416 = vpop.f32.mrb[0].mxu0
      %v2417 = vpop.f32.mrb[0].mxu0
      %v2418 = vadd.f32 0.0, %v2417
      %v2419 = vpop.f32.mrb[0].mxu0
      %2420 = vmatprep.mubr.bf16.mxu0 0
      %2421 = vmatmul.mubr.bf16.gmra.mrb[0].mxu0 %v2053
      %v2422 = vpop.f32.mrb[0].mxu0
      %v2423 = vadd.f32 0.0, %v2422
      %v2424 = vpop.f32.mrb[0].mxu0
      %v2425 = vpop.f32.mrb[0].mxu0
      %v2426 = vadd.f32 0.0, %v2425
      %v2427 = vpop.f32.mrb[0].mxu0
      %2428 = vmatprep.mubr.bf16.mxu0 0
      %2429 = vmatmul.mubr.bf16.gmra.mrb[0].mxu0 %v2056
      %v2430 = vpop.f32.mrb[0].mxu0
      %v2431 = vadd.f32 0.0, %v2430
      %v2432 = vpop.f32.mrb[0].mxu0
      %v2433 = vpop.f32.mrb[0].mxu0
      %v2434 = vadd.f32 0.0, %v2433
      %v2435 = vpop.f32.mrb[0].mxu0
      %2436 = vmatprep.mubr.bf16.mxu0 0
      %2437 = vmatmul.mubr.bf16.gmra.mrb[0].mxu0 %v2059
      %v2438 = vpop.f32.mrb[0].mxu0
      %v2439 = vadd.f32 0.0, %v2438
      %v2440 = vpop.f32.mrb[0].mxu0
      %v2441 = vpop.f32.mrb[0].mxu0
      %v2442 = vadd.f32 0.0, %v2441
      %v2443 = vpop.f32.mrb[0].mxu0
      %2444 = vmatprep.mubr.bf16.mxu0 0
      %2445 = vmatmul.mubr.bf16.gmra.mrb[0].mxu0 %v2287
      %v2446 = vpop.f32.mrb[0].mxu0
      %v2447 = vadd.f32 0.0, %v2446
      %v2448 = vpop.f32.mrb[0].mxu0
      %v2449 = vpop.f32.mrb[0].mxu0
      %v2450 = vadd.f32 0.0, %v2449
      %v2451 = vpop.f32.mrb[0].mxu0
      %2452 = vdwg.mxu0
      %v2453 = vadd.f32 %v2225, %v2327
      %v2454 = vadd.f32 %v2226, %v2330
      %v2455 = vadd.f32 %v2227, %v2335
      %v2456 = vadd.f32 %v2228, %v2338
      %v2457 = vadd.f32 %v2229, %v2343
      %v2458 = vadd.f32 %v2230, %v2346
      %v2459 = vadd.f32 %v2231, %v2351
      %v2460 = vadd.f32 %v2232, %v2354
      %v2461 = vadd.f32 %v2233, %v2359
      %v2462 = vadd.f32 %v2234, %v2362
      %v2463 = vadd.f32 %v2235, %v2367
      %v2464 = vadd.f32 %v2236, %v2370
      %v2465 = vadd.f32 %v2237, %v2375
      %v2466 = vadd.f32 %v2238, %v2378
      %v2467 = vadd.f32 %v2239, %v2383
      %v2468 = vadd.f32 %v2240, %v2386
      %v2469 = vadd.f32 %v2241, %v2391
      %v2470 = vadd.f32 %v2242, %v2394
      %v2471 = vadd.f32 %v2243, %v2399
      %v2472 = vadd.f32 %v2244, %v2402
      %v2473 = vadd.f32 %v2245, %v2407
      %v2474 = vadd.f32 %v2246, %v2410
      %v2475 = vadd.f32 %v2247, %v2415
      %v2476 = vadd.f32 %v2248, %v2418
      %v2477 = vadd.f32 %v2249, %v2423
      %v2478 = vadd.f32 %v2250, %v2426
      %v2479 = vadd.f32 %v2251, %v2431
      %v2480 = vadd.f32 %v2252, %v2434
      %v2481 = vadd.f32 %v2253, %v2439
      %v2482 = vadd.f32 %v2254, %v2442
      %v2483 = vadd.f32 %v2255, %v2447
      %v2484 = vadd.f32 %v2256, %v2450
      %v2486 = vshrl.u32 %v1573, 16
      %v2488 = vrot.slane %v2486, 4
      %v2489 = vshll.u32 %v1573, 16
      %v2491 = vrot.slane %v2489, 5
      %v2492 = vor.u32 %v2488, %v2491
      %v2493 = vrot.slane %v2492, 4
      %v2495 = vshll.u32 %v1574, 16
      %v2497 = vrot.slane %v2495, 5
      %v2498 = vsel %vm1578, %v2493, %v2497
      %v2499 = vshrl.u32 %v1574, 16
      %v2501 = vrot.slane %v2499, 4
      %v2502 = vor.u32 %v2501, %v2497
      %v2503 = vrot.slane %v2502, 4
      %v2505 = vshll.u32 %v1575, 16
      %v2507 = vrot.slane %v2505, 5
      %v2508 = vsel %vm1578, %v2503, %v2507
      %s2509 = scalar_lea.vmem %s1, 14
      %v2510 = vld [vmem:[%s2509] sm:$0x3]
      %v2511 = vunpack.c.l.b16 %v2498
      %v2512 = vunpack.c.l.b16 %v2508
      %v2513 = vpack.c.b16 %v2512, %v2511
      %v2515 = vsel %vm930, %v2513, 0
      %v2518 = vsel %vm979, %v2510, 0
      %2520 = vmatprep.subr.bf16.mxu0 0
      %2521 = vmatpush1.bf16.msra.mxu0 %v2518
      %2522 = vmatprep.subr.bf16.mxu0 0
      %2523 = vmatpush1.bf16.msra.mxu0 0
      %2524 = vmatprep.subr.bf16.mxu0 0
      %2525 = vmatpush1.bf16.msra.mxu0 0
      %2526 = vmatprep.subr.bf16.mxu0 0
      %2527 = vmatpush1.bf16.msra.mxu0 0
      %2528 = vmatprep.subr.bf16.mxu0 0
      %2529 = vmatpush1.bf16.msra.mxu0 0
      %2530 = vmatprep.subr.bf16.mxu0 0
      %2531 = vmatpush1.bf16.msra.mxu0 0
      %2532 = vmatprep.subr.bf16.mxu0 0
      %2533 = vmatpush1.bf16.msra.mxu0 0
      %2534 = vmatprep.subr.bf16.mxu0 0
      %2535 = vmatpush1.bf16.msra.mxu0 0
      %2536 = vmatprep.subr.bf16.mxu0 0
      %2537 = vmatpush1.bf16.msra.mxu0 0
      %2538 = vmatprep.subr.bf16.mxu0 0
      %2539 = vmatpush1.bf16.msra.mxu0 0
      %2540 = vmatprep.subr.bf16.mxu0 0
      %2541 = vmatpush1.bf16.msra.mxu0 0
      %2542 = vmatprep.subr.bf16.mxu0 0
      %2543 = vmatpush1.bf16.msra.mxu0 0
      %2544 = vmatprep.subr.bf16.mxu0 0
      %2545 = vmatpush1.bf16.msra.mxu0 0
      %2546 = vmatprep.subr.bf16.mxu0 0
      %2547 = vmatpush1.bf16.msra.mxu0 0
      %2548 = vmatprep.subr.bf16.mxu0 0
      %2549 = vmatpush1.bf16.msra.mxu0 0
      %2550 = vmatprep.subr.bf16.mxu0 0
      %2551 = vmatpush1.bf16.msra.mxu0 0
      %2552 = vmatprep.mubr.bf16.mxu0 0
      %2553 = vmatmul.mubr.bf16.gmra.mrb[0].mxu0 %v2020
      %v2554 = vpop.f32.mrb[0].mxu0
      %v2555 = vadd.f32 0.0, %v2554
      %v2556 = vpop.f32.mrb[0].mxu0
      %v2557 = vpop.f32.mrb[0].mxu0
      %v2558 = vadd.f32 0.0, %v2557
      %v2559 = vpop.f32.mrb[0].mxu0
      %2560 = vmatprep.mubr.bf16.mxu0 0
      %2561 = vmatmul.mubr.bf16.gmra.mrb[0].mxu0 %v2023
      %v2562 = vpop.f32.mrb[0].mxu0
      %v2563 = vadd.f32 0.0, %v2562
      %v2564 = vpop.f32.mrb[0].mxu0
      %v2565 = vpop.f32.mrb[0].mxu0
      %v2566 = vadd.f32 0.0, %v2565
      %v2567 = vpop.f32.mrb[0].mxu0
      %2568 = vmatprep.mubr.bf16.mxu0 0
      %2569 = vmatmul.mubr.bf16.gmra.mrb[0].mxu0 %v2026
      %v2570 = vpop.f32.mrb[0].mxu0
      %v2571 = vadd.f32 0.0, %v2570
      %v2572 = vpop.f32.mrb[0].mxu0
      %v2573 = vpop.f32.mrb[0].mxu0
      %v2574 = vadd.f32 0.0, %v2573
      %v2575 = vpop.f32.mrb[0].mxu0
      %2576 = vmatprep.mubr.bf16.mxu0 0
      %2577 = vmatmul.mubr.bf16.gmra.mrb[0].mxu0 %v2029
      %v2578 = vpop.f32.mrb[0].mxu0
      %v2579 = vadd.f32 0.0, %v2578
      %v2580 = vpop.f32.mrb[0].mxu0
      %v2581 = vpop.f32.mrb[0].mxu0
      %v2582 = vadd.f32 0.0, %v2581
      %v2583 = vpop.f32.mrb[0].mxu0
      %2584 = vmatprep.mubr.bf16.mxu0 0
      %2585 = vmatmul.mubr.bf16.gmra.mrb[0].mxu0 %v2032
      %v2586 = vpop.f32.mrb[0].mxu0
      %v2587 = vadd.f32 0.0, %v2586
      %v2588 = vpop.f32.mrb[0].mxu0
      %v2589 = vpop.f32.mrb[0].mxu0
      %v2590 = vadd.f32 0.0, %v2589
      %v2591 = vpop.f32.mrb[0].mxu0
      %2592 = vmatprep.mubr.bf16.mxu0 0
      %2593 = vmatmul.mubr.bf16.gmra.mrb[0].mxu0 %v2035
      %v2594 = vpop.f32.mrb[0].mxu0
      %v2595 = vadd.f32 0.0, %v2594
      %v2596 = vpop.f32.mrb[0].mxu0
      %v2597 = vpop.f32.mrb[0].mxu0
      %v2598 = vadd.f32 0.0, %v2597
      %v2599 = vpop.f32.mrb[0].mxu0
      %2600 = vmatprep.mubr.bf16.mxu0 0
      %2601 = vmatmul.mubr.bf16.gmra.mrb[0].mxu0 %v2038
      %v2602 = vpop.f32.mrb[0].mxu0
      %v2603 = vadd.f32 0.0, %v2602
      %v2604 = vpop.f32.mrb[0].mxu0
      %v2605 = vpop.f32.mrb[0].mxu0
      %v2606 = vadd.f32 0.0, %v2605
      %v2607 = vpop.f32.mrb[0].mxu0
      %2608 = vmatprep.mubr.bf16.mxu0 0
      %2609 = vmatmul.mubr.bf16.gmra.mrb[0].mxu0 %v2041
      %v2610 = vpop.f32.mrb[0].mxu0
      %v2611 = vadd.f32 0.0, %v2610
      %v2612 = vpop.f32.mrb[0].mxu0
      %v2613 = vpop.f32.mrb[0].mxu0
      %v2614 = vadd.f32 0.0, %v2613
      %v2615 = vpop.f32.mrb[0].mxu0
      %2616 = vmatprep.mubr.bf16.mxu0 0
      %2617 = vmatmul.mubr.bf16.gmra.mrb[0].mxu0 %v2044
      %v2618 = vpop.f32.mrb[0].mxu0
      %v2619 = vadd.f32 0.0, %v2618
      %v2620 = vpop.f32.mrb[0].mxu0
      %v2621 = vpop.f32.mrb[0].mxu0
      %v2622 = vadd.f32 0.0, %v2621
      %v2623 = vpop.f32.mrb[0].mxu0
      %2624 = vmatprep.mubr.bf16.mxu0 0
      %2625 = vmatmul.mubr.bf16.gmra.mrb[0].mxu0 %v2047
      %v2626 = vpop.f32.mrb[0].mxu0
      %v2627 = vadd.f32 0.0, %v2626
      %v2628 = vpop.f32.mrb[0].mxu0
      %v2629 = vpop.f32.mrb[0].mxu0
      %v2630 = vadd.f32 0.0, %v2629
      %v2631 = vpop.f32.mrb[0].mxu0
      %2632 = vmatprep.mubr.bf16.mxu0 0
      %2633 = vmatmul.mubr.bf16.gmra.mrb[0].mxu0 %v2050
      %v2634 = vpop.f32.mrb[0].mxu0
      %v2635 = vadd.f32 0.0, %v2634
      %v2636 = vpop.f32.mrb[0].mxu0
      %v2637 = vpop.f32.mrb[0].mxu0
      %v2638 = vadd.f32 0.0, %v2637
      %v2639 = vpop.f32.mrb[0].mxu0
      %2640 = vmatprep.mubr.bf16.mxu0 0
      %2641 = vmatmul.mubr.bf16.gmra.mrb[0].mxu0 %v2053
      %v2642 = vpop.f32.mrb[0].mxu0
      %v2643 = vadd.f32 0.0, %v2642
      %v2644 = vpop.f32.mrb[0].mxu0
      %v2645 = vpop.f32.mrb[0].mxu0
      %v2646 = vadd.f32 0.0, %v2645
      %v2647 = vpop.f32.mrb[0].mxu0
      %2648 = vmatprep.mubr.bf16.mxu0 0
      %2649 = vmatmul.mubr.bf16.gmra.mrb[0].mxu0 %v2056
      %v2650 = vpop.f32.mrb[0].mxu0
      %v2651 = vadd.f32 0.0, %v2650
      %v2652 = vpop.f32.mrb[0].mxu0
      %v2653 = vpop.f32.mrb[0].mxu0
      %v2654 = vadd.f32 0.0, %v2653
      %v2655 = vpop.f32.mrb[0].mxu0
      %2656 = vmatprep.mubr.bf16.mxu0 0
      %2657 = vmatmul.mubr.bf16.gmra.mrb[0].mxu0 %v2059
      %v2658 = vpop.f32.mrb[0].mxu0
      %v2659 = vadd.f32 0.0, %v2658
      %v2660 = vpop.f32.mrb[0].mxu0
      %v2661 = vpop.f32.mrb[0].mxu0
      %v2662 = vadd.f32 0.0, %v2661
      %v2663 = vpop.f32.mrb[0].mxu0
      %2664 = vmatprep.mubr.bf16.mxu0 0
      %2665 = vmatmul.mubr.bf16.gmra.mrb[0].mxu0 %v2287
      %v2666 = vpop.f32.mrb[0].mxu0
      %v2667 = vadd.f32 0.0, %v2666
      %v2668 = vpop.f32.mrb[0].mxu0
      %v2669 = vpop.f32.mrb[0].mxu0
      %v2670 = vadd.f32 0.0, %v2669
      %v2671 = vpop.f32.mrb[0].mxu0
      %2672 = vmatprep.mubr.bf16.mxu0 0
      %2673 = vmatmul.mubr.bf16.gmra.mrb[0].mxu0 %v2515
      %v2674 = vpop.f32.mrb[0].mxu0
      %v2675 = vadd.f32 0.0, %v2674
      %v2676 = vpop.f32.mrb[0].mxu0
      %v2677 = vpop.f32.mrb[0].mxu0
      %v2678 = vadd.f32 0.0, %v2677
      %v2679 = vpop.f32.mrb[0].mxu0
      %2680 = vdwg.mxu0
      %v2681 = vadd.f32 %v2453, %v2555
      %v2682 = vadd.f32 %v2454, %v2558
      %v2683 = vadd.f32 %v2455, %v2563
      %v2684 = vadd.f32 %v2456, %v2566
      %v2685 = vadd.f32 %v2457, %v2571
      %v2686 = vadd.f32 %v2458, %v2574
      %v2687 = vadd.f32 %v2459, %v2579
      %v2688 = vadd.f32 %v2460, %v2582
      %v2689 = vadd.f32 %v2461, %v2587
      %v2690 = vadd.f32 %v2462, %v2590
      %v2691 = vadd.f32 %v2463, %v2595
      %v2692 = vadd.f32 %v2464, %v2598
      %v2693 = vadd.f32 %v2465, %v2603
      %v2694 = vadd.f32 %v2466, %v2606
      %v2695 = vadd.f32 %v2467, %v2611
      %v2696 = vadd.f32 %v2468, %v2614
      %v2697 = vadd.f32 %v2469, %v2619
      %v2698 = vadd.f32 %v2470, %v2622
      %v2699 = vadd.f32 %v2471, %v2627
      %v2700 = vadd.f32 %v2472, %v2630
      %v2701 = vadd.f32 %v2473, %v2635
      %v2702 = vadd.f32 %v2474, %v2638
      %v2703 = vadd.f32 %v2475, %v2643
      %v2704 = vadd.f32 %v2476, %v2646
      %v2705 = vadd.f32 %v2477, %v2651
      %v2706 = vadd.f32 %v2478, %v2654
      %v2707 = vadd.f32 %v2479, %v2659
      %v2708 = vadd.f32 %v2480, %v2662
      %v2709 = vadd.f32 %v2481, %v2667
      %v2710 = vadd.f32 %v2482, %v2670
      %v2711 = vadd.f32 %v2483, %v2675
      %v2712 = vadd.f32 %v2484, %v2678
      %v2713 = vld [vmem:[#allocation2] sm:$0xe]
      %v2714 = vld [vmem:[#allocation2 + $0xc] sm:$0xe]
      %v2715 = vld [vmem:[#allocation2 + $0x18] sm:$0xe]
      %v2716 = vld [vmem:[#allocation2 + $0x24] sm:$0xe]
      %v2717 = vld [vmem:[#allocation2 + $0x30] sm:$0xe]
      %v2718 = vld [vmem:[#allocation2 + $0x3c] sm:$0xe]
      %v2719 = vld [vmem:[#allocation2 + $0x48] sm:$0xe]
      %v2720 = vld [vmem:[#allocation2 + $0x54] sm:$0xe]
      %v2721 = vld [vmem:[#allocation2 + $0x60] sm:$0xe]
      %v2722 = vld [vmem:[#allocation2 + $0x6c] sm:$0xe]
      %v2723 = vld [vmem:[#allocation2 + $0x78] sm:$0xe]
      %v2724 = vld [vmem:[#allocation2 + $0x84] sm:$0xe]
      %v2725 = vld [vmem:[#allocation2 + $0x90] sm:$0xe]
      %v2726 = vld [vmem:[#allocation2 + $0x9c] sm:$0xe]
      %v2727 = vld [vmem:[#allocation2 + $0xa8] sm:$0xe]
      %v2728 = vld [vmem:[#allocation2 + $0xb4] sm:$0xe]
      %v2729 = vld [vmem:[#allocation2 + $0xc0] sm:$0xe]
      %v2730 = vld [vmem:[#allocation2 + $0xcc] sm:$0xe]
      %vm2779 = vcmask 1042432
      %vm2780 = vcmask 1046532
      %vm2781 = vmor %vm2779, %vm2780
      %v2782 = vrot.slane %v2713, 5
      %v2783 = vrot.slane %v2782, 4
      %v2784 = vrot.slane %v1523, 5
      %v2785 = vsel %vm2781, %v2783, %v2784
      %v2786 = vrot.slane %v2784, 4
      %v2787 = vrot.slane %v1524, 5
      %v2788 = vsel %vm2781, %v2786, %v2787
      %v2789 = vrot.slane %v2714, 5
      %v2790 = vrot.slane %v2789, 4
      %v2791 = vrot.slane %v1526, 5
      %v2792 = vsel %vm2781, %v2790, %v2791
      %v2793 = vrot.slane %v2791, 4
      %v2794 = vrot.slane %v1527, 5
      %v2795 = vsel %vm2781, %v2793, %v2794
      %v2796 = vrot.slane %v2715, 5
      %v2797 = vrot.slane %v2796, 4
      %v2798 = vrot.slane %v1529, 5
      %v2799 = vsel %vm2781, %v2797, %v2798
      %v2800 = vrot.slane %v2798, 4
      %v2801 = vrot.slane %v1530, 5
      %v2802 = vsel %vm2781, %v2800, %v2801
      %v2803 = vrot.slane %v2716, 5
      %v2804 = vrot.slane %v2803, 4
      %v2805 = vrot.slane %v1532, 5
      %v2806 = vsel %vm2781, %v2804, %v2805
      %v2807 = vrot.slane %v2805, 4
      %v2808 = vrot.slane %v1533, 5
      %v2809 = vsel %vm2781, %v2807, %v2808
      %v2810 = vrot.slane %v2717, 5
      %v2811 = vrot.slane %v2810, 4
      %v2812 = vrot.slane %v1535, 5
      %v2813 = vsel %vm2781, %v2811, %v2812
      %v2814 = vrot.slane %v2812, 4
      %v2815 = vrot.slane %v1536, 5
      %v2816 = vsel %vm2781, %v2814, %v2815
      %v2817 = vrot.slane %v2718, 5
      %v2818 = vrot.slane %v2817, 4
      %v2819 = vrot.slane %v1538, 5
      %v2820 = vsel %vm2781, %v2818, %v2819
      %v2821 = vrot.slane %v2819, 4
      %v2822 = vrot.slane %v1539, 5
      %v2823 = vsel %vm2781, %v2821, %v2822
      %v2824 = vrot.slane %v2719, 5
      %v2825 = vrot.slane %v2824, 4
      %v2826 = vrot.slane %v1541, 5
      %v2827 = vsel %vm2781, %v2825, %v2826
      %v2828 = vrot.slane %v2826, 4
      %v2829 = vrot.slane %v1542, 5
      %v2830 = vsel %vm2781, %v2828, %v2829
      %v2831 = vrot.slane %v2720, 5
      %v2832 = vrot.slane %v2831, 4
      %v2833 = vrot.slane %v1544, 5
      %v2834 = vsel %vm2781, %v2832, %v2833
      %v2835 = vrot.slane %v2833, 4
      %v2836 = vrot.slane %v1545, 5
      %v2837 = vsel %vm2781, %v2835, %v2836
      %v2838 = vrot.slane %v2721, 5
      %v2839 = vrot.slane %v2838, 4
      %v2840 = vrot.slane %v1547, 5
      %v2841 = vsel %vm2781, %v2839, %v2840
      %v2842 = vrot.slane %v2840, 4
      %v2843 = vrot.slane %v1548, 5
      %v2844 = vsel %vm2781, %v2842, %v2843
      %v2845 = vrot.slane %v2722, 5
      %v2846 = vrot.slane %v2845, 4
      %v2847 = vrot.slane %v1550, 5
      %v2848 = vsel %vm2781, %v2846, %v2847
      %v2849 = vrot.slane %v2847, 4
      %v2850 = vrot.slane %v1551, 5
      %v2851 = vsel %vm2781, %v2849, %v2850
      %v2852 = vrot.slane %v2723, 5
      %v2853 = vrot.slane %v2852, 4
      %v2854 = vrot.slane %v1553, 5
      %v2855 = vsel %vm2781, %v2853, %v2854
      %v2856 = vrot.slane %v2854, 4
      %v2857 = vrot.slane %v1554, 5
      %v2858 = vsel %vm2781, %v2856, %v2857
      %v2859 = vrot.slane %v2724, 5
      %v2860 = vrot.slane %v2859, 4
      %v2861 = vrot.slane %v1556, 5
      %v2862 = vsel %vm2781, %v2860, %v2861
      %v2863 = vrot.slane %v2861, 4
      %v2864 = vrot.slane %v1557, 5
      %v2865 = vsel %vm2781, %v2863, %v2864
      %v2866 = vrot.slane %v2725, 5
      %v2867 = vrot.slane %v2866, 4
      %v2868 = vrot.slane %v1559, 5
      %v2869 = vsel %vm2781, %v2867, %v2868
      %v2870 = vrot.slane %v2868, 4
      %v2871 = vrot.slane %v1560, 5
      %v2872 = vsel %vm2781, %v2870, %v2871
      %v2873 = vrot.slane %v2726, 5
      %v2874 = vrot.slane %v2873, 4
      %v2875 = vrot.slane %v1562, 5
      %v2876 = vsel %vm2781, %v2874, %v2875
      %v2877 = vrot.slane %v2875, 4
      %v2878 = vrot.slane %v1563, 5
      %v2879 = vsel %vm2781, %v2877, %v2878
      %v2880 = vrot.slane %v2727, 5
      %v2881 = vrot.slane %v2880, 4
      %v2882 = vrot.slane %v1565, 5
      %v2883 = vsel %vm2781, %v2881, %v2882
      %v2884 = vrot.slane %v2882, 4
      %v2885 = vrot.slane %v1566, 5
      %v2886 = vsel %vm2781, %v2884, %v2885
      %v2887 = vrot.slane %v2728, 5
      %v2888 = vrot.slane %v2887, 4
      %v2889 = vrot.slane %v1568, 5
      %v2890 = vsel %vm2781, %v2888, %v2889
      %v2891 = vrot.slane %v2889, 4
      %v2892 = vrot.slane %v1569, 5
      %v2893 = vsel %vm2781, %v2891, %v2892
      %s2894 = scalar_lea.vmem %s1, 4
      %v2895 = vld [vmem:[%s2894] sm:$0x3]
      %v2896 = vunpack.c.l.b16 %v2785
      %v2897 = vunpack.c.l.b16 %v2788
      %v2898 = vunpack.c.l.b16 %v2792
      %v2899 = vunpack.c.l.b16 %v2795
      %v2900 = vunpack.c.l.b16 %v2799
      %v2901 = vunpack.c.l.b16 %v2802
      %v2902 = vunpack.c.l.b16 %v2806
      %v2903 = vunpack.c.l.b16 %v2809
      %v2904 = vunpack.c.l.b16 %v2813
      %v2905 = vunpack.c.l.b16 %v2816
      %v2906 = vunpack.c.l.b16 %v2820
      %v2907 = vunpack.c.l.b16 %v2823
      %v2908 = vunpack.c.l.b16 %v2827
      %v2909 = vunpack.c.l.b16 %v2830
      %v2910 = vunpack.c.l.b16 %v2834
      %v2911 = vunpack.c.l.b16 %v2837
      %v2912 = vunpack.c.l.b16 %v2841
      %v2913 = vunpack.c.l.b16 %v2844
      %v2914 = vunpack.c.l.b16 %v2848
      %v2915 = vunpack.c.l.b16 %v2851
      %v2916 = vunpack.c.l.b16 %v2855
      %v2917 = vunpack.c.l.b16 %v2858
      %v2918 = vunpack.c.l.b16 %v2862
      %v2919 = vunpack.c.l.b16 %v2865
      %v2920 = vunpack.c.l.b16 %v2869
      %v2921 = vunpack.c.l.b16 %v2872
      %v2922 = vunpack.c.l.b16 %v2876
      %v2923 = vunpack.c.l.b16 %v2879
      %v2924 = vunpack.c.l.b16 %v2883
      %v2925 = vunpack.c.l.b16 %v2886
      %v2926 = vunpack.c.l.b16 %v2890
      %v2927 = vunpack.c.l.b16 %v2893
      %v2928 = vpack.c.b16 %v2897, %v2896
      %v2929 = vpack.c.b16 %v2899, %v2898
      %v2930 = vpack.c.b16 %v2901, %v2900
      %v2931 = vpack.c.b16 %v2903, %v2902
      %v2932 = vpack.c.b16 %v2905, %v2904
      %v2933 = vpack.c.b16 %v2907, %v2906
      %v2934 = vpack.c.b16 %v2909, %v2908
      %v2935 = vpack.c.b16 %v2911, %v2910
      %v2936 = vpack.c.b16 %v2913, %v2912
      %v2937 = vpack.c.b16 %v2915, %v2914
      %v2938 = vpack.c.b16 %v2917, %v2916
      %v2939 = vpack.c.b16 %v2919, %v2918
      %v2940 = vpack.c.b16 %v2921, %v2920
      %v2941 = vpack.c.b16 %v2923, %v2922
      %v2942 = vpack.c.b16 %v2925, %v2924
      %v2943 = vpack.c.b16 %v2927, %v2926
      %v2945 = vsel %vm930, %v2928, 0
      %v2948 = vsel %vm930, %v2929, 0
      %v2951 = vsel %vm930, %v2930, 0
      %v2954 = vsel %vm930, %v2931, 0
      %v2957 = vsel %vm930, %v2932, 0
      %v2960 = vsel %vm930, %v2933, 0
      %v2963 = vsel %vm930, %v2934, 0
      %v2966 = vsel %vm930, %v2935, 0
      %v2969 = vsel %vm930, %v2936, 0
      %v2972 = vsel %vm930, %v2937, 0
      %v2975 = vsel %vm930, %v2938, 0
      %v2978 = vsel %vm930, %v2939, 0
      %v2981 = vsel %vm930, %v2940, 0
      %v2984 = vsel %vm930, %v2941, 0
      %v2987 = vsel %vm930, %v2942, 0
      %v2990 = vsel %vm930, %v2943, 0
      %v2993 = vsel %vm979, %v2895, 0
      %2995 = vmatprep.subr.bf16.mxu0 0
      %2996 = vmatpush1.bf16.msra.mxu0 %v2993
      %2997 = vmatprep.subr.bf16.mxu0 0
      %2998 = vmatpush1.bf16.msra.mxu0 0
      %2999 = vmatprep.subr.bf16.mxu0 0
      %3000 = vmatpush1.bf16.msra.mxu0 0
      %3001 = vmatprep.subr.bf16.mxu0 0
      %3002 = vmatpush1.bf16.msra.mxu0 0
      %3003 = vmatprep.subr.bf16.mxu0 0
      %3004 = vmatpush1.bf16.msra.mxu0 0
      %3005 = vmatprep.subr.bf16.mxu0 0
      %3006 = vmatpush1.bf16.msra.mxu0 0
      %3007 = vmatprep.subr.bf16.mxu0 0
      %3008 = vmatpush1.bf16.msra.mxu0 0
      %3009 = vmatprep.subr.bf16.mxu0 0
      %3010 = vmatpush1.bf16.msra.mxu0 0
      %3011 = vmatprep.subr.bf16.mxu0 0
      %3012 = vmatpush1.bf16.msra.mxu0 0
      %3013 = vmatprep.subr.bf16.mxu0 0
      %3014 = vmatpush1.bf16.msra.mxu0 0
      %3015 = vmatprep.subr.bf16.mxu0 0
      %3016 = vmatpush1.bf16.msra.mxu0 0
      %3017 = vmatprep.subr.bf16.mxu0 0
      %3018 = vmatpush1.bf16.msra.mxu0 0
      %3019 = vmatprep.subr.bf16.mxu0 0
      %3020 = vmatpush1.bf16.msra.mxu0 0
      %3021 = vmatprep.subr.bf16.mxu0 0
      %3022 = vmatpush1.bf16.msra.mxu0 0
      %3023 = vmatprep.subr.bf16.mxu0 0
      %3024 = vmatpush1.bf16.msra.mxu0 0
      %3025 = vmatprep.subr.bf16.mxu0 0
      %3026 = vmatpush1.bf16.msra.mxu0 0
      %3027 = vmatprep.mubr.bf16.mxu0 0
      %3028 = vmatmul.mubr.bf16.gmra.mrb[0].mxu0 %v2945
      %v3029 = vpop.f32.mrb[0].mxu0
      %v3030 = vadd.f32 0.0, %v3029
      %v3031 = vpop.f32.mrb[0].mxu0
      %v3032 = vpop.f32.mrb[0].mxu0
      %v3033 = vadd.f32 0.0, %v3032
      %v3034 = vpop.f32.mrb[0].mxu0
      %3035 = vmatprep.mubr.bf16.mxu0 0
      %3036 = vmatmul.mubr.bf16.gmra.mrb[0].mxu0 %v2948
      %v3037 = vpop.f32.mrb[0].mxu0
      %v3038 = vadd.f32 0.0, %v3037
      %v3039 = vpop.f32.mrb[0].mxu0
      %v3040 = vpop.f32.mrb[0].mxu0
      %v3041 = vadd.f32 0.0, %v3040
      %v3042 = vpop.f32.mrb[0].mxu0
      %3043 = vmatprep.mubr.bf16.mxu0 0
      %3044 = vmatmul.mubr.bf16.gmra.mrb[0].mxu0 %v2951
      %v3045 = vpop.f32.mrb[0].mxu0
      %v3046 = vadd.f32 0.0, %v3045
      %v3047 = vpop.f32.mrb[0].mxu0
      %v3048 = vpop.f32.mrb[0].mxu0
      %v3049 = vadd.f32 0.0, %v3048
      %v3050 = vpop.f32.mrb[0].mxu0
      %3051 = vmatprep.mubr.bf16.mxu0 0
      %3052 = vmatmul.mubr.bf16.gmra.mrb[0].mxu0 %v2954
      %v3053 = vpop.f32.mrb[0].mxu0
      %v3054 = vadd.f32 0.0, %v3053
      %v3055 = vpop.f32.mrb[0].mxu0
      %v3056 = vpop.f32.mrb[0].mxu0
      %v3057 = vadd.f32 0.0, %v3056
      %v3058 = vpop.f32.mrb[0].mxu0
      %3059 = vmatprep.mubr.bf16.mxu0 0
      %3060 = vmatmul.mubr.bf16.gmra.mrb[0].mxu0 %v2957
      %v3061 = vpop.f32.mrb[0].mxu0
      %v3062 = vadd.f32 0.0, %v3061
      %v3063 = vpop.f32.mrb[0].mxu0
      %v3064 = vpop.f32.mrb[0].mxu0
      %v3065 = vadd.f32 0.0, %v3064
      %v3066 = vpop.f32.mrb[0].mxu0
      %3067 = vmatprep.mubr.bf16.mxu0 0
      %3068 = vmatmul.mubr.bf16.gmra.mrb[0].mxu0 %v2960
      %v3069 = vpop.f32.mrb[0].mxu0
      %v3070 = vadd.f32 0.0, %v3069
      %v3071 = vpop.f32.mrb[0].mxu0
      %v3072 = vpop.f32.mrb[0].mxu0
      %v3073 = vadd.f32 0.0, %v3072
      %v3074 = vpop.f32.mrb[0].mxu0
      %3075 = vmatprep.mubr.bf16.mxu0 0
      %3076 = vmatmul.mubr.bf16.gmra.mrb[0].mxu0 %v2963
      %v3077 = vpop.f32.mrb[0].mxu0
      %v3078 = vadd.f32 0.0, %v3077
      %v3079 = vpop.f32.mrb[0].mxu0
      %v3080 = vpop.f32.mrb[0].mxu0
      %v3081 = vadd.f32 0.0, %v3080
      %v3082 = vpop.f32.mrb[0].mxu0
      %3083 = vmatprep.mubr.bf16.mxu0 0
      %3084 = vmatmul.mubr.bf16.gmra.mrb[0].mxu0 %v2966
      %v3085 = vpop.f32.mrb[0].mxu0
      %v3086 = vadd.f32 0.0, %v3085
      %v3087 = vpop.f32.mrb[0].mxu0
      %v3088 = vpop.f32.mrb[0].mxu0
      %v3089 = vadd.f32 0.0, %v3088
      %v3090 = vpop.f32.mrb[0].mxu0
      %3091 = vmatprep.mubr.bf16.mxu0 0
      %3092 = vmatmul.mubr.bf16.gmra.mrb[0].mxu0 %v2969
      %v3093 = vpop.f32.mrb[0].mxu0
      %v3094 = vadd.f32 0.0, %v3093
      %v3095 = vpop.f32.mrb[0].mxu0
      %v3096 = vpop.f32.mrb[0].mxu0
      %v3097 = vadd.f32 0.0, %v3096
      %v3098 = vpop.f32.mrb[0].mxu0
      %3099 = vmatprep.mubr.bf16.mxu0 0
      %3100 = vmatmul.mubr.bf16.gmra.mrb[0].mxu0 %v2972
      %v3101 = vpop.f32.mrb[0].mxu0
      %v3102 = vadd.f32 0.0, %v3101
      %v3103 = vpop.f32.mrb[0].mxu0
      %v3104 = vpop.f32.mrb[0].mxu0
      %v3105 = vadd.f32 0.0, %v3104
      %v3106 = vpop.f32.mrb[0].mxu0
      %3107 = vmatprep.mubr.bf16.mxu0 0
      %3108 = vmatmul.mubr.bf16.gmra.mrb[0].mxu0 %v2975
      %v3109 = vpop.f32.mrb[0].mxu0
      %v3110 = vadd.f32 0.0, %v3109
      %v3111 = vpop.f32.mrb[0].mxu0
      %v3112 = vpop.f32.mrb[0].mxu0
      %v3113 = vadd.f32 0.0, %v3112
      %v3114 = vpop.f32.mrb[0].mxu0
      %3115 = vmatprep.mubr.bf16.mxu0 0
      %3116 = vmatmul.mubr.bf16.gmra.mrb[0].mxu0 %v2978
      %v3117 = vpop.f32.mrb[0].mxu0
      %v3118 = vadd.f32 0.0, %v3117
      %v3119 = vpop.f32.mrb[0].mxu0
      %v3120 = vpop.f32.mrb[0].mxu0
      %v3121 = vadd.f32 0.0, %v3120
      %v3122 = vpop.f32.mrb[0].mxu0
      %3123 = vmatprep.mubr.bf16.mxu0 0
      %3124 = vmatmul.mubr.bf16.gmra.mrb[0].mxu0 %v2981
      %v3125 = vpop.f32.mrb[0].mxu0
      %v3126 = vadd.f32 0.0, %v3125
      %v3127 = vpop.f32.mrb[0].mxu0
      %v3128 = vpop.f32.mrb[0].mxu0
      %v3129 = vadd.f32 0.0, %v3128
      %v3130 = vpop.f32.mrb[0].mxu0
      %3131 = vmatprep.mubr.bf16.mxu0 0
      %3132 = vmatmul.mubr.bf16.gmra.mrb[0].mxu0 %v2984
      %v3133 = vpop.f32.mrb[0].mxu0
      %v3134 = vadd.f32 0.0, %v3133
      %v3135 = vpop.f32.mrb[0].mxu0
      %v3136 = vpop.f32.mrb[0].mxu0
      %v3137 = vadd.f32 0.0, %v3136
      %v3138 = vpop.f32.mrb[0].mxu0
      %3139 = vmatprep.mubr.bf16.mxu0 0
      %3140 = vmatmul.mubr.bf16.gmra.mrb[0].mxu0 %v2987
      %v3141 = vpop.f32.mrb[0].mxu0
      %v3142 = vadd.f32 0.0, %v3141
      %v3143 = vpop.f32.mrb[0].mxu0
      %v3144 = vpop.f32.mrb[0].mxu0
      %v3145 = vadd.f32 0.0, %v3144
      %v3146 = vpop.f32.mrb[0].mxu0
      %3147 = vmatprep.mubr.bf16.mxu0 0
      %3148 = vmatmul.mubr.bf16.gmra.mrb[0].mxu0 %v2990
      %v3149 = vpop.f32.mrb[0].mxu0
      %v3150 = vadd.f32 0.0, %v3149
      %v3151 = vpop.f32.mrb[0].mxu0
      %v3152 = vpop.f32.mrb[0].mxu0
      %v3153 = vadd.f32 0.0, %v3152
      %v3154 = vpop.f32.mrb[0].mxu0
      %3155 = vdwg.mxu0
      %v3156 = vadd.f32 %v2681, %v3030
      %v3157 = vadd.f32 %v2682, %v3033
      %v3158 = vadd.f32 %v2683, %v3038
      %v3159 = vadd.f32 %v2684, %v3041
      %v3160 = vadd.f32 %v2685, %v3046
      %v3161 = vadd.f32 %v2686, %v3049
      %v3162 = vadd.f32 %v2687, %v3054
      %v3163 = vadd.f32 %v2688, %v3057
      %v3164 = vadd.f32 %v2689, %v3062
      %v3165 = vadd.f32 %v2690, %v3065
      %v3166 = vadd.f32 %v2691, %v3070
      %v3167 = vadd.f32 %v2692, %v3073
      %v3168 = vadd.f32 %v2693, %v3078
      %v3169 = vadd.f32 %v2694, %v3081
      %v3170 = vadd.f32 %v2695, %v3086
      %v3171 = vadd.f32 %v2696, %v3089
      %v3172 = vadd.f32 %v2697, %v3094
      %v3173 = vadd.f32 %v2698, %v3097
      %v3174 = vadd.f32 %v2699, %v3102
      %v3175 = vadd.f32 %v2700, %v3105
      %v3176 = vadd.f32 %v2701, %v3110
      %v3177 = vadd.f32 %v2702, %v3113
      %v3178 = vadd.f32 %v2703, %v3118
      %v3179 = vadd.f32 %v2704, %v3121
      %v3180 = vadd.f32 %v2705, %v3126
      %v3181 = vadd.f32 %v2706, %v3129
      %v3182 = vadd.f32 %v2707, %v3134
      %v3183 = vadd.f32 %v2708, %v3137
      %v3184 = vadd.f32 %v2709, %v3142
      %v3185 = vadd.f32 %v2710, %v3145
      %v3186 = vadd.f32 %v2711, %v3150
      %v3187 = vadd.f32 %v2712, %v3153
      %v3191 = vrot.slane %v2729, 5
      %v3192 = vrot.slane %v3191, 4
      %v3193 = vrot.slane %v1571, 5
      %v3194 = vsel %vm2781, %v3192, %v3193
      %v3195 = vrot.slane %v3193, 4
      %v3196 = vrot.slane %v1572, 5
      %v3197 = vsel %vm2781, %v3195, %v3196
      %s3198 = scalar_lea.vmem %s1, 10
      %v3199 = vld [vmem:[%s3198] sm:$0x3]
      %v3200 = vunpack.c.l.b16 %v3194
      %v3201 = vunpack.c.l.b16 %v3197
      %v3202 = vpack.c.b16 %v3201, %v3200
      %v3204 = vsel %vm930, %v3202, 0
      %v3207 = vsel %vm979, %v3199, 0
      %3209 = vmatprep.subr.bf16.mxu0 0
      %3210 = vmatpush1.bf16.msra.mxu0 %v3207
      %3211 = vmatprep.subr.bf16.mxu0 0
      %3212 = vmatpush1.bf16.msra.mxu0 0
      %3213 = vmatprep.subr.bf16.mxu0 0
      %3214 = vmatpush1.bf16.msra.mxu0 0
      %3215 = vmatprep.subr.bf16.mxu0 0
      %3216 = vmatpush1.bf16.msra.mxu0 0
      %3217 = vmatprep.subr.bf16.mxu0 0
      %3218 = vmatpush1.bf16.msra.mxu0 0
      %3219 = vmatprep.subr.bf16.mxu0 0
      %3220 = vmatpush1.bf16.msra.mxu0 0
      %3221 = vmatprep.subr.bf16.mxu0 0
      %3222 = vmatpush1.bf16.msra.mxu0 0
      %3223 = vmatprep.subr.bf16.mxu0 0
      %3224 = vmatpush1.bf16.msra.mxu0 0
      %3225 = vmatprep.subr.bf16.mxu0 0
      %3226 = vmatpush1.bf16.msra.mxu0 0
      %3227 = vmatprep.subr.bf16.mxu0 0
      %3228 = vmatpush1.bf16.msra.mxu0 0
      %3229 = vmatprep.subr.bf16.mxu0 0
      %3230 = vmatpush1.bf16.msra.mxu0 0
      %3231 = vmatprep.subr.bf16.mxu0 0
      %3232 = vmatpush1.bf16.msra.mxu0 0
      %3233 = vmatprep.subr.bf16.mxu0 0
      %3234 = vmatpush1.bf16.msra.mxu0 0
      %3235 = vmatprep.subr.bf16.mxu0 0
      %3236 = vmatpush1.bf16.msra.mxu0 0
      %3237 = vmatprep.subr.bf16.mxu0 0
      %3238 = vmatpush1.bf16.msra.mxu0 0
      %3239 = vmatprep.subr.bf16.mxu0 0
      %3240 = vmatpush1.bf16.msra.mxu0 0
      %3241 = vmatprep.mubr.bf16.mxu0 0
      %3242 = vmatmul.mubr.bf16.gmra.mrb[0].mxu0 %v2948
      %v3243 = vpop.f32.mrb[0].mxu0
      %v3244 = vadd.f32 0.0, %v3243
      %v3245 = vpop.f32.mrb[0].mxu0
      %v3246 = vpop.f32.mrb[0].mxu0
      %v3247 = vadd.f32 0.0, %v3246
      %v3248 = vpop.f32.mrb[0].mxu0
      %3249 = vmatprep.mubr.bf16.mxu0 0
      %3250 = vmatmul.mubr.bf16.gmra.mrb[0].mxu0 %v2951
      %v3251 = vpop.f32.mrb[0].mxu0
      %v3252 = vadd.f32 0.0, %v3251
      %v3253 = vpop.f32.mrb[0].mxu0
      %v3254 = vpop.f32.mrb[0].mxu0
      %v3255 = vadd.f32 0.0, %v3254
      %v3256 = vpop.f32.mrb[0].mxu0
      %3257 = vmatprep.mubr.bf16.mxu0 0
      %3258 = vmatmul.mubr.bf16.gmra.mrb[0].mxu0 %v2954
      %v3259 = vpop.f32.mrb[0].mxu0
      %v3260 = vadd.f32 0.0, %v3259
      %v3261 = vpop.f32.mrb[0].mxu0
      %v3262 = vpop.f32.mrb[0].mxu0
      %v3263 = vadd.f32 0.0, %v3262
      %v3264 = vpop.f32.mrb[0].mxu0
      %3265 = vmatprep.mubr.bf16.mxu0 0
      %3266 = vmatmul.mubr.bf16.gmra.mrb[0].mxu0 %v2957
      %v3267 = vpop.f32.mrb[0].mxu0
      %v3268 = vadd.f32 0.0, %v3267
      %v3269 = vpop.f32.mrb[0].mxu0
      %v3270 = vpop.f32.mrb[0].mxu0
      %v3271 = vadd.f32 0.0, %v3270
      %v3272 = vpop.f32.mrb[0].mxu0
      %3273 = vmatprep.mubr.bf16.mxu0 0
      %3274 = vmatmul.mubr.bf16.gmra.mrb[0].mxu0 %v2960
      %v3275 = vpop.f32.mrb[0].mxu0
      %v3276 = vadd.f32 0.0, %v3275
      %v3277 = vpop.f32.mrb[0].mxu0
      %v3278 = vpop.f32.mrb[0].mxu0
      %v3279 = vadd.f32 0.0, %v3278
      %v3280 = vpop.f32.mrb[0].mxu0
      %3281 = vmatprep.mubr.bf16.mxu0 0
      %3282 = vmatmul.mubr.bf16.gmra.mrb[0].mxu0 %v2963
      %v3283 = vpop.f32.mrb[0].mxu0
      %v3284 = vadd.f32 0.0, %v3283
      %v3285 = vpop.f32.mrb[0].mxu0
      %v3286 = vpop.f32.mrb[0].mxu0
      %v3287 = vadd.f32 0.0, %v3286
      %v3288 = vpop.f32.mrb[0].mxu0
      %3289 = vmatprep.mubr.bf16.mxu0 0
      %3290 = vmatmul.mubr.bf16.gmra.mrb[0].mxu0 %v2966
      %v3291 = vpop.f32.mrb[0].mxu0
      %v3292 = vadd.f32 0.0, %v3291
      %v3293 = vpop.f32.mrb[0].mxu0
      %v3294 = vpop.f32.mrb[0].mxu0
      %v3295 = vadd.f32 0.0, %v3294
      %v3296 = vpop.f32.mrb[0].mxu0
      %3297 = vmatprep.mubr.bf16.mxu0 0
      %3298 = vmatmul.mubr.bf16.gmra.mrb[0].mxu0 %v2969
      %v3299 = vpop.f32.mrb[0].mxu0
      %v3300 = vadd.f32 0.0, %v3299
      %v3301 = vpop.f32.mrb[0].mxu0
      %v3302 = vpop.f32.mrb[0].mxu0
      %v3303 = vadd.f32 0.0, %v3302
      %v3304 = vpop.f32.mrb[0].mxu0
      %3305 = vmatprep.mubr.bf16.mxu0 0
      %3306 = vmatmul.mubr.bf16.gmra.mrb[0].mxu0 %v2972
      %v3307 = vpop.f32.mrb[0].mxu0
      %v3308 = vadd.f32 0.0, %v3307
      %v3309 = vpop.f32.mrb[0].mxu0
      %v3310 = vpop.f32.mrb[0].mxu0
      %v3311 = vadd.f32 0.0, %v3310
      %v3312 = vpop.f32.mrb[0].mxu0
      %3313 = vmatprep.mubr.bf16.mxu0 0
      %3314 = vmatmul.mubr.bf16.gmra.mrb[0].mxu0 %v2975
      %v3315 = vpop.f32.mrb[0].mxu0
      %v3316 = vadd.f32 0.0, %v3315
      %v3317 = vpop.f32.mrb[0].mxu0
      %v3318 = vpop.f32.mrb[0].mxu0
      %v3319 = vadd.f32 0.0, %v3318
      %v3320 = vpop.f32.mrb[0].mxu0
      %3321 = vmatprep.mubr.bf16.mxu0 0
      %3322 = vmatmul.mubr.bf16.gmra.mrb[0].mxu0 %v2978
      %v3323 = vpop.f32.mrb[0].mxu0
      %v3324 = vadd.f32 0.0, %v3323
      %v3325 = vpop.f32.mrb[0].mxu0
      %v3326 = vpop.f32.mrb[0].mxu0
      %v3327 = vadd.f32 0.0, %v3326
      %v3328 = vpop.f32.mrb[0].mxu0
      %3329 = vmatprep.mubr.bf16.mxu0 0
      %3330 = vmatmul.mubr.bf16.gmra.mrb[0].mxu0 %v2981
      %v3331 = vpop.f32.mrb[0].mxu0
      %v3332 = vadd.f32 0.0, %v3331
      %v3333 = vpop.f32.mrb[0].mxu0
      %v3334 = vpop.f32.mrb[0].mxu0
      %v3335 = vadd.f32 0.0, %v3334
      %v3336 = vpop.f32.mrb[0].mxu0
      %3337 = vmatprep.mubr.bf16.mxu0 0
      %3338 = vmatmul.mubr.bf16.gmra.mrb[0].mxu0 %v2984
      %v3339 = vpop.f32.mrb[0].mxu0
      %v3340 = vadd.f32 0.0, %v3339
      %v3341 = vpop.f32.mrb[0].mxu0
      %v3342 = vpop.f32.mrb[0].mxu0
      %v3343 = vadd.f32 0.0, %v3342
      %v3344 = vpop.f32.mrb[0].mxu0
      %3345 = vmatprep.mubr.bf16.mxu0 0
      %3346 = vmatmul.mubr.bf16.gmra.mrb[0].mxu0 %v2987
      %v3347 = vpop.f32.mrb[0].mxu0
      %v3348 = vadd.f32 0.0, %v3347
      %v3349 = vpop.f32.mrb[0].mxu0
      %v3350 = vpop.f32.mrb[0].mxu0
      %v3351 = vadd.f32 0.0, %v3350
      %v3352 = vpop.f32.mrb[0].mxu0
      %3353 = vmatprep.mubr.bf16.mxu0 0
      %3354 = vmatmul.mubr.bf16.gmra.mrb[0].mxu0 %v2990
      %v3355 = vpop.f32.mrb[0].mxu0
      %v3356 = vadd.f32 0.0, %v3355
      %v3357 = vpop.f32.mrb[0].mxu0
      %v3358 = vpop.f32.mrb[0].mxu0
      %v3359 = vadd.f32 0.0, %v3358
      %v3360 = vpop.f32.mrb[0].mxu0
      %3361 = vmatprep.mubr.bf16.mxu0 0
      %3362 = vmatmul.mubr.bf16.gmra.mrb[0].mxu0 %v3204
      %v3363 = vpop.f32.mrb[0].mxu0
      %v3364 = vadd.f32 0.0, %v3363
      %v3365 = vpop.f32.mrb[0].mxu0
      %v3366 = vpop.f32.mrb[0].mxu0
      %v3367 = vadd.f32 0.0, %v3366
      %v3368 = vpop.f32.mrb[0].mxu0
      %3369 = vdwg.mxu0
      %v3370 = vadd.f32 %v3156, %v3244
      %v3371 = vadd.f32 %v3157, %v3247
      %v3372 = vadd.f32 %v3158, %v3252
      %v3373 = vadd.f32 %v3159, %v3255
      %v3374 = vadd.f32 %v3160, %v3260
      %v3375 = vadd.f32 %v3161, %v3263
      %v3376 = vadd.f32 %v3162, %v3268
      %v3377 = vadd.f32 %v3163, %v3271
      %v3378 = vadd.f32 %v3164, %v3276
      %v3379 = vadd.f32 %v3165, %v3279
      %v3380 = vadd.f32 %v3166, %v3284
      %v3381 = vadd.f32 %v3167, %v3287
      %v3382 = vadd.f32 %v3168, %v3292
      %v3383 = vadd.f32 %v3169, %v3295
      %v3384 = vadd.f32 %v3170, %v3300
      %v3385 = vadd.f32 %v3171, %v3303
      %v3386 = vadd.f32 %v3172, %v3308
      %v3387 = vadd.f32 %v3173, %v3311
      %v3388 = vadd.f32 %v3174, %v3316
      %v3389 = vadd.f32 %v3175, %v3319
      %v3390 = vadd.f32 %v3176, %v3324
      %v3391 = vadd.f32 %v3177, %v3327
      %v3392 = vadd.f32 %v3178, %v3332
      %v3393 = vadd.f32 %v3179, %v3335
      %v3394 = vadd.f32 %v3180, %v3340
      %v3395 = vadd.f32 %v3181, %v3343
      %v3396 = vadd.f32 %v3182, %v3348
      %v3397 = vadd.f32 %v3183, %v3351
      %v3398 = vadd.f32 %v3184, %v3356
      %v3399 = vadd.f32 %v3185, %v3359
      %v3400 = vadd.f32 %v3186, %v3364
      %v3401 = vadd.f32 %v3187, %v3367
      %v3405 = vrot.slane %v2730, 5
      %v3406 = vrot.slane %v3405, 4
      %v3407 = vrot.slane %v1574, 5
      %v3408 = vsel %vm2781, %v3406, %v3407
      %v3409 = vrot.slane %v3407, 4
      %v3410 = vrot.slane %v1575, 5
      %v3411 = vsel %vm2781, %v3409, %v3410
      %s3412 = scalar_lea.vmem %s1, 16
      %v3413 = vld [vmem:[%s3412] sm:$0x3]
      %v3414 = vunpack.c.l.b16 %v3408
      %v3415 = vunpack.c.l.b16 %v3411
      %v3416 = vpack.c.b16 %v3415, %v3414
      %v3418 = vsel %vm930, %v3416, 0
      %v3421 = vsel %vm979, %v3413, 0
      %3423 = vmatprep.subr.bf16.mxu0 0
      %3424 = vmatpush1.bf16.msra.mxu0 %v3421
      %3425 = vmatprep.subr.bf16.mxu0 0
      %3426 = vmatpush1.bf16.msra.mxu0 0
      %3427 = vmatprep.subr.bf16.mxu0 0
      %3428 = vmatpush1.bf16.msra.mxu0 0
      %3429 = vmatprep.subr.bf16.mxu0 0
      %3430 = vmatpush1.bf16.msra.mxu0 0
      %3431 = vmatprep.subr.bf16.mxu0 0
      %3432 = vmatpush1.bf16.msra.mxu0 0
      %3433 = vmatprep.subr.bf16.mxu0 0
      %3434 = vmatpush1.bf16.msra.mxu0 0
      %3435 = vmatprep.subr.bf16.mxu0 0
      %3436 = vmatpush1.bf16.msra.mxu0 0
      %3437 = vmatprep.subr.bf16.mxu0 0
      %3438 = vmatpush1.bf16.msra.mxu0 0
      %3439 = vmatprep.subr.bf16.mxu0 0
      %3440 = vmatpush1.bf16.msra.mxu0 0
      %3441 = vmatprep.subr.bf16.mxu0 0
      %3442 = vmatpush1.bf16.msra.mxu0 0
      %3443 = vmatprep.subr.bf16.mxu0 0
      %3444 = vmatpush1.bf16.msra.mxu0 0
      %3445 = vmatprep.subr.bf16.mxu0 0
      %3446 = vmatpush1.bf16.msra.mxu0 0
      %3447 = vmatprep.subr.bf16.mxu0 0
      %3448 = vmatpush1.bf16.msra.mxu0 0
      %3449 = vmatprep.subr.bf16.mxu0 0
      %3450 = vmatpush1.bf16.msra.mxu0 0
      %3451 = vmatprep.subr.bf16.mxu0 0
      %3452 = vmatpush1.bf16.msra.mxu0 0
      %3453 = vmatprep.subr.bf16.mxu0 0
      %3454 = vmatpush1.bf16.msra.mxu0 0
      %3455 = vmatprep.mubr.bf16.mxu0 0
      %3456 = vmatmul.mubr.bf16.gmra.mrb[0].mxu0 %v2951
      %v3457 = vpop.f32.mrb[0].mxu0
      %v3458 = vadd.f32 0.0, %v3457
      %v3459 = vpop.f32.mrb[0].mxu0
      %v3460 = vpop.f32.mrb[0].mxu0
      %v3461 = vadd.f32 0.0, %v3460
      %v3462 = vpop.f32.mrb[0].mxu0
      %3463 = vmatprep.mubr.bf16.mxu0 0
      %3464 = vmatmul.mubr.bf16.gmra.mrb[0].mxu0 %v2954
      %v3465 = vpop.f32.mrb[0].mxu0
      %v3466 = vadd.f32 0.0, %v3465
      %v3467 = vpop.f32.mrb[0].mxu0
      %v3468 = vpop.f32.mrb[0].mxu0
      %v3469 = vadd.f32 0.0, %v3468
      %v3470 = vpop.f32.mrb[0].mxu0
      %3471 = vmatprep.mubr.bf16.mxu0 0
      %3472 = vmatmul.mubr.bf16.gmra.mrb[0].mxu0 %v2957
      %v3473 = vpop.f32.mrb[0].mxu0
      %v3474 = vadd.f32 0.0, %v3473
      %v3475 = vpop.f32.mrb[0].mxu0
      %v3476 = vpop.f32.mrb[0].mxu0
      %v3477 = vadd.f32 0.0, %v3476
      %v3478 = vpop.f32.mrb[0].mxu0
      %3479 = vmatprep.mubr.bf16.mxu0 0
      %3480 = vmatmul.mubr.bf16.gmra.mrb[0].mxu0 %v2960
      %v3481 = vpop.f32.mrb[0].mxu0
      %v3482 = vadd.f32 0.0, %v3481
      %v3483 = vpop.f32.mrb[0].mxu0
      %v3484 = vpop.f32.mrb[0].mxu0
      %v3485 = vadd.f32 0.0, %v3484
      %v3486 = vpop.f32.mrb[0].mxu0
      %3487 = vmatprep.mubr.bf16.mxu0 0
      %3488 = vmatmul.mubr.bf16.gmra.mrb[0].mxu0 %v2963
      %v3489 = vpop.f32.mrb[0].mxu0
      %v3490 = vadd.f32 0.0, %v3489
      %v3491 = vpop.f32.mrb[0].mxu0
      %v3492 = vpop.f32.mrb[0].mxu0
      %v3493 = vadd.f32 0.0, %v3492
      %v3494 = vpop.f32.mrb[0].mxu0
      %3495 = vmatprep.mubr.bf16.mxu0 0
      %3496 = vmatmul.mubr.bf16.gmra.mrb[0].mxu0 %v2966
      %v3497 = vpop.f32.mrb[0].mxu0
      %v3498 = vadd.f32 0.0, %v3497
      %v3499 = vpop.f32.mrb[0].mxu0
      %v3500 = vpop.f32.mrb[0].mxu0
      %v3501 = vadd.f32 0.0, %v3500
      %v3502 = vpop.f32.mrb[0].mxu0
      %3503 = vmatprep.mubr.bf16.mxu0 0
      %3504 = vmatmul.mubr.bf16.gmra.mrb[0].mxu0 %v2969
      %v3505 = vpop.f32.mrb[0].mxu0
      %v3506 = vadd.f32 0.0, %v3505
      %v3507 = vpop.f32.mrb[0].mxu0
      %v3508 = vpop.f32.mrb[0].mxu0
      %v3509 = vadd.f32 0.0, %v3508
      %v3510 = vpop.f32.mrb[0].mxu0
      %3511 = vmatprep.mubr.bf16.mxu0 0
      %3512 = vmatmul.mubr.bf16.gmra.mrb[0].mxu0 %v2972
      %v3513 = vpop.f32.mrb[0].mxu0
      %v3514 = vadd.f32 0.0, %v3513
      %v3515 = vpop.f32.mrb[0].mxu0
      %v3516 = vpop.f32.mrb[0].mxu0
      %v3517 = vadd.f32 0.0, %v3516
      %v3518 = vpop.f32.mrb[0].mxu0
      %3519 = vmatprep.mubr.bf16.mxu0 0
      %3520 = vmatmul.mubr.bf16.gmra.mrb[0].mxu0 %v2975
      %v3521 = vpop.f32.mrb[0].mxu0
      %v3522 = vadd.f32 0.0, %v3521
      %v3523 = vpop.f32.mrb[0].mxu0
      %v3524 = vpop.f32.mrb[0].mxu0
      %v3525 = vadd.f32 0.0, %v3524
      %v3526 = vpop.f32.mrb[0].mxu0
      %3527 = vmatprep.mubr.bf16.mxu0 0
      %3528 = vmatmul.mubr.bf16.gmra.mrb[0].mxu0 %v2978
      %v3529 = vpop.f32.mrb[0].mxu0
      %v3530 = vadd.f32 0.0, %v3529
      %v3531 = vpop.f32.mrb[0].mxu0
      %v3532 = vpop.f32.mrb[0].mxu0
      %v3533 = vadd.f32 0.0, %v3532
      %v3534 = vpop.f32.mrb[0].mxu0
      %3535 = vmatprep.mubr.bf16.mxu0 0
      %3536 = vmatmul.mubr.bf16.gmra.mrb[0].mxu0 %v2981
      %v3537 = vpop.f32.mrb[0].mxu0
      %v3538 = vadd.f32 0.0, %v3537
      %v3539 = vpop.f32.mrb[0].mxu0
      %v3540 = vpop.f32.mrb[0].mxu0
      %v3541 = vadd.f32 0.0, %v3540
      %v3542 = vpop.f32.mrb[0].mxu0
      %3543 = vmatprep.mubr.bf16.mxu0 0
      %3544 = vmatmul.mubr.bf16.gmra.mrb[0].mxu0 %v2984
      %v3545 = vpop.f32.mrb[0].mxu0
      %v3546 = vadd.f32 0.0, %v3545
      %v3547 = vpop.f32.mrb[0].mxu0
      %v3548 = vpop.f32.mrb[0].mxu0
      %v3549 = vadd.f32 0.0, %v3548
      %v3550 = vpop.f32.mrb[0].mxu0
      %3551 = vmatprep.mubr.bf16.mxu0 0
      %3552 = vmatmul.mubr.bf16.gmra.mrb[0].mxu0 %v2987
      %v3553 = vpop.f32.mrb[0].mxu0
      %v3554 = vadd.f32 0.0, %v3553
      %v3555 = vpop.f32.mrb[0].mxu0
      %v3556 = vpop.f32.mrb[0].mxu0
      %v3557 = vadd.f32 0.0, %v3556
      %v3558 = vpop.f32.mrb[0].mxu0
      %3559 = vmatprep.mubr.bf16.mxu0 0
      %3560 = vmatmul.mubr.bf16.gmra.mrb[0].mxu0 %v2990
      %v3561 = vpop.f32.mrb[0].mxu0
      %v3562 = vadd.f32 0.0, %v3561
      %v3563 = vpop.f32.mrb[0].mxu0
      %v3564 = vpop.f32.mrb[0].mxu0
      %v3565 = vadd.f32 0.0, %v3564
      %v3566 = vpop.f32.mrb[0].mxu0
      %3567 = vmatprep.mubr.bf16.mxu0 0
      %3568 = vmatmul.mubr.bf16.gmra.mrb[0].mxu0 %v3204
      %v3569 = vpop.f32.mrb[0].mxu0
      %v3570 = vadd.f32 0.0, %v3569
      %v3571 = vpop.f32.mrb[0].mxu0
      %v3572 = vpop.f32.mrb[0].mxu0
      %v3573 = vadd.f32 0.0, %v3572
      %v3574 = vpop.f32.mrb[0].mxu0
      %3575 = vmatprep.mubr.bf16.mxu0 0
      %3576 = vmatmul.mubr.bf16.gmra.mrb[0].mxu0 %v3418
      %v3577 = vpop.f32.mrb[0].mxu0
      %v3578 = vadd.f32 0.0, %v3577
      %v3579 = vpop.f32.mrb[0].mxu0
      %v3580 = vpop.f32.mrb[0].mxu0
      %v3581 = vadd.f32 0.0, %v3580
      %v3582 = vpop.f32.mrb[0].mxu0
      %3583 = vdwg.mxu0
      %v3584 = vadd.f32 %v3370, %v3458
      %v3585 = vadd.f32 %v3371, %v3461
      %v3586 = vadd.f32 %v3372, %v3466
      %v3587 = vadd.f32 %v3373, %v3469
      %v3588 = vadd.f32 %v3374, %v3474
      %v3589 = vadd.f32 %v3375, %v3477
      %v3590 = vadd.f32 %v3376, %v3482
      %v3591 = vadd.f32 %v3377, %v3485
      %v3592 = vadd.f32 %v3378, %v3490
      %v3593 = vadd.f32 %v3379, %v3493
      %v3594 = vadd.f32 %v3380, %v3498
      %v3595 = vadd.f32 %v3381, %v3501
      %v3596 = vadd.f32 %v3382, %v3506
      %v3597 = vadd.f32 %v3383, %v3509
      %v3598 = vadd.f32 %v3384, %v3514
      %v3599 = vadd.f32 %v3385, %v3517
      %v3600 = vadd.f32 %v3386, %v3522
      %v3601 = vadd.f32 %v3387, %v3525
      %v3602 = vadd.f32 %v3388, %v3530
      %v3603 = vadd.f32 %v3389, %v3533
      %v3604 = vadd.f32 %v3390, %v3538
      %v3605 = vadd.f32 %v3391, %v3541
      %v3606 = vadd.f32 %v3392, %v3546
      %v3607 = vadd.f32 %v3393, %v3549
      %v3608 = vadd.f32 %v3394, %v3554
      %v3609 = vadd.f32 %v3395, %v3557
      %v3610 = vadd.f32 %v3396, %v3562
      %v3611 = vadd.f32 %v3397, %v3565
      %v3612 = vadd.f32 %v3398, %v3570
      %v3613 = vadd.f32 %v3399, %v3573
      %v3614 = vadd.f32 %v3400, %v3578
      %v3615 = vadd.f32 %v3401, %v3581
      %v3616 = vld [vmem:[%s2] sm:$0x1]
      %v3618 = vlaneseq
      %v3619 = vshrl.u32 %v3618, 7
      %v3620 = vsub.s32 0, %v3619
      %v3621 = vrot.slane %v3616, %v3620
      %v3623 = vadd.f32 %v3584, %v3621
      %v3624 = vadd.f32 %v3585, %v3621
      %v3625 = vadd.f32 %v3586, %v3621
      %v3626 = vadd.f32 %v3587, %v3621
      %v3627 = vadd.f32 %v3588, %v3621
      %v3628 = vadd.f32 %v3589, %v3621
      %v3629 = vadd.f32 %v3590, %v3621
      %v3630 = vadd.f32 %v3591, %v3621
      %v3631 = vadd.f32 %v3592, %v3621
      %v3632 = vadd.f32 %v3593, %v3621
      %v3633 = vadd.f32 %v3594, %v3621
      %v3634 = vadd.f32 %v3595, %v3621
      %v3635 = vadd.f32 %v3596, %v3621
      %v3636 = vadd.f32 %v3597, %v3621
      %v3637 = vadd.f32 %v3598, %v3621
      %v3638 = vadd.f32 %v3599, %v3621
      %v3639 = vadd.f32 %v3600, %v3621
      %v3640 = vadd.f32 %v3601, %v3621
      %v3641 = vadd.f32 %v3602, %v3621
      %v3642 = vadd.f32 %v3603, %v3621
      %v3643 = vadd.f32 %v3604, %v3621
      %v3644 = vadd.f32 %v3605, %v3621
      %v3645 = vadd.f32 %v3606, %v3621
      %v3646 = vadd.f32 %v3607, %v3621
      %v3647 = vadd.f32 %v3608, %v3621
      %v3648 = vadd.f32 %v3609, %v3621
      %v3649 = vadd.f32 %v3610, %v3621
      %v3650 = vadd.f32 %v3611, %v3621
      %v3651 = vadd.f32 %v3612, %v3621
      %v3652 = vadd.f32 %v3613, %v3621
      %v3653 = vadd.f32 %v3614, %v3621
      %v3654 = vadd.f32 %v3615, %v3621
      %v3655 = vmax.f32 %v3623, 0.0
      %v3656 = vmax.f32 %v3624, 0.0
      %v3657 = vmax.f32 %v3625, 0.0
      %v3658 = vmax.f32 %v3626, 0.0
      %v3659 = vmax.f32 %v3627, 0.0
      %v3660 = vmax.f32 %v3628, 0.0
      %v3661 = vmax.f32 %v3629, 0.0
      %v3662 = vmax.f32 %v3630, 0.0
      %v3663 = vmax.f32 %v3631, 0.0
      %v3664 = vmax.f32 %v3632, 0.0
      %v3665 = vmax.f32 %v3633, 0.0
      %v3666 = vmax.f32 %v3634, 0.0
      %v3667 = vmax.f32 %v3635, 0.0
      %v3668 = vmax.f32 %v3636, 0.0
      %v3669 = vmax.f32 %v3637, 0.0
      %v3670 = vmax.f32 %v3638, 0.0
      %v3671 = vmax.f32 %v3639, 0.0
      %v3672 = vmax.f32 %v3640, 0.0
      %v3673 = vmax.f32 %v3641, 0.0
      %v3674 = vmax.f32 %v3642, 0.0
      %v3675 = vmax.f32 %v3643, 0.0
      %v3676 = vmax.f32 %v3644, 0.0
      %v3677 = vmax.f32 %v3645, 0.0
      %v3678 = vmax.f32 %v3646, 0.0
      %v3679 = vmax.f32 %v3647, 0.0
      %v3680 = vmax.f32 %v3648, 0.0
      %v3681 = vmax.f32 %v3649, 0.0
      %v3682 = vmax.f32 %v3650, 0.0
      %v3683 = vmax.f32 %v3651, 0.0
      %v3684 = vmax.f32 %v3652, 0.0
      %v3685 = vmax.f32 %v3653, 0.0
      %v3686 = vmax.f32 %v3654, 0.0
      %v3687 = vpack.c.bf16 %v3656, %v3655
      %v3688 = vpack.c.bf16 %v3658, %v3657
      %v3689 = vpack.c.bf16 %v3660, %v3659
      %v3690 = vpack.c.bf16 %v3662, %v3661
      %v3691 = vpack.c.bf16 %v3664, %v3663
      %v3692 = vpack.c.bf16 %v3666, %v3665
      %v3693 = vpack.c.bf16 %v3668, %v3667
      %v3694 = vpack.c.bf16 %v3670, %v3669
      %v3695 = vpack.c.bf16 %v3672, %v3671
      %v3696 = vpack.c.bf16 %v3674, %v3673
      %v3697 = vpack.c.bf16 %v3676, %v3675
      %v3698 = vpack.c.bf16 %v3678, %v3677
      %v3699 = vpack.c.bf16 %v3680, %v3679
      %v3700 = vpack.c.bf16 %v3682, %v3681
      %v3701 = vpack.c.bf16 %v3684, %v3683
      %v3702 = vpack.c.bf16 %v3686, %v3685
      %v3719 = vunpack.c.l.b16 %v3687
      %v3720 = vunpack.c.h.b16 %v3687
      %v3721 = vunpack.c.l.b16 %v3688
      %v3722 = vunpack.c.h.b16 %v3688
      %v3723 = vunpack.c.l.b16 %v3689
      %v3724 = vunpack.c.h.b16 %v3689
      %v3725 = vunpack.c.l.b16 %v3690
      %v3726 = vunpack.c.h.b16 %v3690
      %v3727 = vunpack.c.l.b16 %v3691
      %v3728 = vunpack.c.h.b16 %v3691
      %v3729 = vunpack.c.l.b16 %v3692
      %v3730 = vunpack.c.h.b16 %v3692
      %v3731 = vunpack.c.l.b16 %v3693
      %v3732 = vunpack.c.h.b16 %v3693
      %v3733 = vunpack.c.l.b16 %v3694
      %v3734 = vunpack.c.h.b16 %v3694
      %v3735 = vunpack.c.l.b16 %v3695
      %v3736 = vunpack.c.h.b16 %v3695
      %v3737 = vunpack.c.l.b16 %v3696
      %v3738 = vunpack.c.h.b16 %v3696
      %v3739 = vunpack.c.l.b16 %v3697
      %v3740 = vunpack.c.h.b16 %v3697
      %v3741 = vunpack.c.l.b16 %v3698
      %v3742 = vunpack.c.h.b16 %v3698
      %v3743 = vunpack.c.l.b16 %v3699
      %v3744 = vunpack.c.h.b16 %v3699
      %v3745 = vunpack.c.l.b16 %v3700
      %v3746 = vunpack.c.h.b16 %v3700
      %v3747 = vunpack.c.l.b16 %v3701
      %v3748 = vunpack.c.h.b16 %v3701
      %v3749 = vunpack.c.l.b16 %v3702
      %v3750 = vunpack.c.h.b16 %v3702
      %v3751 = vpack.c.b16 %v3719, %v3719
      %v3752 = vpack.c.b16 %v3720, %v3720
      %v3753 = vpack.c.b16 %v3721, %v3721
      %v3754 = vpack.c.b16 %v3722, %v3722
      %v3755 = vpack.c.b16 %v3723, %v3723
      %v3756 = vpack.c.b16 %v3724, %v3724
      %v3757 = vpack.c.b16 %v3725, %v3725
      %v3758 = vpack.c.b16 %v3726, %v3726
      %v3759 = vpack.c.b16 %v3727, %v3727
      %v3760 = vpack.c.b16 %v3728, %v3728
      %v3761 = vpack.c.b16 %v3729, %v3729
      %v3762 = vpack.c.b16 %v3730, %v3730
      %v3763 = vpack.c.b16 %v3731, %v3731
      %v3764 = vpack.c.b16 %v3732, %v3732
      %v3765 = vpack.c.b16 %v3733, %v3733
      %v3766 = vpack.c.b16 %v3734, %v3734
      %v3767 = vpack.c.b16 %v3735, %v3735
      %v3768 = vpack.c.b16 %v3736, %v3736
      %v3769 = vpack.c.b16 %v3737, %v3737
      %v3770 = vpack.c.b16 %v3738, %v3738
      %v3771 = vpack.c.b16 %v3739, %v3739
      %v3772 = vpack.c.b16 %v3740, %v3740
      %v3773 = vpack.c.b16 %v3741, %v3741
      %v3774 = vpack.c.b16 %v3742, %v3742
      %v3775 = vpack.c.b16 %v3743, %v3743
      %v3776 = vpack.c.b16 %v3744, %v3744
      %v3777 = vpack.c.b16 %v3745, %v3745
      %v3778 = vpack.c.b16 %v3746, %v3746
      %v3779 = vpack.c.b16 %v3747, %v3747
      %v3780 = vpack.c.b16 %v3748, %v3748
      %v3781 = vpack.c.b16 %v3749, %v3749
      %v3782 = vpack.c.b16 %v3750, %v3750
      %v3784 = vshrl.u32 %v3751, 16
      %v3786 = vrot.slane %v3784, 7
      %v3787 = vshll.u32 %v3751, 16
      %v3789 = vor.u32 %v3786, %v3787
      %v3790 = vrot.slane %v3786, 4
      %v3792 = vshrl.u32 %v3752, 16
      %v3794 = vrot.slane %v3792, 7
      %v3795 = vshll.u32 %v3752, 16
      %v3797 = vor.u32 %v3794, %v3795
      %v3798 = vsel %vm316, %v3790, %v3797
      %v3799 = vrot.slane %v3794, 4
      %v3801 = vshrl.u32 %v3753, 16
      %v3803 = vrot.slane %v3801, 7
      %v3804 = vshll.u32 %v3753, 16
      %v3806 = vor.u32 %v3803, %v3804
      %v3807 = vrot.slane %v3803, 4
      %v3809 = vshrl.u32 %v3754, 16
      %v3811 = vrot.slane %v3809, 7
      %v3812 = vshll.u32 %v3754, 16
      %v3814 = vor.u32 %v3811, %v3812
      %v3815 = vsel %vm316, %v3807, %v3814
      %v3816 = vrot.slane %v3811, 4
      %v3818 = vshrl.u32 %v3755, 16
      %v3820 = vrot.slane %v3818, 7
      %v3821 = vshll.u32 %v3755, 16
      %v3823 = vor.u32 %v3820, %v3821
      %v3824 = vrot.slane %v3820, 4
      %v3826 = vshrl.u32 %v3756, 16
      %v3828 = vrot.slane %v3826, 7
      %v3829 = vshll.u32 %v3756, 16
      %v3831 = vor.u32 %v3828, %v3829
      %v3832 = vsel %vm316, %v3824, %v3831
      %v3833 = vrot.slane %v3828, 4
      %v3835 = vshrl.u32 %v3757, 16
      %v3837 = vrot.slane %v3835, 7
      %v3838 = vshll.u32 %v3757, 16
      %v3840 = vor.u32 %v3837, %v3838
      %v3841 = vrot.slane %v3837, 4
      %v3843 = vshrl.u32 %v3758, 16
      %v3845 = vrot.slane %v3843, 7
      %v3846 = vshll.u32 %v3758, 16
      %v3848 = vor.u32 %v3845, %v3846
      %v3849 = vsel %vm316, %v3841, %v3848
      %v3850 = vrot.slane %v3845, 4
      %v3852 = vshrl.u32 %v3759, 16
      %v3854 = vrot.slane %v3852, 7
      %v3855 = vshll.u32 %v3759, 16
      %v3857 = vor.u32 %v3854, %v3855
      %v3858 = vrot.slane %v3854, 4
      %v3860 = vshrl.u32 %v3760, 16
      %v3862 = vrot.slane %v3860, 7
      %v3863 = vshll.u32 %v3760, 16
      %v3865 = vor.u32 %v3862, %v3863
      %v3866 = vsel %vm316, %v3858, %v3865
      %v3867 = vrot.slane %v3862, 4
      %v3869 = vshrl.u32 %v3761, 16
      %v3871 = vrot.slane %v3869, 7
      %v3872 = vshll.u32 %v3761, 16
      %v3874 = vor.u32 %v3871, %v3872
      %v3875 = vrot.slane %v3871, 4
      %v3877 = vshrl.u32 %v3762, 16
      %v3879 = vrot.slane %v3877, 7
      %v3880 = vshll.u32 %v3762, 16
      %v3882 = vor.u32 %v3879, %v3880
      %v3883 = vsel %vm316, %v3875, %v3882
      %v3884 = vrot.slane %v3879, 4
      %v3886 = vshrl.u32 %v3763, 16
      %v3888 = vrot.slane %v3886, 7
      %v3889 = vshll.u32 %v3763, 16
      %v3891 = vor.u32 %v3888, %v3889
      %v3892 = vrot.slane %v3888, 4
      %v3894 = vshrl.u32 %v3764, 16
      %v3896 = vrot.slane %v3894, 7
      %v3897 = vshll.u32 %v3764, 16
      %v3899 = vor.u32 %v3896, %v3897
      %v3900 = vsel %vm316, %v3892, %v3899
      %v3901 = vrot.slane %v3896, 4
      %v3903 = vshrl.u32 %v3765, 16
      %v3905 = vrot.slane %v3903, 7
      %v3906 = vshll.u32 %v3765, 16
      %v3908 = vor.u32 %v3905, %v3906
      %v3909 = vrot.slane %v3905, 4
      %v3911 = vshrl.u32 %v3766, 16
      %v3913 = vrot.slane %v3911, 7
      %v3914 = vshll.u32 %v3766, 16
      %v3916 = vor.u32 %v3913, %v3914
      %v3917 = vsel %vm316, %v3909, %v3916
      %v3918 = vrot.slane %v3913, 4
      %v3920 = vshrl.u32 %v3767, 16
      %v3922 = vrot.slane %v3920, 7
      %v3923 = vshll.u32 %v3767, 16
      %v3925 = vor.u32 %v3922, %v3923
      %v3926 = vrot.slane %v3922, 4
      %v3928 = vshrl.u32 %v3768, 16
      %v3930 = vrot.slane %v3928, 7
      %v3931 = vshll.u32 %v3768, 16
      %v3933 = vor.u32 %v3930, %v3931
      %v3934 = vsel %vm316, %v3926, %v3933
      %v3935 = vrot.slane %v3930, 4
      %v3937 = vshrl.u32 %v3769, 16
      %v3939 = vrot.slane %v3937, 7
      %v3940 = vshll.u32 %v3769, 16
      %v3942 = vor.u32 %v3939, %v3940
      %v3943 = vrot.slane %v3939, 4
      %v3945 = vshrl.u32 %v3770, 16
      %v3947 = vrot.slane %v3945, 7
      %v3948 = vshll.u32 %v3770, 16
      %v3950 = vor.u32 %v3947, %v3948
      %v3951 = vsel %vm316, %v3943, %v3950
      %v3952 = vrot.slane %v3947, 4
      %v3954 = vshrl.u32 %v3771, 16
      %v3956 = vrot.slane %v3954, 7
      %v3957 = vshll.u32 %v3771, 16
      %v3959 = vor.u32 %v3956, %v3957
      %v3960 = vrot.slane %v3956, 4
      %v3962 = vshrl.u32 %v3772, 16
      %v3964 = vrot.slane %v3962, 7
      %v3965 = vshll.u32 %v3772, 16
      %v3967 = vor.u32 %v3964, %v3965
      %v3968 = vsel %vm316, %v3960, %v3967
      %v3969 = vrot.slane %v3964, 4
      %v3971 = vshrl.u32 %v3773, 16
      %v3973 = vrot.slane %v3971, 7
      %v3974 = vshll.u32 %v3773, 16
      %v3976 = vor.u32 %v3973, %v3974
      %v3977 = vrot.slane %v3973, 4
      %v3979 = vshrl.u32 %v3774, 16
      %v3981 = vrot.slane %v3979, 7
      %v3982 = vshll.u32 %v3774, 16
      %v3984 = vor.u32 %v3981, %v3982
      %v3985 = vsel %vm316, %v3977, %v3984
      %v3986 = vrot.slane %v3981, 4
      %v3988 = vshrl.u32 %v3775, 16
      %v3990 = vrot.slane %v3988, 7
      %v3991 = vshll.u32 %v3775, 16
      %v3993 = vor.u32 %v3990, %v3991
      %v3994 = vrot.slane %v3990, 4
      %v3996 = vshrl.u32 %v3776, 16
      %v3998 = vrot.slane %v3996, 7
      %v3999 = vshll.u32 %v3776, 16
      %v4001 = vor.u32 %v3998, %v3999
      %v4002 = vsel %vm316, %v3994, %v4001
      %v4003 = vrot.slane %v3998, 4
      %v4005 = vshrl.u32 %v3777, 16
      %v4007 = vrot.slane %v4005, 7
      %v4008 = vshll.u32 %v3777, 16
      %v4010 = vor.u32 %v4007, %v4008
      %v4011 = vrot.slane %v4007, 4
      %v4013 = vshrl.u32 %v3778, 16
      %v4015 = vrot.slane %v4013, 7
      %v4016 = vshll.u32 %v3778, 16
      %v4018 = vor.u32 %v4015, %v4016
      %v4019 = vsel %vm316, %v4011, %v4018
      %v4020 = vrot.slane %v4015, 4
      %v4022 = vshrl.u32 %v3779, 16
      %v4024 = vrot.slane %v4022, 7
      %v4025 = vshll.u32 %v3779, 16
      %v4027 = vor.u32 %v4024, %v4025
      %v4028 = vrot.slane %v4024, 4
      %v4030 = vshrl.u32 %v3780, 16
      %v4032 = vrot.slane %v4030, 7
      %v4033 = vshll.u32 %v3780, 16
      %v4035 = vor.u32 %v4032, %v4033
      %v4036 = vsel %vm316, %v4028, %v4035
      %v4037 = vrot.slane %v4032, 4
      %v4039 = vshrl.u32 %v3781, 16
      %v4041 = vrot.slane %v4039, 7
      %v4042 = vshll.u32 %v3781, 16
      %v4044 = vor.u32 %v4041, %v4042
      %v4045 = vrot.slane %v4041, 4
      %v4047 = vshrl.u32 %v3782, 16
      %v4049 = vrot.slane %v4047, 7
      %v4050 = vshll.u32 %v3782, 16
      %v4052 = vor.u32 %v4049, %v4050
      %v4053 = vsel %vm316, %v4045, %v4052
      %v4054 = vrot.slane %v4049, 4
      %s4103 = scalar_lea.vmem [#allocation3], 12
      %vm4104 = vcmask 60416
      %vm4105 = vmand %vm4104, %vm639
      %v4106 = vld [vmem:[%s4103] sm:$0xf]
      %v4107 = vsel %vm4105, %v3789, %v4106
      %4108 = vst [vmem:[%s4103] sm:$0xf] %v4107
      %4109 = vst.msk [vmem:[%s4103 + $0x4] sm:$0xf] %vm755, %v3798
      %vm4110 = vcmask 57344
      %vm4111 = vmand %vm4110, %vm314
      %v4112 = vld [vmem:[%s4103 + $0x8] sm:$0x1]
      %v4113 = vsel %vm4111, %v3799, %v4112
      %4114 = vst [vmem:[%s4103 + $0x8] sm:$0x1] %v4113
      %v4115 = vld [vmem:[%s4103 + $0xc] sm:$0xf]
      %v4116 = vsel %vm4105, %v3806, %v4115
      %4117 = vst [vmem:[%s4103 + $0xc] sm:$0xf] %v4116
      %4118 = vst.msk [vmem:[%s4103 + $0x10] sm:$0xf] %vm755, %v3815
      %v4119 = vld [vmem:[%s4103 + $0x14] sm:$0x1]
      %v4120 = vsel %vm4111, %v3816, %v4119
      %4121 = vst [vmem:[%s4103 + $0x14] sm:$0x1] %v4120
      %v4122 = vld [vmem:[%s4103 + $0x18] sm:$0xf]
      %v4123 = vsel %vm4105, %v3823, %v4122
      %4124 = vst [vmem:[%s4103 + $0x18] sm:$0xf] %v4123
      %4125 = vst.msk [vmem:[%s4103 + $0x1c] sm:$0xf] %vm755, %v3832
      %v4126 = vld [vmem:[%s4103 + $0x20] sm:$0x1]
      %v4127 = vsel %vm4111, %v3833, %v4126
      %4128 = vst [vmem:[%s4103 + $0x20] sm:$0x1] %v4127
      %v4129 = vld [vmem:[%s4103 + $0x24] sm:$0xf]
      %v4130 = vsel %vm4105, %v3840, %v4129
      %4131 = vst [vmem:[%s4103 + $0x24] sm:$0xf] %v4130
      %4132 = vst.msk [vmem:[%s4103 + $0x28] sm:$0xf] %vm755, %v3849
      %v4133 = vld [vmem:[%s4103 + $0x2c] sm:$0x1]
      %v4134 = vsel %vm4111, %v3850, %v4133
      %4135 = vst [vmem:[%s4103 + $0x2c] sm:$0x1] %v4134
      %v4136 = vld [vmem:[%s4103 + $0x30] sm:$0xf]
      %v4137 = vsel %vm4105, %v3857, %v4136
      %4138 = vst [vmem:[%s4103 + $0x30] sm:$0xf] %v4137
      %4139 = vst.msk [vmem:[%s4103 + $0x34] sm:$0xf] %vm755, %v3866
      %v4140 = vld [vmem:[%s4103 + $0x38] sm:$0x1]
      %v4141 = vsel %vm4111, %v3867, %v4140
      %4142 = vst [vmem:[%s4103 + $0x38] sm:$0x1] %v4141
      %v4143 = vld [vmem:[%s4103 + $0x3c] sm:$0xf]
      %v4144 = vsel %vm4105, %v3874, %v4143
      %4145 = vst [vmem:[%s4103 + $0x3c] sm:$0xf] %v4144
      %4146 = vst.msk [vmem:[%s4103 + $0x40] sm:$0xf] %vm755, %v3883
      %v4147 = vld [vmem:[%s4103 + $0x44] sm:$0x1]
      %v4148 = vsel %vm4111, %v3884, %v4147
      %4149 = vst [vmem:[%s4103 + $0x44] sm:$0x1] %v4148
      %v4150 = vld [vmem:[%s4103 + $0x48] sm:$0xf]
      %v4151 = vsel %vm4105, %v3891, %v4150
      %4152 = vst [vmem:[%s4103 + $0x48] sm:$0xf] %v4151
      %4153 = vst.msk [vmem:[%s4103 + $0x4c] sm:$0xf] %vm755, %v3900
      %v4154 = vld [vmem:[%s4103 + $0x50] sm:$0x1]
      %v4155 = vsel %vm4111, %v3901, %v4154
      %4156 = vst [vmem:[%s4103 + $0x50] sm:$0x1] %v4155
      %v4157 = vld [vmem:[%s4103 + $0x54] sm:$0xf]
      %v4158 = vsel %vm4105, %v3908, %v4157
      %4159 = vst [vmem:[%s4103 + $0x54] sm:$0xf] %v4158
      %4160 = vst.msk [vmem:[%s4103 + $0x58] sm:$0xf] %vm755, %v3917
      %v4161 = vld [vmem:[%s4103 + $0x5c] sm:$0x1]
      %v4162 = vsel %vm4111, %v3918, %v4161
      %4163 = vst [vmem:[%s4103 + $0x5c] sm:$0x1] %v4162
      %v4164 = vld [vmem:[%s4103 + $0x60] sm:$0xf]
      %v4165 = vsel %vm4105, %v3925, %v4164
      %4166 = vst [vmem:[%s4103 + $0x60] sm:$0xf] %v4165
      %4167 = vst.msk [vmem:[%s4103 + $0x64] sm:$0xf] %vm755, %v3934
      %v4168 = vld [vmem:[%s4103 + $0x68] sm:$0x1]
      %v4169 = vsel %vm4111, %v3935, %v4168
      %4170 = vst [vmem:[%s4103 + $0x68] sm:$0x1] %v4169
      %v4171 = vld [vmem:[%s4103 + $0x6c] sm:$0xf]
      %v4172 = vsel %vm4105, %v3942, %v4171
      %4173 = vst [vmem:[%s4103 + $0x6c] sm:$0xf] %v4172
      %4174 = vst.msk [vmem:[%s4103 + $0x70] sm:$0xf] %vm755, %v3951
      %v4175 = vld [vmem:[%s4103 + $0x74] sm:$0x1]
      %v4176 = vsel %vm4111, %v3952, %v4175
      %4177 = vst [vmem:[%s4103 + $0x74] sm:$0x1] %v4176
      %v4178 = vld [vmem:[%s4103 + $0x78] sm:$0xf]
      %v4179 = vsel %vm4105, %v3959, %v4178
      %4180 = vst [vmem:[%s4103 + $0x78] sm:$0xf] %v4179
      %4181 = vst.msk [vmem:[%s4103 + $0x7c] sm:$0xf] %vm755, %v3968
      %v4182 = vld [vmem:[%s4103 + $0x80] sm:$0x1]
      %v4183 = vsel %vm4111, %v3969, %v4182
      %4184 = vst [vmem:[%s4103 + $0x80] sm:$0x1] %v4183
      %v4185 = vld [vmem:[%s4103 + $0x84] sm:$0xf]
      %v4186 = vsel %vm4105, %v3976, %v4185
      %4187 = vst [vmem:[%s4103 + $0x84] sm:$0xf] %v4186
      %4188 = vst.msk [vmem:[%s4103 + $0x88] sm:$0xf] %vm755, %v3985
      %v4189 = vld [vmem:[%s4103 + $0x8c] sm:$0x1]
      %v4190 = vsel %vm4111, %v3986, %v4189
      %4191 = vst [vmem:[%s4103 + $0x8c] sm:$0x1] %v4190
      %v4192 = vld [vmem:[%s4103 + $0x90] sm:$0xf]
      %v4193 = vsel %vm4105, %v3993, %v4192
      %4194 = vst [vmem:[%s4103 + $0x90] sm:$0xf] %v4193
      %4195 = vst.msk [vmem:[%s4103 + $0x94] sm:$0xf] %vm755, %v4002
      %v4196 = vld [vmem:[%s4103 + $0x98] sm:$0x1]
      %v4197 = vsel %vm4111, %v4003, %v4196
      %4198 = vst [vmem:[%s4103 + $0x98] sm:$0x1] %v4197
      %v4199 = vld [vmem:[%s4103 + $0x9c] sm:$0xf]
      %v4200 = vsel %vm4105, %v4010, %v4199
      %4201 = vst [vmem:[%s4103 + $0x9c] sm:$0xf] %v4200
      %4202 = vst.msk [vmem:[%s4103 + $0xa0] sm:$0xf] %vm755, %v4019
      %v4203 = vld [vmem:[%s4103 + $0xa4] sm:$0x1]
      %v4204 = vsel %vm4111, %v4020, %v4203
      %4205 = vst [vmem:[%s4103 + $0xa4] sm:$0x1] %v4204
      %v4206 = vld [vmem:[%s4103 + $0xa8] sm:$0xf]
      %v4207 = vsel %vm4105, %v4027, %v4206
      %4208 = vst [vmem:[%s4103 + $0xa8] sm:$0xf] %v4207
      %4209 = vst.msk [vmem:[%s4103 + $0xac] sm:$0xf] %vm755, %v4036
      %v4210 = vld [vmem:[%s4103 + $0xb0] sm:$0x1]
      %v4211 = vsel %vm4111, %v4037, %v4210
      %4212 = vst [vmem:[%s4103 + $0xb0] sm:$0x1] %v4211
      %v4213 = vld [vmem:[%s4103 + $0xb4] sm:$0xf]
      %v4214 = vsel %vm4105, %v4044, %v4213
      %4215 = vst [vmem:[%s4103 + $0xb4] sm:$0xf] %v4214
      %4216 = vst.msk [vmem:[%s4103 + $0xb8] sm:$0xf] %vm755, %v4053
      %v4217 = vld [vmem:[%s4103 + $0xbc] sm:$0x1]
      %v4218 = vsel %vm4111, %v4054, %v4217
      %4219 = vst [vmem:[%s4103 + $0xbc] sm:$0x1] %v4218
      %v4220 = vld [vmem:[#allocation3] sm:$0xf]
      %v4221 = vld [vmem:[#allocation3 + $0x4] sm:$0xf]
      %v4222 = vld [vmem:[#allocation3 + $0xc] sm:$0xf]
      %v4223 = vld [vmem:[#allocation3 + $0x10] sm:$0xf]
      %v4224 = vld [vmem:[#allocation3 + $0x18] sm:$0xf]
      %v4225 = vld [vmem:[#allocation3 + $0x1c] sm:$0xf]
      %v4226 = vld [vmem:[#allocation3 + $0x24] sm:$0xf]
      %v4227 = vld [vmem:[#allocation3 + $0x28] sm:$0xf]
      %v4228 = vld [vmem:[#allocation3 + $0x30] sm:$0xf]
      %v4229 = vld [vmem:[#allocation3 + $0x34] sm:$0xf]
      %v4230 = vld [vmem:[#allocation3 + $0x3c] sm:$0xf]
      %v4231 = vld [vmem:[#allocation3 + $0x40] sm:$0xf]
      %v4232 = vld [vmem:[#allocation3 + $0x48] sm:$0xf]
      %v4233 = vld [vmem:[#allocation3 + $0x4c] sm:$0xf]
      %v4234 = vld [vmem:[#allocation3 + $0x54] sm:$0xf]
      %v4235 = vld [vmem:[#allocation3 + $0x58] sm:$0xf]
      %v4236 = vld [vmem:[#allocation3 + $0x60] sm:$0xf]
      %v4237 = vld [vmem:[#allocation3 + $0x64] sm:$0xf]
      %v4238 = vld [vmem:[#allocation3 + $0x6c] sm:$0xf]
      %v4239 = vld [vmem:[#allocation3 + $0x70] sm:$0xf]
      %v4240 = vld [vmem:[#allocation3 + $0x78] sm:$0xf]
      %v4241 = vld [vmem:[#allocation3 + $0x7c] sm:$0xf]
      %v4242 = vld [vmem:[#allocation3 + $0x84] sm:$0xf]
      %v4243 = vld [vmem:[#allocation3 + $0x88] sm:$0xf]
      %v4244 = vld [vmem:[#allocation3 + $0x90] sm:$0xf]
      %v4245 = vld [vmem:[#allocation3 + $0x94] sm:$0xf]
      %v4246 = vld [vmem:[#allocation3 + $0x9c] sm:$0xf]
      %v4247 = vld [vmem:[#allocation3 + $0xa0] sm:$0xf]
      %v4248 = vld [vmem:[#allocation3 + $0xa8] sm:$0xf]
      %v4249 = vld [vmem:[#allocation3 + $0xac] sm:$0xf]
      %v4250 = vld [vmem:[#allocation3 + $0xb4] sm:$0xf]
      %v4251 = vld [vmem:[#allocation3 + $0xb8] sm:$0xf]
      %v4252 = vld [vmem:[#allocation3 + $0xc0] sm:$0xf]
      %v4253 = vld [vmem:[#allocation3 + $0xc4] sm:$0xf]
      %v4254 = vld [vmem:[#allocation3 + $0xcc] sm:$0xf]
      %v4255 = vld [vmem:[#allocation3 + $0xd0] sm:$0xf]
      %v4256 = vld [vmem:[%s3] sm:$0xf]
      %s4257 = scalar_lea.vmem %s3, 12
      %v4258 = vld [vmem:[%s4257] sm:$0xf]
      %v4291 = vunpack.c.l.b16 %v4222
      %v4292 = vunpack.c.l.b16 %v4223
      %v4293 = vunpack.c.l.b16 %v4224
      %v4294 = vunpack.c.l.b16 %v4225
      %v4295 = vunpack.c.l.b16 %v4226
      %v4296 = vunpack.c.l.b16 %v4227
      %v4297 = vunpack.c.l.b16 %v4228
      %v4298 = vunpack.c.l.b16 %v4229
      %v4299 = vunpack.c.l.b16 %v4230
      %v4300 = vunpack.c.l.b16 %v4231
      %v4301 = vunpack.c.l.b16 %v4232
      %v4302 = vunpack.c.l.b16 %v4233
      %v4303 = vunpack.c.l.b16 %v4234
      %v4304 = vunpack.c.l.b16 %v4235
      %v4305 = vunpack.c.l.b16 %v4236
      %v4306 = vunpack.c.l.b16 %v4237
      %v4307 = vunpack.c.l.b16 %v4238
      %v4308 = vunpack.c.l.b16 %v4239
      %v4309 = vunpack.c.l.b16 %v4240
      %v4310 = vunpack.c.l.b16 %v4241
      %v4311 = vunpack.c.l.b16 %v4242
      %v4312 = vunpack.c.l.b16 %v4243
      %v4313 = vunpack.c.l.b16 %v4244
      %v4314 = vunpack.c.l.b16 %v4245
      %v4315 = vunpack.c.l.b16 %v4246
      %v4316 = vunpack.c.l.b16 %v4247
      %v4317 = vunpack.c.l.b16 %v4248
      %v4318 = vunpack.c.l.b16 %v4249
      %v4319 = vunpack.c.l.b16 %v4250
      %v4320 = vunpack.c.l.b16 %v4251
      %v4321 = vunpack.c.l.b16 %v4252
      %v4322 = vunpack.c.l.b16 %v4253
      %v4323 = vpack.c.b16 %v4292, %v4291
      %v4324 = vpack.c.b16 %v4294, %v4293
      %v4325 = vpack.c.b16 %v4296, %v4295
      %v4326 = vpack.c.b16 %v4298, %v4297
      %v4327 = vpack.c.b16 %v4300, %v4299
      %v4328 = vpack.c.b16 %v4302, %v4301
      %v4329 = vpack.c.b16 %v4304, %v4303
      %v4330 = vpack.c.b16 %v4306, %v4305
      %v4331 = vpack.c.b16 %v4308, %v4307
      %v4332 = vpack.c.b16 %v4310, %v4309
      %v4333 = vpack.c.b16 %v4312, %v4311
      %v4334 = vpack.c.b16 %v4314, %v4313
      %v4335 = vpack.c.b16 %v4316, %v4315
      %v4336 = vpack.c.b16 %v4318, %v4317
      %v4337 = vpack.c.b16 %v4320, %v4319
      %v4338 = vpack.c.b16 %v4322, %v4321
      %vm4339 = vcmask 64512
      %v4341 = vsel %vm4339, %v4323, 0
      %v4344 = vsel %vm4339, %v4324, 0
      %v4347 = vsel %vm4339, %v4325, 0
      %v4350 = vsel %vm4339, %v4326, 0
      %v4353 = vsel %vm4339, %v4327, 0
      %v4356 = vsel %vm4339, %v4328, 0
      %v4359 = vsel %vm4339, %v4329, 0
      %v4362 = vsel %vm4339, %v4330, 0
      %v4365 = vsel %vm4339, %v4331, 0
      %v4368 = vsel %vm4339, %v4332, 0
      %v4371 = vsel %vm4339, %v4333, 0
      %v4374 = vsel %vm4339, %v4334, 0
      %v4377 = vsel %vm4339, %v4335, 0
      %v4380 = vsel %vm4339, %v4336, 0
      %v4383 = vsel %vm4339, %v4337, 0
      %v4386 = vsel %vm4339, %v4338, 0
      %vm4388 = vcmask 1043456
      %v4390 = vsel %vm4388, %v4258, 0
      %4392 = vmatprep.subr.bf16.mxu0 0
      %4393 = vmatpush1.bf16.msra.mxu0 %v4390
      %4394 = vmatprep.subr.bf16.mxu0 0
      %4395 = vmatpush1.bf16.msra.mxu0 0
      %4396 = vmatprep.subr.bf16.mxu0 0
      %4397 = vmatpush1.bf16.msra.mxu0 0
      %4398 = vmatprep.subr.bf16.mxu0 0
      %4399 = vmatpush1.bf16.msra.mxu0 0
      %4400 = vmatprep.subr.bf16.mxu0 0
      %4401 = vmatpush1.bf16.msra.mxu0 0
      %4402 = vmatprep.subr.bf16.mxu0 0
      %4403 = vmatpush1.bf16.msra.mxu0 0
      %4404 = vmatprep.subr.bf16.mxu0 0
      %4405 = vmatpush1.bf16.msra.mxu0 0
      %4406 = vmatprep.subr.bf16.mxu0 0
      %4407 = vmatpush1.bf16.msra.mxu0 0
      %4408 = vmatprep.subr.bf16.mxu0 0
      %4409 = vmatpush1.bf16.msra.mxu0 0
      %4410 = vmatprep.subr.bf16.mxu0 0
      %4411 = vmatpush1.bf16.msra.mxu0 0
      %4412 = vmatprep.subr.bf16.mxu0 0
      %4413 = vmatpush1.bf16.msra.mxu0 0
      %4414 = vmatprep.subr.bf16.mxu0 0
      %4415 = vmatpush1.bf16.msra.mxu0 0
      %4416 = vmatprep.subr.bf16.mxu0 0
      %4417 = vmatpush1.bf16.msra.mxu0 0
      %4418 = vmatprep.subr.bf16.mxu0 0
      %4419 = vmatpush1.bf16.msra.mxu0 0
      %4420 = vmatprep.subr.bf16.mxu0 0
      %4421 = vmatpush1.bf16.msra.mxu0 0
      %4422 = vmatprep.subr.bf16.mxu0 0
      %4423 = vmatpush1.bf16.msra.mxu0 0
      %4424 = vmatprep.mubr.bf16.mxu0 0
      %4425 = vmatmul.mubr.bf16.gmra.mrb[0].mxu0 %v4341
      %v4426 = vpop.f32.mrb[0].mxu0
      %v4427 = vadd.f32 0.0, %v4426
      %v4428 = vpop.f32.mrb[0].mxu0
      %v4429 = vpop.f32.mrb[0].mxu0
      %v4430 = vadd.f32 0.0, %v4429
      %v4431 = vpop.f32.mrb[0].mxu0
      %4432 = vmatprep.mubr.bf16.mxu0 0
      %4433 = vmatmul.mubr.bf16.gmra.mrb[0].mxu0 %v4344
      %v4434 = vpop.f32.mrb[0].mxu0
      %v4435 = vadd.f32 0.0, %v4434
      %v4436 = vpop.f32.mrb[0].mxu0
      %v4437 = vpop.f32.mrb[0].mxu0
      %v4438 = vadd.f32 0.0, %v4437
      %v4439 = vpop.f32.mrb[0].mxu0
      %4440 = vmatprep.mubr.bf16.mxu0 0
      %4441 = vmatmul.mubr.bf16.gmra.mrb[0].mxu0 %v4347
      %v4442 = vpop.f32.mrb[0].mxu0
      %v4443 = vadd.f32 0.0, %v4442
      %v4444 = vpop.f32.mrb[0].mxu0
      %v4445 = vpop.f32.mrb[0].mxu0
      %v4446 = vadd.f32 0.0, %v4445
      %v4447 = vpop.f32.mrb[0].mxu0
      %4448 = vmatprep.mubr.bf16.mxu0 0
      %4449 = vmatmul.mubr.bf16.gmra.mrb[0].mxu0 %v4350
      %v4450 = vpop.f32.mrb[0].mxu0
      %v4451 = vadd.f32 0.0, %v4450
      %v4452 = vpop.f32.mrb[0].mxu0
      %v4453 = vpop.f32.mrb[0].mxu0
      %v4454 = vadd.f32 0.0, %v4453
      %v4455 = vpop.f32.mrb[0].mxu0
      %4456 = vmatprep.mubr.bf16.mxu0 0
      %4457 = vmatmul.mubr.bf16.gmra.mrb[0].mxu0 %v4353
      %v4458 = vpop.f32.mrb[0].mxu0
      %v4459 = vadd.f32 0.0, %v4458
      %v4460 = vpop.f32.mrb[0].mxu0
      %v4461 = vpop.f32.mrb[0].mxu0
      %v4462 = vadd.f32 0.0, %v4461
      %v4463 = vpop.f32.mrb[0].mxu0
      %4464 = vmatprep.mubr.bf16.mxu0 0
      %4465 = vmatmul.mubr.bf16.gmra.mrb[0].mxu0 %v4356
      %v4466 = vpop.f32.mrb[0].mxu0
      %v4467 = vadd.f32 0.0, %v4466
      %v4468 = vpop.f32.mrb[0].mxu0
      %v4469 = vpop.f32.mrb[0].mxu0
      %v4470 = vadd.f32 0.0, %v4469
      %v4471 = vpop.f32.mrb[0].mxu0
      %4472 = vmatprep.mubr.bf16.mxu0 0
      %4473 = vmatmul.mubr.bf16.gmra.mrb[0].mxu0 %v4359
      %v4474 = vpop.f32.mrb[0].mxu0
      %v4475 = vadd.f32 0.0, %v4474
      %v4476 = vpop.f32.mrb[0].mxu0
      %v4477 = vpop.f32.mrb[0].mxu0
      %v4478 = vadd.f32 0.0, %v4477
      %v4479 = vpop.f32.mrb[0].mxu0
      %4480 = vmatprep.mubr.bf16.mxu0 0
      %4481 = vmatmul.mubr.bf16.gmra.mrb[0].mxu0 %v4362
      %v4482 = vpop.f32.mrb[0].mxu0
      %v4483 = vadd.f32 0.0, %v4482
      %v4484 = vpop.f32.mrb[0].mxu0
      %v4485 = vpop.f32.mrb[0].mxu0
      %v4486 = vadd.f32 0.0, %v4485
      %v4487 = vpop.f32.mrb[0].mxu0
      %4488 = vmatprep.mubr.bf16.mxu0 0
      %4489 = vmatmul.mubr.bf16.gmra.mrb[0].mxu0 %v4365
      %v4490 = vpop.f32.mrb[0].mxu0
      %v4491 = vadd.f32 0.0, %v4490
      %v4492 = vpop.f32.mrb[0].mxu0
      %v4493 = vpop.f32.mrb[0].mxu0
      %v4494 = vadd.f32 0.0, %v4493
      %v4495 = vpop.f32.mrb[0].mxu0
      %4496 = vmatprep.mubr.bf16.mxu0 0
      %4497 = vmatmul.mubr.bf16.gmra.mrb[0].mxu0 %v4368
      %v4498 = vpop.f32.mrb[0].mxu0
      %v4499 = vadd.f32 0.0, %v4498
      %v4500 = vpop.f32.mrb[0].mxu0
      %v4501 = vpop.f32.mrb[0].mxu0
      %v4502 = vadd.f32 0.0, %v4501
      %v4503 = vpop.f32.mrb[0].mxu0
      %4504 = vmatprep.mubr.bf16.mxu0 0
      %4505 = vmatmul.mubr.bf16.gmra.mrb[0].mxu0 %v4371
      %v4506 = vpop.f32.mrb[0].mxu0
      %v4507 = vadd.f32 0.0, %v4506
      %v4508 = vpop.f32.mrb[0].mxu0
      %v4509 = vpop.f32.mrb[0].mxu0
      %v4510 = vadd.f32 0.0, %v4509
      %v4511 = vpop.f32.mrb[0].mxu0
      %4512 = vmatprep.mubr.bf16.mxu0 0
      %4513 = vmatmul.mubr.bf16.gmra.mrb[0].mxu0 %v4374
      %v4514 = vpop.f32.mrb[0].mxu0
      %v4515 = vadd.f32 0.0, %v4514
      %v4516 = vpop.f32.mrb[0].mxu0
      %v4517 = vpop.f32.mrb[0].mxu0
      %v4518 = vadd.f32 0.0, %v4517
      %v4519 = vpop.f32.mrb[0].mxu0
      %4520 = vmatprep.mubr.bf16.mxu0 0
      %4521 = vmatmul.mubr.bf16.gmra.mrb[0].mxu0 %v4377
      %v4522 = vpop.f32.mrb[0].mxu0
      %v4523 = vadd.f32 0.0, %v4522
      %v4524 = vpop.f32.mrb[0].mxu0
      %v4525 = vpop.f32.mrb[0].mxu0
      %v4526 = vadd.f32 0.0, %v4525
      %v4527 = vpop.f32.mrb[0].mxu0
      %4528 = vmatprep.mubr.bf16.mxu0 0
      %4529 = vmatmul.mubr.bf16.gmra.mrb[0].mxu0 %v4380
      %v4530 = vpop.f32.mrb[0].mxu0
      %v4531 = vadd.f32 0.0, %v4530
      %v4532 = vpop.f32.mrb[0].mxu0
      %v4533 = vpop.f32.mrb[0].mxu0
      %v4534 = vadd.f32 0.0, %v4533
      %v4535 = vpop.f32.mrb[0].mxu0
      %4536 = vmatprep.mubr.bf16.mxu0 0
      %4537 = vmatmul.mubr.bf16.gmra.mrb[0].mxu0 %v4383
      %v4538 = vpop.f32.mrb[0].mxu0
      %v4539 = vadd.f32 0.0, %v4538
      %v4540 = vpop.f32.mrb[0].mxu0
      %v4541 = vpop.f32.mrb[0].mxu0
      %v4542 = vadd.f32 0.0, %v4541
      %v4543 = vpop.f32.mrb[0].mxu0
      %4544 = vmatprep.mubr.bf16.mxu0 0
      %4545 = vmatmul.mubr.bf16.gmra.mrb[0].mxu0 %v4386
      %v4546 = vpop.f32.mrb[0].mxu0
      %v4547 = vadd.f32 0.0, %v4546
      %v4548 = vpop.f32.mrb[0].mxu0
      %v4549 = vpop.f32.mrb[0].mxu0
      %v4550 = vadd.f32 0.0, %v4549
      %v4551 = vpop.f32.mrb[0].mxu0
      %4552 = vdwg.mxu0
      %v4555 = vunpack.c.l.b16 %v4220
      %v4556 = vunpack.c.l.b16 %v4221
      %v4557 = vpack.c.b16 %v4556, %v4555
      %v4559 = vsel %vm4339, %v4557, 0
      %v4562 = vsel %vm4388, %v4256, 0
      %4564 = vmatprep.subr.bf16.mxu0 0
      %4565 = vmatpush1.bf16.msra.mxu0 %v4562
      %4566 = vmatprep.subr.bf16.mxu0 0
      %4567 = vmatpush1.bf16.msra.mxu0 0
      %4568 = vmatprep.subr.bf16.mxu0 0
      %4569 = vmatpush1.bf16.msra.mxu0 0
      %4570 = vmatprep.subr.bf16.mxu0 0
      %4571 = vmatpush1.bf16.msra.mxu0 0
      %4572 = vmatprep.subr.bf16.mxu0 0
      %4573 = vmatpush1.bf16.msra.mxu0 0
      %4574 = vmatprep.subr.bf16.mxu0 0
      %4575 = vmatpush1.bf16.msra.mxu0 0
      %4576 = vmatprep.subr.bf16.mxu0 0
      %4577 = vmatpush1.bf16.msra.mxu0 0
      %4578 = vmatprep.subr.bf16.mxu0 0
      %4579 = vmatpush1.bf16.msra.mxu0 0
      %4580 = vmatprep.subr.bf16.mxu0 0
      %4581 = vmatpush1.bf16.msra.mxu0 0
      %4582 = vmatprep.subr.bf16.mxu0 0
      %4583 = vmatpush1.bf16.msra.mxu0 0
      %4584 = vmatprep.subr.bf16.mxu0 0
      %4585 = vmatpush1.bf16.msra.mxu0 0
      %4586 = vmatprep.subr.bf16.mxu0 0
      %4587 = vmatpush1.bf16.msra.mxu0 0
      %4588 = vmatprep.subr.bf16.mxu0 0
      %4589 = vmatpush1.bf16.msra.mxu0 0
      %4590 = vmatprep.subr.bf16.mxu0 0
      %4591 = vmatpush1.bf16.msra.mxu0 0
      %4592 = vmatprep.subr.bf16.mxu0 0
      %4593 = vmatpush1.bf16.msra.mxu0 0
      %4594 = vmatprep.subr.bf16.mxu0 0
      %4595 = vmatpush1.bf16.msra.mxu0 0
      %4596 = vmatprep.mubr.bf16.mxu0 0
      %4597 = vmatmul.mubr.bf16.gmra.mrb[0].mxu0 %v4559
      %v4598 = vpop.f32.mrb[0].mxu0
      %v4599 = vadd.f32 %v4427, %v4598
      %v4600 = vpop.f32.mrb[0].mxu0
      %v4601 = vpop.f32.mrb[0].mxu0
      %v4602 = vadd.f32 %v4430, %v4601
      %v4603 = vpop.f32.mrb[0].mxu0
      %4604 = vmatprep.mubr.bf16.mxu0 0
      %4605 = vmatmul.mubr.bf16.gmra.mrb[0].mxu0 %v4341
      %v4606 = vpop.f32.mrb[0].mxu0
      %v4607 = vadd.f32 %v4435, %v4606
      %v4608 = vpop.f32.mrb[0].mxu0
      %v4609 = vpop.f32.mrb[0].mxu0
      %v4610 = vadd.f32 %v4438, %v4609
      %v4611 = vpop.f32.mrb[0].mxu0
      %4612 = vmatprep.mubr.bf16.mxu0 0
      %4613 = vmatmul.mubr.bf16.gmra.mrb[0].mxu0 %v4344
      %v4614 = vpop.f32.mrb[0].mxu0
      %v4615 = vadd.f32 %v4443, %v4614
      %v4616 = vpop.f32.mrb[0].mxu0
      %v4617 = vpop.f32.mrb[0].mxu0
      %v4618 = vadd.f32 %v4446, %v4617
      %v4619 = vpop.f32.mrb[0].mxu0
      %4620 = vmatprep.mubr.bf16.mxu0 0
      %4621 = vmatmul.mubr.bf16.gmra.mrb[0].mxu0 %v4347
      %v4622 = vpop.f32.mrb[0].mxu0
      %v4623 = vadd.f32 %v4451, %v4622
      %v4624 = vpop.f32.mrb[0].mxu0
      %v4625 = vpop.f32.mrb[0].mxu0
      %v4626 = vadd.f32 %v4454, %v4625
      %v4627 = vpop.f32.mrb[0].mxu0
      %4628 = vmatprep.mubr.bf16.mxu0 0
      %4629 = vmatmul.mubr.bf16.gmra.mrb[0].mxu0 %v4350
      %v4630 = vpop.f32.mrb[0].mxu0
      %v4631 = vadd.f32 %v4459, %v4630
      %v4632 = vpop.f32.mrb[0].mxu0
      %v4633 = vpop.f32.mrb[0].mxu0
      %v4634 = vadd.f32 %v4462, %v4633
      %v4635 = vpop.f32.mrb[0].mxu0
      %4636 = vmatprep.mubr.bf16.mxu0 0
      %4637 = vmatmul.mubr.bf16.gmra.mrb[0].mxu0 %v4353
      %v4638 = vpop.f32.mrb[0].mxu0
      %v4639 = vadd.f32 %v4467, %v4638
      %v4640 = vpop.f32.mrb[0].mxu0
      %v4641 = vpop.f32.mrb[0].mxu0
      %v4642 = vadd.f32 %v4470, %v4641
      %v4643 = vpop.f32.mrb[0].mxu0
      %4644 = vmatprep.mubr.bf16.mxu0 0
      %4645 = vmatmul.mubr.bf16.gmra.mrb[0].mxu0 %v4356
      %v4646 = vpop.f32.mrb[0].mxu0
      %v4647 = vadd.f32 %v4475, %v4646
      %v4648 = vpop.f32.mrb[0].mxu0
      %v4649 = vpop.f32.mrb[0].mxu0
      %v4650 = vadd.f32 %v4478, %v4649
      %v4651 = vpop.f32.mrb[0].mxu0
      %4652 = vmatprep.mubr.bf16.mxu0 0
      %4653 = vmatmul.mubr.bf16.gmra.mrb[0].mxu0 %v4359
      %v4654 = vpop.f32.mrb[0].mxu0
      %v4655 = vadd.f32 %v4483, %v4654
      %v4656 = vpop.f32.mrb[0].mxu0
      %v4657 = vpop.f32.mrb[0].mxu0
      %v4658 = vadd.f32 %v4486, %v4657
      %v4659 = vpop.f32.mrb[0].mxu0
      %4660 = vmatprep.mubr.bf16.mxu0 0
      %4661 = vmatmul.mubr.bf16.gmra.mrb[0].mxu0 %v4362
      %v4662 = vpop.f32.mrb[0].mxu0
      %v4663 = vadd.f32 %v4491, %v4662
      %v4664 = vpop.f32.mrb[0].mxu0
      %v4665 = vpop.f32.mrb[0].mxu0
      %v4666 = vadd.f32 %v4494, %v4665
      %v4667 = vpop.f32.mrb[0].mxu0
      %4668 = vmatprep.mubr.bf16.mxu0 0
      %4669 = vmatmul.mubr.bf16.gmra.mrb[0].mxu0 %v4365
      %v4670 = vpop.f32.mrb[0].mxu0
      %v4671 = vadd.f32 %v4499, %v4670
      %v4672 = vpop.f32.mrb[0].mxu0
      %v4673 = vpop.f32.mrb[0].mxu0
      %v4674 = vadd.f32 %v4502, %v4673
      %v4675 = vpop.f32.mrb[0].mxu0
      %4676 = vmatprep.mubr.bf16.mxu0 0
      %4677 = vmatmul.mubr.bf16.gmra.mrb[0].mxu0 %v4368
      %v4678 = vpop.f32.mrb[0].mxu0
      %v4679 = vadd.f32 %v4507, %v4678
      %v4680 = vpop.f32.mrb[0].mxu0
      %v4681 = vpop.f32.mrb[0].mxu0
      %v4682 = vadd.f32 %v4510, %v4681
      %v4683 = vpop.f32.mrb[0].mxu0
      %4684 = vmatprep.mubr.bf16.mxu0 0
      %4685 = vmatmul.mubr.bf16.gmra.mrb[0].mxu0 %v4371
      %v4686 = vpop.f32.mrb[0].mxu0
      %v4687 = vadd.f32 %v4515, %v4686
      %v4688 = vpop.f32.mrb[0].mxu0
      %v4689 = vpop.f32.mrb[0].mxu0
      %v4690 = vadd.f32 %v4518, %v4689
      %v4691 = vpop.f32.mrb[0].mxu0
      %4692 = vmatprep.mubr.bf16.mxu0 0
      %4693 = vmatmul.mubr.bf16.gmra.mrb[0].mxu0 %v4374
      %v4694 = vpop.f32.mrb[0].mxu0
      %v4695 = vadd.f32 %v4523, %v4694
      %v4696 = vpop.f32.mrb[0].mxu0
      %v4697 = vpop.f32.mrb[0].mxu0
      %v4698 = vadd.f32 %v4526, %v4697
      %v4699 = vpop.f32.mrb[0].mxu0
      %4700 = vmatprep.mubr.bf16.mxu0 0
      %4701 = vmatmul.mubr.bf16.gmra.mrb[0].mxu0 %v4377
      %v4702 = vpop.f32.mrb[0].mxu0
      %v4703 = vadd.f32 %v4531, %v4702
      %v4704 = vpop.f32.mrb[0].mxu0
      %v4705 = vpop.f32.mrb[0].mxu0
      %v4706 = vadd.f32 %v4534, %v4705
      %v4707 = vpop.f32.mrb[0].mxu0
      %4708 = vmatprep.mubr.bf16.mxu0 0
      %4709 = vmatmul.mubr.bf16.gmra.mrb[0].mxu0 %v4380
      %v4710 = vpop.f32.mrb[0].mxu0
      %v4711 = vadd.f32 %v4539, %v4710
      %v4712 = vpop.f32.mrb[0].mxu0
      %v4713 = vpop.f32.mrb[0].mxu0
      %v4714 = vadd.f32 %v4542, %v4713
      %v4715 = vpop.f32.mrb[0].mxu0
      %4716 = vmatprep.mubr.bf16.mxu0 0
      %4717 = vmatmul.mubr.bf16.gmra.mrb[0].mxu0 %v4383
      %v4718 = vpop.f32.mrb[0].mxu0
      %v4719 = vadd.f32 %v4547, %v4718
      %v4720 = vpop.f32.mrb[0].mxu0
      %v4721 = vpop.f32.mrb[0].mxu0
      %v4722 = vadd.f32 %v4550, %v4721
      %v4723 = vpop.f32.mrb[0].mxu0
      %4724 = vdwg.mxu0
      %s4725 = scalar_lea.vmem %s3, 24
      %v4726 = vld [vmem:[%s4725] sm:$0xf]
      %v4729 = vunpack.c.l.b16 %v4254
      %v4730 = vunpack.c.l.b16 %v4255
      %v4731 = vpack.c.b16 %v4730, %v4729
      %v4733 = vsel %vm4339, %v4731, 0
      %v4736 = vsel %vm4388, %v4726, 0
      %4738 = vmatprep.subr.bf16.mxu0 0
      %4739 = vmatpush1.bf16.msra.mxu0 %v4736
      %4740 = vmatprep.subr.bf16.mxu0 0
      %4741 = vmatpush1.bf16.msra.mxu0 0
      %4742 = vmatprep.subr.bf16.mxu0 0
      %4743 = vmatpush1.bf16.msra.mxu0 0
      %4744 = vmatprep.subr.bf16.mxu0 0
      %4745 = vmatpush1.bf16.msra.mxu0 0
      %4746 = vmatprep.subr.bf16.mxu0 0
      %4747 = vmatpush1.bf16.msra.mxu0 0
      %4748 = vmatprep.subr.bf16.mxu0 0
      %4749 = vmatpush1.bf16.msra.mxu0 0
      %4750 = vmatprep.subr.bf16.mxu0 0
      %4751 = vmatpush1.bf16.msra.mxu0 0
      %4752 = vmatprep.subr.bf16.mxu0 0
      %4753 = vmatpush1.bf16.msra.mxu0 0
      %4754 = vmatprep.subr.bf16.mxu0 0
      %4755 = vmatpush1.bf16.msra.mxu0 0
      %4756 = vmatprep.subr.bf16.mxu0 0
      %4757 = vmatpush1.bf16.msra.mxu0 0
      %4758 = vmatprep.subr.bf16.mxu0 0
      %4759 = vmatpush1.bf16.msra.mxu0 0
      %4760 = vmatprep.subr.bf16.mxu0 0
      %4761 = vmatpush1.bf16.msra.mxu0 0
      %4762 = vmatprep.subr.bf16.mxu0 0
      %4763 = vmatpush1.bf16.msra.mxu0 0
      %4764 = vmatprep.subr.bf16.mxu0 0
      %4765 = vmatpush1.bf16.msra.mxu0 0
      %4766 = vmatprep.subr.bf16.mxu0 0
      %4767 = vmatpush1.bf16.msra.mxu0 0
      %4768 = vmatprep.subr.bf16.mxu0 0
      %4769 = vmatpush1.bf16.msra.mxu0 0
      %4770 = vmatprep.mubr.bf16.mxu0 0
      %4771 = vmatmul.mubr.bf16.gmra.mrb[0].mxu0 %v4344
      %v4772 = vpop.f32.mrb[0].mxu0
      %v4773 = vadd.f32 0.0, %v4772
      %v4774 = vpop.f32.mrb[0].mxu0
      %v4775 = vpop.f32.mrb[0].mxu0
      %v4776 = vadd.f32 0.0, %v4775
      %v4777 = vpop.f32.mrb[0].mxu0
      %4778 = vmatprep.mubr.bf16.mxu0 0
      %4779 = vmatmul.mubr.bf16.gmra.mrb[0].mxu0 %v4347
      %v4780 = vpop.f32.mrb[0].mxu0
      %v4781 = vadd.f32 0.0, %v4780
      %v4782 = vpop.f32.mrb[0].mxu0
      %v4783 = vpop.f32.mrb[0].mxu0
      %v4784 = vadd.f32 0.0, %v4783
      %v4785 = vpop.f32.mrb[0].mxu0
      %4786 = vmatprep.mubr.bf16.mxu0 0
      %4787 = vmatmul.mubr.bf16.gmra.mrb[0].mxu0 %v4350
      %v4788 = vpop.f32.mrb[0].mxu0
      %v4789 = vadd.f32 0.0, %v4788
      %v4790 = vpop.f32.mrb[0].mxu0
      %v4791 = vpop.f32.mrb[0].mxu0
      %v4792 = vadd.f32 0.0, %v4791
      %v4793 = vpop.f32.mrb[0].mxu0
      %4794 = vmatprep.mubr.bf16.mxu0 0
      %4795 = vmatmul.mubr.bf16.gmra.mrb[0].mxu0 %v4353
      %v4796 = vpop.f32.mrb[0].mxu0
      %v4797 = vadd.f32 0.0, %v4796
      %v4798 = vpop.f32.mrb[0].mxu0
      %v4799 = vpop.f32.mrb[0].mxu0
      %v4800 = vadd.f32 0.0, %v4799
      %v4801 = vpop.f32.mrb[0].mxu0
      %4802 = vmatprep.mubr.bf16.mxu0 0
      %4803 = vmatmul.mubr.bf16.gmra.mrb[0].mxu0 %v4356
      %v4804 = vpop.f32.mrb[0].mxu0
      %v4805 = vadd.f32 0.0, %v4804
      %v4806 = vpop.f32.mrb[0].mxu0
      %v4807 = vpop.f32.mrb[0].mxu0
      %v4808 = vadd.f32 0.0, %v4807
      %v4809 = vpop.f32.mrb[0].mxu0
      %4810 = vmatprep.mubr.bf16.mxu0 0
      %4811 = vmatmul.mubr.bf16.gmra.mrb[0].mxu0 %v4359
      %v4812 = vpop.f32.mrb[0].mxu0
      %v4813 = vadd.f32 0.0, %v4812
      %v4814 = vpop.f32.mrb[0].mxu0
      %v4815 = vpop.f32.mrb[0].mxu0
      %v4816 = vadd.f32 0.0, %v4815
      %v4817 = vpop.f32.mrb[0].mxu0
      %4818 = vmatprep.mubr.bf16.mxu0 0
      %4819 = vmatmul.mubr.bf16.gmra.mrb[0].mxu0 %v4362
      %v4820 = vpop.f32.mrb[0].mxu0
      %v4821 = vadd.f32 0.0, %v4820
      %v4822 = vpop.f32.mrb[0].mxu0
      %v4823 = vpop.f32.mrb[0].mxu0
      %v4824 = vadd.f32 0.0, %v4823
      %v4825 = vpop.f32.mrb[0].mxu0
      %4826 = vmatprep.mubr.bf16.mxu0 0
      %4827 = vmatmul.mubr.bf16.gmra.mrb[0].mxu0 %v4365
      %v4828 = vpop.f32.mrb[0].mxu0
      %v4829 = vadd.f32 0.0, %v4828
      %v4830 = vpop.f32.mrb[0].mxu0
      %v4831 = vpop.f32.mrb[0].mxu0
      %v4832 = vadd.f32 0.0, %v4831
      %v4833 = vpop.f32.mrb[0].mxu0
      %4834 = vmatprep.mubr.bf16.mxu0 0
      %4835 = vmatmul.mubr.bf16.gmra.mrb[0].mxu0 %v4368
      %v4836 = vpop.f32.mrb[0].mxu0
      %v4837 = vadd.f32 0.0, %v4836
      %v4838 = vpop.f32.mrb[0].mxu0
      %v4839 = vpop.f32.mrb[0].mxu0
      %v4840 = vadd.f32 0.0, %v4839
      %v4841 = vpop.f32.mrb[0].mxu0
      %4842 = vmatprep.mubr.bf16.mxu0 0
      %4843 = vmatmul.mubr.bf16.gmra.mrb[0].mxu0 %v4371
      %v4844 = vpop.f32.mrb[0].mxu0
      %v4845 = vadd.f32 0.0, %v4844
      %v4846 = vpop.f32.mrb[0].mxu0
      %v4847 = vpop.f32.mrb[0].mxu0
      %v4848 = vadd.f32 0.0, %v4847
      %v4849 = vpop.f32.mrb[0].mxu0
      %4850 = vmatprep.mubr.bf16.mxu0 0
      %4851 = vmatmul.mubr.bf16.gmra.mrb[0].mxu0 %v4374
      %v4852 = vpop.f32.mrb[0].mxu0
      %v4853 = vadd.f32 0.0, %v4852
      %v4854 = vpop.f32.mrb[0].mxu0
      %v4855 = vpop.f32.mrb[0].mxu0
      %v4856 = vadd.f32 0.0, %v4855
      %v4857 = vpop.f32.mrb[0].mxu0
      %4858 = vmatprep.mubr.bf16.mxu0 0
      %4859 = vmatmul.mubr.bf16.gmra.mrb[0].mxu0 %v4377
      %v4860 = vpop.f32.mrb[0].mxu0
      %v4861 = vadd.f32 0.0, %v4860
      %v4862 = vpop.f32.mrb[0].mxu0
      %v4863 = vpop.f32.mrb[0].mxu0
      %v4864 = vadd.f32 0.0, %v4863
      %v4865 = vpop.f32.mrb[0].mxu0
      %4866 = vmatprep.mubr.bf16.mxu0 0
      %4867 = vmatmul.mubr.bf16.gmra.mrb[0].mxu0 %v4380
      %v4868 = vpop.f32.mrb[0].mxu0
      %v4869 = vadd.f32 0.0, %v4868
      %v4870 = vpop.f32.mrb[0].mxu0
      %v4871 = vpop.f32.mrb[0].mxu0
      %v4872 = vadd.f32 0.0, %v4871
      %v4873 = vpop.f32.mrb[0].mxu0
      %4874 = vmatprep.mubr.bf16.mxu0 0
      %4875 = vmatmul.mubr.bf16.gmra.mrb[0].mxu0 %v4383
      %v4876 = vpop.f32.mrb[0].mxu0
      %v4877 = vadd.f32 0.0, %v4876
      %v4878 = vpop.f32.mrb[0].mxu0
      %v4879 = vpop.f32.mrb[0].mxu0
      %v4880 = vadd.f32 0.0, %v4879
      %v4881 = vpop.f32.mrb[0].mxu0
      %4882 = vmatprep.mubr.bf16.mxu0 0
      %4883 = vmatmul.mubr.bf16.gmra.mrb[0].mxu0 %v4386
      %v4884 = vpop.f32.mrb[0].mxu0
      %v4885 = vadd.f32 0.0, %v4884
      %v4886 = vpop.f32.mrb[0].mxu0
      %v4887 = vpop.f32.mrb[0].mxu0
      %v4888 = vadd.f32 0.0, %v4887
      %v4889 = vpop.f32.mrb[0].mxu0
      %4890 = vmatprep.mubr.bf16.mxu0 0
      %4891 = vmatmul.mubr.bf16.gmra.mrb[0].mxu0 %v4733
      %v4892 = vpop.f32.mrb[0].mxu0
      %v4893 = vadd.f32 0.0, %v4892
      %v4894 = vpop.f32.mrb[0].mxu0
      %v4895 = vpop.f32.mrb[0].mxu0
      %v4896 = vadd.f32 0.0, %v4895
      %v4897 = vpop.f32.mrb[0].mxu0
      %4898 = vdwg.mxu0
      %v4899 = vadd.f32 %v4599, %v4773
      %v4900 = vadd.f32 %v4602, %v4776
      %v4901 = vadd.f32 %v4607, %v4781
      %v4902 = vadd.f32 %v4610, %v4784
      %v4903 = vadd.f32 %v4615, %v4789
      %v4904 = vadd.f32 %v4618, %v4792
      %v4905 = vadd.f32 %v4623, %v4797
      %v4906 = vadd.f32 %v4626, %v4800
      %v4907 = vadd.f32 %v4631, %v4805
      %v4908 = vadd.f32 %v4634, %v4808
      %v4909 = vadd.f32 %v4639, %v4813
      %v4910 = vadd.f32 %v4642, %v4816
      %v4911 = vadd.f32 %v4647, %v4821
      %v4912 = vadd.f32 %v4650, %v4824
      %v4913 = vadd.f32 %v4655, %v4829
      %v4914 = vadd.f32 %v4658, %v4832
      %v4915 = vadd.f32 %v4663, %v4837
      %v4916 = vadd.f32 %v4666, %v4840
      %v4917 = vadd.f32 %v4671, %v4845
      %v4918 = vadd.f32 %v4674, %v4848
      %v4919 = vadd.f32 %v4679, %v4853
      %v4920 = vadd.f32 %v4682, %v4856
      %v4921 = vadd.f32 %v4687, %v4861
      %v4922 = vadd.f32 %v4690, %v4864
      %v4923 = vadd.f32 %v4695, %v4869
      %v4924 = vadd.f32 %v4698, %v4872
      %v4925 = vadd.f32 %v4703, %v4877
      %v4926 = vadd.f32 %v4706, %v4880
      %v4927 = vadd.f32 %v4711, %v4885
      %v4928 = vadd.f32 %v4714, %v4888
      %v4929 = vadd.f32 %v4719, %v4893
      %v4930 = vadd.f32 %v4722, %v4896
      %v4931 = vld [vmem:[#allocation3] sm:$0xf]
      %v4932 = vld [vmem:[#allocation3 + $0x4] sm:$0xf]
      %v4933 = vld [vmem:[#allocation3 + $0x8] sm:$0x1]
      %v4934 = vld [vmem:[#allocation3 + $0xc] sm:$0xf]
      %v4935 = vld [vmem:[#allocation3 + $0x10] sm:$0xf]
      %v4936 = vld [vmem:[#allocation3 + $0x14] sm:$0x1]
      %v4937 = vld [vmem:[#allocation3 + $0x18] sm:$0xf]
      %v4938 = vld [vmem:[#allocation3 + $0x1c] sm:$0xf]
      %v4939 = vld [vmem:[#allocation3 + $0x20] sm:$0x1]
      %v4940 = vld [vmem:[#allocation3 + $0x24] sm:$0xf]
      %v4941 = vld [vmem:[#allocation3 + $0x28] sm:$0xf]
      %v4942 = vld [vmem:[#allocation3 + $0x2c] sm:$0x1]
      %v4943 = vld [vmem:[#allocation3 + $0x30] sm:$0xf]
      %v4944 = vld [vmem:[#allocation3 + $0x34] sm:$0xf]
      %v4945 = vld [vmem:[#allocation3 + $0x38] sm:$0x1]
      %v4946 = vld [vmem:[#allocation3 + $0x3c] sm:$0xf]
      %v4947 = vld [vmem:[#allocation3 + $0x40] sm:$0xf]
      %v4948 = vld [vmem:[#allocation3 + $0x44] sm:$0x1]
      %v4949 = vld [vmem:[#allocation3 + $0x48] sm:$0xf]
      %v4950 = vld [vmem:[#allocation3 + $0x4c] sm:$0xf]
      %v4951 = vld [vmem:[#allocation3 + $0x50] sm:$0x1]
      %v4952 = vld [vmem:[#allocation3 + $0x54] sm:$0xf]
      %v4953 = vld [vmem:[#allocation3 + $0x58] sm:$0xf]
      %v4954 = vld [vmem:[#allocation3 + $0x5c] sm:$0x1]
      %v4955 = vld [vmem:[#allocation3 + $0x60] sm:$0xf]
      %v4956 = vld [vmem:[#allocation3 + $0x64] sm:$0xf]
      %v4957 = vld [vmem:[#allocation3 + $0x68] sm:$0x1]
      %v4958 = vld [vmem:[#allocation3 + $0x6c] sm:$0xf]
      %v4959 = vld [vmem:[#allocation3 + $0x70] sm:$0xf]
      %v4960 = vld [vmem:[#allocation3 + $0x74] sm:$0x1]
      %v4961 = vld [vmem:[#allocation3 + $0x78] sm:$0xf]
      %v4962 = vld [vmem:[#allocation3 + $0x7c] sm:$0xf]
      %v4963 = vld [vmem:[#allocation3 + $0x80] sm:$0x1]
      %v4964 = vld [vmem:[#allocation3 + $0x84] sm:$0xf]
      %v4965 = vld [vmem:[#allocation3 + $0x88] sm:$0xf]
      %v4966 = vld [vmem:[#allocation3 + $0x8c] sm:$0x1]
      %v4967 = vld [vmem:[#allocation3 + $0x90] sm:$0xf]
      %v4968 = vld [vmem:[#allocation3 + $0x94] sm:$0xf]
      %v4969 = vld [vmem:[#allocation3 + $0x98] sm:$0x1]
      %v4970 = vld [vmem:[#allocation3 + $0x9c] sm:$0xf]
      %v4971 = vld [vmem:[#allocation3 + $0xa0] sm:$0xf]
      %v4972 = vld [vmem:[#allocation3 + $0xa4] sm:$0x1]
      %v4973 = vld [vmem:[#allocation3 + $0xa8] sm:$0xf]
      %v4974 = vld [vmem:[#allocation3 + $0xac] sm:$0xf]
      %v4975 = vld [vmem:[#allocation3 + $0xb0] sm:$0x1]
      %v4976 = vld [vmem:[#allocation3 + $0xb4] sm:$0xf]
      %v4977 = vld [vmem:[#allocation3 + $0xb8] sm:$0xf]
      %v4978 = vld [vmem:[#allocation3 + $0xbc] sm:$0x1]
      %v4979 = vld [vmem:[#allocation3 + $0xc0] sm:$0xf]
      %v4980 = vld [vmem:[#allocation3 + $0xc4] sm:$0xf]
      %v4981 = vld [vmem:[#allocation3 + $0xc8] sm:$0x1]
      %v4982 = vld [vmem:[#allocation3 + $0xcc] sm:$0xf]
      %v4983 = vld [vmem:[#allocation3 + $0xd0] sm:$0xf]
      %v4984 = vld [vmem:[#allocation3 + $0xd4] sm:$0x1]
      %v4986 = vshrl.u32 %v4931, 16
      %v4988 = vrot.slane %v4986, 4
      %v4989 = vshll.u32 %v4931, 16
      %v4991 = vrot.slane %v4989, 5
      %v4992 = vor.u32 %v4988, %v4991
      %v4993 = vrot.slane %v4992, 4
      %v4995 = vshll.u32 %v4932, 16
      %v4997 = vrot.slane %v4995, 5
      %v4998 = vsel %vm1578, %v4993, %v4997
      %v4999 = vshrl.u32 %v4932, 16
      %v5001 = vrot.slane %v4999, 4
      %v5002 = vor.u32 %v5001, %v4997
      %v5003 = vrot.slane %v5002, 4
      %v5005 = vshll.u32 %v4933, 16
      %v5007 = vrot.slane %v5005, 5
      %v5008 = vsel %vm1578, %v5003, %v5007
      %v5010 = vshrl.u32 %v4934, 16
      %v5012 = vrot.slane %v5010, 4
      %v5013 = vshll.u32 %v4934, 16
      %v5015 = vrot.slane %v5013, 5
      %v5016 = vor.u32 %v5012, %v5015
      %v5017 = vrot.slane %v5016, 4
      %v5019 = vshll.u32 %v4935, 16
      %v5021 = vrot.slane %v5019, 5
      %v5022 = vsel %vm1578, %v5017, %v5021
      %v5023 = vshrl.u32 %v4935, 16
      %v5025 = vrot.slane %v5023, 4
      %v5026 = vor.u32 %v5025, %v5021
      %v5027 = vrot.slane %v5026, 4
      %v5029 = vshll.u32 %v4936, 16
      %v5031 = vrot.slane %v5029, 5
      %v5032 = vsel %vm1578, %v5027, %v5031
      %v5034 = vshrl.u32 %v4937, 16
      %v5036 = vrot.slane %v5034, 4
      %v5037 = vshll.u32 %v4937, 16
      %v5039 = vrot.slane %v5037, 5
      %v5040 = vor.u32 %v5036, %v5039
      %v5041 = vrot.slane %v5040, 4
      %v5043 = vshll.u32 %v4938, 16
      %v5045 = vrot.slane %v5043, 5
      %v5046 = vsel %vm1578, %v5041, %v5045
      %v5047 = vshrl.u32 %v4938, 16
      %v5049 = vrot.slane %v5047, 4
      %v5050 = vor.u32 %v5049, %v5045
      %v5051 = vrot.slane %v5050, 4
      %v5053 = vshll.u32 %v4939, 16
      %v5055 = vrot.slane %v5053, 5
      %v5056 = vsel %vm1578, %v5051, %v5055
      %v5058 = vshrl.u32 %v4940, 16
      %v5060 = vrot.slane %v5058, 4
      %v5061 = vshll.u32 %v4940, 16
      %v5063 = vrot.slane %v5061, 5
      %v5064 = vor.u32 %v5060, %v5063
      %v5065 = vrot.slane %v5064, 4
      %v5067 = vshll.u32 %v4941, 16
      %v5069 = vrot.slane %v5067, 5
      %v5070 = vsel %vm1578, %v5065, %v5069
      %v5071 = vshrl.u32 %v4941, 16
      %v5073 = vrot.slane %v5071, 4
      %v5074 = vor.u32 %v5073, %v5069
      %v5075 = vrot.slane %v5074, 4
      %v5077 = vshll.u32 %v4942, 16
      %v5079 = vrot.slane %v5077, 5
      %v5080 = vsel %vm1578, %v5075, %v5079
      %v5082 = vshrl.u32 %v4943, 16
      %v5084 = vrot.slane %v5082, 4
      %v5085 = vshll.u32 %v4943, 16
      %v5087 = vrot.slane %v5085, 5
      %v5088 = vor.u32 %v5084, %v5087
      %v5089 = vrot.slane %v5088, 4
      %v5091 = vshll.u32 %v4944, 16
      %v5093 = vrot.slane %v5091, 5
      %v5094 = vsel %vm1578, %v5089, %v5093
      %v5095 = vshrl.u32 %v4944, 16
      %v5097 = vrot.slane %v5095, 4
      %v5098 = vor.u32 %v5097, %v5093
      %v5099 = vrot.slane %v5098, 4
      %v5101 = vshll.u32 %v4945, 16
      %v5103 = vrot.slane %v5101, 5
      %v5104 = vsel %vm1578, %v5099, %v5103
      %v5106 = vshrl.u32 %v4946, 16
      %v5108 = vrot.slane %v5106, 4
      %v5109 = vshll.u32 %v4946, 16
      %v5111 = vrot.slane %v5109, 5
      %v5112 = vor.u32 %v5108, %v5111
      %v5113 = vrot.slane %v5112, 4
      %v5115 = vshll.u32 %v4947, 16
      %v5117 = vrot.slane %v5115, 5
      %v5118 = vsel %vm1578, %v5113, %v5117
      %v5119 = vshrl.u32 %v4947, 16
      %v5121 = vrot.slane %v5119, 4
      %v5122 = vor.u32 %v5121, %v5117
      %v5123 = vrot.slane %v5122, 4
      %v5125 = vshll.u32 %v4948, 16
      %v5127 = vrot.slane %v5125, 5
      %v5128 = vsel %vm1578, %v5123, %v5127
      %v5130 = vshrl.u32 %v4949, 16
      %v5132 = vrot.slane %v5130, 4
      %v5133 = vshll.u32 %v4949, 16
      %v5135 = vrot.slane %v5133, 5
      %v5136 = vor.u32 %v5132, %v5135
      %v5137 = vrot.slane %v5136, 4
      %v5139 = vshll.u32 %v4950, 16
      %v5141 = vrot.slane %v5139, 5
      %v5142 = vsel %vm1578, %v5137, %v5141
      %v5143 = vshrl.u32 %v4950, 16
      %v5145 = vrot.slane %v5143, 4
      %v5146 = vor.u32 %v5145, %v5141
      %v5147 = vrot.slane %v5146, 4
      %v5149 = vshll.u32 %v4951, 16
      %v5151 = vrot.slane %v5149, 5
      %v5152 = vsel %vm1578, %v5147, %v5151
      %v5154 = vshrl.u32 %v4952, 16
      %v5156 = vrot.slane %v5154, 4
      %v5157 = vshll.u32 %v4952, 16
      %v5159 = vrot.slane %v5157, 5
      %v5160 = vor.u32 %v5156, %v5159
      %v5161 = vrot.slane %v5160, 4
      %v5163 = vshll.u32 %v4953, 16
      %v5165 = vrot.slane %v5163, 5
      %v5166 = vsel %vm1578, %v5161, %v5165
      %v5167 = vshrl.u32 %v4953, 16
      %v5169 = vrot.slane %v5167, 4
      %v5170 = vor.u32 %v5169, %v5165
      %v5171 = vrot.slane %v5170, 4
      %v5173 = vshll.u32 %v4954, 16
      %v5175 = vrot.slane %v5173, 5
      %v5176 = vsel %vm1578, %v5171, %v5175
      %v5178 = vshrl.u32 %v4955, 16
      %v5180 = vrot.slane %v5178, 4
      %v5181 = vshll.u32 %v4955, 16
      %v5183 = vrot.slane %v5181, 5
      %v5184 = vor.u32 %v5180, %v5183
      %v5185 = vrot.slane %v5184, 4
      %v5187 = vshll.u32 %v4956, 16
      %v5189 = vrot.slane %v5187, 5
      %v5190 = vsel %vm1578, %v5185, %v5189
      %v5191 = vshrl.u32 %v4956, 16
      %v5193 = vrot.slane %v5191, 4
      %v5194 = vor.u32 %v5193, %v5189
      %v5195 = vrot.slane %v5194, 4
      %v5197 = vshll.u32 %v4957, 16
      %v5199 = vrot.slane %v5197, 5
      %v5200 = vsel %vm1578, %v5195, %v5199
      %v5202 = vshrl.u32 %v4958, 16
      %v5204 = vrot.slane %v5202, 4
      %v5205 = vshll.u32 %v4958, 16
      %v5207 = vrot.slane %v5205, 5
      %v5208 = vor.u32 %v5204, %v5207
      %v5209 = vrot.slane %v5208, 4
      %v5211 = vshll.u32 %v4959, 16
      %v5213 = vrot.slane %v5211, 5
      %v5214 = vsel %vm1578, %v5209, %v5213
      %v5215 = vshrl.u32 %v4959, 16
      %v5217 = vrot.slane %v5215, 4
      %v5218 = vor.u32 %v5217, %v5213
      %v5219 = vrot.slane %v5218, 4
      %v5221 = vshll.u32 %v4960, 16
      %v5223 = vrot.slane %v5221, 5
      %v5224 = vsel %vm1578, %v5219, %v5223
      %v5226 = vshrl.u32 %v4961, 16
      %v5228 = vrot.slane %v5226, 4
      %v5229 = vshll.u32 %v4961, 16
      %v5231 = vrot.slane %v5229, 5
      %v5232 = vor.u32 %v5228, %v5231
      %v5233 = vrot.slane %v5232, 4
      %v5235 = vshll.u32 %v4962, 16
      %v5237 = vrot.slane %v5235, 5
      %v5238 = vsel %vm1578, %v5233, %v5237
      %v5239 = vshrl.u32 %v4962, 16
      %v5241 = vrot.slane %v5239, 4
      %v5242 = vor.u32 %v5241, %v5237
      %v5243 = vrot.slane %v5242, 4
      %v5245 = vshll.u32 %v4963, 16
      %v5247 = vrot.slane %v5245, 5
      %v5248 = vsel %vm1578, %v5243, %v5247
      %v5250 = vshrl.u32 %v4964, 16
      %v5252 = vrot.slane %v5250, 4
      %v5253 = vshll.u32 %v4964, 16
      %v5255 = vrot.slane %v5253, 5
      %v5256 = vor.u32 %v5252, %v5255
      %v5257 = vrot.slane %v5256, 4
      %v5259 = vshll.u32 %v4965, 16
      %v5261 = vrot.slane %v5259, 5
      %v5262 = vsel %vm1578, %v5257, %v5261
      %v5263 = vshrl.u32 %v4965, 16
      %v5265 = vrot.slane %v5263, 4
      %v5266 = vor.u32 %v5265, %v5261
      %v5267 = vrot.slane %v5266, 4
      %v5269 = vshll.u32 %v4966, 16
      %v5271 = vrot.slane %v5269, 5
      %v5272 = vsel %vm1578, %v5267, %v5271
      %v5274 = vshrl.u32 %v4967, 16
      %v5276 = vrot.slane %v5274, 4
      %v5277 = vshll.u32 %v4967, 16
      %v5279 = vrot.slane %v5277, 5
      %v5280 = vor.u32 %v5276, %v5279
      %v5281 = vrot.slane %v5280, 4
      %v5283 = vshll.u32 %v4968, 16
      %v5285 = vrot.slane %v5283, 5
      %v5286 = vsel %vm1578, %v5281, %v5285
      %v5287 = vshrl.u32 %v4968, 16
      %v5289 = vrot.slane %v5287, 4
      %v5290 = vor.u32 %v5289, %v5285
      %v5291 = vrot.slane %v5290, 4
      %v5293 = vshll.u32 %v4969, 16
      %v5295 = vrot.slane %v5293, 5
      %v5296 = vsel %vm1578, %v5291, %v5295
      %v5298 = vshrl.u32 %v4970, 16
      %v5300 = vrot.slane %v5298, 4
      %v5301 = vshll.u32 %v4970, 16
      %v5303 = vrot.slane %v5301, 5
      %v5304 = vor.u32 %v5300, %v5303
      %v5305 = vrot.slane %v5304, 4
      %v5307 = vshll.u32 %v4971, 16
      %v5309 = vrot.slane %v5307, 5
      %v5310 = vsel %vm1578, %v5305, %v5309
      %v5311 = vshrl.u32 %v4971, 16
      %v5313 = vrot.slane %v5311, 4
      %v5314 = vor.u32 %v5313, %v5309
      %v5315 = vrot.slane %v5314, 4
      %v5317 = vshll.u32 %v4972, 16
      %v5319 = vrot.slane %v5317, 5
      %v5320 = vsel %vm1578, %v5315, %v5319
      %v5322 = vshrl.u32 %v4973, 16
      %v5324 = vrot.slane %v5322, 4
      %v5325 = vshll.u32 %v4973, 16
      %v5327 = vrot.slane %v5325, 5
      %v5328 = vor.u32 %v5324, %v5327
      %v5329 = vrot.slane %v5328, 4
      %v5331 = vshll.u32 %v4974, 16
      %v5333 = vrot.slane %v5331, 5
      %v5334 = vsel %vm1578, %v5329, %v5333
      %v5335 = vshrl.u32 %v4974, 16
      %v5337 = vrot.slane %v5335, 4
      %v5338 = vor.u32 %v5337, %v5333
      %v5339 = vrot.slane %v5338, 4
      %v5341 = vshll.u32 %v4975, 16
      %v5343 = vrot.slane %v5341, 5
      %v5344 = vsel %vm1578, %v5339, %v5343
      %v5346 = vshrl.u32 %v4976, 16
      %v5348 = vrot.slane %v5346, 4
      %v5349 = vshll.u32 %v4976, 16
      %v5351 = vrot.slane %v5349, 5
      %v5352 = vor.u32 %v5348, %v5351
      %v5353 = vrot.slane %v5352, 4
      %v5355 = vshll.u32 %v4977, 16
      %v5357 = vrot.slane %v5355, 5
      %v5358 = vsel %vm1578, %v5353, %v5357
      %v5359 = vshrl.u32 %v4977, 16
      %v5361 = vrot.slane %v5359, 4
      %v5362 = vor.u32 %v5361, %v5357
      %v5363 = vrot.slane %v5362, 4
      %v5365 = vshll.u32 %v4978, 16
      %v5367 = vrot.slane %v5365, 5
      %v5368 = vsel %vm1578, %v5363, %v5367
      %s5369 = scalar_lea.vmem %s3, 4
      %v5370 = vld [vmem:[%s5369] sm:$0xf]
      %v5371 = vunpack.c.l.b16 %v4998
      %v5372 = vunpack.c.l.b16 %v5008
      %v5373 = vunpack.c.l.b16 %v5022
      %v5374 = vunpack.c.l.b16 %v5032
      %v5375 = vunpack.c.l.b16 %v5046
      %v5376 = vunpack.c.l.b16 %v5056
      %v5377 = vunpack.c.l.b16 %v5070
      %v5378 = vunpack.c.l.b16 %v5080
      %v5379 = vunpack.c.l.b16 %v5094
      %v5380 = vunpack.c.l.b16 %v5104
      %v5381 = vunpack.c.l.b16 %v5118
      %v5382 = vunpack.c.l.b16 %v5128
      %v5383 = vunpack.c.l.b16 %v5142
      %v5384 = vunpack.c.l.b16 %v5152
      %v5385 = vunpack.c.l.b16 %v5166
      %v5386 = vunpack.c.l.b16 %v5176
      %v5387 = vunpack.c.l.b16 %v5190
      %v5388 = vunpack.c.l.b16 %v5200
      %v5389 = vunpack.c.l.b16 %v5214
      %v5390 = vunpack.c.l.b16 %v5224
      %v5391 = vunpack.c.l.b16 %v5238
      %v5392 = vunpack.c.l.b16 %v5248
      %v5393 = vunpack.c.l.b16 %v5262
      %v5394 = vunpack.c.l.b16 %v5272
      %v5395 = vunpack.c.l.b16 %v5286
      %v5396 = vunpack.c.l.b16 %v5296
      %v5397 = vunpack.c.l.b16 %v5310
      %v5398 = vunpack.c.l.b16 %v5320
      %v5399 = vunpack.c.l.b16 %v5334
      %v5400 = vunpack.c.l.b16 %v5344
      %v5401 = vunpack.c.l.b16 %v5358
      %v5402 = vunpack.c.l.b16 %v5368
      %v5403 = vpack.c.b16 %v5372, %v5371
      %v5404 = vpack.c.b16 %v5374, %v5373
      %v5405 = vpack.c.b16 %v5376, %v5375
      %v5406 = vpack.c.b16 %v5378, %v5377
      %v5407 = vpack.c.b16 %v5380, %v5379
      %v5408 = vpack.c.b16 %v5382, %v5381
      %v5409 = vpack.c.b16 %v5384, %v5383
      %v5410 = vpack.c.b16 %v5386, %v5385
      %v5411 = vpack.c.b16 %v5388, %v5387
      %v5412 = vpack.c.b16 %v5390, %v5389
      %v5413 = vpack.c.b16 %v5392, %v5391
      %v5414 = vpack.c.b16 %v5394, %v5393
      %v5415 = vpack.c.b16 %v5396, %v5395
      %v5416 = vpack.c.b16 %v5398, %v5397
      %v5417 = vpack.c.b16 %v5400, %v5399
      %v5418 = vpack.c.b16 %v5402, %v5401
      %v5420 = vsel %vm4339, %v5403, 0
      %v5423 = vsel %vm4339, %v5404, 0
      %v5426 = vsel %vm4339, %v5405, 0
      %v5429 = vsel %vm4339, %v5406, 0
      %v5432 = vsel %vm4339, %v5407, 0
      %v5435 = vsel %vm4339, %v5408, 0
      %v5438 = vsel %vm4339, %v5409, 0
      %v5441 = vsel %vm4339, %v5410, 0
      %v5444 = vsel %vm4339, %v5411, 0
      %v5447 = vsel %vm4339, %v5412, 0
      %v5450 = vsel %vm4339, %v5413, 0
      %v5453 = vsel %vm4339, %v5414, 0
      %v5456 = vsel %vm4339, %v5415, 0
      %v5459 = vsel %vm4339, %v5416, 0
      %v5462 = vsel %vm4339, %v5417, 0
      %v5465 = vsel %vm4339, %v5418, 0
      %v5468 = vsel %vm4388, %v5370, 0
      %5470 = vmatprep.subr.bf16.mxu0 0
      %5471 = vmatpush1.bf16.msra.mxu0 %v5468
      %5472 = vmatprep.subr.bf16.mxu0 0
      %5473 = vmatpush1.bf16.msra.mxu0 0
      %5474 = vmatprep.subr.bf16.mxu0 0
      %5475 = vmatpush1.bf16.msra.mxu0 0
      %5476 = vmatprep.subr.bf16.mxu0 0
      %5477 = vmatpush1.bf16.msra.mxu0 0
      %5478 = vmatprep.subr.bf16.mxu0 0
      %5479 = vmatpush1.bf16.msra.mxu0 0
      %5480 = vmatprep.subr.bf16.mxu0 0
      %5481 = vmatpush1.bf16.msra.mxu0 0
      %5482 = vmatprep.subr.bf16.mxu0 0
      %5483 = vmatpush1.bf16.msra.mxu0 0
      %5484 = vmatprep.subr.bf16.mxu0 0
      %5485 = vmatpush1.bf16.msra.mxu0 0
      %5486 = vmatprep.subr.bf16.mxu0 0
      %5487 = vmatpush1.bf16.msra.mxu0 0
      %5488 = vmatprep.subr.bf16.mxu0 0
      %5489 = vmatpush1.bf16.msra.mxu0 0
      %5490 = vmatprep.subr.bf16.mxu0 0
      %5491 = vmatpush1.bf16.msra.mxu0 0
      %5492 = vmatprep.subr.bf16.mxu0 0
      %5493 = vmatpush1.bf16.msra.mxu0 0
      %5494 = vmatprep.subr.bf16.mxu0 0
      %5495 = vmatpush1.bf16.msra.mxu0 0
      %5496 = vmatprep.subr.bf16.mxu0 0
      %5497 = vmatpush1.bf16.msra.mxu0 0
      %5498 = vmatprep.subr.bf16.mxu0 0
      %5499 = vmatpush1.bf16.msra.mxu0 0
      %5500 = vmatprep.subr.bf16.mxu0 0
      %5501 = vmatpush1.bf16.msra.mxu0 0
      %5502 = vmatprep.mubr.bf16.mxu0 0
      %5503 = vmatmul.mubr.bf16.gmra.mrb[0].mxu0 %v5420
      %v5504 = vpop.f32.mrb[0].mxu0
      %v5505 = vadd.f32 0.0, %v5504
      %v5506 = vpop.f32.mrb[0].mxu0
      %v5507 = vpop.f32.mrb[0].mxu0
      %v5508 = vadd.f32 0.0, %v5507
      %v5509 = vpop.f32.mrb[0].mxu0
      %5510 = vmatprep.mubr.bf16.mxu0 0
      %5511 = vmatmul.mubr.bf16.gmra.mrb[0].mxu0 %v5423
      %v5512 = vpop.f32.mrb[0].mxu0
      %v5513 = vadd.f32 0.0, %v5512
      %v5514 = vpop.f32.mrb[0].mxu0
      %v5515 = vpop.f32.mrb[0].mxu0
      %v5516 = vadd.f32 0.0, %v5515
      %v5517 = vpop.f32.mrb[0].mxu0
      %5518 = vmatprep.mubr.bf16.mxu0 0
      %5519 = vmatmul.mubr.bf16.gmra.mrb[0].mxu0 %v5426
      %v5520 = vpop.f32.mrb[0].mxu0
      %v5521 = vadd.f32 0.0, %v5520
      %v5522 = vpop.f32.mrb[0].mxu0
      %v5523 = vpop.f32.mrb[0].mxu0
      %v5524 = vadd.f32 0.0, %v5523
      %v5525 = vpop.f32.mrb[0].mxu0
      %5526 = vmatprep.mubr.bf16.mxu0 0
      %5527 = vmatmul.mubr.bf16.gmra.mrb[0].mxu0 %v5429
      %v5528 = vpop.f32.mrb[0].mxu0
      %v5529 = vadd.f32 0.0, %v5528
      %v5530 = vpop.f32.mrb[0].mxu0
      %v5531 = vpop.f32.mrb[0].mxu0
      %v5532 = vadd.f32 0.0, %v5531
      %v5533 = vpop.f32.mrb[0].mxu0
      %5534 = vmatprep.mubr.bf16.mxu0 0
      %5535 = vmatmul.mubr.bf16.gmra.mrb[0].mxu0 %v5432
      %v5536 = vpop.f32.mrb[0].mxu0
      %v5537 = vadd.f32 0.0, %v5536
      %v5538 = vpop.f32.mrb[0].mxu0
      %v5539 = vpop.f32.mrb[0].mxu0
      %v5540 = vadd.f32 0.0, %v5539
      %v5541 = vpop.f32.mrb[0].mxu0
      %5542 = vmatprep.mubr.bf16.mxu0 0
      %5543 = vmatmul.mubr.bf16.gmra.mrb[0].mxu0 %v5435
      %v5544 = vpop.f32.mrb[0].mxu0
      %v5545 = vadd.f32 0.0, %v5544
      %v5546 = vpop.f32.mrb[0].mxu0
      %v5547 = vpop.f32.mrb[0].mxu0
      %v5548 = vadd.f32 0.0, %v5547
      %v5549 = vpop.f32.mrb[0].mxu0
      %5550 = vmatprep.mubr.bf16.mxu0 0
      %5551 = vmatmul.mubr.bf16.gmra.mrb[0].mxu0 %v5438
      %v5552 = vpop.f32.mrb[0].mxu0
      %v5553 = vadd.f32 0.0, %v5552
      %v5554 = vpop.f32.mrb[0].mxu0
      %v5555 = vpop.f32.mrb[0].mxu0
      %v5556 = vadd.f32 0.0, %v5555
      %v5557 = vpop.f32.mrb[0].mxu0
      %5558 = vmatprep.mubr.bf16.mxu0 0
      %5559 = vmatmul.mubr.bf16.gmra.mrb[0].mxu0 %v5441
      %v5560 = vpop.f32.mrb[0].mxu0
      %v5561 = vadd.f32 0.0, %v5560
      %v5562 = vpop.f32.mrb[0].mxu0
      %v5563 = vpop.f32.mrb[0].mxu0
      %v5564 = vadd.f32 0.0, %v5563
      %v5565 = vpop.f32.mrb[0].mxu0
      %5566 = vmatprep.mubr.bf16.mxu0 0
      %5567 = vmatmul.mubr.bf16.gmra.mrb[0].mxu0 %v5444
      %v5568 = vpop.f32.mrb[0].mxu0
      %v5569 = vadd.f32 0.0, %v5568
      %v5570 = vpop.f32.mrb[0].mxu0
      %v5571 = vpop.f32.mrb[0].mxu0
      %v5572 = vadd.f32 0.0, %v5571
      %v5573 = vpop.f32.mrb[0].mxu0
      %5574 = vmatprep.mubr.bf16.mxu0 0
      %5575 = vmatmul.mubr.bf16.gmra.mrb[0].mxu0 %v5447
      %v5576 = vpop.f32.mrb[0].mxu0
      %v5577 = vadd.f32 0.0, %v5576
      %v5578 = vpop.f32.mrb[0].mxu0
      %v5579 = vpop.f32.mrb[0].mxu0
      %v5580 = vadd.f32 0.0, %v5579
      %v5581 = vpop.f32.mrb[0].mxu0
      %5582 = vmatprep.mubr.bf16.mxu0 0
      %5583 = vmatmul.mubr.bf16.gmra.mrb[0].mxu0 %v5450
      %v5584 = vpop.f32.mrb[0].mxu0
      %v5585 = vadd.f32 0.0, %v5584
      %v5586 = vpop.f32.mrb[0].mxu0
      %v5587 = vpop.f32.mrb[0].mxu0
      %v5588 = vadd.f32 0.0, %v5587
      %v5589 = vpop.f32.mrb[0].mxu0
      %5590 = vmatprep.mubr.bf16.mxu0 0
      %5591 = vmatmul.mubr.bf16.gmra.mrb[0].mxu0 %v5453
      %v5592 = vpop.f32.mrb[0].mxu0
      %v5593 = vadd.f32 0.0, %v5592
      %v5594 = vpop.f32.mrb[0].mxu0
      %v5595 = vpop.f32.mrb[0].mxu0
      %v5596 = vadd.f32 0.0, %v5595
      %v5597 = vpop.f32.mrb[0].mxu0
      %5598 = vmatprep.mubr.bf16.mxu0 0
      %5599 = vmatmul.mubr.bf16.gmra.mrb[0].mxu0 %v5456
      %v5600 = vpop.f32.mrb[0].mxu0
      %v5601 = vadd.f32 0.0, %v5600
      %v5602 = vpop.f32.mrb[0].mxu0
      %v5603 = vpop.f32.mrb[0].mxu0
      %v5604 = vadd.f32 0.0, %v5603
      %v5605 = vpop.f32.mrb[0].mxu0
      %5606 = vmatprep.mubr.bf16.mxu0 0
      %5607 = vmatmul.mubr.bf16.gmra.mrb[0].mxu0 %v5459
      %v5608 = vpop.f32.mrb[0].mxu0
      %v5609 = vadd.f32 0.0, %v5608
      %v5610 = vpop.f32.mrb[0].mxu0
      %v5611 = vpop.f32.mrb[0].mxu0
      %v5612 = vadd.f32 0.0, %v5611
      %v5613 = vpop.f32.mrb[0].mxu0
      %5614 = vmatprep.mubr.bf16.mxu0 0
      %5615 = vmatmul.mubr.bf16.gmra.mrb[0].mxu0 %v5462
      %v5616 = vpop.f32.mrb[0].mxu0
      %v5617 = vadd.f32 0.0, %v5616
      %v5618 = vpop.f32.mrb[0].mxu0
      %v5619 = vpop.f32.mrb[0].mxu0
      %v5620 = vadd.f32 0.0, %v5619
      %v5621 = vpop.f32.mrb[0].mxu0
      %5622 = vmatprep.mubr.bf16.mxu0 0
      %5623 = vmatmul.mubr.bf16.gmra.mrb[0].mxu0 %v5465
      %v5624 = vpop.f32.mrb[0].mxu0
      %v5625 = vadd.f32 0.0, %v5624
      %v5626 = vpop.f32.mrb[0].mxu0
      %v5627 = vpop.f32.mrb[0].mxu0
      %v5628 = vadd.f32 0.0, %v5627
      %v5629 = vpop.f32.mrb[0].mxu0
      %5630 = vdwg.mxu0
      %v5631 = vadd.f32 %v4899, %v5505
      %v5632 = vadd.f32 %v4900, %v5508
      %v5633 = vadd.f32 %v4901, %v5513
      %v5634 = vadd.f32 %v4902, %v5516
      %v5635 = vadd.f32 %v4903, %v5521
      %v5636 = vadd.f32 %v4904, %v5524
      %v5637 = vadd.f32 %v4905, %v5529
      %v5638 = vadd.f32 %v4906, %v5532
      %v5639 = vadd.f32 %v4907, %v5537
      %v5640 = vadd.f32 %v4908, %v5540
      %v5641 = vadd.f32 %v4909, %v5545
      %v5642 = vadd.f32 %v4910, %v5548
      %v5643 = vadd.f32 %v4911, %v5553
      %v5644 = vadd.f32 %v4912, %v5556
      %v5645 = vadd.f32 %v4913, %v5561
      %v5646 = vadd.f32 %v4914, %v5564
      %v5647 = vadd.f32 %v4915, %v5569
      %v5648 = vadd.f32 %v4916, %v5572
      %v5649 = vadd.f32 %v4917, %v5577
      %v5650 = vadd.f32 %v4918, %v5580
      %v5651 = vadd.f32 %v4919, %v5585
      %v5652 = vadd.f32 %v4920, %v5588
      %v5653 = vadd.f32 %v4921, %v5593
      %v5654 = vadd.f32 %v4922, %v5596
      %v5655 = vadd.f32 %v4923, %v5601
      %v5656 = vadd.f32 %v4924, %v5604
      %v5657 = vadd.f32 %v4925, %v5609
      %v5658 = vadd.f32 %v4926, %v5612
      %v5659 = vadd.f32 %v4927, %v5617
      %v5660 = vadd.f32 %v4928, %v5620
      %v5661 = vadd.f32 %v4929, %v5625
      %v5662 = vadd.f32 %v4930, %v5628
      %v5664 = vshrl.u32 %v4979, 16
      %v5666 = vrot.slane %v5664, 4
      %v5667 = vshll.u32 %v4979, 16
      %v5669 = vrot.slane %v5667, 5
      %v5670 = vor.u32 %v5666, %v5669
      %v5671 = vrot.slane %v5670, 4
      %v5673 = vshll.u32 %v4980, 16
      %v5675 = vrot.slane %v5673, 5
      %v5676 = vsel %vm1578, %v5671, %v5675
      %v5677 = vshrl.u32 %v4980, 16
      %v5679 = vrot.slane %v5677, 4
      %v5680 = vor.u32 %v5679, %v5675
      %v5681 = vrot.slane %v5680, 4
      %v5683 = vshll.u32 %v4981, 16
      %v5685 = vrot.slane %v5683, 5
      %v5686 = vsel %vm1578, %v5681, %v5685
      %s5687 = scalar_lea.vmem %s3, 16
      %v5688 = vld [vmem:[%s5687] sm:$0xf]
      %v5689 = vunpack.c.l.b16 %v5676
      %v5690 = vunpack.c.l.b16 %v5686
      %v5691 = vpack.c.b16 %v5690, %v5689
      %v5693 = vsel %vm4339, %v5691, 0
      %v5696 = vsel %vm4388, %v5688, 0
      %5698 = vmatprep.subr.bf16.mxu0 0
      %5699 = vmatpush1.bf16.msra.mxu0 %v5696
      %5700 = vmatprep.subr.bf16.mxu0 0
      %5701 = vmatpush1.bf16.msra.mxu0 0
      %5702 = vmatprep.subr.bf16.mxu0 0
      %5703 = vmatpush1.bf16.msra.mxu0 0
      %5704 = vmatprep.subr.bf16.mxu0 0
      %5705 = vmatpush1.bf16.msra.mxu0 0
      %5706 = vmatprep.subr.bf16.mxu0 0
      %5707 = vmatpush1.bf16.msra.mxu0 0
      %5708 = vmatprep.subr.bf16.mxu0 0
      %5709 = vmatpush1.bf16.msra.mxu0 0
      %5710 = vmatprep.subr.bf16.mxu0 0
      %5711 = vmatpush1.bf16.msra.mxu0 0
      %5712 = vmatprep.subr.bf16.mxu0 0
      %5713 = vmatpush1.bf16.msra.mxu0 0
      %5714 = vmatprep.subr.bf16.mxu0 0
      %5715 = vmatpush1.bf16.msra.mxu0 0
      %5716 = vmatprep.subr.bf16.mxu0 0
      %5717 = vmatpush1.bf16.msra.mxu0 0
      %5718 = vmatprep.subr.bf16.mxu0 0
      %5719 = vmatpush1.bf16.msra.mxu0 0
      %5720 = vmatprep.subr.bf16.mxu0 0
      %5721 = vmatpush1.bf16.msra.mxu0 0
      %5722 = vmatprep.subr.bf16.mxu0 0
      %5723 = vmatpush1.bf16.msra.mxu0 0
      %5724 = vmatprep.subr.bf16.mxu0 0
      %5725 = vmatpush1.bf16.msra.mxu0 0
      %5726 = vmatprep.subr.bf16.mxu0 0
      %5727 = vmatpush1.bf16.msra.mxu0 0
      %5728 = vmatprep.subr.bf16.mxu0 0
      %5729 = vmatpush1.bf16.msra.mxu0 0
      %5730 = vmatprep.mubr.bf16.mxu0 0
      %5731 = vmatmul.mubr.bf16.gmra.mrb[0].mxu0 %v5423
      %v5732 = vpop.f32.mrb[0].mxu0
      %v5733 = vadd.f32 0.0, %v5732
      %v5734 = vpop.f32.mrb[0].mxu0
      %v5735 = vpop.f32.mrb[0].mxu0
      %v5736 = vadd.f32 0.0, %v5735
      %v5737 = vpop.f32.mrb[0].mxu0
      %5738 = vmatprep.mubr.bf16.mxu0 0
      %5739 = vmatmul.mubr.bf16.gmra.mrb[0].mxu0 %v5426
      %v5740 = vpop.f32.mrb[0].mxu0
      %v5741 = vadd.f32 0.0, %v5740
      %v5742 = vpop.f32.mrb[0].mxu0
      %v5743 = vpop.f32.mrb[0].mxu0
      %v5744 = vadd.f32 0.0, %v5743
      %v5745 = vpop.f32.mrb[0].mxu0
      %5746 = vmatprep.mubr.bf16.mxu0 0
      %5747 = vmatmul.mubr.bf16.gmra.mrb[0].mxu0 %v5429
      %v5748 = vpop.f32.mrb[0].mxu0
      %v5749 = vadd.f32 0.0, %v5748
      %v5750 = vpop.f32.mrb[0].mxu0
      %v5751 = vpop.f32.mrb[0].mxu0
      %v5752 = vadd.f32 0.0, %v5751
      %v5753 = vpop.f32.mrb[0].mxu0
      %5754 = vmatprep.mubr.bf16.mxu0 0
      %5755 = vmatmul.mubr.bf16.gmra.mrb[0].mxu0 %v5432
      %v5756 = vpop.f32.mrb[0].mxu0
      %v5757 = vadd.f32 0.0, %v5756
      %v5758 = vpop.f32.mrb[0].mxu0
      %v5759 = vpop.f32.mrb[0].mxu0
      %v5760 = vadd.f32 0.0, %v5759
      %v5761 = vpop.f32.mrb[0].mxu0
      %5762 = vmatprep.mubr.bf16.mxu0 0
      %5763 = vmatmul.mubr.bf16.gmra.mrb[0].mxu0 %v5435
      %v5764 = vpop.f32.mrb[0].mxu0
      %v5765 = vadd.f32 0.0, %v5764
      %v5766 = vpop.f32.mrb[0].mxu0
      %v5767 = vpop.f32.mrb[0].mxu0
      %v5768 = vadd.f32 0.0, %v5767
      %v5769 = vpop.f32.mrb[0].mxu0
      %5770 = vmatprep.mubr.bf16.mxu0 0
      %5771 = vmatmul.mubr.bf16.gmra.mrb[0].mxu0 %v5438
      %v5772 = vpop.f32.mrb[0].mxu0
      %v5773 = vadd.f32 0.0, %v5772
      %v5774 = vpop.f32.mrb[0].mxu0
      %v5775 = vpop.f32.mrb[0].mxu0
      %v5776 = vadd.f32 0.0, %v5775
      %v5777 = vpop.f32.mrb[0].mxu0
      %5778 = vmatprep.mubr.bf16.mxu0 0
      %5779 = vmatmul.mubr.bf16.gmra.mrb[0].mxu0 %v5441
      %v5780 = vpop.f32.mrb[0].mxu0
      %v5781 = vadd.f32 0.0, %v5780
      %v5782 = vpop.f32.mrb[0].mxu0
      %v5783 = vpop.f32.mrb[0].mxu0
      %v5784 = vadd.f32 0.0, %v5783
      %v5785 = vpop.f32.mrb[0].mxu0
      %5786 = vmatprep.mubr.bf16.mxu0 0
      %5787 = vmatmul.mubr.bf16.gmra.mrb[0].mxu0 %v5444
      %v5788 = vpop.f32.mrb[0].mxu0
      %v5789 = vadd.f32 0.0, %v5788
      %v5790 = vpop.f32.mrb[0].mxu0
      %v5791 = vpop.f32.mrb[0].mxu0
      %v5792 = vadd.f32 0.0, %v5791
      %v5793 = vpop.f32.mrb[0].mxu0
      %5794 = vmatprep.mubr.bf16.mxu0 0
      %5795 = vmatmul.mubr.bf16.gmra.mrb[0].mxu0 %v5447
      %v5796 = vpop.f32.mrb[0].mxu0
      %v5797 = vadd.f32 0.0, %v5796
      %v5798 = vpop.f32.mrb[0].mxu0
      %v5799 = vpop.f32.mrb[0].mxu0
      %v5800 = vadd.f32 0.0, %v5799
      %v5801 = vpop.f32.mrb[0].mxu0
      %5802 = vmatprep.mubr.bf16.mxu0 0
      %5803 = vmatmul.mubr.bf16.gmra.mrb[0].mxu0 %v5450
      %v5804 = vpop.f32.mrb[0].mxu0
      %v5805 = vadd.f32 0.0, %v5804
      %v5806 = vpop.f32.mrb[0].mxu0
      %v5807 = vpop.f32.mrb[0].mxu0
      %v5808 = vadd.f32 0.0, %v5807
      %v5809 = vpop.f32.mrb[0].mxu0
      %5810 = vmatprep.mubr.bf16.mxu0 0
      %5811 = vmatmul.mubr.bf16.gmra.mrb[0].mxu0 %v5453
      %v5812 = vpop.f32.mrb[0].mxu0
      %v5813 = vadd.f32 0.0, %v5812
      %v5814 = vpop.f32.mrb[0].mxu0
      %v5815 = vpop.f32.mrb[0].mxu0
      %v5816 = vadd.f32 0.0, %v5815
      %v5817 = vpop.f32.mrb[0].mxu0
      %5818 = vmatprep.mubr.bf16.mxu0 0
      %5819 = vmatmul.mubr.bf16.gmra.mrb[0].mxu0 %v5456
      %v5820 = vpop.f32.mrb[0].mxu0
      %v5821 = vadd.f32 0.0, %v5820
      %v5822 = vpop.f32.mrb[0].mxu0
      %v5823 = vpop.f32.mrb[0].mxu0
      %v5824 = vadd.f32 0.0, %v5823
      %v5825 = vpop.f32.mrb[0].mxu0
      %5826 = vmatprep.mubr.bf16.mxu0 0
      %5827 = vmatmul.mubr.bf16.gmra.mrb[0].mxu0 %v5459
      %v5828 = vpop.f32.mrb[0].mxu0
      %v5829 = vadd.f32 0.0, %v5828
      %v5830 = vpop.f32.mrb[0].mxu0
      %v5831 = vpop.f32.mrb[0].mxu0
      %v5832 = vadd.f32 0.0, %v5831
      %v5833 = vpop.f32.mrb[0].mxu0
      %5834 = vmatprep.mubr.bf16.mxu0 0
      %5835 = vmatmul.mubr.bf16.gmra.mrb[0].mxu0 %v5462
      %v5836 = vpop.f32.mrb[0].mxu0
      %v5837 = vadd.f32 0.0, %v5836
      %v5838 = vpop.f32.mrb[0].mxu0
      %v5839 = vpop.f32.mrb[0].mxu0
      %v5840 = vadd.f32 0.0, %v5839
      %v5841 = vpop.f32.mrb[0].mxu0
      %5842 = vmatprep.mubr.bf16.mxu0 0
      %5843 = vmatmul.mubr.bf16.gmra.mrb[0].mxu0 %v5465
      %v5844 = vpop.f32.mrb[0].mxu0
      %v5845 = vadd.f32 0.0, %v5844
      %v5846 = vpop.f32.mrb[0].mxu0
      %v5847 = vpop.f32.mrb[0].mxu0
      %v5848 = vadd.f32 0.0, %v5847
      %v5849 = vpop.f32.mrb[0].mxu0
      %5850 = vmatprep.mubr.bf16.mxu0 0
      %5851 = vmatmul.mubr.bf16.gmra.mrb[0].mxu0 %v5693
      %v5852 = vpop.f32.mrb[0].mxu0
      %v5853 = vadd.f32 0.0, %v5852
      %v5854 = vpop.f32.mrb[0].mxu0
      %v5855 = vpop.f32.mrb[0].mxu0
      %v5856 = vadd.f32 0.0, %v5855
      %v5857 = vpop.f32.mrb[0].mxu0
      %5858 = vdwg.mxu0
      %v5859 = vadd.f32 %v5631, %v5733
      %v5860 = vadd.f32 %v5632, %v5736
      %v5861 = vadd.f32 %v5633, %v5741
      %v5862 = vadd.f32 %v5634, %v5744
      %v5863 = vadd.f32 %v5635, %v5749
      %v5864 = vadd.f32 %v5636, %v5752
      %v5865 = vadd.f32 %v5637, %v5757
      %v5866 = vadd.f32 %v5638, %v5760
      %v5867 = vadd.f32 %v5639, %v5765
      %v5868 = vadd.f32 %v5640, %v5768
      %v5869 = vadd.f32 %v5641, %v5773
      %v5870 = vadd.f32 %v5642, %v5776
      %v5871 = vadd.f32 %v5643, %v5781
      %v5872 = vadd.f32 %v5644, %v5784
      %v5873 = vadd.f32 %v5645, %v5789
      %v5874 = vadd.f32 %v5646, %v5792
      %v5875 = vadd.f32 %v5647, %v5797
      %v5876 = vadd.f32 %v5648, %v5800
      %v5877 = vadd.f32 %v5649, %v5805
      %v5878 = vadd.f32 %v5650, %v5808
      %v5879 = vadd.f32 %v5651, %v5813
      %v5880 = vadd.f32 %v5652, %v5816
      %v5881 = vadd.f32 %v5653, %v5821
      %v5882 = vadd.f32 %v5654, %v5824
      %v5883 = vadd.f32 %v5655, %v5829
      %v5884 = vadd.f32 %v5656, %v5832
      %v5885 = vadd.f32 %v5657, %v5837
      %v5886 = vadd.f32 %v5658, %v5840
      %v5887 = vadd.f32 %v5659, %v5845
      %v5888 = vadd.f32 %v5660, %v5848
      %v5889 = vadd.f32 %v5661, %v5853
      %v5890 = vadd.f32 %v5662, %v5856
      %v5892 = vshrl.u32 %v4982, 16
      %v5894 = vrot.slane %v5892, 4
      %v5895 = vshll.u32 %v4982, 16
      %v5897 = vrot.slane %v5895, 5
      %v5898 = vor.u32 %v5894, %v5897
      %v5899 = vrot.slane %v5898, 4
      %v5901 = vshll.u32 %v4983, 16
      %v5903 = vrot.slane %v5901, 5
      %v5904 = vsel %vm1578, %v5899, %v5903
      %v5905 = vshrl.u32 %v4983, 16
      %v5907 = vrot.slane %v5905, 4
      %v5908 = vor.u32 %v5907, %v5903
      %v5909 = vrot.slane %v5908, 4
      %v5911 = vshll.u32 %v4984, 16
      %v5913 = vrot.slane %v5911, 5
      %v5914 = vsel %vm1578, %v5909, %v5913
      %s5915 = scalar_lea.vmem %s3, 28
      %v5916 = vld [vmem:[%s5915] sm:$0xf]
      %v5917 = vunpack.c.l.b16 %v5904
      %v5918 = vunpack.c.l.b16 %v5914
      %v5919 = vpack.c.b16 %v5918, %v5917
      %v5921 = vsel %vm4339, %v5919, 0
      %v5924 = vsel %vm4388, %v5916, 0
      %5926 = vmatprep.subr.bf16.mxu0 0
      %5927 = vmatpush1.bf16.msra.mxu0 %v5924
      %5928 = vmatprep.subr.bf16.mxu0 0
      %5929 = vmatpush1.bf16.msra.mxu0 0
      %5930 = vmatprep.subr.bf16.mxu0 0
      %5931 = vmatpush1.bf16.msra.mxu0 0
      %5932 = vmatprep.subr.bf16.mxu0 0
      %5933 = vmatpush1.bf16.msra.mxu0 0
      %5934 = vmatprep.subr.bf16.mxu0 0
      %5935 = vmatpush1.bf16.msra.mxu0 0
      %5936 = vmatprep.subr.bf16.mxu0 0
      %5937 = vmatpush1.bf16.msra.mxu0 0
      %5938 = vmatprep.subr.bf16.mxu0 0
      %5939 = vmatpush1.bf16.msra.mxu0 0
      %5940 = vmatprep.subr.bf16.mxu0 0
      %5941 = vmatpush1.bf16.msra.mxu0 0
      %5942 = vmatprep.subr.bf16.mxu0 0
      %5943 = vmatpush1.bf16.msra.mxu0 0
      %5944 = vmatprep.subr.bf16.mxu0 0
      %5945 = vmatpush1.bf16.msra.mxu0 0
      %5946 = vmatprep.subr.bf16.mxu0 0
      %5947 = vmatpush1.bf16.msra.mxu0 0
      %5948 = vmatprep.subr.bf16.mxu0 0
      %5949 = vmatpush1.bf16.msra.mxu0 0
      %5950 = vmatprep.subr.bf16.mxu0 0
      %5951 = vmatpush1.bf16.msra.mxu0 0
      %5952 = vmatprep.subr.bf16.mxu0 0
      %5953 = vmatpush1.bf16.msra.mxu0 0
      %5954 = vmatprep.subr.bf16.mxu0 0
      %5955 = vmatpush1.bf16.msra.mxu0 0
      %5956 = vmatprep.subr.bf16.mxu0 0
      %5957 = vmatpush1.bf16.msra.mxu0 0
      %5958 = vmatprep.mubr.bf16.mxu0 0
      %5959 = vmatmul.mubr.bf16.gmra.mrb[0].mxu0 %v5426
      %v5960 = vpop.f32.mrb[0].mxu0
      %v5961 = vadd.f32 0.0, %v5960
      %v5962 = vpop.f32.mrb[0].mxu0
      %v5963 = vpop.f32.mrb[0].mxu0
      %v5964 = vadd.f32 0.0, %v5963
      %v5965 = vpop.f32.mrb[0].mxu0
      %5966 = vmatprep.mubr.bf16.mxu0 0
      %5967 = vmatmul.mubr.bf16.gmra.mrb[0].mxu0 %v5429
      %v5968 = vpop.f32.mrb[0].mxu0
      %v5969 = vadd.f32 0.0, %v5968
      %v5970 = vpop.f32.mrb[0].mxu0
      %v5971 = vpop.f32.mrb[0].mxu0
      %v5972 = vadd.f32 0.0, %v5971
      %v5973 = vpop.f32.mrb[0].mxu0
      %5974 = vmatprep.mubr.bf16.mxu0 0
      %5975 = vmatmul.mubr.bf16.gmra.mrb[0].mxu0 %v5432
      %v5976 = vpop.f32.mrb[0].mxu0
      %v5977 = vadd.f32 0.0, %v5976
      %v5978 = vpop.f32.mrb[0].mxu0
      %v5979 = vpop.f32.mrb[0].mxu0
      %v5980 = vadd.f32 0.0, %v5979
      %v5981 = vpop.f32.mrb[0].mxu0
      %5982 = vmatprep.mubr.bf16.mxu0 0
      %5983 = vmatmul.mubr.bf16.gmra.mrb[0].mxu0 %v5435
      %v5984 = vpop.f32.mrb[0].mxu0
      %v5985 = vadd.f32 0.0, %v5984
      %v5986 = vpop.f32.mrb[0].mxu0
      %v5987 = vpop.f32.mrb[0].mxu0
      %v5988 = vadd.f32 0.0, %v5987
      %v5989 = vpop.f32.mrb[0].mxu0
      %5990 = vmatprep.mubr.bf16.mxu0 0
      %5991 = vmatmul.mubr.bf16.gmra.mrb[0].mxu0 %v5438
      %v5992 = vpop.f32.mrb[0].mxu0
      %v5993 = vadd.f32 0.0, %v5992
      %v5994 = vpop.f32.mrb[0].mxu0
      %v5995 = vpop.f32.mrb[0].mxu0
      %v5996 = vadd.f32 0.0, %v5995
      %v5997 = vpop.f32.mrb[0].mxu0
      %5998 = vmatprep.mubr.bf16.mxu0 0
      %5999 = vmatmul.mubr.bf16.gmra.mrb[0].mxu0 %v5441
      %v6000 = vpop.f32.mrb[0].mxu0
      %v6001 = vadd.f32 0.0, %v6000
      %v6002 = vpop.f32.mrb[0].mxu0
      %v6003 = vpop.f32.mrb[0].mxu0
      %v6004 = vadd.f32 0.0, %v6003
      %v6005 = vpop.f32.mrb[0].mxu0
      %6006 = vmatprep.mubr.bf16.mxu0 0
      %6007 = vmatmul.mubr.bf16.gmra.mrb[0].mxu0 %v5444
      %v6008 = vpop.f32.mrb[0].mxu0
      %v6009 = vadd.f32 0.0, %v6008
      %v6010 = vpop.f32.mrb[0].mxu0
      %v6011 = vpop.f32.mrb[0].mxu0
      %v6012 = vadd.f32 0.0, %v6011
      %v6013 = vpop.f32.mrb[0].mxu0
      %6014 = vmatprep.mubr.bf16.mxu0 0
      %6015 = vmatmul.mubr.bf16.gmra.mrb[0].mxu0 %v5447
      %v6016 = vpop.f32.mrb[0].mxu0
      %v6017 = vadd.f32 0.0, %v6016
      %v6018 = vpop.f32.mrb[0].mxu0
      %v6019 = vpop.f32.mrb[0].mxu0
      %v6020 = vadd.f32 0.0, %v6019
      %v6021 = vpop.f32.mrb[0].mxu0
      %6022 = vmatprep.mubr.bf16.mxu0 0
      %6023 = vmatmul.mubr.bf16.gmra.mrb[0].mxu0 %v5450
      %v6024 = vpop.f32.mrb[0].mxu0
      %v6025 = vadd.f32 0.0, %v6024
      %v6026 = vpop.f32.mrb[0].mxu0
      %v6027 = vpop.f32.mrb[0].mxu0
      %v6028 = vadd.f32 0.0, %v6027
      %v6029 = vpop.f32.mrb[0].mxu0
      %6030 = vmatprep.mubr.bf16.mxu0 0
      %6031 = vmatmul.mubr.bf16.gmra.mrb[0].mxu0 %v5453
      %v6032 = vpop.f32.mrb[0].mxu0
      %v6033 = vadd.f32 0.0, %v6032
      %v6034 = vpop.f32.mrb[0].mxu0
      %v6035 = vpop.f32.mrb[0].mxu0
      %v6036 = vadd.f32 0.0, %v6035
      %v6037 = vpop.f32.mrb[0].mxu0
      %6038 = vmatprep.mubr.bf16.mxu0 0
      %6039 = vmatmul.mubr.bf16.gmra.mrb[0].mxu0 %v5456
      %v6040 = vpop.f32.mrb[0].mxu0
      %v6041 = vadd.f32 0.0, %v6040
      %v6042 = vpop.f32.mrb[0].mxu0
      %v6043 = vpop.f32.mrb[0].mxu0
      %v6044 = vadd.f32 0.0, %v6043
      %v6045 = vpop.f32.mrb[0].mxu0
      %6046 = vmatprep.mubr.bf16.mxu0 0
      %6047 = vmatmul.mubr.bf16.gmra.mrb[0].mxu0 %v5459
      %v6048 = vpop.f32.mrb[0].mxu0
      %v6049 = vadd.f32 0.0, %v6048
      %v6050 = vpop.f32.mrb[0].mxu0
      %v6051 = vpop.f32.mrb[0].mxu0
      %v6052 = vadd.f32 0.0, %v6051
      %v6053 = vpop.f32.mrb[0].mxu0
      %6054 = vmatprep.mubr.bf16.mxu0 0
      %6055 = vmatmul.mubr.bf16.gmra.mrb[0].mxu0 %v5462
      %v6056 = vpop.f32.mrb[0].mxu0
      %v6057 = vadd.f32 0.0, %v6056
      %v6058 = vpop.f32.mrb[0].mxu0
      %v6059 = vpop.f32.mrb[0].mxu0
      %v6060 = vadd.f32 0.0, %v6059
      %v6061 = vpop.f32.mrb[0].mxu0
      %6062 = vmatprep.mubr.bf16.mxu0 0
      %6063 = vmatmul.mubr.bf16.gmra.mrb[0].mxu0 %v5465
      %v6064 = vpop.f32.mrb[0].mxu0
      %v6065 = vadd.f32 0.0, %v6064
      %v6066 = vpop.f32.mrb[0].mxu0
      %v6067 = vpop.f32.mrb[0].mxu0
      %v6068 = vadd.f32 0.0, %v6067
      %v6069 = vpop.f32.mrb[0].mxu0
      %6070 = vmatprep.mubr.bf16.mxu0 0
      %6071 = vmatmul.mubr.bf16.gmra.mrb[0].mxu0 %v5693
      %v6072 = vpop.f32.mrb[0].mxu0
      %v6073 = vadd.f32 0.0, %v6072
      %v6074 = vpop.f32.mrb[0].mxu0
      %v6075 = vpop.f32.mrb[0].mxu0
      %v6076 = vadd.f32 0.0, %v6075
      %v6077 = vpop.f32.mrb[0].mxu0
      %6078 = vmatprep.mubr.bf16.mxu0 0
      %6079 = vmatmul.mubr.bf16.gmra.mrb[0].mxu0 %v5921
      %v6080 = vpop.f32.mrb[0].mxu0
      %v6081 = vadd.f32 0.0, %v6080
      %v6082 = vpop.f32.mrb[0].mxu0
      %v6083 = vpop.f32.mrb[0].mxu0
      %v6084 = vadd.f32 0.0, %v6083
      %v6085 = vpop.f32.mrb[0].mxu0
      %6086 = vdwg.mxu0
      %v6087 = vadd.f32 %v5859, %v5961
      %v6088 = vadd.f32 %v5860, %v5964
      %v6089 = vadd.f32 %v5861, %v5969
      %v6090 = vadd.f32 %v5862, %v5972
      %v6091 = vadd.f32 %v5863, %v5977
      %v6092 = vadd.f32 %v5864, %v5980
      %v6093 = vadd.f32 %v5865, %v5985
      %v6094 = vadd.f32 %v5866, %v5988
      %v6095 = vadd.f32 %v5867, %v5993
      %v6096 = vadd.f32 %v5868, %v5996
      %v6097 = vadd.f32 %v5869, %v6001
      %v6098 = vadd.f32 %v5870, %v6004
      %v6099 = vadd.f32 %v5871, %v6009
      %v6100 = vadd.f32 %v5872, %v6012
      %v6101 = vadd.f32 %v5873, %v6017
      %v6102 = vadd.f32 %v5874, %v6020
      %v6103 = vadd.f32 %v5875, %v6025
      %v6104 = vadd.f32 %v5876, %v6028
      %v6105 = vadd.f32 %v5877, %v6033
      %v6106 = vadd.f32 %v5878, %v6036
      %v6107 = vadd.f32 %v5879, %v6041
      %v6108 = vadd.f32 %v5880, %v6044
      %v6109 = vadd.f32 %v5881, %v6049
      %v6110 = vadd.f32 %v5882, %v6052
      %v6111 = vadd.f32 %v5883, %v6057
      %v6112 = vadd.f32 %v5884, %v6060
      %v6113 = vadd.f32 %v5885, %v6065
      %v6114 = vadd.f32 %v5886, %v6068
      %v6115 = vadd.f32 %v5887, %v6073
      %v6116 = vadd.f32 %v5888, %v6076
      %v6117 = vadd.f32 %v5889, %v6081
      %v6118 = vadd.f32 %v5890, %v6084
      %v6119 = vld [vmem:[#allocation3] sm:$0xe]
      %v6120 = vld [vmem:[#allocation3 + $0xc] sm:$0xe]
      %v6121 = vld [vmem:[#allocation3 + $0x18] sm:$0xe]
      %v6122 = vld [vmem:[#allocation3 + $0x24] sm:$0xe]
      %v6123 = vld [vmem:[#allocation3 + $0x30] sm:$0xe]
      %v6124 = vld [vmem:[#allocation3 + $0x3c] sm:$0xe]
      %v6125 = vld [vmem:[#allocation3 + $0x48] sm:$0xe]
      %v6126 = vld [vmem:[#allocation3 + $0x54] sm:$0xe]
      %v6127 = vld [vmem:[#allocation3 + $0x60] sm:$0xe]
      %v6128 = vld [vmem:[#allocation3 + $0x6c] sm:$0xe]
      %v6129 = vld [vmem:[#allocation3 + $0x78] sm:$0xe]
      %v6130 = vld [vmem:[#allocation3 + $0x84] sm:$0xe]
      %v6131 = vld [vmem:[#allocation3 + $0x90] sm:$0xe]
      %v6132 = vld [vmem:[#allocation3 + $0x9c] sm:$0xe]
      %v6133 = vld [vmem:[#allocation3 + $0xa8] sm:$0xe]
      %v6134 = vld [vmem:[#allocation3 + $0xb4] sm:$0xe]
      %v6135 = vld [vmem:[#allocation3 + $0xc0] sm:$0xe]
      %v6136 = vld [vmem:[#allocation3 + $0xcc] sm:$0xe]
      %v6185 = vrot.slane %v6119, 5
      %v6186 = vrot.slane %v6185, 4
      %v6187 = vrot.slane %v4932, 5
      %v6188 = vsel %vm2781, %v6186, %v6187
      %v6189 = vrot.slane %v6187, 4
      %v6190 = vrot.slane %v4933, 5
      %v6191 = vsel %vm2781, %v6189, %v6190
      %v6192 = vrot.slane %v6120, 5
      %v6193 = vrot.slane %v6192, 4
      %v6194 = vrot.slane %v4935, 5
      %v6195 = vsel %vm2781, %v6193, %v6194
      %v6196 = vrot.slane %v6194, 4
      %v6197 = vrot.slane %v4936, 5
      %v6198 = vsel %vm2781, %v6196, %v6197
      %v6199 = vrot.slane %v6121, 5
      %v6200 = vrot.slane %v6199, 4
      %v6201 = vrot.slane %v4938, 5
      %v6202 = vsel %vm2781, %v6200, %v6201
      %v6203 = vrot.slane %v6201, 4
      %v6204 = vrot.slane %v4939, 5
      %v6205 = vsel %vm2781, %v6203, %v6204
      %v6206 = vrot.slane %v6122, 5
      %v6207 = vrot.slane %v6206, 4
      %v6208 = vrot.slane %v4941, 5
      %v6209 = vsel %vm2781, %v6207, %v6208
      %v6210 = vrot.slane %v6208, 4
      %v6211 = vrot.slane %v4942, 5
      %v6212 = vsel %vm2781, %v6210, %v6211
      %v6213 = vrot.slane %v6123, 5
      %v6214 = vrot.slane %v6213, 4
      %v6215 = vrot.slane %v4944, 5
      %v6216 = vsel %vm2781, %v6214, %v6215
      %v6217 = vrot.slane %v6215, 4
      %v6218 = vrot.slane %v4945, 5
      %v6219 = vsel %vm2781, %v6217, %v6218
      %v6220 = vrot.slane %v6124, 5
      %v6221 = vrot.slane %v6220, 4
      %v6222 = vrot.slane %v4947, 5
      %v6223 = vsel %vm2781, %v6221, %v6222
      %v6224 = vrot.slane %v6222, 4
      %v6225 = vrot.slane %v4948, 5
      %v6226 = vsel %vm2781, %v6224, %v6225
      %v6227 = vrot.slane %v6125, 5
      %v6228 = vrot.slane %v6227, 4
      %v6229 = vrot.slane %v4950, 5
      %v6230 = vsel %vm2781, %v6228, %v6229
      %v6231 = vrot.slane %v6229, 4
      %v6232 = vrot.slane %v4951, 5
      %v6233 = vsel %vm2781, %v6231, %v6232
      %v6234 = vrot.slane %v6126, 5
      %v6235 = vrot.slane %v6234, 4
      %v6236 = vrot.slane %v4953, 5
      %v6237 = vsel %vm2781, %v6235, %v6236
      %v6238 = vrot.slane %v6236, 4
      %v6239 = vrot.slane %v4954, 5
      %v6240 = vsel %vm2781, %v6238, %v6239
      %v6241 = vrot.slane %v6127, 5
      %v6242 = vrot.slane %v6241, 4
      %v6243 = vrot.slane %v4956, 5
      %v6244 = vsel %vm2781, %v6242, %v6243
      %v6245 = vrot.slane %v6243, 4
      %v6246 = vrot.slane %v4957, 5
      %v6247 = vsel %vm2781, %v6245, %v6246
      %v6248 = vrot.slane %v6128, 5
      %v6249 = vrot.slane %v6248, 4
      %v6250 = vrot.slane %v4959, 5
      %v6251 = vsel %vm2781, %v6249, %v6250
      %v6252 = vrot.slane %v6250, 4
      %v6253 = vrot.slane %v4960, 5
      %v6254 = vsel %vm2781, %v6252, %v6253
      %v6255 = vrot.slane %v6129, 5
      %v6256 = vrot.slane %v6255, 4
      %v6257 = vrot.slane %v4962, 5
      %v6258 = vsel %vm2781, %v6256, %v6257
      %v6259 = vrot.slane %v6257, 4
      %v6260 = vrot.slane %v4963, 5
      %v6261 = vsel %vm2781, %v6259, %v6260
      %v6262 = vrot.slane %v6130, 5
      %v6263 = vrot.slane %v6262, 4
      %v6264 = vrot.slane %v4965, 5
      %v6265 = vsel %vm2781, %v6263, %v6264
      %v6266 = vrot.slane %v6264, 4
      %v6267 = vrot.slane %v4966, 5
      %v6268 = vsel %vm2781, %v6266, %v6267
      %v6269 = vrot.slane %v6131, 5
      %v6270 = vrot.slane %v6269, 4
      %v6271 = vrot.slane %v4968, 5
      %v6272 = vsel %vm2781, %v6270, %v6271
      %v6273 = vrot.slane %v6271, 4
      %v6274 = vrot.slane %v4969, 5
      %v6275 = vsel %vm2781, %v6273, %v6274
      %v6276 = vrot.slane %v6132, 5
      %v6277 = vrot.slane %v6276, 4
      %v6278 = vrot.slane %v4971, 5
      %v6279 = vsel %vm2781, %v6277, %v6278
      %v6280 = vrot.slane %v6278, 4
      %v6281 = vrot.slane %v4972, 5
      %v6282 = vsel %vm2781, %v6280, %v6281
      %v6283 = vrot.slane %v6133, 5
      %v6284 = vrot.slane %v6283, 4
      %v6285 = vrot.slane %v4974, 5
      %v6286 = vsel %vm2781, %v6284, %v6285
      %v6287 = vrot.slane %v6285, 4
      %v6288 = vrot.slane %v4975, 5
      %v6289 = vsel %vm2781, %v6287, %v6288
      %v6290 = vrot.slane %v6134, 5
      %v6291 = vrot.slane %v6290, 4
      %v6292 = vrot.slane %v4977, 5
      %v6293 = vsel %vm2781, %v6291, %v6292
      %v6294 = vrot.slane %v6292, 4
      %v6295 = vrot.slane %v4978, 5
      %v6296 = vsel %vm2781, %v6294, %v6295
      %s6297 = scalar_lea.vmem %s3, 8
      %v6298 = vld [vmem:[%s6297] sm:$0xf]
      %v6299 = vunpack.c.l.b16 %v6188
      %v6300 = vunpack.c.l.b16 %v6191
      %v6301 = vunpack.c.l.b16 %v6195
      %v6302 = vunpack.c.l.b16 %v6198
      %v6303 = vunpack.c.l.b16 %v6202
      %v6304 = vunpack.c.l.b16 %v6205
      %v6305 = vunpack.c.l.b16 %v6209
      %v6306 = vunpack.c.l.b16 %v6212
      %v6307 = vunpack.c.l.b16 %v6216
      %v6308 = vunpack.c.l.b16 %v6219
      %v6309 = vunpack.c.l.b16 %v6223
      %v6310 = vunpack.c.l.b16 %v6226
      %v6311 = vunpack.c.l.b16 %v6230
      %v6312 = vunpack.c.l.b16 %v6233
      %v6313 = vunpack.c.l.b16 %v6237
      %v6314 = vunpack.c.l.b16 %v6240
      %v6315 = vunpack.c.l.b16 %v6244
      %v6316 = vunpack.c.l.b16 %v6247
      %v6317 = vunpack.c.l.b16 %v6251
      %v6318 = vunpack.c.l.b16 %v6254
      %v6319 = vunpack.c.l.b16 %v6258
      %v6320 = vunpack.c.l.b16 %v6261
      %v6321 = vunpack.c.l.b16 %v6265
      %v6322 = vunpack.c.l.b16 %v6268
      %v6323 = vunpack.c.l.b16 %v6272
      %v6324 = vunpack.c.l.b16 %v6275
      %v6325 = vunpack.c.l.b16 %v6279
      %v6326 = vunpack.c.l.b16 %v6282
      %v6327 = vunpack.c.l.b16 %v6286
      %v6328 = vunpack.c.l.b16 %v6289
      %v6329 = vunpack.c.l.b16 %v6293
      %v6330 = vunpack.c.l.b16 %v6296
      %v6331 = vpack.c.b16 %v6300, %v6299
      %v6332 = vpack.c.b16 %v6302, %v6301
      %v6333 = vpack.c.b16 %v6304, %v6303
      %v6334 = vpack.c.b16 %v6306, %v6305
      %v6335 = vpack.c.b16 %v6308, %v6307
      %v6336 = vpack.c.b16 %v6310, %v6309
      %v6337 = vpack.c.b16 %v6312, %v6311
      %v6338 = vpack.c.b16 %v6314, %v6313
      %v6339 = vpack.c.b16 %v6316, %v6315
      %v6340 = vpack.c.b16 %v6318, %v6317
      %v6341 = vpack.c.b16 %v6320, %v6319
      %v6342 = vpack.c.b16 %v6322, %v6321
      %v6343 = vpack.c.b16 %v6324, %v6323
      %v6344 = vpack.c.b16 %v6326, %v6325
      %v6345 = vpack.c.b16 %v6328, %v6327
      %v6346 = vpack.c.b16 %v6330, %v6329
      %v6348 = vsel %vm4339, %v6331, 0
      %v6351 = vsel %vm4339, %v6332, 0
      %v6354 = vsel %vm4339, %v6333, 0
      %v6357 = vsel %vm4339, %v6334, 0
      %v6360 = vsel %vm4339, %v6335, 0
      %v6363 = vsel %vm4339, %v6336, 0
      %v6366 = vsel %vm4339, %v6337, 0
      %v6369 = vsel %vm4339, %v6338, 0
      %v6372 = vsel %vm4339, %v6339, 0
      %v6375 = vsel %vm4339, %v6340, 0
      %v6378 = vsel %vm4339, %v6341, 0
      %v6381 = vsel %vm4339, %v6342, 0
      %v6384 = vsel %vm4339, %v6343, 0
      %v6387 = vsel %vm4339, %v6344, 0
      %v6390 = vsel %vm4339, %v6345, 0
      %v6393 = vsel %vm4339, %v6346, 0
      %v6396 = vsel %vm4388, %v6298, 0
      %6398 = vmatprep.subr.bf16.mxu0 0
      %6399 = vmatpush1.bf16.msra.mxu0 %v6396
      %6400 = vmatprep.subr.bf16.mxu0 0
      %6401 = vmatpush1.bf16.msra.mxu0 0
      %6402 = vmatprep.subr.bf16.mxu0 0
      %6403 = vmatpush1.bf16.msra.mxu0 0
      %6404 = vmatprep.subr.bf16.mxu0 0
      %6405 = vmatpush1.bf16.msra.mxu0 0
      %6406 = vmatprep.subr.bf16.mxu0 0
      %6407 = vmatpush1.bf16.msra.mxu0 0
      %6408 = vmatprep.subr.bf16.mxu0 0
      %6409 = vmatpush1.bf16.msra.mxu0 0
      %6410 = vmatprep.subr.bf16.mxu0 0
      %6411 = vmatpush1.bf16.msra.mxu0 0
      %6412 = vmatprep.subr.bf16.mxu0 0
      %6413 = vmatpush1.bf16.msra.mxu0 0
      %6414 = vmatprep.subr.bf16.mxu0 0
      %6415 = vmatpush1.bf16.msra.mxu0 0
      %6416 = vmatprep.subr.bf16.mxu0 0
      %6417 = vmatpush1.bf16.msra.mxu0 0
      %6418 = vmatprep.subr.bf16.mxu0 0
      %6419 = vmatpush1.bf16.msra.mxu0 0
      %6420 = vmatprep.subr.bf16.mxu0 0
      %6421 = vmatpush1.bf16.msra.mxu0 0
      %6422 = vmatprep.subr.bf16.mxu0 0
      %6423 = vmatpush1.bf16.msra.mxu0 0
      %6424 = vmatprep.subr.bf16.mxu0 0
      %6425 = vmatpush1.bf16.msra.mxu0 0
      %6426 = vmatprep.subr.bf16.mxu0 0
      %6427 = vmatpush1.bf16.msra.mxu0 0
      %6428 = vmatprep.subr.bf16.mxu0 0
      %6429 = vmatpush1.bf16.msra.mxu0 0
      %6430 = vmatprep.mubr.bf16.mxu0 0
      %6431 = vmatmul.mubr.bf16.gmra.mrb[0].mxu0 %v6348
      %v6432 = vpop.f32.mrb[0].mxu0
      %v6433 = vadd.f32 0.0, %v6432
      %v6434 = vpop.f32.mrb[0].mxu0
      %v6435 = vpop.f32.mrb[0].mxu0
      %v6436 = vadd.f32 0.0, %v6435
      %v6437 = vpop.f32.mrb[0].mxu0
      %6438 = vmatprep.mubr.bf16.mxu0 0
      %6439 = vmatmul.mubr.bf16.gmra.mrb[0].mxu0 %v6351
      %v6440 = vpop.f32.mrb[0].mxu0
      %v6441 = vadd.f32 0.0, %v6440
      %v6442 = vpop.f32.mrb[0].mxu0
      %v6443 = vpop.f32.mrb[0].mxu0
      %v6444 = vadd.f32 0.0, %v6443
      %v6445 = vpop.f32.mrb[0].mxu0
      %6446 = vmatprep.mubr.bf16.mxu0 0
      %6447 = vmatmul.mubr.bf16.gmra.mrb[0].mxu0 %v6354
      %v6448 = vpop.f32.mrb[0].mxu0
      %v6449 = vadd.f32 0.0, %v6448
      %v6450 = vpop.f32.mrb[0].mxu0
      %v6451 = vpop.f32.mrb[0].mxu0
      %v6452 = vadd.f32 0.0, %v6451
      %v6453 = vpop.f32.mrb[0].mxu0
      %6454 = vmatprep.mubr.bf16.mxu0 0
      %6455 = vmatmul.mubr.bf16.gmra.mrb[0].mxu0 %v6357
      %v6456 = vpop.f32.mrb[0].mxu0
      %v6457 = vadd.f32 0.0, %v6456
      %v6458 = vpop.f32.mrb[0].mxu0
      %v6459 = vpop.f32.mrb[0].mxu0
      %v6460 = vadd.f32 0.0, %v6459
      %v6461 = vpop.f32.mrb[0].mxu0
      %6462 = vmatprep.mubr.bf16.mxu0 0
      %6463 = vmatmul.mubr.bf16.gmra.mrb[0].mxu0 %v6360
      %v6464 = vpop.f32.mrb[0].mxu0
      %v6465 = vadd.f32 0.0, %v6464
      %v6466 = vpop.f32.mrb[0].mxu0
      %v6467 = vpop.f32.mrb[0].mxu0
      %v6468 = vadd.f32 0.0, %v6467
      %v6469 = vpop.f32.mrb[0].mxu0
      %6470 = vmatprep.mubr.bf16.mxu0 0
      %6471 = vmatmul.mubr.bf16.gmra.mrb[0].mxu0 %v6363
      %v6472 = vpop.f32.mrb[0].mxu0
      %v6473 = vadd.f32 0.0, %v6472
      %v6474 = vpop.f32.mrb[0].mxu0
      %v6475 = vpop.f32.mrb[0].mxu0
      %v6476 = vadd.f32 0.0, %v6475
      %v6477 = vpop.f32.mrb[0].mxu0
      %6478 = vmatprep.mubr.bf16.mxu0 0
      %6479 = vmatmul.mubr.bf16.gmra.mrb[0].mxu0 %v6366
      %v6480 = vpop.f32.mrb[0].mxu0
      %v6481 = vadd.f32 0.0, %v6480
      %v6482 = vpop.f32.mrb[0].mxu0
      %v6483 = vpop.f32.mrb[0].mxu0
      %v6484 = vadd.f32 0.0, %v6483
      %v6485 = vpop.f32.mrb[0].mxu0
      %6486 = vmatprep.mubr.bf16.mxu0 0
      %6487 = vmatmul.mubr.bf16.gmra.mrb[0].mxu0 %v6369
      %v6488 = vpop.f32.mrb[0].mxu0
      %v6489 = vadd.f32 0.0, %v6488
      %v6490 = vpop.f32.mrb[0].mxu0
      %v6491 = vpop.f32.mrb[0].mxu0
      %v6492 = vadd.f32 0.0, %v6491
      %v6493 = vpop.f32.mrb[0].mxu0
      %6494 = vmatprep.mubr.bf16.mxu0 0
      %6495 = vmatmul.mubr.bf16.gmra.mrb[0].mxu0 %v6372
      %v6496 = vpop.f32.mrb[0].mxu0
      %v6497 = vadd.f32 0.0, %v6496
      %v6498 = vpop.f32.mrb[0].mxu0
      %v6499 = vpop.f32.mrb[0].mxu0
      %v6500 = vadd.f32 0.0, %v6499
      %v6501 = vpop.f32.mrb[0].mxu0
      %6502 = vmatprep.mubr.bf16.mxu0 0
      %6503 = vmatmul.mubr.bf16.gmra.mrb[0].mxu0 %v6375
      %v6504 = vpop.f32.mrb[0].mxu0
      %v6505 = vadd.f32 0.0, %v6504
      %v6506 = vpop.f32.mrb[0].mxu0
      %v6507 = vpop.f32.mrb[0].mxu0
      %v6508 = vadd.f32 0.0, %v6507
      %v6509 = vpop.f32.mrb[0].mxu0
      %6510 = vmatprep.mubr.bf16.mxu0 0
      %6511 = vmatmul.mubr.bf16.gmra.mrb[0].mxu0 %v6378
      %v6512 = vpop.f32.mrb[0].mxu0
      %v6513 = vadd.f32 0.0, %v6512
      %v6514 = vpop.f32.mrb[0].mxu0
      %v6515 = vpop.f32.mrb[0].mxu0
      %v6516 = vadd.f32 0.0, %v6515
      %v6517 = vpop.f32.mrb[0].mxu0
      %6518 = vmatprep.mubr.bf16.mxu0 0
      %6519 = vmatmul.mubr.bf16.gmra.mrb[0].mxu0 %v6381
      %v6520 = vpop.f32.mrb[0].mxu0
      %v6521 = vadd.f32 0.0, %v6520
      %v6522 = vpop.f32.mrb[0].mxu0
      %v6523 = vpop.f32.mrb[0].mxu0
      %v6524 = vadd.f32 0.0, %v6523
      %v6525 = vpop.f32.mrb[0].mxu0
      %6526 = vmatprep.mubr.bf16.mxu0 0
      %6527 = vmatmul.mubr.bf16.gmra.mrb[0].mxu0 %v6384
      %v6528 = vpop.f32.mrb[0].mxu0
      %v6529 = vadd.f32 0.0, %v6528
      %v6530 = vpop.f32.mrb[0].mxu0
      %v6531 = vpop.f32.mrb[0].mxu0
      %v6532 = vadd.f32 0.0, %v6531
      %v6533 = vpop.f32.mrb[0].mxu0
      %6534 = vmatprep.mubr.bf16.mxu0 0
      %6535 = vmatmul.mubr.bf16.gmra.mrb[0].mxu0 %v6387
      %v6536 = vpop.f32.mrb[0].mxu0
      %v6537 = vadd.f32 0.0, %v6536
      %v6538 = vpop.f32.mrb[0].mxu0
      %v6539 = vpop.f32.mrb[0].mxu0
      %v6540 = vadd.f32 0.0, %v6539
      %v6541 = vpop.f32.mrb[0].mxu0
      %6542 = vmatprep.mubr.bf16.mxu0 0
      %6543 = vmatmul.mubr.bf16.gmra.mrb[0].mxu0 %v6390
      %v6544 = vpop.f32.mrb[0].mxu0
      %v6545 = vadd.f32 0.0, %v6544
      %v6546 = vpop.f32.mrb[0].mxu0
      %v6547 = vpop.f32.mrb[0].mxu0
      %v6548 = vadd.f32 0.0, %v6547
      %v6549 = vpop.f32.mrb[0].mxu0
      %6550 = vmatprep.mubr.bf16.mxu0 0
      %6551 = vmatmul.mubr.bf16.gmra.mrb[0].mxu0 %v6393
      %v6552 = vpop.f32.mrb[0].mxu0
      %v6553 = vadd.f32 0.0, %v6552
      %v6554 = vpop.f32.mrb[0].mxu0
      %v6555 = vpop.f32.mrb[0].mxu0
      %v6556 = vadd.f32 0.0, %v6555
      %v6557 = vpop.f32.mrb[0].mxu0
      %6558 = vdwg.mxu0
      %v6559 = vadd.f32 %v6087, %v6433
      %v6560 = vadd.f32 %v6088, %v6436
      %v6561 = vadd.f32 %v6089, %v6441
      %v6562 = vadd.f32 %v6090, %v6444
      %v6563 = vadd.f32 %v6091, %v6449
      %v6564 = vadd.f32 %v6092, %v6452
      %v6565 = vadd.f32 %v6093, %v6457
      %v6566 = vadd.f32 %v6094, %v6460
      %v6567 = vadd.f32 %v6095, %v6465
      %v6568 = vadd.f32 %v6096, %v6468
      %v6569 = vadd.f32 %v6097, %v6473
      %v6570 = vadd.f32 %v6098, %v6476
      %v6571 = vadd.f32 %v6099, %v6481
      %v6572 = vadd.f32 %v6100, %v6484
      %v6573 = vadd.f32 %v6101, %v6489
      %v6574 = vadd.f32 %v6102, %v6492
      %v6575 = vadd.f32 %v6103, %v6497
      %v6576 = vadd.f32 %v6104, %v6500
      %v6577 = vadd.f32 %v6105, %v6505
      %v6578 = vadd.f32 %v6106, %v6508
      %v6579 = vadd.f32 %v6107, %v6513
      %v6580 = vadd.f32 %v6108, %v6516
      %v6581 = vadd.f32 %v6109, %v6521
      %v6582 = vadd.f32 %v6110, %v6524
      %v6583 = vadd.f32 %v6111, %v6529
      %v6584 = vadd.f32 %v6112, %v6532
      %v6585 = vadd.f32 %v6113, %v6537
      %v6586 = vadd.f32 %v6114, %v6540
      %v6587 = vadd.f32 %v6115, %v6545
      %v6588 = vadd.f32 %v6116, %v6548
      %v6589 = vadd.f32 %v6117, %v6553
      %v6590 = vadd.f32 %v6118, %v6556
      %v6594 = vrot.slane %v6135, 5
      %v6595 = vrot.slane %v6594, 4
      %v6596 = vrot.slane %v4980, 5
      %v6597 = vsel %vm2781, %v6595, %v6596
      %v6598 = vrot.slane %v6596, 4
      %v6599 = vrot.slane %v4981, 5
      %v6600 = vsel %vm2781, %v6598, %v6599
      %s6601 = scalar_lea.vmem %s3, 20
      %v6602 = vld [vmem:[%s6601] sm:$0xf]
      %v6603 = vunpack.c.l.b16 %v6597
      %v6604 = vunpack.c.l.b16 %v6600
      %v6605 = vpack.c.b16 %v6604, %v6603
      %v6607 = vsel %vm4339, %v6605, 0
      %v6610 = vsel %vm4388, %v6602, 0
      %6612 = vmatprep.subr.bf16.mxu0 0
      %6613 = vmatpush1.bf16.msra.mxu0 %v6610
      %6614 = vmatprep.subr.bf16.mxu0 0
      %6615 = vmatpush1.bf16.msra.mxu0 0
      %6616 = vmatprep.subr.bf16.mxu0 0
      %6617 = vmatpush1.bf16.msra.mxu0 0
      %6618 = vmatprep.subr.bf16.mxu0 0
      %6619 = vmatpush1.bf16.msra.mxu0 0
      %6620 = vmatprep.subr.bf16.mxu0 0
      %6621 = vmatpush1.bf16.msra.mxu0 0
      %6622 = vmatprep.subr.bf16.mxu0 0
      %6623 = vmatpush1.bf16.msra.mxu0 0
      %6624 = vmatprep.subr.bf16.mxu0 0
      %6625 = vmatpush1.bf16.msra.mxu0 0
      %6626 = vmatprep.subr.bf16.mxu0 0
      %6627 = vmatpush1.bf16.msra.mxu0 0
      %6628 = vmatprep.subr.bf16.mxu0 0
      %6629 = vmatpush1.bf16.msra.mxu0 0
      %6630 = vmatprep.subr.bf16.mxu0 0
      %6631 = vmatpush1.bf16.msra.mxu0 0
      %6632 = vmatprep.subr.bf16.mxu0 0
      %6633 = vmatpush1.bf16.msra.mxu0 0
      %6634 = vmatprep.subr.bf16.mxu0 0
      %6635 = vmatpush1.bf16.msra.mxu0 0
      %6636 = vmatprep.subr.bf16.mxu0 0
      %6637 = vmatpush1.bf16.msra.mxu0 0
      %6638 = vmatprep.subr.bf16.mxu0 0
      %6639 = vmatpush1.bf16.msra.mxu0 0
      %6640 = vmatprep.subr.bf16.mxu0 0
      %6641 = vmatpush1.bf16.msra.mxu0 0
      %6642 = vmatprep.subr.bf16.mxu0 0
      %6643 = vmatpush1.bf16.msra.mxu0 0
      %6644 = vmatprep.mubr.bf16.mxu0 0
      %6645 = vmatmul.mubr.bf16.gmra.mrb[0].mxu0 %v6351
      %v6646 = vpop.f32.mrb[0].mxu0
      %v6647 = vadd.f32 0.0, %v6646
      %v6648 = vpop.f32.mrb[0].mxu0
      %v6649 = vpop.f32.mrb[0].mxu0
      %v6650 = vadd.f32 0.0, %v6649
      %v6651 = vpop.f32.mrb[0].mxu0
      %6652 = vmatprep.mubr.bf16.mxu0 0
      %6653 = vmatmul.mubr.bf16.gmra.mrb[0].mxu0 %v6354
      %v6654 = vpop.f32.mrb[0].mxu0
      %v6655 = vadd.f32 0.0, %v6654
      %v6656 = vpop.f32.mrb[0].mxu0
      %v6657 = vpop.f32.mrb[0].mxu0
      %v6658 = vadd.f32 0.0, %v6657
      %v6659 = vpop.f32.mrb[0].mxu0
      %6660 = vmatprep.mubr.bf16.mxu0 0
      %6661 = vmatmul.mubr.bf16.gmra.mrb[0].mxu0 %v6357
      %v6662 = vpop.f32.mrb[0].mxu0
      %v6663 = vadd.f32 0.0, %v6662
      %v6664 = vpop.f32.mrb[0].mxu0
      %v6665 = vpop.f32.mrb[0].mxu0
      %v6666 = vadd.f32 0.0, %v6665
      %v6667 = vpop.f32.mrb[0].mxu0
      %6668 = vmatprep.mubr.bf16.mxu0 0
      %6669 = vmatmul.mubr.bf16.gmra.mrb[0].mxu0 %v6360
      %v6670 = vpop.f32.mrb[0].mxu0
      %v6671 = vadd.f32 0.0, %v6670
      %v6672 = vpop.f32.mrb[0].mxu0
      %v6673 = vpop.f32.mrb[0].mxu0
      %v6674 = vadd.f32 0.0, %v6673
      %v6675 = vpop.f32.mrb[0].mxu0
      %6676 = vmatprep.mubr.bf16.mxu0 0
      %6677 = vmatmul.mubr.bf16.gmra.mrb[0].mxu0 %v6363
      %v6678 = vpop.f32.mrb[0].mxu0
      %v6679 = vadd.f32 0.0, %v6678
      %v6680 = vpop.f32.mrb[0].mxu0
      %v6681 = vpop.f32.mrb[0].mxu0
      %v6682 = vadd.f32 0.0, %v6681
      %v6683 = vpop.f32.mrb[0].mxu0
      %6684 = vmatprep.mubr.bf16.mxu0 0
      %6685 = vmatmul.mubr.bf16.gmra.mrb[0].mxu0 %v6366
      %v6686 = vpop.f32.mrb[0].mxu0
      %v6687 = vadd.f32 0.0, %v6686
      %v6688 = vpop.f32.mrb[0].mxu0
      %v6689 = vpop.f32.mrb[0].mxu0
      %v6690 = vadd.f32 0.0, %v6689
      %v6691 = vpop.f32.mrb[0].mxu0
      %6692 = vmatprep.mubr.bf16.mxu0 0
      %6693 = vmatmul.mubr.bf16.gmra.mrb[0].mxu0 %v6369
      %v6694 = vpop.f32.mrb[0].mxu0
      %v6695 = vadd.f32 0.0, %v6694
      %v6696 = vpop.f32.mrb[0].mxu0
      %v6697 = vpop.f32.mrb[0].mxu0
      %v6698 = vadd.f32 0.0, %v6697
      %v6699 = vpop.f32.mrb[0].mxu0
      %6700 = vmatprep.mubr.bf16.mxu0 0
      %6701 = vmatmul.mubr.bf16.gmra.mrb[0].mxu0 %v6372
      %v6702 = vpop.f32.mrb[0].mxu0
      %v6703 = vadd.f32 0.0, %v6702
      %v6704 = vpop.f32.mrb[0].mxu0
      %v6705 = vpop.f32.mrb[0].mxu0
      %v6706 = vadd.f32 0.0, %v6705
      %v6707 = vpop.f32.mrb[0].mxu0
      %6708 = vmatprep.mubr.bf16.mxu0 0
      %6709 = vmatmul.mubr.bf16.gmra.mrb[0].mxu0 %v6375
      %v6710 = vpop.f32.mrb[0].mxu0
      %v6711 = vadd.f32 0.0, %v6710
      %v6712 = vpop.f32.mrb[0].mxu0
      %v6713 = vpop.f32.mrb[0].mxu0
      %v6714 = vadd.f32 0.0, %v6713
      %v6715 = vpop.f32.mrb[0].mxu0
      %6716 = vmatprep.mubr.bf16.mxu0 0
      %6717 = vmatmul.mubr.bf16.gmra.mrb[0].mxu0 %v6378
      %v6718 = vpop.f32.mrb[0].mxu0
      %v6719 = vadd.f32 0.0, %v6718
      %v6720 = vpop.f32.mrb[0].mxu0
      %v6721 = vpop.f32.mrb[0].mxu0
      %v6722 = vadd.f32 0.0, %v6721
      %v6723 = vpop.f32.mrb[0].mxu0
      %6724 = vmatprep.mubr.bf16.mxu0 0
      %6725 = vmatmul.mubr.bf16.gmra.mrb[0].mxu0 %v6381
      %v6726 = vpop.f32.mrb[0].mxu0
      %v6727 = vadd.f32 0.0, %v6726
      %v6728 = vpop.f32.mrb[0].mxu0
      %v6729 = vpop.f32.mrb[0].mxu0
      %v6730 = vadd.f32 0.0, %v6729
      %v6731 = vpop.f32.mrb[0].mxu0
      %6732 = vmatprep.mubr.bf16.mxu0 0
      %6733 = vmatmul.mubr.bf16.gmra.mrb[0].mxu0 %v6384
      %v6734 = vpop.f32.mrb[0].mxu0
      %v6735 = vadd.f32 0.0, %v6734
      %v6736 = vpop.f32.mrb[0].mxu0
      %v6737 = vpop.f32.mrb[0].mxu0
      %v6738 = vadd.f32 0.0, %v6737
      %v6739 = vpop.f32.mrb[0].mxu0
      %6740 = vmatprep.mubr.bf16.mxu0 0
      %6741 = vmatmul.mubr.bf16.gmra.mrb[0].mxu0 %v6387
      %v6742 = vpop.f32.mrb[0].mxu0
      %v6743 = vadd.f32 0.0, %v6742
      %v6744 = vpop.f32.mrb[0].mxu0
      %v6745 = vpop.f32.mrb[0].mxu0
      %v6746 = vadd.f32 0.0, %v6745
      %v6747 = vpop.f32.mrb[0].mxu0
      %6748 = vmatprep.mubr.bf16.mxu0 0
      %6749 = vmatmul.mubr.bf16.gmra.mrb[0].mxu0 %v6390
      %v6750 = vpop.f32.mrb[0].mxu0
      %v6751 = vadd.f32 0.0, %v6750
      %v6752 = vpop.f32.mrb[0].mxu0
      %v6753 = vpop.f32.mrb[0].mxu0
      %v6754 = vadd.f32 0.0, %v6753
      %v6755 = vpop.f32.mrb[0].mxu0
      %6756 = vmatprep.mubr.bf16.mxu0 0
      %6757 = vmatmul.mubr.bf16.gmra.mrb[0].mxu0 %v6393
      %v6758 = vpop.f32.mrb[0].mxu0
      %v6759 = vadd.f32 0.0, %v6758
      %v6760 = vpop.f32.mrb[0].mxu0
      %v6761 = vpop.f32.mrb[0].mxu0
      %v6762 = vadd.f32 0.0, %v6761
      %v6763 = vpop.f32.mrb[0].mxu0
      %6764 = vmatprep.mubr.bf16.mxu0 0
      %6765 = vmatmul.mubr.bf16.gmra.mrb[0].mxu0 %v6607
      %v6766 = vpop.f32.mrb[0].mxu0
      %v6767 = vadd.f32 0.0, %v6766
      %v6768 = vpop.f32.mrb[0].mxu0
      %v6769 = vpop.f32.mrb[0].mxu0
      %v6770 = vadd.f32 0.0, %v6769
      %v6771 = vpop.f32.mrb[0].mxu0
      %6772 = vdwg.mxu0
      %v6773 = vadd.f32 %v6559, %v6647
      %v6774 = vadd.f32 %v6560, %v6650
      %v6775 = vadd.f32 %v6561, %v6655
      %v6776 = vadd.f32 %v6562, %v6658
      %v6777 = vadd.f32 %v6563, %v6663
      %v6778 = vadd.f32 %v6564, %v6666
      %v6779 = vadd.f32 %v6565, %v6671
      %v6780 = vadd.f32 %v6566, %v6674
      %v6781 = vadd.f32 %v6567, %v6679
      %v6782 = vadd.f32 %v6568, %v6682
      %v6783 = vadd.f32 %v6569, %v6687
      %v6784 = vadd.f32 %v6570, %v6690
      %v6785 = vadd.f32 %v6571, %v6695
      %v6786 = vadd.f32 %v6572, %v6698
      %v6787 = vadd.f32 %v6573, %v6703
      %v6788 = vadd.f32 %v6574, %v6706
      %v6789 = vadd.f32 %v6575, %v6711
      %v6790 = vadd.f32 %v6576, %v6714
      %v6791 = vadd.f32 %v6577, %v6719
      %v6792 = vadd.f32 %v6578, %v6722
      %v6793 = vadd.f32 %v6579, %v6727
      %v6794 = vadd.f32 %v6580, %v6730
      %v6795 = vadd.f32 %v6581, %v6735
      %v6796 = vadd.f32 %v6582, %v6738
      %v6797 = vadd.f32 %v6583, %v6743
      %v6798 = vadd.f32 %v6584, %v6746
      %v6799 = vadd.f32 %v6585, %v6751
      %v6800 = vadd.f32 %v6586, %v6754
      %v6801 = vadd.f32 %v6587, %v6759
      %v6802 = vadd.f32 %v6588, %v6762
      %v6803 = vadd.f32 %v6589, %v6767
      %v6804 = vadd.f32 %v6590, %v6770
      %v6808 = vrot.slane %v6136, 5
      %v6809 = vrot.slane %v6808, 4
      %v6810 = vrot.slane %v4983, 5
      %v6811 = vsel %vm2781, %v6809, %v6810
      %v6812 = vrot.slane %v6810, 4
      %v6813 = vrot.slane %v4984, 5
      %v6814 = vsel %vm2781, %v6812, %v6813
      %s6815 = scalar_lea.vmem %s3, 32
      %v6816 = vld [vmem:[%s6815] sm:$0xf]
      %v6817 = vunpack.c.l.b16 %v6811
      %v6818 = vunpack.c.l.b16 %v6814
      %v6819 = vpack.c.b16 %v6818, %v6817
      %v6821 = vsel %vm4339, %v6819, 0
      %v6824 = vsel %vm4388, %v6816, 0
      %6826 = vmatprep.subr.bf16.mxu0 0
      %6827 = vmatpush1.bf16.msra.mxu0 %v6824
      %6828 = vmatprep.subr.bf16.mxu0 0
      %6829 = vmatpush1.bf16.msra.mxu0 0
      %6830 = vmatprep.subr.bf16.mxu0 0
      %6831 = vmatpush1.bf16.msra.mxu0 0
      %6832 = vmatprep.subr.bf16.mxu0 0
      %6833 = vmatpush1.bf16.msra.mxu0 0
      %6834 = vmatprep.subr.bf16.mxu0 0
      %6835 = vmatpush1.bf16.msra.mxu0 0
      %6836 = vmatprep.subr.bf16.mxu0 0
      %6837 = vmatpush1.bf16.msra.mxu0 0
      %6838 = vmatprep.subr.bf16.mxu0 0
      %6839 = vmatpush1.bf16.msra.mxu0 0
      %6840 = vmatprep.subr.bf16.mxu0 0
      %6841 = vmatpush1.bf16.msra.mxu0 0
      %6842 = vmatprep.subr.bf16.mxu0 0
      %6843 = vmatpush1.bf16.msra.mxu0 0
      %6844 = vmatprep.subr.bf16.mxu0 0
      %6845 = vmatpush1.bf16.msra.mxu0 0
      %6846 = vmatprep.subr.bf16.mxu0 0
      %6847 = vmatpush1.bf16.msra.mxu0 0
      %6848 = vmatprep.subr.bf16.mxu0 0
      %6849 = vmatpush1.bf16.msra.mxu0 0
      %6850 = vmatprep.subr.bf16.mxu0 0
      %6851 = vmatpush1.bf16.msra.mxu0 0
      %6852 = vmatprep.subr.bf16.mxu0 0
      %6853 = vmatpush1.bf16.msra.mxu0 0
      %6854 = vmatprep.subr.bf16.mxu0 0
      %6855 = vmatpush1.bf16.msra.mxu0 0
      %6856 = vmatprep.subr.bf16.mxu0 0
      %6857 = vmatpush1.bf16.msra.mxu0 0
      %6858 = vmatprep.mubr.bf16.mxu0 0
      %6859 = vmatmul.mubr.bf16.gmra.mrb[0].mxu0 %v6354
      %v6860 = vpop.f32.mrb[0].mxu0
      %v6861 = vadd.f32 0.0, %v6860
      %v6862 = vpop.f32.mrb[0].mxu0
      %v6863 = vpop.f32.mrb[0].mxu0
      %v6864 = vadd.f32 0.0, %v6863
      %v6865 = vpop.f32.mrb[0].mxu0
      %6866 = vmatprep.mubr.bf16.mxu0 0
      %6867 = vmatmul.mubr.bf16.gmra.mrb[0].mxu0 %v6357
      %v6868 = vpop.f32.mrb[0].mxu0
      %v6869 = vadd.f32 0.0, %v6868
      %v6870 = vpop.f32.mrb[0].mxu0
      %v6871 = vpop.f32.mrb[0].mxu0
      %v6872 = vadd.f32 0.0, %v6871
      %v6873 = vpop.f32.mrb[0].mxu0
      %6874 = vmatprep.mubr.bf16.mxu0 0
      %6875 = vmatmul.mubr.bf16.gmra.mrb[0].mxu0 %v6360
      %v6876 = vpop.f32.mrb[0].mxu0
      %v6877 = vadd.f32 0.0, %v6876
      %v6878 = vpop.f32.mrb[0].mxu0
      %v6879 = vpop.f32.mrb[0].mxu0
      %v6880 = vadd.f32 0.0, %v6879
      %v6881 = vpop.f32.mrb[0].mxu0
      %6882 = vmatprep.mubr.bf16.mxu0 0
      %6883 = vmatmul.mubr.bf16.gmra.mrb[0].mxu0 %v6363
      %v6884 = vpop.f32.mrb[0].mxu0
      %v6885 = vadd.f32 0.0, %v6884
      %v6886 = vpop.f32.mrb[0].mxu0
      %v6887 = vpop.f32.mrb[0].mxu0
      %v6888 = vadd.f32 0.0, %v6887
      %v6889 = vpop.f32.mrb[0].mxu0
      %6890 = vmatprep.mubr.bf16.mxu0 0
      %6891 = vmatmul.mubr.bf16.gmra.mrb[0].mxu0 %v6366
      %v6892 = vpop.f32.mrb[0].mxu0
      %v6893 = vadd.f32 0.0, %v6892
      %v6894 = vpop.f32.mrb[0].mxu0
      %v6895 = vpop.f32.mrb[0].mxu0
      %v6896 = vadd.f32 0.0, %v6895
      %v6897 = vpop.f32.mrb[0].mxu0
      %6898 = vmatprep.mubr.bf16.mxu0 0
      %6899 = vmatmul.mubr.bf16.gmra.mrb[0].mxu0 %v6369
      %v6900 = vpop.f32.mrb[0].mxu0
      %v6901 = vadd.f32 0.0, %v6900
      %v6902 = vpop.f32.mrb[0].mxu0
      %v6903 = vpop.f32.mrb[0].mxu0
      %v6904 = vadd.f32 0.0, %v6903
      %v6905 = vpop.f32.mrb[0].mxu0
      %6906 = vmatprep.mubr.bf16.mxu0 0
      %6907 = vmatmul.mubr.bf16.gmra.mrb[0].mxu0 %v6372
      %v6908 = vpop.f32.mrb[0].mxu0
      %v6909 = vadd.f32 0.0, %v6908
      %v6910 = vpop.f32.mrb[0].mxu0
      %v6911 = vpop.f32.mrb[0].mxu0
      %v6912 = vadd.f32 0.0, %v6911
      %v6913 = vpop.f32.mrb[0].mxu0
      %6914 = vmatprep.mubr.bf16.mxu0 0
      %6915 = vmatmul.mubr.bf16.gmra.mrb[0].mxu0 %v6375
      %v6916 = vpop.f32.mrb[0].mxu0
      %v6917 = vadd.f32 0.0, %v6916
      %v6918 = vpop.f32.mrb[0].mxu0
      %v6919 = vpop.f32.mrb[0].mxu0
      %v6920 = vadd.f32 0.0, %v6919
      %v6921 = vpop.f32.mrb[0].mxu0
      %6922 = vmatprep.mubr.bf16.mxu0 0
      %6923 = vmatmul.mubr.bf16.gmra.mrb[0].mxu0 %v6378
      %v6924 = vpop.f32.mrb[0].mxu0
      %v6925 = vadd.f32 0.0, %v6924
      %v6926 = vpop.f32.mrb[0].mxu0
      %v6927 = vpop.f32.mrb[0].mxu0
      %v6928 = vadd.f32 0.0, %v6927
      %v6929 = vpop.f32.mrb[0].mxu0
      %6930 = vmatprep.mubr.bf16.mxu0 0
      %6931 = vmatmul.mubr.bf16.gmra.mrb[0].mxu0 %v6381
      %v6932 = vpop.f32.mrb[0].mxu0
      %v6933 = vadd.f32 0.0, %v6932
      %v6934 = vpop.f32.mrb[0].mxu0
      %v6935 = vpop.f32.mrb[0].mxu0
      %v6936 = vadd.f32 0.0, %v6935
      %v6937 = vpop.f32.mrb[0].mxu0
      %6938 = vmatprep.mubr.bf16.mxu0 0
      %6939 = vmatmul.mubr.bf16.gmra.mrb[0].mxu0 %v6384
      %v6940 = vpop.f32.mrb[0].mxu0
      %v6941 = vadd.f32 0.0, %v6940
      %v6942 = vpop.f32.mrb[0].mxu0
      %v6943 = vpop.f32.mrb[0].mxu0
      %v6944 = vadd.f32 0.0, %v6943
      %v6945 = vpop.f32.mrb[0].mxu0
      %6946 = vmatprep.mubr.bf16.mxu0 0
      %6947 = vmatmul.mubr.bf16.gmra.mrb[0].mxu0 %v6387
      %v6948 = vpop.f32.mrb[0].mxu0
      %v6949 = vadd.f32 0.0, %v6948
      %v6950 = vpop.f32.mrb[0].mxu0
      %v6951 = vpop.f32.mrb[0].mxu0
      %v6952 = vadd.f32 0.0, %v6951
      %v6953 = vpop.f32.mrb[0].mxu0
      %6954 = vmatprep.mubr.bf16.mxu0 0
      %6955 = vmatmul.mubr.bf16.gmra.mrb[0].mxu0 %v6390
      %v6956 = vpop.f32.mrb[0].mxu0
      %v6957 = vadd.f32 0.0, %v6956
      %v6958 = vpop.f32.mrb[0].mxu0
      %v6959 = vpop.f32.mrb[0].mxu0
      %v6960 = vadd.f32 0.0, %v6959
      %v6961 = vpop.f32.mrb[0].mxu0
      %6962 = vmatprep.mubr.bf16.mxu0 0
      %6963 = vmatmul.mubr.bf16.gmra.mrb[0].mxu0 %v6393
      %v6964 = vpop.f32.mrb[0].mxu0
      %v6965 = vadd.f32 0.0, %v6964
      %v6966 = vpop.f32.mrb[0].mxu0
      %v6967 = vpop.f32.mrb[0].mxu0
      %v6968 = vadd.f32 0.0, %v6967
      %v6969 = vpop.f32.mrb[0].mxu0
      %6970 = vmatprep.mubr.bf16.mxu0 0
      %6971 = vmatmul.mubr.bf16.gmra.mrb[0].mxu0 %v6607
      %v6972 = vpop.f32.mrb[0].mxu0
      %v6973 = vadd.f32 0.0, %v6972
      %v6974 = vpop.f32.mrb[0].mxu0
      %v6975 = vpop.f32.mrb[0].mxu0
      %v6976 = vadd.f32 0.0, %v6975
      %v6977 = vpop.f32.mrb[0].mxu0
      %6978 = vmatprep.mubr.bf16.mxu0 0
      %6979 = vmatmul.mubr.bf16.gmra.mrb[0].mxu0 %v6821
      %v6980 = vpop.f32.mrb[0].mxu0
      %v6981 = vadd.f32 0.0, %v6980
      %v6982 = vpop.f32.mrb[0].mxu0
      %v6983 = vpop.f32.mrb[0].mxu0
      %v6984 = vadd.f32 0.0, %v6983
      %v6985 = vpop.f32.mrb[0].mxu0
      %6986 = vdwg.mxu0
      %v6987 = vadd.f32 %v6773, %v6861
      %v6988 = vadd.f32 %v6774, %v6864
      %v6989 = vadd.f32 %v6775, %v6869
      %v6990 = vadd.f32 %v6776, %v6872
      %v6991 = vadd.f32 %v6777, %v6877
      %v6992 = vadd.f32 %v6778, %v6880
      %v6993 = vadd.f32 %v6779, %v6885
      %v6994 = vadd.f32 %v6780, %v6888
      %v6995 = vadd.f32 %v6781, %v6893
      %v6996 = vadd.f32 %v6782, %v6896
      %v6997 = vadd.f32 %v6783, %v6901
      %v6998 = vadd.f32 %v6784, %v6904
      %v6999 = vadd.f32 %v6785, %v6909
      %v7000 = vadd.f32 %v6786, %v6912
      %v7001 = vadd.f32 %v6787, %v6917
      %v7002 = vadd.f32 %v6788, %v6920
      %v7003 = vadd.f32 %v6789, %v6925
      %v7004 = vadd.f32 %v6790, %v6928
      %v7005 = vadd.f32 %v6791, %v6933
      %v7006 = vadd.f32 %v6792, %v6936
      %v7007 = vadd.f32 %v6793, %v6941
      %v7008 = vadd.f32 %v6794, %v6944
      %v7009 = vadd.f32 %v6795, %v6949
      %v7010 = vadd.f32 %v6796, %v6952
      %v7011 = vadd.f32 %v6797, %v6957
      %v7012 = vadd.f32 %v6798, %v6960
      %v7013 = vadd.f32 %v6799, %v6965
      %v7014 = vadd.f32 %v6800, %v6968
      %v7015 = vadd.f32 %v6801, %v6973
      %v7016 = vadd.f32 %v6802, %v6976
      %v7017 = vadd.f32 %v6803, %v6981
      %v7018 = vadd.f32 %v6804, %v6984
      %v7019 = vld [vmem:[%s4] sm:$0x1]
      %v7021 = vlaneseq
      %v7022 = vshrl.u32 %v7021, 7
      %v7023 = vsub.s32 0, %v7022
      %v7024 = vrot.slane %v7019, %v7023
      %v7026 = vadd.f32 %v6987, %v7024
      %v7027 = vadd.f32 %v6988, %v7024
      %v7028 = vadd.f32 %v6989, %v7024
      %v7029 = vadd.f32 %v6990, %v7024
      %v7030 = vadd.f32 %v6991, %v7024
      %v7031 = vadd.f32 %v6992, %v7024
      %v7032 = vadd.f32 %v6993, %v7024
      %v7033 = vadd.f32 %v6994, %v7024
      %v7034 = vadd.f32 %v6995, %v7024
      %v7035 = vadd.f32 %v6996, %v7024
      %v7036 = vadd.f32 %v6997, %v7024
      %v7037 = vadd.f32 %v6998, %v7024
      %v7038 = vadd.f32 %v6999, %v7024
      %v7039 = vadd.f32 %v7000, %v7024
      %v7040 = vadd.f32 %v7001, %v7024
      %v7041 = vadd.f32 %v7002, %v7024
      %v7042 = vadd.f32 %v7003, %v7024
      %v7043 = vadd.f32 %v7004, %v7024
      %v7044 = vadd.f32 %v7005, %v7024
      %v7045 = vadd.f32 %v7006, %v7024
      %v7046 = vadd.f32 %v7007, %v7024
      %v7047 = vadd.f32 %v7008, %v7024
      %v7048 = vadd.f32 %v7009, %v7024
      %v7049 = vadd.f32 %v7010, %v7024
      %v7050 = vadd.f32 %v7011, %v7024
      %v7051 = vadd.f32 %v7012, %v7024
      %v7052 = vadd.f32 %v7013, %v7024
      %v7053 = vadd.f32 %v7014, %v7024
      %v7054 = vadd.f32 %v7015, %v7024
      %v7055 = vadd.f32 %v7016, %v7024
      %v7056 = vadd.f32 %v7017, %v7024
      %v7057 = vadd.f32 %v7018, %v7024
      %v7058 = vmax.f32 %v7026, 0.0
      %v7059 = vmax.f32 %v7027, 0.0
      %v7060 = vmax.f32 %v7028, 0.0
      %v7061 = vmax.f32 %v7029, 0.0
      %v7062 = vmax.f32 %v7030, 0.0
      %v7063 = vmax.f32 %v7031, 0.0
      %v7064 = vmax.f32 %v7032, 0.0
      %v7065 = vmax.f32 %v7033, 0.0
      %v7066 = vmax.f32 %v7034, 0.0
      %v7067 = vmax.f32 %v7035, 0.0
      %v7068 = vmax.f32 %v7036, 0.0
      %v7069 = vmax.f32 %v7037, 0.0
      %v7070 = vmax.f32 %v7038, 0.0
      %v7071 = vmax.f32 %v7039, 0.0
      %v7072 = vmax.f32 %v7040, 0.0
      %v7073 = vmax.f32 %v7041, 0.0
      %v7074 = vmax.f32 %v7042, 0.0
      %v7075 = vmax.f32 %v7043, 0.0
      %v7076 = vmax.f32 %v7044, 0.0
      %v7077 = vmax.f32 %v7045, 0.0
      %v7078 = vmax.f32 %v7046, 0.0
      %v7079 = vmax.f32 %v7047, 0.0
      %v7080 = vmax.f32 %v7048, 0.0
      %v7081 = vmax.f32 %v7049, 0.0
      %v7082 = vmax.f32 %v7050, 0.0
      %v7083 = vmax.f32 %v7051, 0.0
      %v7084 = vmax.f32 %v7052, 0.0
      %v7085 = vmax.f32 %v7053, 0.0
      %v7086 = vmax.f32 %v7054, 0.0
      %v7087 = vmax.f32 %v7055, 0.0
      %v7088 = vmax.f32 %v7056, 0.0
      %v7089 = vmax.f32 %v7057, 0.0
      %7090 = vst.msk [vmem:[%s224] sm:$0xff] %vm4339, %v7058
      %7091 = vst.msk [vmem:[%s224 + $0x8] sm:$0xff] %vm4339, %v7059
      %7092 = vst.msk [vmem:[%s224 + $0x10] sm:$0xff] %vm4339, %v7060
      %7093 = vst.msk [vmem:[%s224 + $0x18] sm:$0xff] %vm4339, %v7061
      %7094 = vst.msk [vmem:[%s224 + $0x20] sm:$0xff] %vm4339, %v7062
      %7095 = vst.msk [vmem:[%s224 + $0x28] sm:$0xff] %vm4339, %v7063
      %7096 = vst.msk [vmem:[%s224 + $0x30] sm:$0xff] %vm4339, %v7064
      %7097 = vst.msk [vmem:[%s224 + $0x38] sm:$0xff] %vm4339, %v7065
      %7098 = vst.msk [vmem:[%s224 + $0x40] sm:$0xff] %vm4339, %v7066
      %7099 = vst.msk [vmem:[%s224 + $0x48] sm:$0xff] %vm4339, %v7067
      %7100 = vst.msk [vmem:[%s224 + $0x50] sm:$0xff] %vm4339, %v7068
      %7101 = vst.msk [vmem:[%s224 + $0x58] sm:$0xff] %vm4339, %v7069
      %7102 = vst.msk [vmem:[%s224 + $0x60] sm:$0xff] %vm4339, %v7070
      %7103 = vst.msk [vmem:[%s224 + $0x68] sm:$0xff] %vm4339, %v7071
      %7104 = vst.msk [vmem:[%s224 + $0x70] sm:$0xff] %vm4339, %v7072
      %7105 = vst.msk [vmem:[%s224 + $0x78] sm:$0xff] %vm4339, %v7073
      %7106 = vst.msk [vmem:[%s224 + $0x80] sm:$0xff] %vm4339, %v7074
      %7107 = vst.msk [vmem:[%s224 + $0x88] sm:$0xff] %vm4339, %v7075
      %7108 = vst.msk [vmem:[%s224 + $0x90] sm:$0xff] %vm4339, %v7076
      %7109 = vst.msk [vmem:[%s224 + $0x98] sm:$0xff] %vm4339, %v7077
      %7110 = vst.msk [vmem:[%s224 + $0xa0] sm:$0xff] %vm4339, %v7078
      %7111 = vst.msk [vmem:[%s224 + $0xa8] sm:$0xff] %vm4339, %v7079
      %7112 = vst.msk [vmem:[%s224 + $0xb0] sm:$0xff] %vm4339, %v7080
      %7113 = vst.msk [vmem:[%s224 + $0xb8] sm:$0xff] %vm4339, %v7081
      %7114 = vst.msk [vmem:[%s224 + $0xc0] sm:$0xff] %vm4339, %v7082
      %7115 = vst.msk [vmem:[%s224 + $0xc8] sm:$0xff] %vm4339, %v7083
      %7116 = vst.msk [vmem:[%s224 + $0xd0] sm:$0xff] %vm4339, %v7084
      %7117 = vst.msk [vmem:[%s224 + $0xd8] sm:$0xff] %vm4339, %v7085
      %7118 = vst.msk [vmem:[%s224 + $0xe0] sm:$0xff] %vm4339, %v7086
      %7119 = vst.msk [vmem:[%s224 + $0xe8] sm:$0xff] %vm4339, %v7087
      %7120 = vst.msk [vmem:[%s224 + $0xf0] sm:$0xff] %vm4339, %v7088
      %7121 = vst.msk [vmem:[%s224 + $0xf8] sm:$0xff] %vm4339, %v7089
      %p7122 = scmp.lt.s32.totalorder %s16, 1
      %s7123 = scalar_select %p7122, %s16, 1
      %s7124 = smul.addr %s7123, 32
      %s7125 = smul.addr %s7124, 8
      %s7126 = scalar_lea.vmem %s5, %s7125
      // Predicated region
      $region41: #{conv_block_forward.1} parent=39 // pred_check
        %p7127 = pneg %p144
      $region42: #{conv_block_forward.1} parent=39 // pred_check_branch
        %7129 = sbr.rel (%p7127) target = $region44
      $region43: #{conv_block_forward.1} parent=39 // pred_region
        _
      $region44: #{conv_block_forward.1} parent=39 // pred_fallthru
        _
    $region40: #{conv_block_forward.1} parent=5 // pred_fallthru
      _
    %p7130 = scmp.le.s32.totalorder 2, %s11
    // Predicated region
    $region45: #{conv_block_forward.1} parent=5 // pred_check
      %p7131 = pneg %p7130
    $region46: #{conv_block_forward.1} parent=5 // pred_check_branch
      %7133 = sbr.rel (%p7131) target = $region48
    $region47: #{conv_block_forward.1} parent=5 // pred_region
      %s7134 = ssub.s32 %s11, 2
      // Predicated region
      $region49: #{conv_block_forward.1} parent=47 // pred_check
        %p7135 = pneg %p150
      $region50: #{conv_block_forward.1} parent=47 // pred_check_branch
        %7137 = sbr.rel (%p7135) target = $region52
      $region51: #{conv_block_forward.1} parent=47 // pred_region
        %p7138 = scmp.lt.s32.totalorder %s17, 1
        %s7139 = scalar_select %p7138, %s17, 1
        %s7140 = smul.addr %s7139, 32
        %s7141 = smul.addr %s7140, 8
        %s7142 = scalar_lea.vmem %s5, %s7141
      $region52: #{conv_block_forward.1} parent=47 // pred_fallthru
        _
    $region48: #{conv_block_forward.1} parent=5 // pred_fallthru
      _
  $region6: #{conv_block_forward.1} parent=0 // loop_footer
    %s15 = sadd.s32 1, %s11
  $region7: #{conv_block_forward.1} parent=0 // loop_footer_branch
    %10 = sbr.rel target = $region3
  $region8: #{conv_block_forward.1} parent=0 // loop_exit
    _

</llo_original>
